<compile_context>
chip_gen: v7x
topology: tpu7x:2x2x1
jax: 0.10.0
libtpu: 0.0.40
codegen_flags: <defaults>
</compile_context>

<pallas_src>
import functools

import jax
import jax.numpy as jnp
import numpy as np
from jax import lax
from jax.experimental import pallas as pl
from jax.experimental.pallas import tpu as pltpu


# ----------------------------- weight-resident linear (qkv / proj) -----------------------------

def _linear_kernel(x_ref, w_ref, b_ref, o_ref):
    acc = jnp.dot(x_ref[...], w_ref[...], preferred_element_type=jnp.float32)
    o_ref[...] = (acc + b_ref[...].astype(jnp.float32)).astype(o_ref.dtype)


def linear(x2d, w, b, out_dtype=None, tm=512):
    """(M, K) @ (K, N) + (N,).  bf16 operands, f32 accumulation.

    Weight-resident: grid only over M (tk=K, tn=N), the weight's block index is
    constant so Pallas fetches it once and only activations stream.  Rows are
    independent, so a non-divisible M is zero-padded to the tile and sliced off.
    """
    M, K = x2d.shape
    _, N = w.shape
    out_dtype = out_dtype if out_dtype is not None else x2d.dtype
    tm = min(tm, M)
    Mp = -(-M // tm) * tm
    if Mp != M:
        x2d = jnp.pad(x2d, ((0, Mp - M), (0, 0)))
    out = pl.pallas_call(
        _linear_kernel,
        out_shape=jax.ShapeDtypeStruct((Mp, N), out_dtype),
        grid=(Mp // tm,),
        in_specs=[
            pl.BlockSpec((tm, K), lambda i: (i, 0)),
            pl.BlockSpec((K, N), lambda i: (0, 0)),   # constant block -> weight resident
            pl.BlockSpec((1, N), lambda i: (0, 0)),
        ],
        out_specs=pl.BlockSpec((tm, N), lambda i: (i, 0)),
        compiler_params=pltpu.CompilerParams(dimension_semantics=("parallel",)),
    )(x2d, w.astype(x2d.dtype), b.reshape(1, N))
    return out if Mp == M else out[:M]


# ----------------------------- flash attention kernel -----------------------------

def _attn_kernel(q_ref, k_ref, v_ref, rh_ref, rw_ref, o_ref,
                 m_sc, l_sc, acc_sc, relw_sc, *, BQH, BKH, W, scale):
    """One (batch, head, q-block, kv-block) step.

    q block = BQH full image rows (BQ = BQH*W queries), kv block = BKH full image
    rows (BK = BKH*W keys) -> the decomposed rel-pos bias becomes broadcast adds.
    """
    f32 = jnp.float32
    bf16 = jnp.bfloat16
    BQ = BQH * W
    BK = BKH * W
    hd = q_ref.shape[-1]
    ki = pl.program_id(3)

    q = q_ref[0, 0]                      # (BQ, hd) bf16
    k = k_ref[0, 0]                      # (BK, hd) bf16
    v = v_ref[0, 0]                      # (BK, hd) bf16

    @pl.when(ki == 0)
    def _init():
        m_sc[...] = jnp.full(m_sc.shape, -jnp.inf, f32)
        l_sc[...] = jnp.zeros(l_sc.shape, f32)
        acc_sc[...] = jnp.zeros(acc_sc.shape, f32)
        # rel_w[(qh,qw), kw] = sum_c q[(qh,qw),c] * Rw[qw, kw, c].
        # Every W-aligned key block spans kw = 0..W-1, so this is independent of
        # the kv block: compute once per q block and reuse across the kv axis.
        q3f = q.reshape(BQH, W, hd).astype(f32)                  # tile-aligned split
        rwf = rw_ref[...].astype(f32)                            # (W, W, hd)
        relw4 = q3f[:, :, None, :] * rwf[None, :, :, :]          # (BQH, W, W, hd)
        relw_sc[...] = jnp.sum(relw4, axis=-1).reshape(BQ, W)

    # rel_h for this (q block, kv block): batched over the BQH image rows.
    # rel_h[a, qw, kh] = sum_c q[(a,qw),c] * Rh[qh0+a, kh0+kh, c]   (unscaled q,
    # as in the PyTorch reference).  Tiny MXU work: BQ*BKH*hd MACs per step.
    q3 = q.reshape(BQH, W, hd)
    rel_h = lax.dot_general(q3, rh_ref[...], (((2,), (2,)), ((0,), (0,))),
                            preferred_element_type=f32)          # (BQH, W, BKH)
    relh2 = rel_h.reshape(BQ, BKH)                               # tile-aligned merge

    # scores: softmax scale folded into q (a (BQ,hd) multiply, not (BQ,BK)).
    q_scaled = (q.astype(f32) * scale).astype(bf16)
    s = lax.dot_general(q_scaled, k, (((1,), (1,)), ((), ())),
                        preferred_element_type=f32)              # (BQ, BK) f32

    # Decomposed rel-pos bias via broadcast adds: key column j = kh*W + kw, so
    # kh is constant per W-chunk (one relh column) and kw indexes the cached
    # rel_w tile.  No masks, no 0/1 expansion matmuls.
    relw = relw_sc[...]                                          # (BQ, W) f32
    bias = jnp.concatenate(
        [relh2[:, kh:kh + 1] + relw for kh in range(BKH)], axis=-1)  # (BQ, BK)
    s = s + bias

    # ---- online softmax over the kv-block grid axis ----
    m_prev = m_sc[...]
    m_new = jnp.maximum(m_prev, jnp.max(s, axis=-1, keepdims=True))
    alpha = jnp.exp(m_prev - m_new)
    p = jnp.exp(s - m_new)
    l_sc[...] = alpha * l_sc[...] + jnp.sum(p, axis=-1, keepdims=True)
    acc_sc[...] = alpha * acc_sc[...] + lax.dot_general(
        p.astype(bf16), v, (((1,), (0,)), ((), ())), preferred_element_type=f32)
    m_sc[...] = m_new

    @pl.when(ki == pl.num_programs(3) - 1)
    def _finalize():
        o_ref[0, 0] = (acc_sc[...] * pl.reciprocal(l_sc[...], approx=True)
                       ).astype(o_ref.dtype)


def _pick_rows(n_rows, w, target_tokens, rows_mult8=False):
    """Largest divisor d of n_rows with d*w <= target_tokens and d*w % 8 == 0
    (and d % 8 == 0 if rows_mult8, so the Rh block keeps (8,128)-legal dims).
    Falls back to the full extent (always legal: block == full array dims)."""
    best = None
    for d in range(1, n_rows + 1):
        if n_rows % d:
            continue
        if d * w > target_tokens:
            continue
        if (d * w) % 8:
            continue
        if rows_mult8 and (d % 8) and d != n_rows:
            continue
        best = d
    return best if best is not None else n_rows


def attention_core(q, k, v, rh, rw, H, W, *, q_block_tokens=512, k_block_tokens=512):
    """q, k, v: (B, num_heads, H*W, head_dim) bf16.  rh: (H, H, hd), rw: (W, W, hd)."""
    B, nh, HW, hd = q.shape
    scale = float(hd) ** -0.5

    BQH = _pick_rows(H, W, q_block_tokens)
    BKH = _pick_rows(H, W, k_block_tokens, rows_mult8=True)
    BQ, BK = BQH * W, BKH * W
    nQ, nK = H // BQH, H // BKH

    q_spec = pl.BlockSpec((1, 1, BQ, hd), lambda b, h, qi, ki: (b, h, qi, 0))
    kv_spec = pl.BlockSpec((1, 1, BK, hd), lambda b, h, qi, ki: (b, h, ki, 0))
    rh_spec = pl.BlockSpec((BQH, BKH, hd), lambda b, h, qi, ki: (qi, ki, 0))
    rw_spec = pl.BlockSpec((W, W, hd), lambda b, h, qi, ki: (0, 0, 0))

    kernel = functools.partial(_attn_kernel, BQH=BQH, BKH=BKH, W=W, scale=scale)

    return pl.pallas_call(
        kernel,
        out_shape=jax.ShapeDtypeStruct((B, nh, HW, hd), jnp.bfloat16),
        grid=(B, nh, nQ, nK),
        in_specs=[q_spec, kv_spec, kv_spec, rh_spec, rw_spec],
        out_specs=q_spec,
        scratch_shapes=[
            pltpu.VMEM((BQ, 1), jnp.float32),    # running max m
            pltpu.VMEM((BQ, 1), jnp.float32),    # running sum l
            pltpu.VMEM((BQ, hd), jnp.float32),   # output accumulator
            pltpu.VMEM((BQ, W), jnp.float32),    # per-q-block rel_w cache
        ],
        compiler_params=pltpu.CompilerParams(
            dimension_semantics=("parallel", "parallel", "parallel", "arbitrary")),
    )(q, k, v, rh, rw)


# ------------------------------- JAX glue ---------------------------------

def get_rel_pos_jax(q_size, k_size, rel_pos):
    max_rel_dist = int(2 * max(q_size, k_size) - 1)
    # TODO(synk): F.interpolate('linear') resize branch of get_rel_pos not implemented;
    # shapes are chosen so rel_pos already has length 2*max(q,k)-1 (the default case).
    assert rel_pos.shape[0] == max_rel_dist
    q_coords = jnp.arange(q_size)[:, None] * max(k_size / q_size, 1.0)
    k_coords = jnp.arange(k_size)[None, :] * max(q_size / k_size, 1.0)
    rel = (q_coords - k_coords + (k_size - 1) * max(q_size / k_size, 1.0)).astype(jnp.int32)
    return rel_pos[rel]  # (q_size, k_size, head_dim)


def attention_forward(x, params, num_heads, *, q_block_tokens=512, k_block_tokens=512):
    B, H, W, dim = x.shape
    hd = dim // num_heads
    HW = H * W
    bf16 = jnp.bfloat16

    x2d = x.reshape(B * HW, dim).astype(bf16)

    # qkv projection (weight-resident GEMM).
    qkv = linear(x2d, params["w_qkv"], params["b_qkv"], out_dtype=bf16)

    # One packed relayout (B,HW,3,nh,hd)->(3,B,nh,HW,hd) instead of three strided
    # last-dim slices of the fused qkv (which XLA would materialize separately).
    qkv5 = jnp.transpose(qkv.reshape(B, HW, 3, num_heads, hd), (2, 0, 3, 1, 4))
    q, k, v = qkv5[0], qkv5[1], qkv5[2]                     # (B, nh, HW, hd) bf16

    rh = get_rel_pos_jax(H, H, params["rel_pos_h"]).astype(bf16)   # (H, H, hd)
    rw = get_rel_pos_jax(W, W, params["rel_pos_w"]).astype(bf16)   # (W, W, hd)

    out = attention_core(q, k, v, rh, rw, H, W,
                         q_block_tokens=q_block_tokens,
                         k_block_tokens=k_block_tokens)     # (B, nh, HW, hd) bf16

    # (B, nh, HW, hd) -> (B, HW, nh*hd) for the output projection (matches the
    # PyTorch permute(0,2,3,1,4).reshape head-concatenated feature layout).
    out2d = jnp.transpose(out, (0, 2, 1, 3)).reshape(B * HW, dim)
    y = linear(out2d, params["w_proj"], params["b_proj"], out_dtype=x.dtype)
    return y.reshape(B, H, W, dim)


def attention_reference(x, params, num_heads):
    """Pure-JAX f32 mirror of the PyTorch forward (correctness check)."""
    B, H, W, dim = x.shape
    hd = dim // num_heads
    scale = float(hd) ** -0.5

    qkv = x.reshape(B, H * W, dim) @ params["w_qkv"] + params["b_qkv"]
    qkv = qkv.reshape(B, H * W, 3, num_heads, hd)
    qkv = jnp.transpose(qkv, (2, 0, 3, 1, 4)).reshape(3, B * num_heads, H * W, hd)
    q, k, v = qkv[0], qkv[1], qkv[2]

    attn = (q * scale) @ jnp.swapaxes(k, -2, -1)

    Rh = get_rel_pos_jax(H, H, params["rel_pos_h"])
    Rw = get_rel_pos_jax(W, W, params["rel_pos_w"])
    r_q = q.reshape(-1, H, W, hd)
    rel_h = jnp.einsum("bhwc,hkc->bhwk", r_q, Rh)
    rel_w = jnp.einsum("bhwc,wkc->bhwk", r_q, Rw)
    attn = (attn.reshape(-1, H, W, H, W)
            + rel_h[:, :, :, :, None]
            + rel_w[:, :, :, None, :]).reshape(-1, H * W, H * W)

    attn = jax.nn.softmax(attn, axis=-1)
    out = attn @ v
    out = out.reshape(B, num_heads, H, W, hd)
    out = jnp.transpose(out, (0, 2, 3, 1, 4)).reshape(B, H, W, dim)
    return (out.reshape(B * H * W, dim) @ params["w_proj"] + params["b_proj"]).reshape(B, H, W, dim)


# --------------------------------- main ------------------------------------

if __name__ == "__main__":
    B, H, W = 2, 16, 16
    dim, num_heads = 32, 4
    hd = dim // num_heads

    key = jax.random.PRNGKey(0)
    ks = jax.random.split(key, 7)
    x = jax.random.normal(ks[0], (B, H, W, dim), jnp.float32)

    # Deterministic synthetic parameters (nn.Linear: dim -> 3*dim and dim -> dim).
    # rel_pos_zero_init=True would make the tables zero; small random values here
    # so the rel-pos path is actually exercised.
    params = {
        "w_qkv": jax.random.normal(ks[1], (dim, 3 * dim), jnp.float32) * 0.1,
        "b_qkv": jax.random.normal(ks[2], (3 * dim,), jnp.float32) * 0.1,
        "w_proj": jax.random.normal(ks[3], (dim, dim), jnp.float32) * 0.1,
        "b_proj": jax.random.normal(ks[4], (dim,), jnp.float32) * 0.1,
        "rel_pos_h": jax.random.normal(ks[5], (2 * H - 1, hd), jnp.float32) * 0.1,
        "rel_pos_w": jax.random.normal(ks[6], (2 * W - 1, hd), jnp.float32) * 0.1,
    }

    # Small block-token targets so the test shape exercises multiple q blocks and
    # multiple kv blocks (nQ = nK = 2) i.e. the online-softmax accumulation path.
    fwd = jax.jit(functools.partial(attention_forward, num_heads=num_heads,
                                    q_block_tokens=128, k_block_tokens=128))

    y = jax.block_until_ready(fwd(x, params))
    y_ref = jax.block_until_ready(attention_reference(x, params, num_heads))
    np.testing.assert_allclose(np.asarray(y), np.asarray(y_ref), atol=5e-2, rtol=5e-2)

    print("KERNEL_OK")
</pallas_src>

<mosaic_0001>
module attributes {stable_mosaic.version = 11 : i64} {
  func.func @_linear_kernel(%arg0: i32, %arg1: memref<512x32xbf16, #tpu.memory_space<vmem>>, %arg2: memref<32x96xbf16, #tpu.memory_space<vmem>>, %arg3: memref<1x96xf32, #tpu.memory_space<vmem>>, %arg4: memref<512x96xbf16, #tpu.memory_space<vmem>>) attributes {dimension_semantics = [#tpu.dimension_semantics<parallel>], iteration_bounds = array<i64: 1>, scalar_prefetch = 0 : i64, scratch_operands = 0 : i64, tpu.core_type = #tpu.core_type<tc>, window_params = [{transform_indices = @transform_0, window_bounds = array<i64: 512, 32>}, {pipeline_mode = #tpu.pipeline_mode<synchronous>, transform_indices = @transform_1, window_bounds = array<i64: 32, 96>}, {pipeline_mode = #tpu.pipeline_mode<synchronous>, transform_indices = @transform_2, window_bounds = array<i64: 1, 96>}, {transform_indices = @transform_3, window_bounds = array<i64: 512, 96>}]} {
    %c0 = arith.constant 0 : index
    %c0_0 = arith.constant 0 : index
    %0 = vector.load %arg1[%c0, %c0_0] : memref<512x32xbf16, #tpu.memory_space<vmem>>, vector<512x32xbf16>
    %c0_1 = arith.constant 0 : index
    %c0_2 = arith.constant 0 : index
    %1 = vector.load %arg2[%c0_1, %c0_2] : memref<32x96xbf16, #tpu.memory_space<vmem>>, vector<32x96xbf16>
    %cst = arith.constant dense<0.000000e+00> : vector<512x96xf32>
    %2 = tpu.matmul %0, %1, %cst {dimension_numbers = #tpu.dot_dimension_numbers<[1], [0], [0], [1], [0, 0, 1, 1], [], []>} : vector<512x32xbf16>, vector<32x96xbf16>, vector<512x96xf32> -> vector<512x96xf32>
    %c0_3 = arith.constant 0 : index
    %c0_4 = arith.constant 0 : index
    %3 = vector.load %arg3[%c0_3, %c0_4] : memref<1x96xf32, #tpu.memory_space<vmem>>, vector<1x96xf32>
    %4 = vector.broadcast %3 : vector<1x96xf32> to vector<512x96xf32>
    %5 = arith.addf %2, %4 : vector<512x96xf32>
    %6 = arith.truncf %5 : vector<512x96xf32> to vector<512x96xbf16>
    %c0_5 = arith.constant 0 : index
    %c0_6 = arith.constant 0 : index
    %7 = vector.load %arg4[%c0_5, %c0_6] : memref<512x96xbf16, #tpu.memory_space<vmem>>, vector<512x96xbf16>
    tpu.vector_store %arg4[%c0_5, %c0_6], %6 {strides = array<i32>} : memref<512x96xbf16, #tpu.memory_space<vmem>>, vector<512x96xbf16>,
    return
  }
  func.func @transform_0(%arg0: i32) -> (i32, i32) {
    %c0_i32 = arith.constant 0 : i32
    %c0_i32_0 = arith.constant 0 : i32
    return %arg0, %c0_i32 : i32, i32
  }
  func.func @transform_1(%arg0: i32) -> (i32, i32) {
    %c0_i32 = arith.constant 0 : i32
    %c0_i32_0 = arith.constant 0 : i32
    %c0_i32_1 = arith.constant 0 : i32
    return %c0_i32, %c0_i32_0 : i32, i32
  }
  func.func @transform_2(%arg0: i32) -> (i32, i32) {
    %c0_i32 = arith.constant 0 : i32
    %c0_i32_0 = arith.constant 0 : i32
    %c0_i32_1 = arith.constant 0 : i32
    return %c0_i32, %c0_i32_0 : i32, i32
  }
  func.func @transform_3(%arg0: i32) -> (i32, i32) {
    %c0_i32 = arith.constant 0 : i32
    %c0_i32_0 = arith.constant 0 : i32
    return %arg0, %c0_i32 : i32, i32
  }
}

module attributes {stable_mosaic.version = 11 : i64} {
  func.func @_attn_kernel(%arg0: i32, %arg1: i32, %arg2: i32, %arg3: i32, %arg4: memref<1x1x128x8xbf16, #tpu.memory_space<vmem>>, %arg5: memref<1x1x128x8xbf16, #tpu.memory_space<vmem>>, %arg6: memref<1x1x128x8xbf16, #tpu.memory_space<vmem>>, %arg7: memref<8x8x8xbf16, #tpu.memory_space<vmem>>, %arg8: memref<16x16x8xbf16, #tpu.memory_space<vmem>>, %arg9: memref<1x1x128x8xbf16, #tpu.memory_space<vmem>>, %arg10: memref<128x1xf32, #tpu.memory_space<vmem>>, %arg11: memref<128x1xf32, #tpu.memory_space<vmem>>, %arg12: memref<128x8xf32, #tpu.memory_space<vmem>>, %arg13: memref<128x16xf32, #tpu.memory_space<vmem>>) attributes {dimension_semantics = [#tpu.dimension_semantics<parallel>, #tpu.dimension_semantics<parallel>, #tpu.dimension_semantics<parallel>, #tpu.dimension_semantics<arbitrary>], iteration_bounds = array<i64: 2, 4, 2, 2>, scalar_prefetch = 0 : i64, scratch_operands = 4 : i64, tpu.core_type = #tpu.core_type<tc>, window_params = [{transform_indices = @transform_0, window_bounds = array<i64: 1, 1, 128, 8>}, {transform_indices = @transform_1, window_bounds = array<i64: 1, 1, 128, 8>}, {transform_indices = @transform_2, window_bounds = array<i64: 1, 1, 128, 8>}, {transform_indices = @transform_3, window_bounds = array<i64: 8, 8, 8>}, {pipeline_mode = #tpu.pipeline_mode<synchronous>, transform_indices = @transform_4, window_bounds = array<i64: 16, 16, 8>}, {transform_indices = @transform_5, window_bounds = array<i64: 1, 1, 128, 8>}]} {
    %c0 = arith.constant 0 : index
    %c0_0 = arith.constant 0 : index
    %c0_1 = arith.constant 0 : index
    %c0_2 = arith.constant 0 : index
    %0 = vector.load %arg4[%c0, %c0_0, %c0_1, %c0_2] : memref<1x1x128x8xbf16, #tpu.memory_space<vmem>>, vector<1x1x128x8xbf16>
    %1 = vector.shape_cast %0 : vector<1x1x128x8xbf16> to vector<128x8xbf16>
    %c0_3 = arith.constant 0 : index
    %c0_4 = arith.constant 0 : index
    %c0_5 = arith.constant 0 : index
    %c0_6 = arith.constant 0 : index
    %2 = vector.load %arg5[%c0_3, %c0_4, %c0_5, %c0_6] : memref<1x1x128x8xbf16, #tpu.memory_space<vmem>>, vector<1x1x128x8xbf16>
    %3 = vector.shape_cast %2 : vector<1x1x128x8xbf16> to vector<128x8xbf16>
    %c0_7 = arith.constant 0 : index
    %c0_8 = arith.constant 0 : index
    %c0_9 = arith.constant 0 : index
    %c0_10 = arith.constant 0 : index
    %4 = vector.load %arg6[%c0_7, %c0_8, %c0_9, %c0_10] : memref<1x1x128x8xbf16, #tpu.memory_space<vmem>>, vector<1x1x128x8xbf16>
    %5 = vector.shape_cast %4 : vector<1x1x128x8xbf16> to vector<128x8xbf16>
    %c0_i32 = arith.constant 0 : i32
    %6 = arith.cmpi eq, %arg3, %c0_i32 : i32
    %7 = arith.extui %6 : i1 to i32
    %c0_i32_11 = arith.constant 0 : i32
    %8 = arith.cmpi ne, %7, %c0_i32_11 : i32
    scf.if %8 {
      %cst_35 = arith.constant 0xFF800000 : f32
      %71 = vector.broadcast %cst_35 : f32 to vector<128x1xf32>
      %c0_36 = arith.constant 0 : index
      %c0_37 = arith.constant 0 : index
      %72 = vector.load %arg10[%c0_36, %c0_37] : memref<128x1xf32, #tpu.memory_space<vmem>>, vector<128x1xf32>
      tpu.vector_store %arg10[%c0_36, %c0_37], %71 {strides = array<i32>} : memref<128x1xf32, #tpu.memory_space<vmem>>, vector<128x1xf32>,
      %cst_38 = arith.constant 0.000000e+00 : f32
      %73 = vector.broadcast %cst_38 : f32 to vector<128x1xf32>
      %c0_39 = arith.constant 0 : index
      %c0_40 = arith.constant 0 : index
      %74 = vector.load %arg11[%c0_39, %c0_40] : memref<128x1xf32, #tpu.memory_space<vmem>>, vector<128x1xf32>
      tpu.vector_store %arg11[%c0_39, %c0_40], %73 {strides = array<i32>} : memref<128x1xf32, #tpu.memory_space<vmem>>, vector<128x1xf32>,
      %cst_41 = arith.constant 0.000000e+00 : f32
      %75 = vector.broadcast %cst_41 : f32 to vector<128x8xf32>
      %c0_42 = arith.constant 0 : index
      %c0_43 = arith.constant 0 : index
      %76 = vector.load %arg12[%c0_42, %c0_43] : memref<128x8xf32, #tpu.memory_space<vmem>>, vector<128x8xf32>
      tpu.vector_store %arg12[%c0_42, %c0_43], %75 {strides = array<i32>} : memref<128x8xf32, #tpu.memory_space<vmem>>, vector<128x8xf32>,
      %77 = vector.shape_cast %1 : vector<128x8xbf16> to vector<8x16x8xbf16>
      %78 = arith.extf %77 : vector<8x16x8xbf16> to vector<8x16x8xf32>
      %c0_44 = arith.constant 0 : index
      %c0_45 = arith.constant 0 : index
      %c0_46 = arith.constant 0 : index
      %79 = vector.load %arg8[%c0_44, %c0_45, %c0_46] : memref<16x16x8xbf16, #tpu.memory_space<vmem>>, vector<16x16x8xbf16>
      %80 = arith.extf %79 : vector<16x16x8xbf16> to vector<16x16x8xf32>
      %81 = vector.shape_cast %78 : vector<8x16x8xf32> to vector<8x16x1x8xf32>
      %82 = vector.shape_cast %80 : vector<16x16x8xf32> to vector<1x16x16x8xf32>
      %83 = vector.broadcast %81 : vector<8x16x1x8xf32> to vector<8x16x16x8xf32>
      %84 = vector.broadcast %82 : vector<1x16x16x8xf32> to vector<8x16x16x8xf32>
      %85 = arith.mulf %83, %84 : vector<8x16x16x8xf32>
      %cst_47 = arith.constant dense<0.000000e+00> : vector<8x16x16xf32>
      %86 = vector.multi_reduction <add>, %85, %cst_47 [3] : vector<8x16x16x8xf32> to vector<8x16x16xf32>
      %87 = vector.shape_cast %86 : vector<8x16x16xf32> to vector<128x16xf32>
      %c0_48 = arith.constant 0 : index
      %c0_49 = arith.constant 0 : index
      %88 = vector.load %arg13[%c0_48, %c0_49] : memref<128x16xf32, #tpu.memory_space<vmem>>, vector<128x16xf32>
      tpu.vector_store %arg13[%c0_48, %c0_49], %87 {strides = array<i32>} : memref<128x16xf32, #tpu.memory_space<vmem>>, vector<128x16xf32>,
    } else {
    }
    %9 = vector.shape_cast %1 : vector<128x8xbf16> to vector<8x16x8xbf16>
    %c0_12 = arith.constant 0 : index
    %c0_13 = arith.constant 0 : index
    %c0_14 = arith.constant 0 : index
    %10 = vector.load %arg7[%c0_12, %c0_13, %c0_14] : memref<8x8x8xbf16, #tpu.memory_space<vmem>>, vector<8x8x8xbf16>
    %cst = arith.constant dense<0.000000e+00> : vector<8x16x8xf32>
    %11 = tpu.matmul %9, %10, %cst {dimension_numbers = #tpu.dot_dimension_numbers<[2], [2], [1], [1], [0, 0, 0, 1, 1, 1], [0], [0]>} : vector<8x16x8xbf16>, vector<8x8x8xbf16>, vector<8x16x8xf32> -> vector<8x16x8xf32>
    %12 = vector.shape_cast %11 : vector<8x16x8xf32> to vector<128x8xf32>
    %13 = arith.extf %1 : vector<128x8xbf16> to vector<128x8xf32>
    %cst_15 = arith.constant 0.353553385 : f32
    %14 = vector.broadcast %cst_15 : f32 to vector<128x8xf32>
    %15 = arith.mulf %13, %14 : vector<128x8xf32>
    %16 = arith.truncf %15 : vector<128x8xf32> to vector<128x8xbf16>
    %cst_16 = arith.constant dense<0.000000e+00> : vector<128x128xf32>
    %17 = tpu.matmul %16, %3, %cst_16 {dimension_numbers = #tpu.dot_dimension_numbers<[1], [1], [0], [0], [0, 0, 1, 0], [], []>} : vector<128x8xbf16>, vector<128x8xbf16>, vector<128x128xf32> -> vector<128x128xf32>
    %c0_17 = arith.constant 0 : index
    %c0_18 = arith.constant 0 : index
    %18 = vector.load %arg13[%c0_17, %c0_18] : memref<128x16xf32, #tpu.memory_space<vmem>>, vector<128x16xf32>
    %19 = vector.extract_strided_slice %12 {offsets = [0, 0], sizes = [128, 1], strides = [1, 1]} : vector<128x8xf32> to vector<128x1xf32>
    %20 = vector.broadcast %19 : vector<128x1xf32> to vector<128x16xf32>
    %21 = arith.addf %20, %18 : vector<128x16xf32>
    %22 = vector.extract_strided_slice %12 {offsets = [0, 1], sizes = [128, 1], strides = [1, 1]} : vector<128x8xf32> to vector<128x1xf32>
    %23 = vector.broadcast %22 : vector<128x1xf32> to vector<128x16xf32>
    %24 = arith.addf %23, %18 : vector<128x16xf32>
    %25 = vector.extract_strided_slice %12 {offsets = [0, 2], sizes = [128, 1], strides = [1, 1]} : vector<128x8xf32> to vector<128x1xf32>
    %26 = vector.broadcast %25 : vector<128x1xf32> to vector<128x16xf32>
    %27 = arith.addf %26, %18 : vector<128x16xf32>
    %28 = vector.extract_strided_slice %12 {offsets = [0, 3], sizes = [128, 1], strides = [1, 1]} : vector<128x8xf32> to vector<128x1xf32>
    %29 = vector.broadcast %28 : vector<128x1xf32> to vector<128x16xf32>
    %30 = arith.addf %29, %18 : vector<128x16xf32>
    %31 = vector.extract_strided_slice %12 {offsets = [0, 4], sizes = [128, 1], strides = [1, 1]} : vector<128x8xf32> to vector<128x1xf32>
    %32 = vector.broadcast %31 : vector<128x1xf32> to vector<128x16xf32>
    %33 = arith.addf %32, %18 : vector<128x16xf32>
    %34 = vector.extract_strided_slice %12 {offsets = [0, 5], sizes = [128, 1], strides = [1, 1]} : vector<128x8xf32> to vector<128x1xf32>
    %35 = vector.broadcast %34 : vector<128x1xf32> to vector<128x16xf32>
    %36 = arith.addf %35, %18 : vector<128x16xf32>
    %37 = vector.extract_strided_slice %12 {offsets = [0, 6], sizes = [128, 1], strides = [1, 1]} : vector<128x8xf32> to vector<128x1xf32>
    %38 = vector.broadcast %37 : vector<128x1xf32> to vector<128x16xf32>
    %39 = arith.addf %38, %18 : vector<128x16xf32>
    %40 = vector.extract_strided_slice %12 {offsets = [0, 7], sizes = [128, 1], strides = [1, 1]} : vector<128x8xf32> to vector<128x1xf32>
    %41 = vector.broadcast %40 : vector<128x1xf32> to vector<128x16xf32>
    %42 = arith.addf %41, %18 : vector<128x16xf32>
    %43 = tpu.concatenate %21, %24, %27, %30, %33, %36, %39, %42 in 1 : vector<128x16xf32>, vector<128x16xf32>, vector<128x16xf32>, vector<128x16xf32>, vector<128x16xf32>, vector<128x16xf32>, vector<128x16xf32>, vector<128x16xf32> -> vector<128x128xf32>
    %44 = arith.addf %17, %43 : vector<128x128xf32>
    %c0_19 = arith.constant 0 : index
    %c0_20 = arith.constant 0 : index
    %45 = vector.load %arg10[%c0_19, %c0_20] : memref<128x1xf32, #tpu.memory_space<vmem>>, vector<128x1xf32>
    %cst_21 = arith.constant dense<0xFF800000> : vector<128xf32>
    %46 = vector.multi_reduction <maximumf>, %44, %cst_21 [1] : vector<128x128xf32> to vector<128xf32>
    %47 = vector.shape_cast %46 : vector<128xf32> to vector<128x1xf32>
    %48 = arith.maximumf %45, %47 : vector<128x1xf32>
    %49 = arith.subf %45, %48 : vector<128x1xf32>
    %50 = math.exp %49 : vector<128x1xf32>
    %51 = vector.broadcast %48 : vector<128x1xf32> to vector<128x128xf32>
    %52 = arith.subf %44, %51 : vector<128x128xf32>
    %53 = math.exp %52 : vector<128x128xf32>
    %c0_22 = arith.constant 0 : index
    %c0_23 = arith.constant 0 : index
    %54 = vector.load %arg11[%c0_22, %c0_23] : memref<128x1xf32, #tpu.memory_space<vmem>>, vector<128x1xf32>
    %55 = arith.mulf %50, %54 : vector<128x1xf32>
    %cst_24 = arith.constant dense<0.000000e+00> : vector<128xf32>
    %56 = vector.multi_reduction <add>, %53, %cst_24 [1] : vector<128x128xf32> to vector<128xf32>
    %57 = vector.shape_cast %56 : vector<128xf32> to vector<128x1xf32>
    %58 = arith.addf %55, %57 : vector<128x1xf32>
    %c0_25 = arith.constant 0 : index
    %c0_26 = arith.constant 0 : index
    %59 = vector.load %arg11[%c0_25, %c0_26] : memref<128x1xf32, #tpu.memory_space<vmem>>, vector<128x1xf32>
    tpu.vector_store %arg11[%c0_25, %c0_26], %58 {strides = array<i32>} : memref<128x1xf32, #tpu.memory_space<vmem>>, vector<128x1xf32>,
    %c0_27 = arith.constant 0 : index
    %c0_28 = arith.constant 0 : index
    %60 = vector.load %arg12[%c0_27, %c0_28] : memref<128x8xf32, #tpu.memory_space<vmem>>, vector<128x8xf32>
    %61 = vector.broadcast %50 : vector<128x1xf32> to vector<128x8xf32>
    %62 = arith.mulf %61, %60 : vector<128x8xf32>
    %63 = arith.truncf %53 : vector<128x128xf32> to vector<128x128xbf16>
    %cst_29 = arith.constant dense<0.000000e+00> : vector<128x8xf32>
    %64 = tpu.matmul %63, %5, %cst_29 {dimension_numbers = #tpu.dot_dimension_numbers<[1], [0], [0], [1], [0, 0, 1, 1], [], []>} : vector<128x128xbf16>, vector<128x8xbf16>, vector<128x8xf32> -> vector<128x8xf32>
    %65 = arith.addf %62, %64 : vector<128x8xf32>
    %c0_30 = arith.constant 0 : index
    %c0_31 = arith.constant 0 : index
    %66 = vector.load %arg12[%c0_30, %c0_31] : memref<128x8xf32, #tpu.memory_space<vmem>>, vector<128x8xf32>
    tpu.vector_store %arg12[%c0_30, %c0_31], %65 {strides = array<i32>} : memref<128x8xf32, #tpu.memory_space<vmem>>, vector<128x8xf32>,
    %c0_32 = arith.constant 0 : index
    %c0_33 = arith.constant 0 : index
    %67 = vector.load %arg10[%c0_32, %c0_33] : memref<128x1xf32, #tpu.memory_space<vmem>>, vector<128x1xf32>
    tpu.vector_store %arg10[%c0_32, %c0_33], %48 {strides = array<i32>} : memref<128x1xf32, #tpu.memory_space<vmem>>, vector<128x1xf32>,
    %c1_i32 = arith.constant 1 : i32
    %68 = arith.cmpi eq, %arg3, %c1_i32 : i32
    %69 = arith.extui %68 : i1 to i32
    %c0_i32_34 = arith.constant 0 : i32
    %70 = arith.cmpi ne, %69, %c0_i32_34 : i32
    scf.if %70 {
      %c0_35 = arith.constant 0 : index
      %c0_36 = arith.constant 0 : index
      %71 = vector.load %arg12[%c0_35, %c0_36] : memref<128x8xf32, #tpu.memory_space<vmem>>, vector<128x8xf32>
      %c0_37 = arith.constant 0 : index
      %c0_38 = arith.constant 0 : index
      %72 = vector.load %arg11[%c0_37, %c0_38] : memref<128x1xf32, #tpu.memory_space<vmem>>, vector<128x1xf32>
      %73 = tpu.reciprocal %72 {approx = true} : vector<128x1xf32> -> vector<128x1xf32>
      %74 = vector.broadcast %73 : vector<128x1xf32> to vector<128x8xf32>
      %75 = arith.mulf %71, %74 : vector<128x8xf32>
      %76 = arith.truncf %75 : vector<128x8xf32> to vector<128x8xbf16>
      %c0_39 = arith.constant 0 : index
      %c0_40 = arith.constant 0 : index
      %c0_41 = arith.constant 0 : index
      %c0_42 = arith.constant 0 : index
      %77 = vector.load %arg9[%c0_39, %c0_40, %c0_41, %c0_42] : memref<1x1x128x8xbf16, #tpu.memory_space<vmem>>, vector<1x1x128x8xbf16>
      %78 = vector.shape_cast %77 : vector<1x1x128x8xbf16> to vector<128x8xbf16>
      %79 = vector.shape_cast %76 : vector<128x8xbf16> to vector<1x1x128x8xbf16>
      tpu.vector_store %arg9[%c0_39, %c0_40, %c0_41, %c0_42], %79 {strides = array<i32>} : memref<1x1x128x8xbf16, #tpu.memory_space<vmem>>, vector<1x1x128x8xbf16>,
    } else {
    }
    return
  }
  func.func @transform_0(%arg0: i32, %arg1: i32, %arg2: i32, %arg3: i32) -> (i32, i32, i32, i32) {
    %c0_i32 = arith.constant 0 : i32
    %c0_i32_0 = arith.constant 0 : i32
    return %arg0, %arg1, %arg2, %c0_i32 : i32, i32, i32, i32
  }
  func.func @transform_1(%arg0: i32, %arg1: i32, %arg2: i32, %arg3: i32) -> (i32, i32, i32, i32) {
    %c0_i32 = arith.constant 0 : i32
    %c0_i32_0 = arith.constant 0 : i32
    return %arg0, %arg1, %arg3, %c0_i32 : i32, i32, i32, i32
  }
  func.func @transform_2(%arg0: i32, %arg1: i32, %arg2: i32, %arg3: i32) -> (i32, i32, i32, i32) {
    %c0_i32 = arith.constant 0 : i32
    %c0_i32_0 = arith.constant 0 : i32
    return %arg0, %arg1, %arg3, %c0_i32 : i32, i32, i32, i32
  }
  func.func @transform_3(%arg0: i32, %arg1: i32, %arg2: i32, %arg3: i32) -> (i32, i32, i32) {
    %c0_i32 = arith.constant 0 : i32
    %c0_i32_0 = arith.constant 0 : i32
    return %arg2, %arg3, %c0_i32 : i32, i32, i32
  }
  func.func @transform_4(%arg0: i32, %arg1: i32, %arg2: i32, %arg3: i32) -> (i32, i32, i32) {
    %c0_i32 = arith.constant 0 : i32
    %c0_i32_0 = arith.constant 0 : i32
    %c0_i32_1 = arith.constant 0 : i32
    %c0_i32_2 = arith.constant 0 : i32
    return %c0_i32, %c0_i32_0, %c0_i32_1 : i32, i32, i32
  }
  func.func @transform_5(%arg0: i32, %arg1: i32, %arg2: i32, %arg3: i32) -> (i32, i32, i32, i32) {
    %c0_i32 = arith.constant 0 : i32
    %c0_i32_0 = arith.constant 0 : i32
    return %arg0, %arg1, %arg2, %c0_i32 : i32, i32, i32, i32
  }
}

module attributes {stable_mosaic.version = 11 : i64} {
  func.func @_linear_kernel(%arg0: i32, %arg1: memref<512x32xbf16, #tpu.memory_space<vmem>>, %arg2: memref<32x32xbf16, #tpu.memory_space<vmem>>, %arg3: memref<1x32xf32, #tpu.memory_space<vmem>>, %arg4: memref<512x32xf32, #tpu.memory_space<vmem>>) attributes {dimension_semantics = [#tpu.dimension_semantics<parallel>], iteration_bounds = array<i64: 1>, scalar_prefetch = 0 : i64, scratch_operands = 0 : i64, tpu.core_type = #tpu.core_type<tc>, window_params = [{transform_indices = @transform_0, window_bounds = array<i64: 512, 32>}, {pipeline_mode = #tpu.pipeline_mode<synchronous>, transform_indices = @transform_1, window_bounds = array<i64: 32, 32>}, {pipeline_mode = #tpu.pipeline_mode<synchronous>, transform_indices = @transform_2, window_bounds = array<i64: 1, 32>}, {transform_indices = @transform_3, window_bounds = array<i64: 512, 32>}]} {
    %c0 = arith.constant 0 : index
    %c0_0 = arith.constant 0 : index
    %0 = vector.load %arg1[%c0, %c0_0] : memref<512x32xbf16, #tpu.memory_space<vmem>>, vector<512x32xbf16>
    %c0_1 = arith.constant 0 : index
    %c0_2 = arith.constant 0 : index
    %1 = vector.load %arg2[%c0_1, %c0_2] : memref<32x32xbf16, #tpu.memory_space<vmem>>, vector<32x32xbf16>
    %cst = arith.constant dense<0.000000e+00> : vector<512x32xf32>
    %2 = tpu.matmul %0, %1, %cst {dimension_numbers = #tpu.dot_dimension_numbers<[1], [0], [0], [1], [0, 0, 1, 1], [], []>} : vector<512x32xbf16>, vector<32x32xbf16>, vector<512x32xf32> -> vector<512x32xf32>
    %c0_3 = arith.constant 0 : index
    %c0_4 = arith.constant 0 : index
    %3 = vector.load %arg3[%c0_3, %c0_4] : memref<1x32xf32, #tpu.memory_space<vmem>>, vector<1x32xf32>
    %4 = vector.broadcast %3 : vector<1x32xf32> to vector<512x32xf32>
    %5 = arith.addf %2, %4 : vector<512x32xf32>
    %c0_5 = arith.constant 0 : index
    %c0_6 = arith.constant 0 : index
    %6 = vector.load %arg4[%c0_5, %c0_6] : memref<512x32xf32, #tpu.memory_space<vmem>>, vector<512x32xf32>
    tpu.vector_store %arg4[%c0_5, %c0_6], %5 {strides = array<i32>} : memref<512x32xf32, #tpu.memory_space<vmem>>, vector<512x32xf32>,
    return
  }
  func.func @transform_0(%arg0: i32) -> (i32, i32) {
    %c0_i32 = arith.constant 0 : i32
    %c0_i32_0 = arith.constant 0 : i32
    return %arg0, %c0_i32 : i32, i32
  }
  func.func @transform_1(%arg0: i32) -> (i32, i32) {
    %c0_i32 = arith.constant 0 : i32
    %c0_i32_0 = arith.constant 0 : i32
    %c0_i32_1 = arith.constant 0 : i32
    return %c0_i32, %c0_i32_0 : i32, i32
  }
  func.func @transform_2(%arg0: i32) -> (i32, i32) {
    %c0_i32 = arith.constant 0 : i32
    %c0_i32_0 = arith.constant 0 : i32
    %c0_i32_1 = arith.constant 0 : i32
    return %c0_i32, %c0_i32_0 : i32, i32
  }
  func.func @transform_3(%arg0: i32) -> (i32, i32) {
    %c0_i32 = arith.constant 0 : i32
    %c0_i32_0 = arith.constant 0 : i32
    return %arg0, %c0_i32 : i32, i32
  }
}

</mosaic_0001>

<llo_original>
// kernel: attention_forward.3
$region0: #{attention_forward.3}
  #allocation0 [shape = 'u32[]', space=smem, size = 0x4, offset = 0x4, fixed_abs, tag = 'smem constant byte address 0x4 - core index']
  #allocation1 [shape = 'u32[144,128]{1,0:T(1,128)}', space=vmem, size = 0x12000, scoped, tag = 'internal scratch']
  %s0 = inlined_call_operand.vmem [shape: bf16[512,32], index: 0, kind: input, shape index: {}]
  %s1 = inlined_call_operand.vmem [shape: bf16[32,96], index: 1, kind: input, shape index: {}]
  %s2 = inlined_call_operand.hbm [shape: f32[1,96], index: 2, kind: input, shape index: {}]
  %s3 = inlined_call_operand.vmem [shape: bf16[512,96], index: 3, kind: output, shape index: {}]
  %s4 = sld [smem:[#allocation0]]
  $region26: #{attention_forward.3} parent=0
    _
  %s6 = ssub.s32 1, %s4
  %s7 = scalar_select 0, %s6, %s4
  $region1: #{attention_forward.3} parent=0
    #allocation2 [shape = 'u8[512]{0}', space=vmem, size = 0x400, scoped, tag = 'input window, operand 2, single buffered']
    #allocation3 [shape = 's32[1]{0}', space=sflag, size = 0x4, scoped, tag = 'scoped memory for attention_forward.3']
    %8 = vsyncpa [#allocation3], 0
    // Predicated region
    $region2: #{attention_forward.3} parent=1 // pred_check
      _
    $region3: #{attention_forward.3} parent=1 // pred_check_branch
      %10 = sbr.rel (0) target = $region5
    $region4: #{attention_forward.3} parent=1 // pred_region
      _
    $region5: #{attention_forward.3} parent=1 // pred_fallthru
      _
    // Predicated region
    $region6: #{attention_forward.3} parent=1 // pred_check
      _
    $region7: #{attention_forward.3} parent=1 // pred_check_branch
      %12 = sbr.rel (0) target = $region9
    $region8: #{attention_forward.3} parent=1 // pred_region
      _
    $region9: #{attention_forward.3} parent=1 // pred_fallthru
      _
    // Predicated region
    $region10: #{attention_forward.3} parent=1 // pred_check
      _
    $region11: #{attention_forward.3} parent=1 // pred_check_branch
      %14 = sbr.rel (0) target = $region13
    $region12: #{attention_forward.3} parent=1 // pred_region
      %s16 = ssub.s32 16, 16
      %17 = vsyncadd [#allocation3], %s16
      %s19 = sshll.u32 [#allocation2], 4
      %s20 = int_to_ptr.vmem [resolvable:$true] %s19
      %22 = dma.hbm_to_vmem [thread:$0]  %s2, 16, %s20, [#allocation3]
    $region13: #{attention_forward.3} parent=1 // pred_fallthru
      _
    // Predicated region
    $region14: #{attention_forward.3} parent=1 // pred_check
      _
    $region15: #{attention_forward.3} parent=1 // pred_check_branch
      %24 = sbr.rel (0) target = $region17
    $region16: #{attention_forward.3} parent=1 // pred_region
      %25 = dma.done [#allocation3], 16
    $region17: #{attention_forward.3} parent=1 // pred_fallthru
      _
    %v27 = vld [vmem:[%s0] sm:$0xf]
    %v28 = vld [vmem:[%s0 + $0x4] sm:$0xf]
    %v29 = vld [vmem:[%s0 + $0x8] sm:$0xf]
    %v30 = vld [vmem:[%s0 + $0xc] sm:$0xf]
    %v31 = vld [vmem:[%s0 + $0x10] sm:$0xf]
    %v32 = vld [vmem:[%s0 + $0x14] sm:$0xf]
    %v33 = vld [vmem:[%s0 + $0x18] sm:$0xf]
    %v34 = vld [vmem:[%s0 + $0x1c] sm:$0xf]
    %v35 = vld [vmem:[%s0 + $0x20] sm:$0xf]
    %v36 = vld [vmem:[%s0 + $0x24] sm:$0xf]
    %v37 = vld [vmem:[%s0 + $0x28] sm:$0xf]
    %v38 = vld [vmem:[%s0 + $0x2c] sm:$0xf]
    %v39 = vld [vmem:[%s0 + $0x30] sm:$0xf]
    %v40 = vld [vmem:[%s0 + $0x34] sm:$0xf]
    %v41 = vld [vmem:[%s0 + $0x38] sm:$0xf]
    %v42 = vld [vmem:[%s0 + $0x3c] sm:$0xf]
    %v43 = vld [vmem:[%s0 + $0x40] sm:$0xf]
    %v44 = vld [vmem:[%s0 + $0x44] sm:$0xf]
    %v45 = vld [vmem:[%s0 + $0x48] sm:$0xf]
    %v46 = vld [vmem:[%s0 + $0x4c] sm:$0xf]
    %v47 = vld [vmem:[%s0 + $0x50] sm:$0xf]
    %v48 = vld [vmem:[%s0 + $0x54] sm:$0xf]
    %v49 = vld [vmem:[%s0 + $0x58] sm:$0xf]
    %v50 = vld [vmem:[%s0 + $0x5c] sm:$0xf]
    %v51 = vld [vmem:[%s0 + $0x60] sm:$0xf]
    %v52 = vld [vmem:[%s0 + $0x64] sm:$0xf]
    %v53 = vld [vmem:[%s0 + $0x68] sm:$0xf]
    %v54 = vld [vmem:[%s0 + $0x6c] sm:$0xf]
    %v55 = vld [vmem:[%s0 + $0x70] sm:$0xf]
    %v56 = vld [vmem:[%s0 + $0x74] sm:$0xf]
    %v57 = vld [vmem:[%s0 + $0x78] sm:$0xf]
    %v58 = vld [vmem:[%s0 + $0x7c] sm:$0xf]
    %v59 = vld [vmem:[%s0 + $0x80] sm:$0xf]
    %v60 = vld [vmem:[%s0 + $0x84] sm:$0xf]
    %v61 = vld [vmem:[%s0 + $0x88] sm:$0xf]
    %v62 = vld [vmem:[%s0 + $0x8c] sm:$0xf]
    %v63 = vld [vmem:[%s0 + $0x90] sm:$0xf]
    %v64 = vld [vmem:[%s0 + $0x94] sm:$0xf]
    %v65 = vld [vmem:[%s0 + $0x98] sm:$0xf]
    %v66 = vld [vmem:[%s0 + $0x9c] sm:$0xf]
    %v67 = vld [vmem:[%s0 + $0xa0] sm:$0xf]
    %v68 = vld [vmem:[%s0 + $0xa4] sm:$0xf]
    %v69 = vld [vmem:[%s0 + $0xa8] sm:$0xf]
    %v70 = vld [vmem:[%s0 + $0xac] sm:$0xf]
    %v71 = vld [vmem:[%s0 + $0xb0] sm:$0xf]
    %v72 = vld [vmem:[%s0 + $0xb4] sm:$0xf]
    %v73 = vld [vmem:[%s0 + $0xb8] sm:$0xf]
    %v74 = vld [vmem:[%s0 + $0xbc] sm:$0xf]
    %v75 = vld [vmem:[%s0 + $0xc0] sm:$0xf]
    %v76 = vld [vmem:[%s0 + $0xc4] sm:$0xf]
    %v77 = vld [vmem:[%s0 + $0xc8] sm:$0xf]
    %v78 = vld [vmem:[%s0 + $0xcc] sm:$0xf]
    %v79 = vld [vmem:[%s0 + $0xd0] sm:$0xf]
    %v80 = vld [vmem:[%s0 + $0xd4] sm:$0xf]
    %v81 = vld [vmem:[%s0 + $0xd8] sm:$0xf]
    %v82 = vld [vmem:[%s0 + $0xdc] sm:$0xf]
    %v83 = vld [vmem:[%s0 + $0xe0] sm:$0xf]
    %v84 = vld [vmem:[%s0 + $0xe4] sm:$0xf]
    %v85 = vld [vmem:[%s0 + $0xe8] sm:$0xf]
    %v86 = vld [vmem:[%s0 + $0xec] sm:$0xf]
    %v87 = vld [vmem:[%s0 + $0xf0] sm:$0xf]
    %v88 = vld [vmem:[%s0 + $0xf4] sm:$0xf]
    %v89 = vld [vmem:[%s0 + $0xf8] sm:$0xf]
    %v90 = vld [vmem:[%s0 + $0xfc] sm:$0xf]
    %v91 = vld [vmem:[%s1] sm:$0xf]
    %v92 = vld [vmem:[%s1 + $0x4] sm:$0xf]
    %v93 = vld [vmem:[%s1 + $0x8] sm:$0xf]
    %v94 = vld [vmem:[%s1 + $0xc] sm:$0xf]
    %v95 = vld [vmem:[#allocation2] sm:$0x1]
    %v97 = vlaneseq
    %v98 = vshrl.u32 %v97, 7
    %v99 = vsub.s32 0, %v98
    %v100 = vrot.slane %v95, %v99
    %v166 = vunpack.c.l.b16 %v27
    %v167 = vunpack.c.l.b16 %v28
    %v168 = vunpack.c.l.b16 %v29
    %v169 = vunpack.c.l.b16 %v30
    %v170 = vunpack.c.l.b16 %v31
    %v171 = vunpack.c.l.b16 %v32
    %v172 = vunpack.c.l.b16 %v33
    %v173 = vunpack.c.l.b16 %v34
    %v174 = vunpack.c.l.b16 %v35
    %v175 = vunpack.c.l.b16 %v36
    %v176 = vunpack.c.l.b16 %v37
    %v177 = vunpack.c.l.b16 %v38
    %v178 = vunpack.c.l.b16 %v39
    %v179 = vunpack.c.l.b16 %v40
    %v180 = vunpack.c.l.b16 %v41
    %v181 = vunpack.c.l.b16 %v42
    %v182 = vunpack.c.l.b16 %v43
    %v183 = vunpack.c.l.b16 %v44
    %v184 = vunpack.c.l.b16 %v45
    %v185 = vunpack.c.l.b16 %v46
    %v186 = vunpack.c.l.b16 %v47
    %v187 = vunpack.c.l.b16 %v48
    %v188 = vunpack.c.l.b16 %v49
    %v189 = vunpack.c.l.b16 %v50
    %v190 = vunpack.c.l.b16 %v51
    %v191 = vunpack.c.l.b16 %v52
    %v192 = vunpack.c.l.b16 %v53
    %v193 = vunpack.c.l.b16 %v54
    %v194 = vunpack.c.l.b16 %v55
    %v195 = vunpack.c.l.b16 %v56
    %v196 = vunpack.c.l.b16 %v57
    %v197 = vunpack.c.l.b16 %v58
    %v198 = vunpack.c.l.b16 %v59
    %v199 = vunpack.c.l.b16 %v60
    %v200 = vunpack.c.l.b16 %v61
    %v201 = vunpack.c.l.b16 %v62
    %v202 = vunpack.c.l.b16 %v63
    %v203 = vunpack.c.l.b16 %v64
    %v204 = vunpack.c.l.b16 %v65
    %v205 = vunpack.c.l.b16 %v66
    %v206 = vunpack.c.l.b16 %v67
    %v207 = vunpack.c.l.b16 %v68
    %v208 = vunpack.c.l.b16 %v69
    %v209 = vunpack.c.l.b16 %v70
    %v210 = vunpack.c.l.b16 %v71
    %v211 = vunpack.c.l.b16 %v72
    %v212 = vunpack.c.l.b16 %v73
    %v213 = vunpack.c.l.b16 %v74
    %v214 = vunpack.c.l.b16 %v75
    %v215 = vunpack.c.l.b16 %v76
    %v216 = vunpack.c.l.b16 %v77
    %v217 = vunpack.c.l.b16 %v78
    %v218 = vunpack.c.l.b16 %v79
    %v219 = vunpack.c.l.b16 %v80
    %v220 = vunpack.c.l.b16 %v81
    %v221 = vunpack.c.l.b16 %v82
    %v222 = vunpack.c.l.b16 %v83
    %v223 = vunpack.c.l.b16 %v84
    %v224 = vunpack.c.l.b16 %v85
    %v225 = vunpack.c.l.b16 %v86
    %v226 = vunpack.c.l.b16 %v87
    %v227 = vunpack.c.l.b16 %v88
    %v228 = vunpack.c.l.b16 %v89
    %v229 = vunpack.c.l.b16 %v90
    %v230 = vpack.c.b16 %v167, %v166
    %v231 = vpack.c.b16 %v169, %v168
    %v232 = vpack.c.b16 %v171, %v170
    %v233 = vpack.c.b16 %v173, %v172
    %v234 = vpack.c.b16 %v175, %v174
    %v235 = vpack.c.b16 %v177, %v176
    %v236 = vpack.c.b16 %v179, %v178
    %v237 = vpack.c.b16 %v181, %v180
    %v238 = vpack.c.b16 %v183, %v182
    %v239 = vpack.c.b16 %v185, %v184
    %v240 = vpack.c.b16 %v187, %v186
    %v241 = vpack.c.b16 %v189, %v188
    %v242 = vpack.c.b16 %v191, %v190
    %v243 = vpack.c.b16 %v193, %v192
    %v244 = vpack.c.b16 %v195, %v194
    %v245 = vpack.c.b16 %v197, %v196
    %v246 = vpack.c.b16 %v199, %v198
    %v247 = vpack.c.b16 %v201, %v200
    %v248 = vpack.c.b16 %v203, %v202
    %v249 = vpack.c.b16 %v205, %v204
    %v250 = vpack.c.b16 %v207, %v206
    %v251 = vpack.c.b16 %v209, %v208
    %v252 = vpack.c.b16 %v211, %v210
    %v253 = vpack.c.b16 %v213, %v212
    %v254 = vpack.c.b16 %v215, %v214
    %v255 = vpack.c.b16 %v217, %v216
    %v256 = vpack.c.b16 %v219, %v218
    %v257 = vpack.c.b16 %v221, %v220
    %v258 = vpack.c.b16 %v223, %v222
    %v259 = vpack.c.b16 %v225, %v224
    %v260 = vpack.c.b16 %v227, %v226
    %v261 = vpack.c.b16 %v229, %v228
    %v266 = vunpack.c.l.b16 %v91
    %v267 = vunpack.c.l.b16 %v92
    %v268 = vunpack.c.l.b16 %v93
    %v269 = vunpack.c.l.b16 %v94
    %v270 = vpack.c.b16 %v267, %v266
    %v271 = vpack.c.b16 %v269, %v268
    %vm274 = vcmask 261120
    %v276 = vsel %vm274, %v230, 0
    %v279 = vsel %vm274, %v231, 0
    %v282 = vsel %vm274, %v232, 0
    %v285 = vsel %vm274, %v233, 0
    %v288 = vsel %vm274, %v234, 0
    %v291 = vsel %vm274, %v235, 0
    %v294 = vsel %vm274, %v236, 0
    %v297 = vsel %vm274, %v237, 0
    %v300 = vsel %vm274, %v238, 0
    %v303 = vsel %vm274, %v239, 0
    %v306 = vsel %vm274, %v240, 0
    %v309 = vsel %vm274, %v241, 0
    %v312 = vsel %vm274, %v242, 0
    %v315 = vsel %vm274, %v243, 0
    %v318 = vsel %vm274, %v244, 0
    %v321 = vsel %vm274, %v245, 0
    %v324 = vsel %vm274, %v246, 0
    %v327 = vsel %vm274, %v247, 0
    %v330 = vsel %vm274, %v248, 0
    %v333 = vsel %vm274, %v249, 0
    %v336 = vsel %vm274, %v250, 0
    %v339 = vsel %vm274, %v251, 0
    %v342 = vsel %vm274, %v252, 0
    %v345 = vsel %vm274, %v253, 0
    %v348 = vsel %vm274, %v254, 0
    %v351 = vsel %vm274, %v255, 0
    %v354 = vsel %vm274, %v256, 0
    %v357 = vsel %vm274, %v257, 0
    %v360 = vsel %vm274, %v258, 0
    %v363 = vsel %vm274, %v259, 0
    %v366 = vsel %vm274, %v260, 0
    %v369 = vsel %vm274, %v261, 0
    %371 = vmatprep.subr.bf16.mxu0 0
    %372 = vmatpush1.bf16.msra.mxu0 %v270
    %373 = vmatprep.subr.bf16.mxu0 0
    %374 = vmatpush1.bf16.msra.mxu0 %v271
    %375 = vmatprep.subr.bf16.mxu0 0
    %376 = vmatpush1.bf16.msra.mxu0 0
    %377 = vmatprep.subr.bf16.mxu0 0
    %378 = vmatpush1.bf16.msra.mxu0 0
    %379 = vmatprep.subr.bf16.mxu0 0
    %380 = vmatpush1.bf16.msra.mxu0 0
    %381 = vmatprep.subr.bf16.mxu0 0
    %382 = vmatpush1.bf16.msra.mxu0 0
    %383 = vmatprep.subr.bf16.mxu0 0
    %384 = vmatpush1.bf16.msra.mxu0 0
    %385 = vmatprep.subr.bf16.mxu0 0
    %386 = vmatpush1.bf16.msra.mxu0 0
    %387 = vmatprep.subr.bf16.mxu0 0
    %388 = vmatpush1.bf16.msra.mxu0 0
    %389 = vmatprep.subr.bf16.mxu0 0
    %390 = vmatpush1.bf16.msra.mxu0 0
    %391 = vmatprep.subr.bf16.mxu0 0
    %392 = vmatpush1.bf16.msra.mxu0 0
    %393 = vmatprep.subr.bf16.mxu0 0
    %394 = vmatpush1.bf16.msra.mxu0 0
    %395 = vmatprep.subr.bf16.mxu0 0
    %396 = vmatpush1.bf16.msra.mxu0 0
    %397 = vmatprep.subr.bf16.mxu0 0
    %398 = vmatpush1.bf16.msra.mxu0 0
    %399 = vmatprep.subr.bf16.mxu0 0
    %400 = vmatpush1.bf16.msra.mxu0 0
    %401 = vmatprep.subr.bf16.mxu0 0
    %402 = vmatpush1.bf16.msra.mxu0 0
    %403 = vmatprep.mubr.bf16.mxu0 0
    %404 = vmatmul.mubr.bf16.gmra.mrb[0].mxu0 %v276
    %v405 = vpop.f32.mrb[0].mxu0
    %v406 = vadd.f32 %v100, %v405
    %v407 = vpop.f32.mrb[0].mxu0
    %v408 = vpop.f32.mrb[0].mxu0
    %v409 = vadd.f32 %v100, %v408
    %v410 = vpop.f32.mrb[0].mxu0
    %411 = vmatprep.mubr.bf16.mxu0 0
    %412 = vmatmul.mubr.bf16.gmra.mrb[0].mxu0 %v279
    %v413 = vpop.f32.mrb[0].mxu0
    %v414 = vadd.f32 %v100, %v413
    %v415 = vpop.f32.mrb[0].mxu0
    %v416 = vpop.f32.mrb[0].mxu0
    %v417 = vadd.f32 %v100, %v416
    %v418 = vpop.f32.mrb[0].mxu0
    %419 = vmatprep.mubr.bf16.mxu0 0
    %420 = vmatmul.mubr.bf16.gmra.mrb[0].mxu0 %v282
    %v421 = vpop.f32.mrb[0].mxu0
    %v422 = vadd.f32 %v100, %v421
    %v423 = vpop.f32.mrb[0].mxu0
    %v424 = vpop.f32.mrb[0].mxu0
    %v425 = vadd.f32 %v100, %v424
    %v426 = vpop.f32.mrb[0].mxu0
    %427 = vmatprep.mubr.bf16.mxu0 0
    %428 = vmatmul.mubr.bf16.gmra.mrb[0].mxu0 %v285
    %v429 = vpop.f32.mrb[0].mxu0
    %v430 = vadd.f32 %v100, %v429
    %v431 = vpop.f32.mrb[0].mxu0
    %v432 = vpop.f32.mrb[0].mxu0
    %v433 = vadd.f32 %v100, %v432
    %v434 = vpop.f32.mrb[0].mxu0
    %435 = vmatprep.mubr.bf16.mxu0 0
    %436 = vmatmul.mubr.bf16.gmra.mrb[0].mxu0 %v288
    %v437 = vpop.f32.mrb[0].mxu0
    %v438 = vadd.f32 %v100, %v437
    %v439 = vpop.f32.mrb[0].mxu0
    %v440 = vpop.f32.mrb[0].mxu0
    %v441 = vadd.f32 %v100, %v440
    %v442 = vpop.f32.mrb[0].mxu0
    %443 = vmatprep.mubr.bf16.mxu0 0
    %444 = vmatmul.mubr.bf16.gmra.mrb[0].mxu0 %v291
    %v445 = vpop.f32.mrb[0].mxu0
    %v446 = vadd.f32 %v100, %v445
    %v447 = vpop.f32.mrb[0].mxu0
    %v448 = vpop.f32.mrb[0].mxu0
    %v449 = vadd.f32 %v100, %v448
    %v450 = vpop.f32.mrb[0].mxu0
    %451 = vmatprep.mubr.bf16.mxu0 0
    %452 = vmatmul.mubr.bf16.gmra.mrb[0].mxu0 %v294
    %v453 = vpop.f32.mrb[0].mxu0
    %v454 = vadd.f32 %v100, %v453
    %v455 = vpop.f32.mrb[0].mxu0
    %v456 = vpop.f32.mrb[0].mxu0
    %v457 = vadd.f32 %v100, %v456
    %v458 = vpop.f32.mrb[0].mxu0
    %459 = vmatprep.mubr.bf16.mxu0 0
    %460 = vmatmul.mubr.bf16.gmra.mrb[0].mxu0 %v297
    %v461 = vpop.f32.mrb[0].mxu0
    %v462 = vadd.f32 %v100, %v461
    %v463 = vpop.f32.mrb[0].mxu0
    %v464 = vpop.f32.mrb[0].mxu0
    %v465 = vadd.f32 %v100, %v464
    %v466 = vpop.f32.mrb[0].mxu0
    %467 = vmatprep.mubr.bf16.mxu0 0
    %468 = vmatmul.mubr.bf16.gmra.mrb[0].mxu0 %v300
    %v469 = vpop.f32.mrb[0].mxu0
    %v470 = vadd.f32 %v100, %v469
    %v471 = vpop.f32.mrb[0].mxu0
    %v472 = vpop.f32.mrb[0].mxu0
    %v473 = vadd.f32 %v100, %v472
    %v474 = vpop.f32.mrb[0].mxu0
    %475 = vmatprep.mubr.bf16.mxu0 0
    %476 = vmatmul.mubr.bf16.gmra.mrb[0].mxu0 %v303
    %v477 = vpop.f32.mrb[0].mxu0
    %v478 = vadd.f32 %v100, %v477
    %v479 = vpop.f32.mrb[0].mxu0
    %v480 = vpop.f32.mrb[0].mxu0
    %v481 = vadd.f32 %v100, %v480
    %v482 = vpop.f32.mrb[0].mxu0
    %483 = vmatprep.mubr.bf16.mxu0 0
    %484 = vmatmul.mubr.bf16.gmra.mrb[0].mxu0 %v306
    %v485 = vpop.f32.mrb[0].mxu0
    %v486 = vadd.f32 %v100, %v485
    %v487 = vpop.f32.mrb[0].mxu0
    %v488 = vpop.f32.mrb[0].mxu0
    %v489 = vadd.f32 %v100, %v488
    %v490 = vpop.f32.mrb[0].mxu0
    %491 = vmatprep.mubr.bf16.mxu0 0
    %492 = vmatmul.mubr.bf16.gmra.mrb[0].mxu0 %v309
    %v493 = vpop.f32.mrb[0].mxu0
    %v494 = vadd.f32 %v100, %v493
    %v495 = vpop.f32.mrb[0].mxu0
    %v496 = vpop.f32.mrb[0].mxu0
    %v497 = vadd.f32 %v100, %v496
    %v498 = vpop.f32.mrb[0].mxu0
    %499 = vmatprep.mubr.bf16.mxu0 0
    %500 = vmatmul.mubr.bf16.gmra.mrb[0].mxu0 %v312
    %v501 = vpop.f32.mrb[0].mxu0
    %v502 = vadd.f32 %v100, %v501
    %v503 = vpop.f32.mrb[0].mxu0
    %v504 = vpop.f32.mrb[0].mxu0
    %v505 = vadd.f32 %v100, %v504
    %v506 = vpop.f32.mrb[0].mxu0
    %507 = vmatprep.mubr.bf16.mxu0 0
    %508 = vmatmul.mubr.bf16.gmra.mrb[0].mxu0 %v315
    %v509 = vpop.f32.mrb[0].mxu0
    %v510 = vadd.f32 %v100, %v509
    %v511 = vpop.f32.mrb[0].mxu0
    %v512 = vpop.f32.mrb[0].mxu0
    %v513 = vadd.f32 %v100, %v512
    %v514 = vpop.f32.mrb[0].mxu0
    %515 = vmatprep.mubr.bf16.mxu0 0
    %516 = vmatmul.mubr.bf16.gmra.mrb[0].mxu0 %v318
    %v517 = vpop.f32.mrb[0].mxu0
    %v518 = vadd.f32 %v100, %v517
    %v519 = vpop.f32.mrb[0].mxu0
    %v520 = vpop.f32.mrb[0].mxu0
    %v521 = vadd.f32 %v100, %v520
    %v522 = vpop.f32.mrb[0].mxu0
    %523 = vmatprep.mubr.bf16.mxu0 0
    %524 = vmatmul.mubr.bf16.gmra.mrb[0].mxu0 %v321
    %v525 = vpop.f32.mrb[0].mxu0
    %v526 = vadd.f32 %v100, %v525
    %v527 = vpop.f32.mrb[0].mxu0
    %v528 = vpop.f32.mrb[0].mxu0
    %v529 = vadd.f32 %v100, %v528
    %v530 = vpop.f32.mrb[0].mxu0
    %531 = vmatprep.mubr.bf16.mxu0 0
    %532 = vmatmul.mubr.bf16.gmra.mrb[0].mxu0 %v324
    %v533 = vpop.f32.mrb[0].mxu0
    %v534 = vadd.f32 %v100, %v533
    %v535 = vpop.f32.mrb[0].mxu0
    %v536 = vpop.f32.mrb[0].mxu0
    %v537 = vadd.f32 %v100, %v536
    %v538 = vpop.f32.mrb[0].mxu0
    %539 = vmatprep.mubr.bf16.mxu0 0
    %540 = vmatmul.mubr.bf16.gmra.mrb[0].mxu0 %v327
    %v541 = vpop.f32.mrb[0].mxu0
    %v542 = vadd.f32 %v100, %v541
    %v543 = vpop.f32.mrb[0].mxu0
    %v544 = vpop.f32.mrb[0].mxu0
    %v545 = vadd.f32 %v100, %v544
    %v546 = vpop.f32.mrb[0].mxu0
    %547 = vmatprep.mubr.bf16.mxu0 0
    %548 = vmatmul.mubr.bf16.gmra.mrb[0].mxu0 %v330
    %v549 = vpop.f32.mrb[0].mxu0
    %v550 = vadd.f32 %v100, %v549
    %v551 = vpop.f32.mrb[0].mxu0
    %v552 = vpop.f32.mrb[0].mxu0
    %v553 = vadd.f32 %v100, %v552
    %v554 = vpop.f32.mrb[0].mxu0
    %555 = vmatprep.mubr.bf16.mxu0 0
    %556 = vmatmul.mubr.bf16.gmra.mrb[0].mxu0 %v333
    %v557 = vpop.f32.mrb[0].mxu0
    %v558 = vadd.f32 %v100, %v557
    %v559 = vpop.f32.mrb[0].mxu0
    %v560 = vpop.f32.mrb[0].mxu0
    %v561 = vadd.f32 %v100, %v560
    %v562 = vpop.f32.mrb[0].mxu0
    %563 = vmatprep.mubr.bf16.mxu0 0
    %564 = vmatmul.mubr.bf16.gmra.mrb[0].mxu0 %v336
    %v565 = vpop.f32.mrb[0].mxu0
    %v566 = vadd.f32 %v100, %v565
    %v567 = vpop.f32.mrb[0].mxu0
    %v568 = vpop.f32.mrb[0].mxu0
    %v569 = vadd.f32 %v100, %v568
    %v570 = vpop.f32.mrb[0].mxu0
    %571 = vmatprep.mubr.bf16.mxu0 0
    %572 = vmatmul.mubr.bf16.gmra.mrb[0].mxu0 %v339
    %v573 = vpop.f32.mrb[0].mxu0
    %v574 = vadd.f32 %v100, %v573
    %v575 = vpop.f32.mrb[0].mxu0
    %v576 = vpop.f32.mrb[0].mxu0
    %v577 = vadd.f32 %v100, %v576
    %v578 = vpop.f32.mrb[0].mxu0
    %579 = vmatprep.mubr.bf16.mxu0 0
    %580 = vmatmul.mubr.bf16.gmra.mrb[0].mxu0 %v342
    %v581 = vpop.f32.mrb[0].mxu0
    %v582 = vadd.f32 %v100, %v581
    %v583 = vpop.f32.mrb[0].mxu0
    %v584 = vpop.f32.mrb[0].mxu0
    %v585 = vadd.f32 %v100, %v584
    %v586 = vpop.f32.mrb[0].mxu0
    %587 = vmatprep.mubr.bf16.mxu0 0
    %588 = vmatmul.mubr.bf16.gmra.mrb[0].mxu0 %v345
    %v589 = vpop.f32.mrb[0].mxu0
    %v590 = vadd.f32 %v100, %v589
    %v591 = vpop.f32.mrb[0].mxu0
    %v592 = vpop.f32.mrb[0].mxu0
    %v593 = vadd.f32 %v100, %v592
    %v594 = vpop.f32.mrb[0].mxu0
    %595 = vmatprep.mubr.bf16.mxu0 0
    %596 = vmatmul.mubr.bf16.gmra.mrb[0].mxu0 %v348
    %v597 = vpop.f32.mrb[0].mxu0
    %v598 = vadd.f32 %v100, %v597
    %v599 = vpop.f32.mrb[0].mxu0
    %v600 = vpop.f32.mrb[0].mxu0
    %v601 = vadd.f32 %v100, %v600
    %v602 = vpop.f32.mrb[0].mxu0
    %603 = vmatprep.mubr.bf16.mxu0 0
    %604 = vmatmul.mubr.bf16.gmra.mrb[0].mxu0 %v351
    %v605 = vpop.f32.mrb[0].mxu0
    %v606 = vadd.f32 %v100, %v605
    %v607 = vpop.f32.mrb[0].mxu0
    %v608 = vpop.f32.mrb[0].mxu0
    %v609 = vadd.f32 %v100, %v608
    %v610 = vpop.f32.mrb[0].mxu0
    %611 = vmatprep.mubr.bf16.mxu0 0
    %612 = vmatmul.mubr.bf16.gmra.mrb[0].mxu0 %v354
    %v613 = vpop.f32.mrb[0].mxu0
    %v614 = vadd.f32 %v100, %v613
    %v615 = vpop.f32.mrb[0].mxu0
    %v616 = vpop.f32.mrb[0].mxu0
    %v617 = vadd.f32 %v100, %v616
    %v618 = vpop.f32.mrb[0].mxu0
    %619 = vmatprep.mubr.bf16.mxu0 0
    %620 = vmatmul.mubr.bf16.gmra.mrb[0].mxu0 %v357
    %v621 = vpop.f32.mrb[0].mxu0
    %v622 = vadd.f32 %v100, %v621
    %v623 = vpop.f32.mrb[0].mxu0
    %v624 = vpop.f32.mrb[0].mxu0
    %v625 = vadd.f32 %v100, %v624
    %v626 = vpop.f32.mrb[0].mxu0
    %627 = vmatprep.mubr.bf16.mxu0 0
    %628 = vmatmul.mubr.bf16.gmra.mrb[0].mxu0 %v360
    %v629 = vpop.f32.mrb[0].mxu0
    %v630 = vadd.f32 %v100, %v629
    %v631 = vpop.f32.mrb[0].mxu0
    %v632 = vpop.f32.mrb[0].mxu0
    %v633 = vadd.f32 %v100, %v632
    %v634 = vpop.f32.mrb[0].mxu0
    %635 = vmatprep.mubr.bf16.mxu0 0
    %636 = vmatmul.mubr.bf16.gmra.mrb[0].mxu0 %v363
    %v637 = vpop.f32.mrb[0].mxu0
    %v638 = vadd.f32 %v100, %v637
    %v639 = vpop.f32.mrb[0].mxu0
    %v640 = vpop.f32.mrb[0].mxu0
    %v641 = vadd.f32 %v100, %v640
    %v642 = vpop.f32.mrb[0].mxu0
    %643 = vmatprep.mubr.bf16.mxu0 0
    %644 = vmatmul.mubr.bf16.gmra.mrb[0].mxu0 %v366
    %v645 = vpop.f32.mrb[0].mxu0
    %v646 = vadd.f32 %v100, %v645
    %v647 = vpop.f32.mrb[0].mxu0
    %v648 = vpop.f32.mrb[0].mxu0
    %v649 = vadd.f32 %v100, %v648
    %v650 = vpop.f32.mrb[0].mxu0
    %651 = vmatprep.mubr.bf16.mxu0 0
    %652 = vmatmul.mubr.bf16.gmra.mrb[0].mxu0 %v369
    %v653 = vpop.f32.mrb[0].mxu0
    %v654 = vadd.f32 %v100, %v653
    %v655 = vpop.f32.mrb[0].mxu0
    %v656 = vpop.f32.mrb[0].mxu0
    %v657 = vadd.f32 %v100, %v656
    %v658 = vpop.f32.mrb[0].mxu0
    %659 = vdwg.mxu0
    %v660 = vpack.c.bf16 %v409, %v406
    %v661 = vpack.c.bf16 %v417, %v414
    %v662 = vpack.c.bf16 %v425, %v422
    %v663 = vpack.c.bf16 %v433, %v430
    %v664 = vpack.c.bf16 %v441, %v438
    %v665 = vpack.c.bf16 %v449, %v446
    %v666 = vpack.c.bf16 %v457, %v454
    %v667 = vpack.c.bf16 %v465, %v462
    %v668 = vpack.c.bf16 %v473, %v470
    %v669 = vpack.c.bf16 %v481, %v478
    %v670 = vpack.c.bf16 %v489, %v486
    %v671 = vpack.c.bf16 %v497, %v494
    %v672 = vpack.c.bf16 %v505, %v502
    %v673 = vpack.c.bf16 %v513, %v510
    %v674 = vpack.c.bf16 %v521, %v518
    %v675 = vpack.c.bf16 %v529, %v526
    %v676 = vpack.c.bf16 %v537, %v534
    %v677 = vpack.c.bf16 %v545, %v542
    %v678 = vpack.c.bf16 %v553, %v550
    %v679 = vpack.c.bf16 %v561, %v558
    %v680 = vpack.c.bf16 %v569, %v566
    %v681 = vpack.c.bf16 %v577, %v574
    %v682 = vpack.c.bf16 %v585, %v582
    %v683 = vpack.c.bf16 %v593, %v590
    %v684 = vpack.c.bf16 %v601, %v598
    %v685 = vpack.c.bf16 %v609, %v606
    %v686 = vpack.c.bf16 %v617, %v614
    %v687 = vpack.c.bf16 %v625, %v622
    %v688 = vpack.c.bf16 %v633, %v630
    %v689 = vpack.c.bf16 %v641, %v638
    %v690 = vpack.c.bf16 %v649, %v646
    %v691 = vpack.c.bf16 %v657, %v654
    %v724 = vunpack.c.l.b16 %v660
    %v725 = vunpack.c.h.b16 %v660
    %v726 = vunpack.c.l.b16 %v661
    %v727 = vunpack.c.h.b16 %v661
    %v728 = vunpack.c.l.b16 %v662
    %v729 = vunpack.c.h.b16 %v662
    %v730 = vunpack.c.l.b16 %v663
    %v731 = vunpack.c.h.b16 %v663
    %v732 = vunpack.c.l.b16 %v664
    %v733 = vunpack.c.h.b16 %v664
    %v734 = vunpack.c.l.b16 %v665
    %v735 = vunpack.c.h.b16 %v665
    %v736 = vunpack.c.l.b16 %v666
    %v737 = vunpack.c.h.b16 %v666
    %v738 = vunpack.c.l.b16 %v667
    %v739 = vunpack.c.h.b16 %v667
    %v740 = vunpack.c.l.b16 %v668
    %v741 = vunpack.c.h.b16 %v668
    %v742 = vunpack.c.l.b16 %v669
    %v743 = vunpack.c.h.b16 %v669
    %v744 = vunpack.c.l.b16 %v670
    %v745 = vunpack.c.h.b16 %v670
    %v746 = vunpack.c.l.b16 %v671
    %v747 = vunpack.c.h.b16 %v671
    %v748 = vunpack.c.l.b16 %v672
    %v749 = vunpack.c.h.b16 %v672
    %v750 = vunpack.c.l.b16 %v673
    %v751 = vunpack.c.h.b16 %v673
    %v752 = vunpack.c.l.b16 %v674
    %v753 = vunpack.c.h.b16 %v674
    %v754 = vunpack.c.l.b16 %v675
    %v755 = vunpack.c.h.b16 %v675
    %v756 = vunpack.c.l.b16 %v676
    %v757 = vunpack.c.h.b16 %v676
    %v758 = vunpack.c.l.b16 %v677
    %v759 = vunpack.c.h.b16 %v677
    %v760 = vunpack.c.l.b16 %v678
    %v761 = vunpack.c.h.b16 %v678
    %v762 = vunpack.c.l.b16 %v679
    %v763 = vunpack.c.h.b16 %v679
    %v764 = vunpack.c.l.b16 %v680
    %v765 = vunpack.c.h.b16 %v680
    %v766 = vunpack.c.l.b16 %v681
    %v767 = vunpack.c.h.b16 %v681
    %v768 = vunpack.c.l.b16 %v682
    %v769 = vunpack.c.h.b16 %v682
    %v770 = vunpack.c.l.b16 %v683
    %v771 = vunpack.c.h.b16 %v683
    %v772 = vunpack.c.l.b16 %v684
    %v773 = vunpack.c.h.b16 %v684
    %v774 = vunpack.c.l.b16 %v685
    %v775 = vunpack.c.h.b16 %v685
    %v776 = vunpack.c.l.b16 %v686
    %v777 = vunpack.c.h.b16 %v686
    %v778 = vunpack.c.l.b16 %v687
    %v779 = vunpack.c.h.b16 %v687
    %v780 = vunpack.c.l.b16 %v688
    %v781 = vunpack.c.h.b16 %v688
    %v782 = vunpack.c.l.b16 %v689
    %v783 = vunpack.c.h.b16 %v689
    %v784 = vunpack.c.l.b16 %v690
    %v785 = vunpack.c.h.b16 %v690
    %v786 = vunpack.c.l.b16 %v691
    %v787 = vunpack.c.h.b16 %v691
    %v788 = vpack.c.b16 %v724, %v724
    %v789 = vpack.c.b16 %v725, %v725
    %v790 = vpack.c.b16 %v726, %v726
    %v791 = vpack.c.b16 %v727, %v727
    %v792 = vpack.c.b16 %v728, %v728
    %v793 = vpack.c.b16 %v729, %v729
    %v794 = vpack.c.b16 %v730, %v730
    %v795 = vpack.c.b16 %v731, %v731
    %v796 = vpack.c.b16 %v732, %v732
    %v797 = vpack.c.b16 %v733, %v733
    %v798 = vpack.c.b16 %v734, %v734
    %v799 = vpack.c.b16 %v735, %v735
    %v800 = vpack.c.b16 %v736, %v736
    %v801 = vpack.c.b16 %v737, %v737
    %v802 = vpack.c.b16 %v738, %v738
    %v803 = vpack.c.b16 %v739, %v739
    %v804 = vpack.c.b16 %v740, %v740
    %v805 = vpack.c.b16 %v741, %v741
    %v806 = vpack.c.b16 %v742, %v742
    %v807 = vpack.c.b16 %v743, %v743
    %v808 = vpack.c.b16 %v744, %v744
    %v809 = vpack.c.b16 %v745, %v745
    %v810 = vpack.c.b16 %v746, %v746
    %v811 = vpack.c.b16 %v747, %v747
    %v812 = vpack.c.b16 %v748, %v748
    %v813 = vpack.c.b16 %v749, %v749
    %v814 = vpack.c.b16 %v750, %v750
    %v815 = vpack.c.b16 %v751, %v751
    %v816 = vpack.c.b16 %v752, %v752
    %v817 = vpack.c.b16 %v753, %v753
    %v818 = vpack.c.b16 %v754, %v754
    %v819 = vpack.c.b16 %v755, %v755
    %v820 = vpack.c.b16 %v756, %v756
    %v821 = vpack.c.b16 %v757, %v757
    %v822 = vpack.c.b16 %v758, %v758
    %v823 = vpack.c.b16 %v759, %v759
    %v824 = vpack.c.b16 %v760, %v760
    %v825 = vpack.c.b16 %v761, %v761
    %v826 = vpack.c.b16 %v762, %v762
    %v827 = vpack.c.b16 %v763, %v763
    %v828 = vpack.c.b16 %v764, %v764
    %v829 = vpack.c.b16 %v765, %v765
    %v830 = vpack.c.b16 %v766, %v766
    %v831 = vpack.c.b16 %v767, %v767
    %v832 = vpack.c.b16 %v768, %v768
    %v833 = vpack.c.b16 %v769, %v769
    %v834 = vpack.c.b16 %v770, %v770
    %v835 = vpack.c.b16 %v771, %v771
    %v836 = vpack.c.b16 %v772, %v772
    %v837 = vpack.c.b16 %v773, %v773
    %v838 = vpack.c.b16 %v774, %v774
    %v839 = vpack.c.b16 %v775, %v775
    %v840 = vpack.c.b16 %v776, %v776
    %v841 = vpack.c.b16 %v777, %v777
    %v842 = vpack.c.b16 %v778, %v778
    %v843 = vpack.c.b16 %v779, %v779
    %v844 = vpack.c.b16 %v780, %v780
    %v845 = vpack.c.b16 %v781, %v781
    %v846 = vpack.c.b16 %v782, %v782
    %v847 = vpack.c.b16 %v783, %v783
    %v848 = vpack.c.b16 %v784, %v784
    %v849 = vpack.c.b16 %v785, %v785
    %v850 = vpack.c.b16 %v786, %v786
    %v851 = vpack.c.b16 %v787, %v787
    %vm916 = vcmask 781312
    %917 = vst.msk [vmem:[%s3] sm:$0xf] %vm916, %v788
    %918 = vst.msk [vmem:[%s3 + $0x4] sm:$0xf] %vm916, %v789
    %919 = vst.msk [vmem:[%s3 + $0x8] sm:$0xf] %vm916, %v790
    %920 = vst.msk [vmem:[%s3 + $0xc] sm:$0xf] %vm916, %v791
    %921 = vst.msk [vmem:[%s3 + $0x10] sm:$0xf] %vm916, %v792
    %922 = vst.msk [vmem:[%s3 + $0x14] sm:$0xf] %vm916, %v793
    %923 = vst.msk [vmem:[%s3 + $0x18] sm:$0xf] %vm916, %v794
    %924 = vst.msk [vmem:[%s3 + $0x1c] sm:$0xf] %vm916, %v795
    %925 = vst.msk [vmem:[%s3 + $0x20] sm:$0xf] %vm916, %v796
    %926 = vst.msk [vmem:[%s3 + $0x24] sm:$0xf] %vm916, %v797
    %927 = vst.msk [vmem:[%s3 + $0x28] sm:$0xf] %vm916, %v798
    %928 = vst.msk [vmem:[%s3 + $0x2c] sm:$0xf] %vm916, %v799
    %929 = vst.msk [vmem:[%s3 + $0x30] sm:$0xf] %vm916, %v800
    %930 = vst.msk [vmem:[%s3 + $0x34] sm:$0xf] %vm916, %v801
    %931 = vst.msk [vmem:[%s3 + $0x38] sm:$0xf] %vm916, %v802
    %932 = vst.msk [vmem:[%s3 + $0x3c] sm:$0xf] %vm916, %v803
    %933 = vst.msk [vmem:[%s3 + $0x40] sm:$0xf] %vm916, %v804
    %934 = vst.msk [vmem:[%s3 + $0x44] sm:$0xf] %vm916, %v805
    %935 = vst.msk [vmem:[%s3 + $0x48] sm:$0xf] %vm916, %v806
    %936 = vst.msk [vmem:[%s3 + $0x4c] sm:$0xf] %vm916, %v807
    %937 = vst.msk [vmem:[%s3 + $0x50] sm:$0xf] %vm916, %v808
    %938 = vst.msk [vmem:[%s3 + $0x54] sm:$0xf] %vm916, %v809
    %939 = vst.msk [vmem:[%s3 + $0x58] sm:$0xf] %vm916, %v810
    %940 = vst.msk [vmem:[%s3 + $0x5c] sm:$0xf] %vm916, %v811
    %941 = vst.msk [vmem:[%s3 + $0x60] sm:$0xf] %vm916, %v812
    %942 = vst.msk [vmem:[%s3 + $0x64] sm:$0xf] %vm916, %v813
    %943 = vst.msk [vmem:[%s3 + $0x68] sm:$0xf] %vm916, %v814
    %944 = vst.msk [vmem:[%s3 + $0x6c] sm:$0xf] %vm916, %v815
    %945 = vst.msk [vmem:[%s3 + $0x70] sm:$0xf] %vm916, %v816
    %946 = vst.msk [vmem:[%s3 + $0x74] sm:$0xf] %vm916, %v817
    %947 = vst.msk [vmem:[%s3 + $0x78] sm:$0xf] %vm916, %v818
    %948 = vst.msk [vmem:[%s3 + $0x7c] sm:$0xf] %vm916, %v819
    %949 = vst.msk [vmem:[%s3 + $0x80] sm:$0xf] %vm916, %v820
    %950 = vst.msk [vmem:[%s3 + $0x84] sm:$0xf] %vm916, %v821
    %951 = vst.msk [vmem:[%s3 + $0x88] sm:$0xf] %vm916, %v822
    %952 = vst.msk [vmem:[%s3 + $0x8c] sm:$0xf] %vm916, %v823
    %953 = vst.msk [vmem:[%s3 + $0x90] sm:$0xf] %vm916, %v824
    %954 = vst.msk [vmem:[%s3 + $0x94] sm:$0xf] %vm916, %v825
    %955 = vst.msk [vmem:[%s3 + $0x98] sm:$0xf] %vm916, %v826
    %956 = vst.msk [vmem:[%s3 + $0x9c] sm:$0xf] %vm916, %v827
    %957 = vst.msk [vmem:[%s3 + $0xa0] sm:$0xf] %vm916, %v828
    %958 = vst.msk [vmem:[%s3 + $0xa4] sm:$0xf] %vm916, %v829
    %959 = vst.msk [vmem:[%s3 + $0xa8] sm:$0xf] %vm916, %v830
    %960 = vst.msk [vmem:[%s3 + $0xac] sm:$0xf] %vm916, %v831
    %961 = vst.msk [vmem:[%s3 + $0xb0] sm:$0xf] %vm916, %v832
    %962 = vst.msk [vmem:[%s3 + $0xb4] sm:$0xf] %vm916, %v833
    %963 = vst.msk [vmem:[%s3 + $0xb8] sm:$0xf] %vm916, %v834
    %964 = vst.msk [vmem:[%s3 + $0xbc] sm:$0xf] %vm916, %v835
    %965 = vst.msk [vmem:[%s3 + $0xc0] sm:$0xf] %vm916, %v836
    %966 = vst.msk [vmem:[%s3 + $0xc4] sm:$0xf] %vm916, %v837
    %967 = vst.msk [vmem:[%s3 + $0xc8] sm:$0xf] %vm916, %v838
    %968 = vst.msk [vmem:[%s3 + $0xcc] sm:$0xf] %vm916, %v839
    %969 = vst.msk [vmem:[%s3 + $0xd0] sm:$0xf] %vm916, %v840
    %970 = vst.msk [vmem:[%s3 + $0xd4] sm:$0xf] %vm916, %v841
    %971 = vst.msk [vmem:[%s3 + $0xd8] sm:$0xf] %vm916, %v842
    %972 = vst.msk [vmem:[%s3 + $0xdc] sm:$0xf] %vm916, %v843
    %973 = vst.msk [vmem:[%s3 + $0xe0] sm:$0xf] %vm916, %v844
    %974 = vst.msk [vmem:[%s3 + $0xe4] sm:$0xf] %vm916, %v845
    %975 = vst.msk [vmem:[%s3 + $0xe8] sm:$0xf] %vm916, %v846
    %976 = vst.msk [vmem:[%s3 + $0xec] sm:$0xf] %vm916, %v847
    %977 = vst.msk [vmem:[%s3 + $0xf0] sm:$0xf] %vm916, %v848
    %978 = vst.msk [vmem:[%s3 + $0xf4] sm:$0xf] %vm916, %v849
    %979 = vst.msk [vmem:[%s3 + $0xf8] sm:$0xf] %vm916, %v850
    %980 = vst.msk [vmem:[%s3 + $0xfc] sm:$0xf] %vm916, %v851
    // Predicated region
    $region18: #{attention_forward.3} parent=1 // pred_check
      _
    $region19: #{attention_forward.3} parent=1 // pred_check_branch
      %982 = sbr.rel (0) target = $region21
    $region20: #{attention_forward.3} parent=1 // pred_region
      _
    $region21: #{attention_forward.3} parent=1 // pred_fallthru
      _
    // Predicated region
    $region22: #{attention_forward.3} parent=1 // pred_check
      _
    $region23: #{attention_forward.3} parent=1 // pred_check_branch
      %984 = sbr.rel (0) target = $region25
    $region24: #{attention_forward.3} parent=1 // pred_region
      _
    $region25: #{attention_forward.3} parent=1 // pred_fallthru
      _
    %985 = vsyncpa [#allocation3], 1

// kernel: attention_forward.5
$region0: #{attention_forward.5}
  #allocation0 [shape = 'u32[]', space=smem, size = 0x4, offset = 0x4, fixed_abs, tag = 'smem constant byte address 0x4 - core index']
  #allocation1 [shape = 'u32[144,128]{1,0:T(1,128)}', space=vmem, size = 0x12000, scoped, tag = 'internal scratch']
  %s0 = inlined_call_operand.vmem [shape: bf16[512,32], index: 0, kind: input, shape index: {}]
  %s1 = inlined_call_operand.vmem [shape: bf16[32,32], index: 1, kind: input, shape index: {}]
  %s2 = inlined_call_operand.vmem [shape: f32[1,32], index: 2, kind: input, shape index: {}]
  %s3 = inlined_call_operand.hbm [shape: f32[512,32], index: 3, kind: output, shape index: {}]
  %s4 = sld [smem:[#allocation0]]
  $region22: #{attention_forward.5} parent=0
    _
  %s6 = ssub.s32 1, %s4
  %s7 = scalar_select 0, %s6, %s4
  $region1: #{attention_forward.5} parent=0
    #allocation2 [shape = 'u8[262144]{0}', space=vmem, size = 0x40000, scoped, tag = 'output window, operand 0, single buffered']
    #allocation3 [shape = 's32[1]{0}', space=sflag, size = 0x4, scoped, tag = 'scoped memory for attention_forward.5']
    %8 = vsyncpa [#allocation3], 0
    // Predicated region
    $region2: #{attention_forward.5} parent=1 // pred_check
      _
    $region3: #{attention_forward.5} parent=1 // pred_check_branch
      %10 = sbr.rel (0) target = $region5
    $region4: #{attention_forward.5} parent=1 // pred_region
      _
    $region5: #{attention_forward.5} parent=1 // pred_fallthru
      _
    // Predicated region
    $region6: #{attention_forward.5} parent=1 // pred_check
      _
    $region7: #{attention_forward.5} parent=1 // pred_check_branch
      %12 = sbr.rel (0) target = $region9
    $region8: #{attention_forward.5} parent=1 // pred_region
      _
    $region9: #{attention_forward.5} parent=1 // pred_fallthru
      _
    // Predicated region
    $region10: #{attention_forward.5} parent=1 // pred_check
      _
    $region11: #{attention_forward.5} parent=1 // pred_check_branch
      %14 = sbr.rel (0) target = $region13
    $region12: #{attention_forward.5} parent=1 // pred_region
      _
    $region13: #{attention_forward.5} parent=1 // pred_fallthru
      _
    %v16 = vld [vmem:[%s0] sm:$0xf]
    %v17 = vld [vmem:[%s0 + $0x4] sm:$0xf]
    %v18 = vld [vmem:[%s0 + $0x8] sm:$0xf]
    %v19 = vld [vmem:[%s0 + $0xc] sm:$0xf]
    %v20 = vld [vmem:[%s0 + $0x10] sm:$0xf]
    %v21 = vld [vmem:[%s0 + $0x14] sm:$0xf]
    %v22 = vld [vmem:[%s0 + $0x18] sm:$0xf]
    %v23 = vld [vmem:[%s0 + $0x1c] sm:$0xf]
    %v24 = vld [vmem:[%s0 + $0x20] sm:$0xf]
    %v25 = vld [vmem:[%s0 + $0x24] sm:$0xf]
    %v26 = vld [vmem:[%s0 + $0x28] sm:$0xf]
    %v27 = vld [vmem:[%s0 + $0x2c] sm:$0xf]
    %v28 = vld [vmem:[%s0 + $0x30] sm:$0xf]
    %v29 = vld [vmem:[%s0 + $0x34] sm:$0xf]
    %v30 = vld [vmem:[%s0 + $0x38] sm:$0xf]
    %v31 = vld [vmem:[%s0 + $0x3c] sm:$0xf]
    %v32 = vld [vmem:[%s0 + $0x40] sm:$0xf]
    %v33 = vld [vmem:[%s0 + $0x44] sm:$0xf]
    %v34 = vld [vmem:[%s0 + $0x48] sm:$0xf]
    %v35 = vld [vmem:[%s0 + $0x4c] sm:$0xf]
    %v36 = vld [vmem:[%s0 + $0x50] sm:$0xf]
    %v37 = vld [vmem:[%s0 + $0x54] sm:$0xf]
    %v38 = vld [vmem:[%s0 + $0x58] sm:$0xf]
    %v39 = vld [vmem:[%s0 + $0x5c] sm:$0xf]
    %v40 = vld [vmem:[%s0 + $0x60] sm:$0xf]
    %v41 = vld [vmem:[%s0 + $0x64] sm:$0xf]
    %v42 = vld [vmem:[%s0 + $0x68] sm:$0xf]
    %v43 = vld [vmem:[%s0 + $0x6c] sm:$0xf]
    %v44 = vld [vmem:[%s0 + $0x70] sm:$0xf]
    %v45 = vld [vmem:[%s0 + $0x74] sm:$0xf]
    %v46 = vld [vmem:[%s0 + $0x78] sm:$0xf]
    %v47 = vld [vmem:[%s0 + $0x7c] sm:$0xf]
    %v48 = vld [vmem:[%s0 + $0x80] sm:$0xf]
    %v49 = vld [vmem:[%s0 + $0x84] sm:$0xf]
    %v50 = vld [vmem:[%s0 + $0x88] sm:$0xf]
    %v51 = vld [vmem:[%s0 + $0x8c] sm:$0xf]
    %v52 = vld [vmem:[%s0 + $0x90] sm:$0xf]
    %v53 = vld [vmem:[%s0 + $0x94] sm:$0xf]
    %v54 = vld [vmem:[%s0 + $0x98] sm:$0xf]
    %v55 = vld [vmem:[%s0 + $0x9c] sm:$0xf]
    %v56 = vld [vmem:[%s0 + $0xa0] sm:$0xf]
    %v57 = vld [vmem:[%s0 + $0xa4] sm:$0xf]
    %v58 = vld [vmem:[%s0 + $0xa8] sm:$0xf]
    %v59 = vld [vmem:[%s0 + $0xac] sm:$0xf]
    %v60 = vld [vmem:[%s0 + $0xb0] sm:$0xf]
    %v61 = vld [vmem:[%s0 + $0xb4] sm:$0xf]
    %v62 = vld [vmem:[%s0 + $0xb8] sm:$0xf]
    %v63 = vld [vmem:[%s0 + $0xbc] sm:$0xf]
    %v64 = vld [vmem:[%s0 + $0xc0] sm:$0xf]
    %v65 = vld [vmem:[%s0 + $0xc4] sm:$0xf]
    %v66 = vld [vmem:[%s0 + $0xc8] sm:$0xf]
    %v67 = vld [vmem:[%s0 + $0xcc] sm:$0xf]
    %v68 = vld [vmem:[%s0 + $0xd0] sm:$0xf]
    %v69 = vld [vmem:[%s0 + $0xd4] sm:$0xf]
    %v70 = vld [vmem:[%s0 + $0xd8] sm:$0xf]
    %v71 = vld [vmem:[%s0 + $0xdc] sm:$0xf]
    %v72 = vld [vmem:[%s0 + $0xe0] sm:$0xf]
    %v73 = vld [vmem:[%s0 + $0xe4] sm:$0xf]
    %v74 = vld [vmem:[%s0 + $0xe8] sm:$0xf]
    %v75 = vld [vmem:[%s0 + $0xec] sm:$0xf]
    %v76 = vld [vmem:[%s0 + $0xf0] sm:$0xf]
    %v77 = vld [vmem:[%s0 + $0xf4] sm:$0xf]
    %v78 = vld [vmem:[%s0 + $0xf8] sm:$0xf]
    %v79 = vld [vmem:[%s0 + $0xfc] sm:$0xf]
    %v80 = vld [vmem:[%s1] sm:$0xf]
    %v81 = vld [vmem:[%s1 + $0x4] sm:$0xf]
    %v82 = vld [vmem:[%s1 + $0x8] sm:$0xf]
    %v83 = vld [vmem:[%s1 + $0xc] sm:$0xf]
    %v84 = vld [vmem:[%s2] sm:$0x1]
    %v86 = vlaneseq
    %v87 = vshrl.u32 %v86, 7
    %v88 = vsub.s32 0, %v87
    %v89 = vrot.slane %v84, %v88
    %v155 = vunpack.c.l.b16 %v16
    %v156 = vunpack.c.l.b16 %v17
    %v157 = vunpack.c.l.b16 %v18
    %v158 = vunpack.c.l.b16 %v19
    %v159 = vunpack.c.l.b16 %v20
    %v160 = vunpack.c.l.b16 %v21
    %v161 = vunpack.c.l.b16 %v22
    %v162 = vunpack.c.l.b16 %v23
    %v163 = vunpack.c.l.b16 %v24
    %v164 = vunpack.c.l.b16 %v25
    %v165 = vunpack.c.l.b16 %v26
    %v166 = vunpack.c.l.b16 %v27
    %v167 = vunpack.c.l.b16 %v28
    %v168 = vunpack.c.l.b16 %v29
    %v169 = vunpack.c.l.b16 %v30
    %v170 = vunpack.c.l.b16 %v31
    %v171 = vunpack.c.l.b16 %v32
    %v172 = vunpack.c.l.b16 %v33
    %v173 = vunpack.c.l.b16 %v34
    %v174 = vunpack.c.l.b16 %v35
    %v175 = vunpack.c.l.b16 %v36
    %v176 = vunpack.c.l.b16 %v37
    %v177 = vunpack.c.l.b16 %v38
    %v178 = vunpack.c.l.b16 %v39
    %v179 = vunpack.c.l.b16 %v40
    %v180 = vunpack.c.l.b16 %v41
    %v181 = vunpack.c.l.b16 %v42
    %v182 = vunpack.c.l.b16 %v43
    %v183 = vunpack.c.l.b16 %v44
    %v184 = vunpack.c.l.b16 %v45
    %v185 = vunpack.c.l.b16 %v46
    %v186 = vunpack.c.l.b16 %v47
    %v187 = vunpack.c.l.b16 %v48
    %v188 = vunpack.c.l.b16 %v49
    %v189 = vunpack.c.l.b16 %v50
    %v190 = vunpack.c.l.b16 %v51
    %v191 = vunpack.c.l.b16 %v52
    %v192 = vunpack.c.l.b16 %v53
    %v193 = vunpack.c.l.b16 %v54
    %v194 = vunpack.c.l.b16 %v55
    %v195 = vunpack.c.l.b16 %v56
    %v196 = vunpack.c.l.b16 %v57
    %v197 = vunpack.c.l.b16 %v58
    %v198 = vunpack.c.l.b16 %v59
    %v199 = vunpack.c.l.b16 %v60
    %v200 = vunpack.c.l.b16 %v61
    %v201 = vunpack.c.l.b16 %v62
    %v202 = vunpack.c.l.b16 %v63
    %v203 = vunpack.c.l.b16 %v64
    %v204 = vunpack.c.l.b16 %v65
    %v205 = vunpack.c.l.b16 %v66
    %v206 = vunpack.c.l.b16 %v67
    %v207 = vunpack.c.l.b16 %v68
    %v208 = vunpack.c.l.b16 %v69
    %v209 = vunpack.c.l.b16 %v70
    %v210 = vunpack.c.l.b16 %v71
    %v211 = vunpack.c.l.b16 %v72
    %v212 = vunpack.c.l.b16 %v73
    %v213 = vunpack.c.l.b16 %v74
    %v214 = vunpack.c.l.b16 %v75
    %v215 = vunpack.c.l.b16 %v76
    %v216 = vunpack.c.l.b16 %v77
    %v217 = vunpack.c.l.b16 %v78
    %v218 = vunpack.c.l.b16 %v79
    %v219 = vpack.c.b16 %v156, %v155
    %v220 = vpack.c.b16 %v158, %v157
    %v221 = vpack.c.b16 %v160, %v159
    %v222 = vpack.c.b16 %v162, %v161
    %v223 = vpack.c.b16 %v164, %v163
    %v224 = vpack.c.b16 %v166, %v165
    %v225 = vpack.c.b16 %v168, %v167
    %v226 = vpack.c.b16 %v170, %v169
    %v227 = vpack.c.b16 %v172, %v171
    %v228 = vpack.c.b16 %v174, %v173
    %v229 = vpack.c.b16 %v176, %v175
    %v230 = vpack.c.b16 %v178, %v177
    %v231 = vpack.c.b16 %v180, %v179
    %v232 = vpack.c.b16 %v182, %v181
    %v233 = vpack.c.b16 %v184, %v183
    %v234 = vpack.c.b16 %v186, %v185
    %v235 = vpack.c.b16 %v188, %v187
    %v236 = vpack.c.b16 %v190, %v189
    %v237 = vpack.c.b16 %v192, %v191
    %v238 = vpack.c.b16 %v194, %v193
    %v239 = vpack.c.b16 %v196, %v195
    %v240 = vpack.c.b16 %v198, %v197
    %v241 = vpack.c.b16 %v200, %v199
    %v242 = vpack.c.b16 %v202, %v201
    %v243 = vpack.c.b16 %v204, %v203
    %v244 = vpack.c.b16 %v206, %v205
    %v245 = vpack.c.b16 %v208, %v207
    %v246 = vpack.c.b16 %v210, %v209
    %v247 = vpack.c.b16 %v212, %v211
    %v248 = vpack.c.b16 %v214, %v213
    %v249 = vpack.c.b16 %v216, %v215
    %v250 = vpack.c.b16 %v218, %v217
    %v255 = vunpack.c.l.b16 %v80
    %v256 = vunpack.c.l.b16 %v81
    %v257 = vunpack.c.l.b16 %v82
    %v258 = vunpack.c.l.b16 %v83
    %v259 = vpack.c.b16 %v256, %v255
    %v260 = vpack.c.b16 %v258, %v257
    %vm263 = vcmask 261120
    %v265 = vsel %vm263, %v219, 0
    %v268 = vsel %vm263, %v220, 0
    %v271 = vsel %vm263, %v221, 0
    %v274 = vsel %vm263, %v222, 0
    %v277 = vsel %vm263, %v223, 0
    %v280 = vsel %vm263, %v224, 0
    %v283 = vsel %vm263, %v225, 0
    %v286 = vsel %vm263, %v226, 0
    %v289 = vsel %vm263, %v227, 0
    %v292 = vsel %vm263, %v228, 0
    %v295 = vsel %vm263, %v229, 0
    %v298 = vsel %vm263, %v230, 0
    %v301 = vsel %vm263, %v231, 0
    %v304 = vsel %vm263, %v232, 0
    %v307 = vsel %vm263, %v233, 0
    %v310 = vsel %vm263, %v234, 0
    %v313 = vsel %vm263, %v235, 0
    %v316 = vsel %vm263, %v236, 0
    %v319 = vsel %vm263, %v237, 0
    %v322 = vsel %vm263, %v238, 0
    %v325 = vsel %vm263, %v239, 0
    %v328 = vsel %vm263, %v240, 0
    %v331 = vsel %vm263, %v241, 0
    %v334 = vsel %vm263, %v242, 0
    %v337 = vsel %vm263, %v243, 0
    %v340 = vsel %vm263, %v244, 0
    %v343 = vsel %vm263, %v245, 0
    %v346 = vsel %vm263, %v246, 0
    %v349 = vsel %vm263, %v247, 0
    %v352 = vsel %vm263, %v248, 0
    %v355 = vsel %vm263, %v249, 0
    %v358 = vsel %vm263, %v250, 0
    %360 = vmatprep.subr.bf16.mxu0 0
    %361 = vmatpush1.bf16.msra.mxu0 %v259
    %362 = vmatprep.subr.bf16.mxu0 0
    %363 = vmatpush1.bf16.msra.mxu0 %v260
    %364 = vmatprep.subr.bf16.mxu0 0
    %365 = vmatpush1.bf16.msra.mxu0 0
    %366 = vmatprep.subr.bf16.mxu0 0
    %367 = vmatpush1.bf16.msra.mxu0 0
    %368 = vmatprep.subr.bf16.mxu0 0
    %369 = vmatpush1.bf16.msra.mxu0 0
    %370 = vmatprep.subr.bf16.mxu0 0
    %371 = vmatpush1.bf16.msra.mxu0 0
    %372 = vmatprep.subr.bf16.mxu0 0
    %373 = vmatpush1.bf16.msra.mxu0 0
    %374 = vmatprep.subr.bf16.mxu0 0
    %375 = vmatpush1.bf16.msra.mxu0 0
    %376 = vmatprep.subr.bf16.mxu0 0
    %377 = vmatpush1.bf16.msra.mxu0 0
    %378 = vmatprep.subr.bf16.mxu0 0
    %379 = vmatpush1.bf16.msra.mxu0 0
    %380 = vmatprep.subr.bf16.mxu0 0
    %381 = vmatpush1.bf16.msra.mxu0 0
    %382 = vmatprep.subr.bf16.mxu0 0
    %383 = vmatpush1.bf16.msra.mxu0 0
    %384 = vmatprep.subr.bf16.mxu0 0
    %385 = vmatpush1.bf16.msra.mxu0 0
    %386 = vmatprep.subr.bf16.mxu0 0
    %387 = vmatpush1.bf16.msra.mxu0 0
    %388 = vmatprep.subr.bf16.mxu0 0
    %389 = vmatpush1.bf16.msra.mxu0 0
    %390 = vmatprep.subr.bf16.mxu0 0
    %391 = vmatpush1.bf16.msra.mxu0 0
    %392 = vmatprep.mubr.bf16.mxu0 0
    %393 = vmatmul.mubr.bf16.gmra.mrb[0].mxu0 %v265
    %v394 = vpop.f32.mrb[0].mxu0
    %v395 = vadd.f32 %v89, %v394
    %v396 = vpop.f32.mrb[0].mxu0
    %v397 = vpop.f32.mrb[0].mxu0
    %v398 = vadd.f32 %v89, %v397
    %v399 = vpop.f32.mrb[0].mxu0
    %400 = vmatprep.mubr.bf16.mxu0 0
    %401 = vmatmul.mubr.bf16.gmra.mrb[0].mxu0 %v268
    %v402 = vpop.f32.mrb[0].mxu0
    %v403 = vadd.f32 %v89, %v402
    %v404 = vpop.f32.mrb[0].mxu0
    %v405 = vpop.f32.mrb[0].mxu0
    %v406 = vadd.f32 %v89, %v405
    %v407 = vpop.f32.mrb[0].mxu0
    %408 = vmatprep.mubr.bf16.mxu0 0
    %409 = vmatmul.mubr.bf16.gmra.mrb[0].mxu0 %v271
    %v410 = vpop.f32.mrb[0].mxu0
    %v411 = vadd.f32 %v89, %v410
    %v412 = vpop.f32.mrb[0].mxu0
    %v413 = vpop.f32.mrb[0].mxu0
    %v414 = vadd.f32 %v89, %v413
    %v415 = vpop.f32.mrb[0].mxu0
    %416 = vmatprep.mubr.bf16.mxu0 0
    %417 = vmatmul.mubr.bf16.gmra.mrb[0].mxu0 %v274
    %v418 = vpop.f32.mrb[0].mxu0
    %v419 = vadd.f32 %v89, %v418
    %v420 = vpop.f32.mrb[0].mxu0
    %v421 = vpop.f32.mrb[0].mxu0
    %v422 = vadd.f32 %v89, %v421
    %v423 = vpop.f32.mrb[0].mxu0
    %424 = vmatprep.mubr.bf16.mxu0 0
    %425 = vmatmul.mubr.bf16.gmra.mrb[0].mxu0 %v277
    %v426 = vpop.f32.mrb[0].mxu0
    %v427 = vadd.f32 %v89, %v426
    %v428 = vpop.f32.mrb[0].mxu0
    %v429 = vpop.f32.mrb[0].mxu0
    %v430 = vadd.f32 %v89, %v429
    %v431 = vpop.f32.mrb[0].mxu0
    %432 = vmatprep.mubr.bf16.mxu0 0
    %433 = vmatmul.mubr.bf16.gmra.mrb[0].mxu0 %v280
    %v434 = vpop.f32.mrb[0].mxu0
    %v435 = vadd.f32 %v89, %v434
    %v436 = vpop.f32.mrb[0].mxu0
    %v437 = vpop.f32.mrb[0].mxu0
    %v438 = vadd.f32 %v89, %v437
    %v439 = vpop.f32.mrb[0].mxu0
    %440 = vmatprep.mubr.bf16.mxu0 0
    %441 = vmatmul.mubr.bf16.gmra.mrb[0].mxu0 %v283
    %v442 = vpop.f32.mrb[0].mxu0
    %v443 = vadd.f32 %v89, %v442
    %v444 = vpop.f32.mrb[0].mxu0
    %v445 = vpop.f32.mrb[0].mxu0
    %v446 = vadd.f32 %v89, %v445
    %v447 = vpop.f32.mrb[0].mxu0
    %448 = vmatprep.mubr.bf16.mxu0 0
    %449 = vmatmul.mubr.bf16.gmra.mrb[0].mxu0 %v286
    %v450 = vpop.f32.mrb[0].mxu0
    %v451 = vadd.f32 %v89, %v450
    %v452 = vpop.f32.mrb[0].mxu0
    %v453 = vpop.f32.mrb[0].mxu0
    %v454 = vadd.f32 %v89, %v453
    %v455 = vpop.f32.mrb[0].mxu0
    %456 = vmatprep.mubr.bf16.mxu0 0
    %457 = vmatmul.mubr.bf16.gmra.mrb[0].mxu0 %v289
    %v458 = vpop.f32.mrb[0].mxu0
    %v459 = vadd.f32 %v89, %v458
    %v460 = vpop.f32.mrb[0].mxu0
    %v461 = vpop.f32.mrb[0].mxu0
    %v462 = vadd.f32 %v89, %v461
    %v463 = vpop.f32.mrb[0].mxu0
    %464 = vmatprep.mubr.bf16.mxu0 0
    %465 = vmatmul.mubr.bf16.gmra.mrb[0].mxu0 %v292
    %v466 = vpop.f32.mrb[0].mxu0
    %v467 = vadd.f32 %v89, %v466
    %v468 = vpop.f32.mrb[0].mxu0
    %v469 = vpop.f32.mrb[0].mxu0
    %v470 = vadd.f32 %v89, %v469
    %v471 = vpop.f32.mrb[0].mxu0
    %472 = vmatprep.mubr.bf16.mxu0 0
    %473 = vmatmul.mubr.bf16.gmra.mrb[0].mxu0 %v295
    %v474 = vpop.f32.mrb[0].mxu0
    %v475 = vadd.f32 %v89, %v474
    %v476 = vpop.f32.mrb[0].mxu0
    %v477 = vpop.f32.mrb[0].mxu0
    %v478 = vadd.f32 %v89, %v477
    %v479 = vpop.f32.mrb[0].mxu0
    %480 = vmatprep.mubr.bf16.mxu0 0
    %481 = vmatmul.mubr.bf16.gmra.mrb[0].mxu0 %v298
    %v482 = vpop.f32.mrb[0].mxu0
    %v483 = vadd.f32 %v89, %v482
    %v484 = vpop.f32.mrb[0].mxu0
    %v485 = vpop.f32.mrb[0].mxu0
    %v486 = vadd.f32 %v89, %v485
    %v487 = vpop.f32.mrb[0].mxu0
    %488 = vmatprep.mubr.bf16.mxu0 0
    %489 = vmatmul.mubr.bf16.gmra.mrb[0].mxu0 %v301
    %v490 = vpop.f32.mrb[0].mxu0
    %v491 = vadd.f32 %v89, %v490
    %v492 = vpop.f32.mrb[0].mxu0
    %v493 = vpop.f32.mrb[0].mxu0
    %v494 = vadd.f32 %v89, %v493
    %v495 = vpop.f32.mrb[0].mxu0
    %496 = vmatprep.mubr.bf16.mxu0 0
    %497 = vmatmul.mubr.bf16.gmra.mrb[0].mxu0 %v304
    %v498 = vpop.f32.mrb[0].mxu0
    %v499 = vadd.f32 %v89, %v498
    %v500 = vpop.f32.mrb[0].mxu0
    %v501 = vpop.f32.mrb[0].mxu0
    %v502 = vadd.f32 %v89, %v501
    %v503 = vpop.f32.mrb[0].mxu0
    %504 = vmatprep.mubr.bf16.mxu0 0
    %505 = vmatmul.mubr.bf16.gmra.mrb[0].mxu0 %v307
    %v506 = vpop.f32.mrb[0].mxu0
    %v507 = vadd.f32 %v89, %v506
    %v508 = vpop.f32.mrb[0].mxu0
    %v509 = vpop.f32.mrb[0].mxu0
    %v510 = vadd.f32 %v89, %v509
    %v511 = vpop.f32.mrb[0].mxu0
    %512 = vmatprep.mubr.bf16.mxu0 0
    %513 = vmatmul.mubr.bf16.gmra.mrb[0].mxu0 %v310
    %v514 = vpop.f32.mrb[0].mxu0
    %v515 = vadd.f32 %v89, %v514
    %v516 = vpop.f32.mrb[0].mxu0
    %v517 = vpop.f32.mrb[0].mxu0
    %v518 = vadd.f32 %v89, %v517
    %v519 = vpop.f32.mrb[0].mxu0
    %520 = vmatprep.mubr.bf16.mxu0 0
    %521 = vmatmul.mubr.bf16.gmra.mrb[0].mxu0 %v313
    %v522 = vpop.f32.mrb[0].mxu0
    %v523 = vadd.f32 %v89, %v522
    %v524 = vpop.f32.mrb[0].mxu0
    %v525 = vpop.f32.mrb[0].mxu0
    %v526 = vadd.f32 %v89, %v525
    %v527 = vpop.f32.mrb[0].mxu0
    %528 = vmatprep.mubr.bf16.mxu0 0
    %529 = vmatmul.mubr.bf16.gmra.mrb[0].mxu0 %v316
    %v530 = vpop.f32.mrb[0].mxu0
    %v531 = vadd.f32 %v89, %v530
    %v532 = vpop.f32.mrb[0].mxu0
    %v533 = vpop.f32.mrb[0].mxu0
    %v534 = vadd.f32 %v89, %v533
    %v535 = vpop.f32.mrb[0].mxu0
    %536 = vmatprep.mubr.bf16.mxu0 0
    %537 = vmatmul.mubr.bf16.gmra.mrb[0].mxu0 %v319
    %v538 = vpop.f32.mrb[0].mxu0
    %v539 = vadd.f32 %v89, %v538
    %v540 = vpop.f32.mrb[0].mxu0
    %v541 = vpop.f32.mrb[0].mxu0
    %v542 = vadd.f32 %v89, %v541
    %v543 = vpop.f32.mrb[0].mxu0
    %544 = vmatprep.mubr.bf16.mxu0 0
    %545 = vmatmul.mubr.bf16.gmra.mrb[0].mxu0 %v322
    %v546 = vpop.f32.mrb[0].mxu0
    %v547 = vadd.f32 %v89, %v546
    %v548 = vpop.f32.mrb[0].mxu0
    %v549 = vpop.f32.mrb[0].mxu0
    %v550 = vadd.f32 %v89, %v549
    %v551 = vpop.f32.mrb[0].mxu0
    %552 = vmatprep.mubr.bf16.mxu0 0
    %553 = vmatmul.mubr.bf16.gmra.mrb[0].mxu0 %v325
    %v554 = vpop.f32.mrb[0].mxu0
    %v555 = vadd.f32 %v89, %v554
    %v556 = vpop.f32.mrb[0].mxu0
    %v557 = vpop.f32.mrb[0].mxu0
    %v558 = vadd.f32 %v89, %v557
    %v559 = vpop.f32.mrb[0].mxu0
    %560 = vmatprep.mubr.bf16.mxu0 0
    %561 = vmatmul.mubr.bf16.gmra.mrb[0].mxu0 %v328
    %v562 = vpop.f32.mrb[0].mxu0
    %v563 = vadd.f32 %v89, %v562
    %v564 = vpop.f32.mrb[0].mxu0
    %v565 = vpop.f32.mrb[0].mxu0
    %v566 = vadd.f32 %v89, %v565
    %v567 = vpop.f32.mrb[0].mxu0
    %568 = vmatprep.mubr.bf16.mxu0 0
    %569 = vmatmul.mubr.bf16.gmra.mrb[0].mxu0 %v331
    %v570 = vpop.f32.mrb[0].mxu0
    %v571 = vadd.f32 %v89, %v570
    %v572 = vpop.f32.mrb[0].mxu0
    %v573 = vpop.f32.mrb[0].mxu0
    %v574 = vadd.f32 %v89, %v573
    %v575 = vpop.f32.mrb[0].mxu0
    %576 = vmatprep.mubr.bf16.mxu0 0
    %577 = vmatmul.mubr.bf16.gmra.mrb[0].mxu0 %v334
    %v578 = vpop.f32.mrb[0].mxu0
    %v579 = vadd.f32 %v89, %v578
    %v580 = vpop.f32.mrb[0].mxu0
    %v581 = vpop.f32.mrb[0].mxu0
    %v582 = vadd.f32 %v89, %v581
    %v583 = vpop.f32.mrb[0].mxu0
    %584 = vmatprep.mubr.bf16.mxu0 0
    %585 = vmatmul.mubr.bf16.gmra.mrb[0].mxu0 %v337
    %v586 = vpop.f32.mrb[0].mxu0
    %v587 = vadd.f32 %v89, %v586
    %v588 = vpop.f32.mrb[0].mxu0
    %v589 = vpop.f32.mrb[0].mxu0
    %v590 = vadd.f32 %v89, %v589
    %v591 = vpop.f32.mrb[0].mxu0
    %592 = vmatprep.mubr.bf16.mxu0 0
    %593 = vmatmul.mubr.bf16.gmra.mrb[0].mxu0 %v340
    %v594 = vpop.f32.mrb[0].mxu0
    %v595 = vadd.f32 %v89, %v594
    %v596 = vpop.f32.mrb[0].mxu0
    %v597 = vpop.f32.mrb[0].mxu0
    %v598 = vadd.f32 %v89, %v597
    %v599 = vpop.f32.mrb[0].mxu0
    %600 = vmatprep.mubr.bf16.mxu0 0
    %601 = vmatmul.mubr.bf16.gmra.mrb[0].mxu0 %v343
    %v602 = vpop.f32.mrb[0].mxu0
    %v603 = vadd.f32 %v89, %v602
    %v604 = vpop.f32.mrb[0].mxu0
    %v605 = vpop.f32.mrb[0].mxu0
    %v606 = vadd.f32 %v89, %v605
    %v607 = vpop.f32.mrb[0].mxu0
    %608 = vmatprep.mubr.bf16.mxu0 0
    %609 = vmatmul.mubr.bf16.gmra.mrb[0].mxu0 %v346
    %v610 = vpop.f32.mrb[0].mxu0
    %v611 = vadd.f32 %v89, %v610
    %v612 = vpop.f32.mrb[0].mxu0
    %v613 = vpop.f32.mrb[0].mxu0
    %v614 = vadd.f32 %v89, %v613
    %v615 = vpop.f32.mrb[0].mxu0
    %616 = vmatprep.mubr.bf16.mxu0 0
    %617 = vmatmul.mubr.bf16.gmra.mrb[0].mxu0 %v349
    %v618 = vpop.f32.mrb[0].mxu0
    %v619 = vadd.f32 %v89, %v618
    %v620 = vpop.f32.mrb[0].mxu0
    %v621 = vpop.f32.mrb[0].mxu0
    %v622 = vadd.f32 %v89, %v621
    %v623 = vpop.f32.mrb[0].mxu0
    %624 = vmatprep.mubr.bf16.mxu0 0
    %625 = vmatmul.mubr.bf16.gmra.mrb[0].mxu0 %v352
    %v626 = vpop.f32.mrb[0].mxu0
    %v627 = vadd.f32 %v89, %v626
    %v628 = vpop.f32.mrb[0].mxu0
    %v629 = vpop.f32.mrb[0].mxu0
    %v630 = vadd.f32 %v89, %v629
    %v631 = vpop.f32.mrb[0].mxu0
    %632 = vmatprep.mubr.bf16.mxu0 0
    %633 = vmatmul.mubr.bf16.gmra.mrb[0].mxu0 %v355
    %v634 = vpop.f32.mrb[0].mxu0
    %v635 = vadd.f32 %v89, %v634
    %v636 = vpop.f32.mrb[0].mxu0
    %v637 = vpop.f32.mrb[0].mxu0
    %v638 = vadd.f32 %v89, %v637
    %v639 = vpop.f32.mrb[0].mxu0
    %640 = vmatprep.mubr.bf16.mxu0 0
    %641 = vmatmul.mubr.bf16.gmra.mrb[0].mxu0 %v358
    %v642 = vpop.f32.mrb[0].mxu0
    %v643 = vadd.f32 %v89, %v642
    %v644 = vpop.f32.mrb[0].mxu0
    %v645 = vpop.f32.mrb[0].mxu0
    %v646 = vadd.f32 %v89, %v645
    %v647 = vpop.f32.mrb[0].mxu0
    %648 = vdwg.mxu0
    %649 = vst.msk [vmem:[#allocation2] sm:$0xff] %vm263, %v395
    %650 = vst.msk [vmem:[#allocation2 + $0x8] sm:$0xff] %vm263, %v398
    %651 = vst.msk [vmem:[#allocation2 + $0x10] sm:$0xff] %vm263, %v403
    %652 = vst.msk [vmem:[#allocation2 + $0x18] sm:$0xff] %vm263, %v406
    %653 = vst.msk [vmem:[#allocation2 + $0x20] sm:$0xff] %vm263, %v411
    %654 = vst.msk [vmem:[#allocation2 + $0x28] sm:$0xff] %vm263, %v414
    %655 = vst.msk [vmem:[#allocation2 + $0x30] sm:$0xff] %vm263, %v419
    %656 = vst.msk [vmem:[#allocation2 + $0x38] sm:$0xff] %vm263, %v422
    %657 = vst.msk [vmem:[#allocation2 + $0x40] sm:$0xff] %vm263, %v427
    %658 = vst.msk [vmem:[#allocation2 + $0x48] sm:$0xff] %vm263, %v430
    %659 = vst.msk [vmem:[#allocation2 + $0x50] sm:$0xff] %vm263, %v435
    %660 = vst.msk [vmem:[#allocation2 + $0x58] sm:$0xff] %vm263, %v438
    %661 = vst.msk [vmem:[#allocation2 + $0x60] sm:$0xff] %vm263, %v443
    %662 = vst.msk [vmem:[#allocation2 + $0x68] sm:$0xff] %vm263, %v446
    %663 = vst.msk [vmem:[#allocation2 + $0x70] sm:$0xff] %vm263, %v451
    %664 = vst.msk [vmem:[#allocation2 + $0x78] sm:$0xff] %vm263, %v454
    %665 = vst.msk [vmem:[#allocation2 + $0x80] sm:$0xff] %vm263, %v459
    %666 = vst.msk [vmem:[#allocation2 + $0x88] sm:$0xff] %vm263, %v462
    %667 = vst.msk [vmem:[#allocation2 + $0x90] sm:$0xff] %vm263, %v467
    %668 = vst.msk [vmem:[#allocation2 + $0x98] sm:$0xff] %vm263, %v470
    %669 = vst.msk [vmem:[#allocation2 + $0xa0] sm:$0xff] %vm263, %v475
    %670 = vst.msk [vmem:[#allocation2 + $0xa8] sm:$0xff] %vm263, %v478
    %671 = vst.msk [vmem:[#allocation2 + $0xb0] sm:$0xff] %vm263, %v483
    %672 = vst.msk [vmem:[#allocation2 + $0xb8] sm:$0xff] %vm263, %v486
    %673 = vst.msk [vmem:[#allocation2 + $0xc0] sm:$0xff] %vm263, %v491
    %674 = vst.msk [vmem:[#allocation2 + $0xc8] sm:$0xff] %vm263, %v494
    %675 = vst.msk [vmem:[#allocation2 + $0xd0] sm:$0xff] %vm263, %v499
    %676 = vst.msk [vmem:[#allocation2 + $0xd8] sm:$0xff] %vm263, %v502
    %677 = vst.msk [vmem:[#allocation2 + $0xe0] sm:$0xff] %vm263, %v507
    %678 = vst.msk [vmem:[#allocation2 + $0xe8] sm:$0xff] %vm263, %v510
    %679 = vst.msk [vmem:[#allocation2 + $0xf0] sm:$0xff] %vm263, %v515
    %680 = vst.msk [vmem:[#allocation2 + $0xf8] sm:$0xff] %vm263, %v518
    %681 = vst.msk [vmem:[#allocation2 + $0x100] sm:$0xff] %vm263, %v523
    %682 = vst.msk [vmem:[#allocation2 + $0x108] sm:$0xff] %vm263, %v526
    %683 = vst.msk [vmem:[#allocation2 + $0x110] sm:$0xff] %vm263, %v531
    %684 = vst.msk [vmem:[#allocation2 + $0x118] sm:$0xff] %vm263, %v534
    %685 = vst.msk [vmem:[#allocation2 + $0x120] sm:$0xff] %vm263, %v539
    %686 = vst.msk [vmem:[#allocation2 + $0x128] sm:$0xff] %vm263, %v542
    %687 = vst.msk [vmem:[#allocation2 + $0x130] sm:$0xff] %vm263, %v547
    %688 = vst.msk [vmem:[#allocation2 + $0x138] sm:$0xff] %vm263, %v550
    %689 = vst.msk [vmem:[#allocation2 + $0x140] sm:$0xff] %vm263, %v555
    %690 = vst.msk [vmem:[#allocation2 + $0x148] sm:$0xff] %vm263, %v558
    %691 = vst.msk [vmem:[#allocation2 + $0x150] sm:$0xff] %vm263, %v563
    %692 = vst.msk [vmem:[#allocation2 + $0x158] sm:$0xff] %vm263, %v566
    %693 = vst.msk [vmem:[#allocation2 + $0x160] sm:$0xff] %vm263, %v571
    %694 = vst.msk [vmem:[#allocation2 + $0x168] sm:$0xff] %vm263, %v574
    %695 = vst.msk [vmem:[#allocation2 + $0x170] sm:$0xff] %vm263, %v579
    %696 = vst.msk [vmem:[#allocation2 + $0x178] sm:$0xff] %vm263, %v582
    %697 = vst.msk [vmem:[#allocation2 + $0x180] sm:$0xff] %vm263, %v587
    %698 = vst.msk [vmem:[#allocation2 + $0x188] sm:$0xff] %vm263, %v590
    %699 = vst.msk [vmem:[#allocation2 + $0x190] sm:$0xff] %vm263, %v595
    %700 = vst.msk [vmem:[#allocation2 + $0x198] sm:$0xff] %vm263, %v598
    %701 = vst.msk [vmem:[#allocation2 + $0x1a0] sm:$0xff] %vm263, %v603
    %702 = vst.msk [vmem:[#allocation2 + $0x1a8] sm:$0xff] %vm263, %v606
    %703 = vst.msk [vmem:[#allocation2 + $0x1b0] sm:$0xff] %vm263, %v611
    %704 = vst.msk [vmem:[#allocation2 + $0x1b8] sm:$0xff] %vm263, %v614
    %705 = vst.msk [vmem:[#allocation2 + $0x1c0] sm:$0xff] %vm263, %v619
    %706 = vst.msk [vmem:[#allocation2 + $0x1c8] sm:$0xff] %vm263, %v622
    %707 = vst.msk [vmem:[#allocation2 + $0x1d0] sm:$0xff] %vm263, %v627
    %708 = vst.msk [vmem:[#allocation2 + $0x1d8] sm:$0xff] %vm263, %v630
    %709 = vst.msk [vmem:[#allocation2 + $0x1e0] sm:$0xff] %vm263, %v635
    %710 = vst.msk [vmem:[#allocation2 + $0x1e8] sm:$0xff] %vm263, %v638
    %711 = vst.msk [vmem:[#allocation2 + $0x1f0] sm:$0xff] %vm263, %v643
    %712 = vst.msk [vmem:[#allocation2 + $0x1f8] sm:$0xff] %vm263, %v646
    // Predicated region
    $region14: #{attention_forward.5} parent=1 // pred_check
      _
    $region15: #{attention_forward.5} parent=1 // pred_check_branch
      %714 = sbr.rel (0) target = $region17
    $region16: #{attention_forward.5} parent=1 // pred_region
      %s716 = ssub.s32 8192, 8192
      %717 = vsyncadd [#allocation3], %s716
      %s718 = sshll.u32 [#allocation2], 4
      %s719 = int_to_ptr.vmem [resolvable:$true] %s718
      %724 = dma.vmem_to_hbm [thread:$0]  %s719, 8192, %s3, [#allocation3], 128, 128, 8
    $region17: #{attention_forward.5} parent=1 // pred_fallthru
      _
    // Predicated region
    $region18: #{attention_forward.5} parent=1 // pred_check
      _
    $region19: #{attention_forward.5} parent=1 // pred_check_branch
      %726 = sbr.rel (0) target = $region21
    $region20: #{attention_forward.5} parent=1 // pred_region
      %727 = dma.done [#allocation3], 8192
    $region21: #{attention_forward.5} parent=1 // pred_fallthru
      _
    %728 = vsyncpa [#allocation3], 1

// kernel: attention_forward.4
$region0: #{attention_forward.4}
  #allocation0 [shape = 'u32[]', space=smem, size = 0x4, offset = 0x4, fixed_abs, tag = 'smem constant byte address 0x4 - core index']
  #allocation1 [shape = 'u32[144,128]{1,0:T(1,128)}', space=vmem, size = 0x12000, scoped, tag = 'internal scratch']
  #allocation2 [shape = 'f32[128,1]{1,0:T(8,128)}', space=vmem, size = 0x10000, scoped, tag = 'scratch operand']
  #allocation3 [shape = 'f32[128,1]{1,0:T(8,128)}', space=vmem, size = 0x10000, scoped, tag = 'scratch operand']
  #allocation4 [shape = 'f32[128,8]{1,0:T(8,128)}', space=vmem, size = 0x10000, scoped, tag = 'scratch operand']
  #allocation5 [shape = 'f32[128,16]{1,0:T(8,128)}', space=vmem, size = 0x10000, scoped, tag = 'scratch operand']
  %s0 = inlined_call_operand.vmem [shape: bf16[2,4,256,8], index: 0, kind: input, shape index: {}]
  %s1 = inlined_call_operand.vmem [shape: bf16[2,4,256,8], index: 1, kind: input, shape index: {}]
  %s2 = inlined_call_operand.vmem [shape: bf16[2,4,256,8], index: 2, kind: input, shape index: {}]
  %s3 = inlined_call_operand.vmem [shape: bf16[16,16,8], index: 3, kind: input, shape index: {}]
  %s4 = inlined_call_operand.vmem [shape: bf16[16,16,8], index: 4, kind: input, shape index: {}]
  %s5 = inlined_call_operand.vmem [shape: bf16[2,4,256,8], index: 5, kind: output, shape index: {}]
  %s6 = sld [smem:[#allocation0]]
  $region102: #{attention_forward.4} parent=0
    _
  %s8 = ssub.s32 1, %s6
  %s9 = scalar_select 0, %s8, %s6
  $region1: #{attention_forward.4} parent=0
    #allocation6 [shape = 'u8[32768]{0}', space=vmem, size = 0x8000, scoped, tag = 'input window, operand 3']
    loop: start=0, step=1, limit=34
    $region2: #{attention_forward.4} parent=1 // loop_pre_header
      _
    $region3: #{attention_forward.4} parent=1 // loop_header
      %s11 = sphi 0, %s15
      %p12 = scmp.ge.s32.totalorder %s11, 34
      %s18 = sphi 0, %s44
      %s19 = sphi 0, %s40
      %s20 = sphi 0, %s36
      %s21 = sphi 0, %s32
      %s22 = sphi 0, %s18
      %s23 = sphi 0, %s19
      %s24 = sphi 0, %s20
      %s25 = sphi 0, %s21
      %s26 = sphi 0, %s22
      %s27 = sphi 0, %s23
      %s28 = sphi 0, %s24
      %s29 = sphi 0, %s25
      %s51 = sphi 0, %s53
      %s54 = sphi 0, %s51
      %s55 = sphi 0, %s54
      %s71 = sphi 0, %s55
      %s81 = sphi 0, %s83
      %s84 = sphi 0, %s81
      %s85 = sphi 0, %s84
      %s101 = sphi 0, %s85
      %s111 = sphi 0, %s113
      %s114 = sphi 0, %s111
      %s115 = sphi 0, %s114
      %s131 = sphi 0, %s115
      %s139 = sphi 0, %s141
      %s142 = sphi 0, %s139
      %s143 = sphi 0, %s142
      %s159 = sphi 0, %s143
      %s163 = sphi 0, %s163
      %s165 = sphi 0, %s163
      %s166 = sphi 0, %s165
      %s180 = sphi 0, %s166
      %s190 = sphi 0, %s192
      %s193 = sphi 0, %s190
      %s194 = sphi 0, %s193
      %s210 = sphi 0, %s194
    $region4: #{attention_forward.4} parent=1 // loop_header_branch
      %14 = sbr.rel (%p12) target = $region8
    $region5: #{attention_forward.4} parent=1 // loop_body
      %s16 = ssub.s32 %s11, 1
      %s17 = ssub.s32 %s11, 2
      %s30 = sadd.s32 1, %s21
      %p31 = scmp.ge.s32.totalorder %s30, 2
      %s32 = scalar_select %p31, 0, %s30
      %s33 = sadd.s32 1, %s20
      %s34 = scalar_select %p31, %s33, %s20
      %p35 = scmp.ge.s32.totalorder %s34, 2
      %s36 = scalar_select %p35, 0, %s34
      %s37 = sadd.s32 1, %s19
      %s38 = scalar_select %p35, %s37, %s19
      %p39 = scmp.ge.s32.totalorder %s38, 4
      %s40 = scalar_select %p39, 0, %s38
      %s41 = sadd.s32 1, %s18
      %s42 = scalar_select %p39, %s41, %s18
      %p43 = scmp.ge.s32.totalorder %s42, 2
      %s44 = scalar_select %p43, 0, %s42
      %s45 = ssub.s32 %s18, %s44
      %s46 = ssub.s32 %s19, %s40
      %s47 = sor.u32 %s45, %s46
      %s48 = ssub.s32 %s20, %s36
      %s49 = sor.u32 %s47, %s48
      %p50 = scmp.eq.s32.totalorder %s49, 0
      %s52 = sadd.s32 %s51, 1
      %s53 = scalar_select %p50, %s51, %s52
      %p56 = pneg %p50
      %p57 = scmp.eq.s32.totalorder %s11, 31
      %p58 = por %p56, %p57
      %p59 = scmp.ne.s32.totalorder %s51, %s54
      %p60 = scmp.eq.s32.totalorder %s11, 0
      %p61 = por %p59, %p60
      %p62 = scmp.ne.s32.totalorder %s51, %s54
      %p63 = scmp.eq.s32.totalorder %s16, 31
      %p64 = por %p62, %p63
      %p65 = scmp.ne.s32.totalorder %s54, %s55
      %p66 = scmp.eq.s32.totalorder %s16, 0
      %p67 = por %p65, %p66
      %p68 = scmp.ne.s32.totalorder %s54, %s55
      %p69 = scmp.eq.s32.totalorder %s17, 31
      %p70 = por %p68, %p69
      %p72 = scmp.ne.s32.totalorder %s55, %s71
      %p73 = scmp.eq.s32.totalorder %s17, 0
      %p74 = por %p72, %p73
      %s75 = ssub.s32 %s18, %s44
      %s76 = ssub.s32 %s19, %s40
      %s77 = sor.u32 %s75, %s76
      %s78 = ssub.s32 %s21, %s32
      %s79 = sor.u32 %s77, %s78
      %p80 = scmp.eq.s32.totalorder %s79, 0
      %s82 = sadd.s32 %s81, 1
      %s83 = scalar_select %p80, %s81, %s82
      %p86 = pneg %p80
      %p87 = scmp.eq.s32.totalorder %s11, 31
      %p88 = por %p86, %p87
      %p89 = scmp.ne.s32.totalorder %s81, %s84
      %p90 = scmp.eq.s32.totalorder %s11, 0
      %p91 = por %p89, %p90
      %p92 = scmp.ne.s32.totalorder %s81, %s84
      %p93 = scmp.eq.s32.totalorder %s16, 31
      %p94 = por %p92, %p93
      %p95 = scmp.ne.s32.totalorder %s84, %s85
      %p96 = scmp.eq.s32.totalorder %s16, 0
      %p97 = por %p95, %p96
      %p98 = scmp.ne.s32.totalorder %s84, %s85
      %p99 = scmp.eq.s32.totalorder %s17, 31
      %p100 = por %p98, %p99
      %p102 = scmp.ne.s32.totalorder %s85, %s101
      %p103 = scmp.eq.s32.totalorder %s17, 0
      %p104 = por %p102, %p103
      %s105 = ssub.s32 %s18, %s44
      %s106 = ssub.s32 %s19, %s40
      %s107 = sor.u32 %s105, %s106
      %s108 = ssub.s32 %s21, %s32
      %s109 = sor.u32 %s107, %s108
      %p110 = scmp.eq.s32.totalorder %s109, 0
      %s112 = sadd.s32 %s111, 1
      %s113 = scalar_select %p110, %s111, %s112
      %p116 = pneg %p110
      %p117 = scmp.eq.s32.totalorder %s11, 31
      %p118 = por %p116, %p117
      %p119 = scmp.ne.s32.totalorder %s111, %s114
      %p120 = scmp.eq.s32.totalorder %s11, 0
      %p121 = por %p119, %p120
      %p122 = scmp.ne.s32.totalorder %s111, %s114
      %p123 = scmp.eq.s32.totalorder %s16, 31
      %p124 = por %p122, %p123
      %p125 = scmp.ne.s32.totalorder %s114, %s115
      %p126 = scmp.eq.s32.totalorder %s16, 0
      %p127 = por %p125, %p126
      %p128 = scmp.ne.s32.totalorder %s114, %s115
      %p129 = scmp.eq.s32.totalorder %s17, 31
      %p130 = por %p128, %p129
      %p132 = scmp.ne.s32.totalorder %s115, %s131
      %p133 = scmp.eq.s32.totalorder %s17, 0
      %p134 = por %p132, %p133
      %s135 = ssub.s32 %s20, %s36
      %s136 = ssub.s32 %s21, %s32
      %s137 = sor.u32 %s135, %s136
      %p138 = scmp.eq.s32.totalorder %s137, 0
      %s140 = sadd.s32 %s139, 1
      %s141 = scalar_select %p138, %s139, %s140
      %p144 = pneg %p138
      %p145 = scmp.eq.s32.totalorder %s11, 31
      %p146 = por %p144, %p145
      %p147 = scmp.ne.s32.totalorder %s139, %s142
      %p148 = scmp.eq.s32.totalorder %s11, 0
      %p149 = por %p147, %p148
      %p150 = scmp.ne.s32.totalorder %s139, %s142
      %p151 = scmp.eq.s32.totalorder %s16, 31
      %p152 = por %p150, %p151
      %p153 = scmp.ne.s32.totalorder %s142, %s143
      %p154 = scmp.eq.s32.totalorder %s16, 0
      %p155 = por %p153, %p154
      %p156 = scmp.ne.s32.totalorder %s142, %s143
      %p157 = scmp.eq.s32.totalorder %s17, 31
      %p158 = por %p156, %p157
      %p160 = scmp.ne.s32.totalorder %s143, %s159
      %p161 = scmp.eq.s32.totalorder %s17, 0
      %p162 = por %p160, %p161
      %s164 = sadd.s32 %s163, 1
      %p167 = scmp.eq.s32.totalorder %s11, 31
      %p168 = scmp.ne.s32.totalorder %s163, %s165
      %p169 = scmp.eq.s32.totalorder %s11, 0
      %p170 = por %p168, %p169
      %p171 = scmp.ne.s32.totalorder %s163, %s165
      %p172 = scmp.eq.s32.totalorder %s16, 31
      %p173 = por %p171, %p172
      %p174 = scmp.ne.s32.totalorder %s165, %s166
      %p175 = scmp.eq.s32.totalorder %s16, 0
      %p176 = por %p174, %p175
      %p177 = scmp.ne.s32.totalorder %s165, %s166
      %p178 = scmp.eq.s32.totalorder %s17, 31
      %p179 = por %p177, %p178
      %p181 = scmp.ne.s32.totalorder %s166, %s180
      %p182 = scmp.eq.s32.totalorder %s17, 0
      %p183 = por %p181, %p182
      %s184 = ssub.s32 %s18, %s44
      %s185 = ssub.s32 %s19, %s40
      %s186 = sor.u32 %s184, %s185
      %s187 = ssub.s32 %s20, %s36
      %s188 = sor.u32 %s186, %s187
      %p189 = scmp.eq.s32.totalorder %s188, 0
      %s191 = sadd.s32 %s190, 1
      %s192 = scalar_select %p189, %s190, %s191
      %p195 = pneg %p189
      %p196 = scmp.eq.s32.totalorder %s11, 31
      %p197 = por %p195, %p196
      %p198 = scmp.ne.s32.totalorder %s190, %s193
      %p199 = scmp.eq.s32.totalorder %s11, 0
      %p200 = por %p198, %p199
      %p201 = scmp.ne.s32.totalorder %s190, %s193
      %p202 = scmp.eq.s32.totalorder %s16, 31
      %p203 = por %p201, %p202
      %p204 = scmp.ne.s32.totalorder %s193, %s194
      %p205 = scmp.eq.s32.totalorder %s16, 0
      %p206 = por %p204, %p205
      %p207 = scmp.ne.s32.totalorder %s193, %s194
      %p208 = scmp.eq.s32.totalorder %s17, 31
      %p209 = por %p207, %p208
      %p211 = scmp.ne.s32.totalorder %s194, %s210
      %p212 = scmp.eq.s32.totalorder %s17, 0
      %p213 = por %p211, %p212
      %p214 = scmp.le.s32.totalorder 1, %s11
      %p215 = scmp.lt.s32.totalorder %s11, 33
      %p216 = pnand %p214, %p215
      %p217 = pneg %p216
      // Predicated region
      $region9: #{attention_forward.4} parent=5 // pred_check
        _
      $region10: #{attention_forward.4} parent=5 // pred_check_branch
        %219 = sbr.rel (%p216) target = $region12
      $region11: #{attention_forward.4} parent=5 // pred_region
        %s220 = ssub.s32 %s11, 1
        // Predicated region
        $region13: #{attention_forward.4} parent=11 // pred_check
          %p221 = pneg %p176
        $region14: #{attention_forward.4} parent=11 // pred_check_branch
          %223 = sbr.rel (%p221) target = $region16
        $region15: #{attention_forward.4} parent=11 // pred_region
          _
        $region16: #{attention_forward.4} parent=11 // pred_fallthru
          _
      $region12: #{attention_forward.4} parent=5 // pred_fallthru
        _
      %p224 = scmp.lt.s32.totalorder %s11, 32
      // Predicated region
      $region17: #{attention_forward.4} parent=5 // pred_check
        %p225 = pneg %p224
      $region18: #{attention_forward.4} parent=5 // pred_check_branch
        %227 = sbr.rel (%p225) target = $region20
      $region19: #{attention_forward.4} parent=5 // pred_region
        // Predicated region
        $region21: #{attention_forward.4} parent=19 // pred_check
          %p228 = pneg %p61
        $region22: #{attention_forward.4} parent=19 // pred_check_branch
          %230 = sbr.rel (%p228) target = $region24
        $region23: #{attention_forward.4} parent=19 // pred_region
          %s231 = smul.u32 16, %s20
          %p232 = scmp.lt.s32.totalorder %s18, 1
          %s233 = scalar_select %p232, %s18, 1
          %p234 = scmp.lt.s32.totalorder %s19, 3
          %s235 = scalar_select %p234, %s19, 3
          %p236 = scmp.lt.s32.totalorder %s231, 31
          %s237 = scalar_select %p236, %s231, 31
          %s238 = smul.addr %s235, 32
          %s239 = sadd.s32 %s237, %s238
          %s240 = smul.addr %s233, 128
          %s241 = sadd.s32 %s239, %s240
          %s242 = smul.addr %s241, 4
          %s243 = scalar_lea.vmem %s0, %s242
          %s244 = smul.u32 16, %s20
        $region24: #{attention_forward.4} parent=19 // pred_fallthru
          _
        // Predicated region
        $region25: #{attention_forward.4} parent=19 // pred_check
          %p245 = pneg %p91
        $region26: #{attention_forward.4} parent=19 // pred_check_branch
          %247 = sbr.rel (%p245) target = $region28
        $region27: #{attention_forward.4} parent=19 // pred_region
          %s248 = smul.u32 16, %s21
          %p249 = scmp.lt.s32.totalorder %s18, 1
          %s250 = scalar_select %p249, %s18, 1
          %p251 = scmp.lt.s32.totalorder %s19, 3
          %s252 = scalar_select %p251, %s19, 3
          %p253 = scmp.lt.s32.totalorder %s248, 31
          %s254 = scalar_select %p253, %s248, 31
          %s255 = smul.addr %s252, 32
          %s256 = sadd.s32 %s254, %s255
          %s257 = smul.addr %s250, 128
          %s258 = sadd.s32 %s256, %s257
          %s259 = smul.addr %s258, 4
          %s260 = scalar_lea.vmem %s1, %s259
          %s261 = smul.u32 16, %s21
        $region28: #{attention_forward.4} parent=19 // pred_fallthru
          _
        // Predicated region
        $region29: #{attention_forward.4} parent=19 // pred_check
          %p262 = pneg %p121
        $region30: #{attention_forward.4} parent=19 // pred_check_branch
          %264 = sbr.rel (%p262) target = $region32
        $region31: #{attention_forward.4} parent=19 // pred_region
          %s265 = smul.u32 16, %s21
          %p266 = scmp.lt.s32.totalorder %s18, 1
          %s267 = scalar_select %p266, %s18, 1
          %p268 = scmp.lt.s32.totalorder %s19, 3
          %s269 = scalar_select %p268, %s19, 3
          %p270 = scmp.lt.s32.totalorder %s265, 31
          %s271 = scalar_select %p270, %s265, 31
          %s272 = smul.addr %s269, 32
          %s273 = sadd.s32 %s271, %s272
          %s274 = smul.addr %s267, 128
          %s275 = sadd.s32 %s273, %s274
          %s276 = smul.addr %s275, 4
          %s277 = scalar_lea.vmem %s2, %s276
          %s278 = smul.u32 16, %s21
        $region32: #{attention_forward.4} parent=19 // pred_fallthru
          _
        // Predicated region
        $region33: #{attention_forward.4} parent=19 // pred_check
          %p279 = pneg %p149
        $region34: #{attention_forward.4} parent=19 // pred_check_branch
          %281 = sbr.rel (%p279) target = $region36
        $region35: #{attention_forward.4} parent=19 // pred_region
          %s282 = sand.u32 %s139, 1
          %s283 = sand.u32 %s139, 1
          %s284 = smul.addr %s283, 32
          %s285 = scalar_lea.vmem [#allocation6], %s284
          %s286 = smul.u32 8, %s20
          %s287 = smul.addr %s286, 2
          %s288 = sadd.s32 %s21, %s287
          %s289 = smul.addr %s288, 4
          %s290 = scalar_lea.vmem %s3, %s289
          // Predicated region
          $region37: #{attention_forward.4} parent=35 // pred_check
            _
          $region38: #{attention_forward.4} parent=35 // pred_check_branch
            %292 = sbr.rel (0) target = $region40
          $region39: #{attention_forward.4} parent=35 // pred_region
            // Predicated region
            $region41: #{attention_forward.4} parent=39 // pred_check
              _
            $region42: #{attention_forward.4} parent=39 // pred_check_branch
              %294 = sbr.rel target = $region44
            $region43: #{attention_forward.4} parent=39 // pred_region
              // Predicated region
              $region56: #{attention_forward.4} parent=43 // pred_check
                _
              $region57: #{attention_forward.4} parent=43 // pred_check_branch
                %323 = sbr.rel (0) target = $region59
              $region58: #{attention_forward.4} parent=43 // pred_region
                loop: start=0, step=1, limit=1
                $region60: #{attention_forward.4} parent=58 // loop_pre_header
                  _
                $region61: #{attention_forward.4} parent=58 // loop_header
                  %s325 = sphi 0, %s329
                  %p326 = scmp.ge.s32.totalorder %s325, 1
                  %s330 = sphi %s290, %s290
                  %s331 = sphi %s285, %s285
                $region62: #{attention_forward.4} parent=58 // loop_header_branch
                  %328 = sbr.rel (%p326) target = $region66
                $region63: #{attention_forward.4} parent=58 // loop_body
                  _
                $region64: #{attention_forward.4} parent=58 // loop_footer
                  %s329 = sadd.s32 1, %s325
                $region65: #{attention_forward.4} parent=58 // loop_footer_branch
                  %324 = sbr.rel target = $region61
                $region66: #{attention_forward.4} parent=58 // loop_exit
                  _
                loop: start=0, step=1, limit=1
                $region67: #{attention_forward.4} parent=58 // loop_pre_header
                  _
                $region68: #{attention_forward.4} parent=58 // loop_header
                  %s334 = sphi 0, %s338
                  %p335 = scmp.ge.s32.totalorder %s334, 1
                  %s339 = sphi %s290, %s290
                  %s340 = sphi %s285, %s285
                $region69: #{attention_forward.4} parent=58 // loop_header_branch
                  %337 = sbr.rel (%p335) target = $region73
                $region70: #{attention_forward.4} parent=58 // loop_body
                  %v341 = vld [vmem:[%s339] sm:$0xf]
                  %342 = vst [vmem:[%s340] sm:$0xf] %v341
                  %v343 = vld [vmem:[%s339 + $0x8] sm:$0xf]
                  %344 = vst [vmem:[%s340 + $0x4] sm:$0xf] %v343
                  %v345 = vld [vmem:[%s339 + $0x10] sm:$0xf]
                  %346 = vst [vmem:[%s340 + $0x8] sm:$0xf] %v345
                  %v347 = vld [vmem:[%s339 + $0x18] sm:$0xf]
                  %348 = vst [vmem:[%s340 + $0xc] sm:$0xf] %v347
                  %v349 = vld [vmem:[%s339 + $0x20] sm:$0xf]
                  %350 = vst [vmem:[%s340 + $0x10] sm:$0xf] %v349
                  %v351 = vld [vmem:[%s339 + $0x28] sm:$0xf]
                  %352 = vst [vmem:[%s340 + $0x14] sm:$0xf] %v351
                  %v353 = vld [vmem:[%s339 + $0x30] sm:$0xf]
                  %354 = vst [vmem:[%s340 + $0x18] sm:$0xf] %v353
                  %v355 = vld [vmem:[%s339 + $0x38] sm:$0xf]
                  %356 = vst [vmem:[%s340 + $0x1c] sm:$0xf] %v355
                $region71: #{attention_forward.4} parent=58 // loop_footer
                  %s338 = sadd.s32 1, %s334
                $region72: #{attention_forward.4} parent=58 // loop_footer_branch
                  %333 = sbr.rel target = $region68
                $region73: #{attention_forward.4} parent=58 // loop_exit
                  _
              $region59: #{attention_forward.4} parent=43 // pred_fallthru
                _
            $region44: #{attention_forward.4} parent=39 // pred_fallthru
              _
            // Predicated region
            $region45: #{attention_forward.4} parent=39 // pred_check
              _
            $region46: #{attention_forward.4} parent=39 // pred_check_branch
              %296 = sbr.rel (0) target = $region48
            $region47: #{attention_forward.4} parent=39 // pred_region
              loop: start=0, step=1, limit=1
              $region49: #{attention_forward.4} parent=47 // loop_pre_header
                _
              $region50: #{attention_forward.4} parent=47 // loop_header
                %s299 = sphi 0, %s303
                %p300 = scmp.ge.s32.totalorder %s299, 1
                %s304 = sphi %s290, %s290
                %s305 = sphi %s285, %s285
              $region51: #{attention_forward.4} parent=47 // loop_header_branch
                %302 = sbr.rel (%p300) target = $region55
              $region52: #{attention_forward.4} parent=47 // loop_body
                %v306 = vld [vmem:[%s304] sm:$0xf]
                %307 = vst [vmem:[%s305] sm:$0xf] %v306
                %v308 = vld [vmem:[%s304 + $0x8] sm:$0xf]
                %309 = vst [vmem:[%s305 + $0x4] sm:$0xf] %v308
                %v310 = vld [vmem:[%s304 + $0x10] sm:$0xf]
                %311 = vst [vmem:[%s305 + $0x8] sm:$0xf] %v310
                %v312 = vld [vmem:[%s304 + $0x18] sm:$0xf]
                %313 = vst [vmem:[%s305 + $0xc] sm:$0xf] %v312
                %v314 = vld [vmem:[%s304 + $0x20] sm:$0xf]
                %315 = vst [vmem:[%s305 + $0x10] sm:$0xf] %v314
                %v316 = vld [vmem:[%s304 + $0x28] sm:$0xf]
                %317 = vst [vmem:[%s305 + $0x14] sm:$0xf] %v316
                %v318 = vld [vmem:[%s304 + $0x30] sm:$0xf]
                %319 = vst [vmem:[%s305 + $0x18] sm:$0xf] %v318
                %v320 = vld [vmem:[%s304 + $0x38] sm:$0xf]
                %321 = vst [vmem:[%s305 + $0x1c] sm:$0xf] %v320
              $region53: #{attention_forward.4} parent=47 // loop_footer
                %s303 = sadd.s32 1, %s299
              $region54: #{attention_forward.4} parent=47 // loop_footer_branch
                %298 = sbr.rel target = $region50
              $region55: #{attention_forward.4} parent=47 // loop_exit
                _
            $region48: #{attention_forward.4} parent=39 // pred_fallthru
              _
          $region40: #{attention_forward.4} parent=35 // pred_fallthru
            _
          %357 = vnop
        $region36: #{attention_forward.4} parent=19 // pred_fallthru
          _
      $region20: #{attention_forward.4} parent=5 // pred_fallthru
        _
      %p358 = scmp.le.s32.totalorder 1, %s11
      %p359 = scmp.lt.s32.totalorder %s11, 33
      %p360 = pnand %p358, %p359
      %p361 = pneg %p360
      // Predicated region
      $region74: #{attention_forward.4} parent=5 // pred_check
        _
      $region75: #{attention_forward.4} parent=5 // pred_check_branch
        %363 = sbr.rel (%p360) target = $region77
      $region76: #{attention_forward.4} parent=5 // pred_region
        %s364 = ssub.s32 %s11, 1
        %s365 = sand.u32 %s142, 1
        %s366 = sand.u32 %s142, 1
        %s367 = smul.addr %s366, 32
        %s368 = scalar_lea.vmem [#allocation6], %s367
        // Predicated region
        $region78: #{attention_forward.4} parent=76 // pred_check
          %p369 = pneg %p155
        $region79: #{attention_forward.4} parent=76 // pred_check_branch
          %371 = sbr.rel (%p369) target = $region81
        $region80: #{attention_forward.4} parent=76 // pred_region
          _
        $region81: #{attention_forward.4} parent=76 // pred_fallthru
          _
        %s372 = smul.u32 16, %s24
        %p373 = scmp.lt.s32.totalorder %s22, 1
        %s374 = scalar_select %p373, %s22, 1
        %p375 = scmp.lt.s32.totalorder %s23, 3
        %s376 = scalar_select %p375, %s23, 3
        %p377 = scmp.lt.s32.totalorder %s372, 31
        %s378 = scalar_select %p377, %s372, 31
        %s379 = smul.addr %s376, 32
        %s380 = sadd.s32 %s378, %s379
        %s381 = smul.addr %s374, 128
        %s382 = sadd.s32 %s380, %s381
        %s383 = smul.addr %s382, 4
        %s384 = scalar_lea.vmem %s0, %s383
        %p385 = pneg %p67
        %p386 = pneg %p64
        %s387 = smul.u32 16, %s25
        %p388 = scmp.lt.s32.totalorder %s22, 1
        %s389 = scalar_select %p388, %s22, 1
        %p390 = scmp.lt.s32.totalorder %s23, 3
        %s391 = scalar_select %p390, %s23, 3
        %p392 = scmp.lt.s32.totalorder %s387, 31
        %s393 = scalar_select %p392, %s387, 31
        %s394 = smul.addr %s391, 32
        %s395 = sadd.s32 %s393, %s394
        %s396 = smul.addr %s389, 128
        %s397 = sadd.s32 %s395, %s396
        %s398 = smul.addr %s397, 4
        %s399 = scalar_lea.vmem %s1, %s398
        %p400 = pneg %p97
        %p401 = pneg %p94
        %s402 = smul.u32 16, %s25
        %p403 = scmp.lt.s32.totalorder %s22, 1
        %s404 = scalar_select %p403, %s22, 1
        %p405 = scmp.lt.s32.totalorder %s23, 3
        %s406 = scalar_select %p405, %s23, 3
        %p407 = scmp.lt.s32.totalorder %s402, 31
        %s408 = scalar_select %p407, %s402, 31
        %s409 = smul.addr %s406, 32
        %s410 = sadd.s32 %s408, %s409
        %s411 = smul.addr %s404, 128
        %s412 = sadd.s32 %s410, %s411
        %s413 = smul.addr %s412, 4
        %s414 = scalar_lea.vmem %s2, %s413
        %p415 = pneg %p127
        %p416 = pneg %p124
        %s417 = sand.u32 %s142, 1
        %s418 = sand.u32 %s142, 1
        %s419 = smul.addr %s418, 32
        %s420 = scalar_lea.vmem [#allocation6], %s419
        %p421 = pneg %p155
        %p422 = pneg %p152
        %p423 = pneg %p176
        %p424 = pneg %p173
        %p425 = pneg %p206
        %p426 = pneg %p203
        %s427 = smul.u32 16, %s24
        %p428 = scmp.lt.s32.totalorder %s22, 1
        %s429 = scalar_select %p428, %s22, 1
        %p430 = scmp.lt.s32.totalorder %s23, 3
        %s431 = scalar_select %p430, %s23, 3
        %p432 = scmp.lt.s32.totalorder %s427, 31
        %s433 = scalar_select %p432, %s427, 31
        %s434 = smul.addr %s431, 32
        %s435 = sadd.s32 %s433, %s434
        %s436 = smul.addr %s429, 128
        %s437 = sadd.s32 %s435, %s436
        %s438 = smul.addr %s437, 4
        %s439 = scalar_lea.vmem %s5, %s438
        %s440 = smul.u32 16, %s24
        %p441 = scmp.lt.s32.totalorder %s22, 1
        %s442 = scalar_select %p441, %s22, 1
        %p443 = scmp.lt.s32.totalorder %s23, 3
        %s444 = scalar_select %p443, %s23, 3
        %p445 = scmp.lt.s32.totalorder %s440, 31
        %s446 = scalar_select %p445, %s440, 31
        %s447 = smul.addr %s444, 32
        %s448 = sadd.s32 %s446, %s447
        %s449 = smul.addr %s442, 128
        %s450 = sadd.s32 %s448, %s449
        %s451 = smul.addr %s450, 4
        %s452 = scalar_lea.vmem %s0, %s451
        %s453 = smul.u32 16, %s24
        %s454 = smul.u32 16, %s25
        %p455 = scmp.lt.s32.totalorder %s22, 1
        %s456 = scalar_select %p455, %s22, 1
        %p457 = scmp.lt.s32.totalorder %s23, 3
        %s458 = scalar_select %p457, %s23, 3
        %p459 = scmp.lt.s32.totalorder %s454, 31
        %s460 = scalar_select %p459, %s454, 31
        %s461 = smul.addr %s458, 32
        %s462 = sadd.s32 %s460, %s461
        %s463 = smul.addr %s456, 128
        %s464 = sadd.s32 %s462, %s463
        %s465 = smul.addr %s464, 4
        %s466 = scalar_lea.vmem %s1, %s465
        %s467 = smul.u32 16, %s25
        %s468 = smul.u32 16, %s25
        %p469 = scmp.lt.s32.totalorder %s22, 1
        %s470 = scalar_select %p469, %s22, 1
        %p471 = scmp.lt.s32.totalorder %s23, 3
        %s472 = scalar_select %p471, %s23, 3
        %p473 = scmp.lt.s32.totalorder %s468, 31
        %s474 = scalar_select %p473, %s468, 31
        %s475 = smul.addr %s472, 32
        %s476 = sadd.s32 %s474, %s475
        %s477 = smul.addr %s470, 128
        %s478 = sadd.s32 %s476, %s477
        %s479 = smul.addr %s478, 4
        %s480 = scalar_lea.vmem %s2, %s479
        %s481 = smul.u32 16, %s25
        %s482 = smul.u32 8, %s24
        %s483 = smul.u32 16, %s24
        %p484 = scmp.lt.s32.totalorder %s22, 1
        %s485 = scalar_select %p484, %s22, 1
        %p486 = scmp.lt.s32.totalorder %s23, 3
        %s487 = scalar_select %p486, %s23, 3
        %p488 = scmp.lt.s32.totalorder %s483, 31
        %s489 = scalar_select %p488, %s483, 31
        %s490 = smul.addr %s487, 32
        %s491 = sadd.s32 %s489, %s490
        %s492 = smul.addr %s485, 128
        %s493 = sadd.s32 %s491, %s492
        %s494 = smul.addr %s493, 4
        %s495 = scalar_lea.vmem %s5, %s494
        %s496 = smul.u32 16, %s24
        %v498 = vld [vmem:[%s452] sm:$0xf]
        %v499 = vld [vmem:[%s452 + $0x4] sm:$0xf]
        %v500 = vld [vmem:[%s452 + $0x8] sm:$0xf]
        %v501 = vld [vmem:[%s452 + $0xc] sm:$0xf]
        %v502 = vld [vmem:[%s452 + $0x10] sm:$0xf]
        %v503 = vld [vmem:[%s452 + $0x14] sm:$0xf]
        %v504 = vld [vmem:[%s452 + $0x18] sm:$0xf]
        %v505 = vld [vmem:[%s452 + $0x1c] sm:$0xf]
        %v506 = vld [vmem:[%s452 + $0x20] sm:$0xf]
        %v507 = vld [vmem:[%s452 + $0x24] sm:$0xf]
        %v508 = vld [vmem:[%s452 + $0x28] sm:$0xf]
        %v509 = vld [vmem:[%s452 + $0x2c] sm:$0xf]
        %v510 = vld [vmem:[%s452 + $0x30] sm:$0xf]
        %v511 = vld [vmem:[%s452 + $0x34] sm:$0xf]
        %v512 = vld [vmem:[%s452 + $0x38] sm:$0xf]
        %v513 = vld [vmem:[%s452 + $0x3c] sm:$0xf]
        %v514 = vld [vmem:[%s466] sm:$0xf]
        %v515 = vld [vmem:[%s466 + $0x4] sm:$0xf]
        %v516 = vld [vmem:[%s466 + $0x8] sm:$0xf]
        %v517 = vld [vmem:[%s466 + $0xc] sm:$0xf]
        %v518 = vld [vmem:[%s466 + $0x10] sm:$0xf]
        %v519 = vld [vmem:[%s466 + $0x14] sm:$0xf]
        %v520 = vld [vmem:[%s466 + $0x18] sm:$0xf]
        %v521 = vld [vmem:[%s466 + $0x1c] sm:$0xf]
        %v522 = vld [vmem:[%s466 + $0x20] sm:$0xf]
        %v523 = vld [vmem:[%s466 + $0x24] sm:$0xf]
        %v524 = vld [vmem:[%s466 + $0x28] sm:$0xf]
        %v525 = vld [vmem:[%s466 + $0x2c] sm:$0xf]
        %v526 = vld [vmem:[%s466 + $0x30] sm:$0xf]
        %v527 = vld [vmem:[%s466 + $0x34] sm:$0xf]
        %v528 = vld [vmem:[%s466 + $0x38] sm:$0xf]
        %v529 = vld [vmem:[%s466 + $0x3c] sm:$0xf]
        %v530 = vld [vmem:[%s480] sm:$0xf]
        %v531 = vld [vmem:[%s480 + $0x4] sm:$0xf]
        %v532 = vld [vmem:[%s480 + $0x8] sm:$0xf]
        %v533 = vld [vmem:[%s480 + $0xc] sm:$0xf]
        %v534 = vld [vmem:[%s480 + $0x10] sm:$0xf]
        %v535 = vld [vmem:[%s480 + $0x14] sm:$0xf]
        %v536 = vld [vmem:[%s480 + $0x18] sm:$0xf]
        %v537 = vld [vmem:[%s480 + $0x1c] sm:$0xf]
        %v538 = vld [vmem:[%s480 + $0x20] sm:$0xf]
        %v539 = vld [vmem:[%s480 + $0x24] sm:$0xf]
        %v540 = vld [vmem:[%s480 + $0x28] sm:$0xf]
        %v541 = vld [vmem:[%s480 + $0x2c] sm:$0xf]
        %v542 = vld [vmem:[%s480 + $0x30] sm:$0xf]
        %v543 = vld [vmem:[%s480 + $0x34] sm:$0xf]
        %v544 = vld [vmem:[%s480 + $0x38] sm:$0xf]
        %v545 = vld [vmem:[%s480 + $0x3c] sm:$0xf]
        %p546 = scmp.eq.s32.totalorder %s25, 0
        // Predicated region
        $region82: #{attention_forward.4} parent=76 // pred_check
          %p547 = pneg %p546
        $region83: #{attention_forward.4} parent=76 // pred_check_branch
          %549 = sbr.rel (%p547) target = $region85
        $region84: #{attention_forward.4} parent=76 // pred_region
          %vm550 = vcmask 7168
          %551 = vst.msk [vmem:[#allocation2] sm:$0xff] %vm550, -inf
          %552 = vst.msk [vmem:[#allocation2 + $0x8] sm:$0xff] %vm550, -inf
          %553 = vst.msk [vmem:[#allocation2 + $0x10] sm:$0xff] %vm550, -inf
          %554 = vst.msk [vmem:[#allocation2 + $0x18] sm:$0xff] %vm550, -inf
          %555 = vst.msk [vmem:[#allocation2 + $0x20] sm:$0xff] %vm550, -inf
          %556 = vst.msk [vmem:[#allocation2 + $0x28] sm:$0xff] %vm550, -inf
          %557 = vst.msk [vmem:[#allocation2 + $0x30] sm:$0xff] %vm550, -inf
          %558 = vst.msk [vmem:[#allocation2 + $0x38] sm:$0xff] %vm550, -inf
          %559 = vst.msk [vmem:[#allocation2 + $0x40] sm:$0xff] %vm550, -inf
          %560 = vst.msk [vmem:[#allocation2 + $0x48] sm:$0xff] %vm550, -inf
          %561 = vst.msk [vmem:[#allocation2 + $0x50] sm:$0xff] %vm550, -inf
          %562 = vst.msk [vmem:[#allocation2 + $0x58] sm:$0xff] %vm550, -inf
          %563 = vst.msk [vmem:[#allocation2 + $0x60] sm:$0xff] %vm550, -inf
          %564 = vst.msk [vmem:[#allocation2 + $0x68] sm:$0xff] %vm550, -inf
          %565 = vst.msk [vmem:[#allocation2 + $0x70] sm:$0xff] %vm550, -inf
          %566 = vst.msk [vmem:[#allocation2 + $0x78] sm:$0xff] %vm550, -inf
          %567 = vst.msk [vmem:[#allocation3] sm:$0xff] %vm550, 0.0
          %568 = vst.msk [vmem:[#allocation3 + $0x8] sm:$0xff] %vm550, 0.0
          %569 = vst.msk [vmem:[#allocation3 + $0x10] sm:$0xff] %vm550, 0.0
          %570 = vst.msk [vmem:[#allocation3 + $0x18] sm:$0xff] %vm550, 0.0
          %571 = vst.msk [vmem:[#allocation3 + $0x20] sm:$0xff] %vm550, 0.0
          %572 = vst.msk [vmem:[#allocation3 + $0x28] sm:$0xff] %vm550, 0.0
          %573 = vst.msk [vmem:[#allocation3 + $0x30] sm:$0xff] %vm550, 0.0
          %574 = vst.msk [vmem:[#allocation3 + $0x38] sm:$0xff] %vm550, 0.0
          %575 = vst.msk [vmem:[#allocation3 + $0x40] sm:$0xff] %vm550, 0.0
          %576 = vst.msk [vmem:[#allocation3 + $0x48] sm:$0xff] %vm550, 0.0
          %577 = vst.msk [vmem:[#allocation3 + $0x50] sm:$0xff] %vm550, 0.0
          %578 = vst.msk [vmem:[#allocation3 + $0x58] sm:$0xff] %vm550, 0.0
          %579 = vst.msk [vmem:[#allocation3 + $0x60] sm:$0xff] %vm550, 0.0
          %580 = vst.msk [vmem:[#allocation3 + $0x68] sm:$0xff] %vm550, 0.0
          %581 = vst.msk [vmem:[#allocation3 + $0x70] sm:$0xff] %vm550, 0.0
          %582 = vst.msk [vmem:[#allocation3 + $0x78] sm:$0xff] %vm550, 0.0
          %vm583 = vcmask 64512
          %584 = vst.msk [vmem:[#allocation4] sm:$0xff] %vm583, 0.0
          %585 = vst.msk [vmem:[#allocation4 + $0x8] sm:$0xff] %vm583, 0.0
          %586 = vst.msk [vmem:[#allocation4 + $0x10] sm:$0xff] %vm583, 0.0
          %587 = vst.msk [vmem:[#allocation4 + $0x18] sm:$0xff] %vm583, 0.0
          %588 = vst.msk [vmem:[#allocation4 + $0x20] sm:$0xff] %vm583, 0.0
          %589 = vst.msk [vmem:[#allocation4 + $0x28] sm:$0xff] %vm583, 0.0
          %590 = vst.msk [vmem:[#allocation4 + $0x30] sm:$0xff] %vm583, 0.0
          %591 = vst.msk [vmem:[#allocation4 + $0x38] sm:$0xff] %vm583, 0.0
          %592 = vst.msk [vmem:[#allocation4 + $0x40] sm:$0xff] %vm583, 0.0
          %593 = vst.msk [vmem:[#allocation4 + $0x48] sm:$0xff] %vm583, 0.0
          %594 = vst.msk [vmem:[#allocation4 + $0x50] sm:$0xff] %vm583, 0.0
          %595 = vst.msk [vmem:[#allocation4 + $0x58] sm:$0xff] %vm583, 0.0
          %596 = vst.msk [vmem:[#allocation4 + $0x60] sm:$0xff] %vm583, 0.0
          %597 = vst.msk [vmem:[#allocation4 + $0x68] sm:$0xff] %vm583, 0.0
          %598 = vst.msk [vmem:[#allocation4 + $0x70] sm:$0xff] %vm583, 0.0
          %599 = vst.msk [vmem:[#allocation4 + $0x78] sm:$0xff] %vm583, 0.0
          %v600 = vunpack.c.l.bf16 %v498
          %v601 = vunpack.c.l.bf16 %v499
          %v602 = vunpack.c.l.bf16 %v500
          %v603 = vunpack.c.l.bf16 %v501
          %v604 = vunpack.c.l.bf16 %v502
          %v605 = vunpack.c.l.bf16 %v503
          %v606 = vunpack.c.l.bf16 %v504
          %v607 = vunpack.c.l.bf16 %v505
          %v608 = vunpack.c.l.bf16 %v506
          %v609 = vunpack.c.l.bf16 %v507
          %v610 = vunpack.c.l.bf16 %v508
          %v611 = vunpack.c.l.bf16 %v509
          %v612 = vunpack.c.l.bf16 %v510
          %v613 = vunpack.c.l.bf16 %v511
          %v614 = vunpack.c.l.bf16 %v512
          %v615 = vunpack.c.l.bf16 %v513
          %v616 = vld [vmem:[%s4] sm:$0xf]
          %v617 = vld [vmem:[%s4 + $0x4] sm:$0xf]
          %v618 = vld [vmem:[%s4 + $0x8] sm:$0xf]
          %v619 = vld [vmem:[%s4 + $0xc] sm:$0xf]
          %v620 = vld [vmem:[%s4 + $0x10] sm:$0xf]
          %v621 = vld [vmem:[%s4 + $0x14] sm:$0xf]
          %v622 = vld [vmem:[%s4 + $0x18] sm:$0xf]
          %v623 = vld [vmem:[%s4 + $0x1c] sm:$0xf]
          %v624 = vld [vmem:[%s4 + $0x20] sm:$0xf]
          %v625 = vld [vmem:[%s4 + $0x24] sm:$0xf]
          %v626 = vld [vmem:[%s4 + $0x28] sm:$0xf]
          %v627 = vld [vmem:[%s4 + $0x2c] sm:$0xf]
          %v628 = vld [vmem:[%s4 + $0x30] sm:$0xf]
          %v629 = vld [vmem:[%s4 + $0x34] sm:$0xf]
          %v630 = vld [vmem:[%s4 + $0x38] sm:$0xf]
          %v631 = vld [vmem:[%s4 + $0x3c] sm:$0xf]
          %v632 = vld [vmem:[%s4 + $0x40] sm:$0xf]
          %v633 = vld [vmem:[%s4 + $0x44] sm:$0xf]
          %v634 = vld [vmem:[%s4 + $0x48] sm:$0xf]
          %v635 = vld [vmem:[%s4 + $0x4c] sm:$0xf]
          %v636 = vld [vmem:[%s4 + $0x50] sm:$0xf]
          %v637 = vld [vmem:[%s4 + $0x54] sm:$0xf]
          %v638 = vld [vmem:[%s4 + $0x58] sm:$0xf]
          %v639 = vld [vmem:[%s4 + $0x5c] sm:$0xf]
          %v640 = vld [vmem:[%s4 + $0x60] sm:$0xf]
          %v641 = vld [vmem:[%s4 + $0x64] sm:$0xf]
          %v642 = vld [vmem:[%s4 + $0x68] sm:$0xf]
          %v643 = vld [vmem:[%s4 + $0x6c] sm:$0xf]
          %v644 = vld [vmem:[%s4 + $0x70] sm:$0xf]
          %v645 = vld [vmem:[%s4 + $0x74] sm:$0xf]
          %v646 = vld [vmem:[%s4 + $0x78] sm:$0xf]
          %v647 = vld [vmem:[%s4 + $0x7c] sm:$0xf]
          %v648 = vunpack.c.l.bf16 %v616
          %v649 = vunpack.c.l.bf16 %v617
          %v650 = vunpack.c.l.bf16 %v618
          %v651 = vunpack.c.l.bf16 %v619
          %v652 = vunpack.c.l.bf16 %v620
          %v653 = vunpack.c.l.bf16 %v621
          %v654 = vunpack.c.l.bf16 %v622
          %v655 = vunpack.c.l.bf16 %v623
          %v656 = vunpack.c.l.bf16 %v624
          %v657 = vunpack.c.l.bf16 %v625
          %v658 = vunpack.c.l.bf16 %v626
          %v659 = vunpack.c.l.bf16 %v627
          %v660 = vunpack.c.l.bf16 %v628
          %v661 = vunpack.c.l.bf16 %v629
          %v662 = vunpack.c.l.bf16 %v630
          %v663 = vunpack.c.l.bf16 %v631
          %v664 = vunpack.c.l.bf16 %v632
          %v665 = vunpack.c.l.bf16 %v633
          %v666 = vunpack.c.l.bf16 %v634
          %v667 = vunpack.c.l.bf16 %v635
          %v668 = vunpack.c.l.bf16 %v636
          %v669 = vunpack.c.l.bf16 %v637
          %v670 = vunpack.c.l.bf16 %v638
          %v671 = vunpack.c.l.bf16 %v639
          %v672 = vunpack.c.l.bf16 %v640
          %v673 = vunpack.c.l.bf16 %v641
          %v674 = vunpack.c.l.bf16 %v642
          %v675 = vunpack.c.l.bf16 %v643
          %v676 = vunpack.c.l.bf16 %v644
          %v677 = vunpack.c.l.bf16 %v645
          %v678 = vunpack.c.l.bf16 %v646
          %v679 = vunpack.c.l.bf16 %v647
          %v696 = vcombine.high %v600, %v600
          %v698 = vunpack.c.l.s4 1966171168
          %v699 = vunpack.c.0.s8 %v698
          %v700 = vlaneseq
          %v701 = vshrl.u32 %v700, 7
          %v702 = vsub.s32 %v699, %v701
          %v703 = vrot.slane %v600, %v702
          %v705 = vunpack.c.l.s4 1966171168
          %v706 = vunpack.c.0.s8 %v705
          %v707 = vlaneseq
          %v708 = vshrl.u32 %v707, 7
          %v709 = vsub.s32 %v706, %v708
          %v710 = vrot.slane %v696, %v709
          %v711 = vcombine.high %v703, %v703
          %v712 = vcombine.high %v710, %v710
          %v714 = vunpack.c.l.s4 1966171168
          %v715 = vunpack.c.0.s8 %v714
          %v716 = vlaneseq
          %v717 = vshrl.u32 %v716, 7
          %v718 = vsub.s32 %v715, %v717
          %v719 = vrot.slane %v703, %v718
          %v721 = vunpack.c.l.s4 1966171168
          %v722 = vunpack.c.0.s8 %v721
          %v723 = vlaneseq
          %v724 = vshrl.u32 %v723, 7
          %v725 = vsub.s32 %v722, %v724
          %v726 = vrot.slane %v710, %v725
          %v728 = vunpack.c.l.s4 1966171168
          %v729 = vunpack.c.0.s8 %v728
          %v730 = vlaneseq
          %v731 = vshrl.u32 %v730, 7
          %v732 = vsub.s32 %v729, %v731
          %v733 = vrot.slane %v711, %v732
          %v735 = vunpack.c.l.s4 1966171168
          %v736 = vunpack.c.0.s8 %v735
          %v737 = vlaneseq
          %v738 = vshrl.u32 %v737, 7
          %v739 = vsub.s32 %v736, %v738
          %v740 = vrot.slane %v712, %v739
          %v741 = vcombine.high %v719, %v719
          %v742 = vcombine.high %v726, %v726
          %v743 = vcombine.high %v733, %v733
          %v744 = vcombine.high %v740, %v740
          %v745 = vcombine.high %v601, %v601
          %v747 = vunpack.c.l.s4 1966171168
          %v748 = vunpack.c.0.s8 %v747
          %v749 = vlaneseq
          %v750 = vshrl.u32 %v749, 7
          %v751 = vsub.s32 %v748, %v750
          %v752 = vrot.slane %v601, %v751
          %v754 = vunpack.c.l.s4 1966171168
          %v755 = vunpack.c.0.s8 %v754
          %v756 = vlaneseq
          %v757 = vshrl.u32 %v756, 7
          %v758 = vsub.s32 %v755, %v757
          %v759 = vrot.slane %v745, %v758
          %v760 = vcombine.high %v752, %v752
          %v761 = vcombine.high %v759, %v759
          %v763 = vunpack.c.l.s4 1966171168
          %v764 = vunpack.c.0.s8 %v763
          %v765 = vlaneseq
          %v766 = vshrl.u32 %v765, 7
          %v767 = vsub.s32 %v764, %v766
          %v768 = vrot.slane %v752, %v767
          %v770 = vunpack.c.l.s4 1966171168
          %v771 = vunpack.c.0.s8 %v770
          %v772 = vlaneseq
          %v773 = vshrl.u32 %v772, 7
          %v774 = vsub.s32 %v771, %v773
          %v775 = vrot.slane %v759, %v774
          %v777 = vunpack.c.l.s4 1966171168
          %v778 = vunpack.c.0.s8 %v777
          %v779 = vlaneseq
          %v780 = vshrl.u32 %v779, 7
          %v781 = vsub.s32 %v778, %v780
          %v782 = vrot.slane %v760, %v781
          %v784 = vunpack.c.l.s4 1966171168
          %v785 = vunpack.c.0.s8 %v784
          %v786 = vlaneseq
          %v787 = vshrl.u32 %v786, 7
          %v788 = vsub.s32 %v785, %v787
          %v789 = vrot.slane %v761, %v788
          %v790 = vcombine.high %v768, %v768
          %v791 = vcombine.high %v775, %v775
          %v792 = vcombine.high %v782, %v782
          %v793 = vcombine.high %v789, %v789
          %v794 = vcombine.high %v602, %v602
          %v796 = vunpack.c.l.s4 1966171168
          %v797 = vunpack.c.0.s8 %v796
          %v798 = vlaneseq
          %v799 = vshrl.u32 %v798, 7
          %v800 = vsub.s32 %v797, %v799
          %v801 = vrot.slane %v602, %v800
          %v803 = vunpack.c.l.s4 1966171168
          %v804 = vunpack.c.0.s8 %v803
          %v805 = vlaneseq
          %v806 = vshrl.u32 %v805, 7
          %v807 = vsub.s32 %v804, %v806
          %v808 = vrot.slane %v794, %v807
          %v809 = vcombine.high %v801, %v801
          %v810 = vcombine.high %v808, %v808
          %v812 = vunpack.c.l.s4 1966171168
          %v813 = vunpack.c.0.s8 %v812
          %v814 = vlaneseq
          %v815 = vshrl.u32 %v814, 7
          %v816 = vsub.s32 %v813, %v815
          %v817 = vrot.slane %v801, %v816
          %v819 = vunpack.c.l.s4 1966171168
          %v820 = vunpack.c.0.s8 %v819
          %v821 = vlaneseq
          %v822 = vshrl.u32 %v821, 7
          %v823 = vsub.s32 %v820, %v822
          %v824 = vrot.slane %v808, %v823
          %v826 = vunpack.c.l.s4 1966171168
          %v827 = vunpack.c.0.s8 %v826
          %v828 = vlaneseq
          %v829 = vshrl.u32 %v828, 7
          %v830 = vsub.s32 %v827, %v829
          %v831 = vrot.slane %v809, %v830
          %v833 = vunpack.c.l.s4 1966171168
          %v834 = vunpack.c.0.s8 %v833
          %v835 = vlaneseq
          %v836 = vshrl.u32 %v835, 7
          %v837 = vsub.s32 %v834, %v836
          %v838 = vrot.slane %v810, %v837
          %v839 = vcombine.high %v817, %v817
          %v840 = vcombine.high %v824, %v824
          %v841 = vcombine.high %v831, %v831
          %v842 = vcombine.high %v838, %v838
          %v843 = vcombine.high %v603, %v603
          %v845 = vunpack.c.l.s4 1966171168
          %v846 = vunpack.c.0.s8 %v845
          %v847 = vlaneseq
          %v848 = vshrl.u32 %v847, 7
          %v849 = vsub.s32 %v846, %v848
          %v850 = vrot.slane %v603, %v849
          %v852 = vunpack.c.l.s4 1966171168
          %v853 = vunpack.c.0.s8 %v852
          %v854 = vlaneseq
          %v855 = vshrl.u32 %v854, 7
          %v856 = vsub.s32 %v853, %v855
          %v857 = vrot.slane %v843, %v856
          %v858 = vcombine.high %v850, %v850
          %v859 = vcombine.high %v857, %v857
          %v861 = vunpack.c.l.s4 1966171168
          %v862 = vunpack.c.0.s8 %v861
          %v863 = vlaneseq
          %v864 = vshrl.u32 %v863, 7
          %v865 = vsub.s32 %v862, %v864
          %v866 = vrot.slane %v850, %v865
          %v868 = vunpack.c.l.s4 1966171168
          %v869 = vunpack.c.0.s8 %v868
          %v870 = vlaneseq
          %v871 = vshrl.u32 %v870, 7
          %v872 = vsub.s32 %v869, %v871
          %v873 = vrot.slane %v857, %v872
          %v875 = vunpack.c.l.s4 1966171168
          %v876 = vunpack.c.0.s8 %v875
          %v877 = vlaneseq
          %v878 = vshrl.u32 %v877, 7
          %v879 = vsub.s32 %v876, %v878
          %v880 = vrot.slane %v858, %v879
          %v882 = vunpack.c.l.s4 1966171168
          %v883 = vunpack.c.0.s8 %v882
          %v884 = vlaneseq
          %v885 = vshrl.u32 %v884, 7
          %v886 = vsub.s32 %v883, %v885
          %v887 = vrot.slane %v859, %v886
          %v888 = vcombine.high %v866, %v866
          %v889 = vcombine.high %v873, %v873
          %v890 = vcombine.high %v880, %v880
          %v891 = vcombine.high %v887, %v887
          %v892 = vcombine.high %v604, %v604
          %v894 = vunpack.c.l.s4 1966171168
          %v895 = vunpack.c.0.s8 %v894
          %v896 = vlaneseq
          %v897 = vshrl.u32 %v896, 7
          %v898 = vsub.s32 %v895, %v897
          %v899 = vrot.slane %v604, %v898
          %v901 = vunpack.c.l.s4 1966171168
          %v902 = vunpack.c.0.s8 %v901
          %v903 = vlaneseq
          %v904 = vshrl.u32 %v903, 7
          %v905 = vsub.s32 %v902, %v904
          %v906 = vrot.slane %v892, %v905
          %v907 = vcombine.high %v899, %v899
          %v908 = vcombine.high %v906, %v906
          %v910 = vunpack.c.l.s4 1966171168
          %v911 = vunpack.c.0.s8 %v910
          %v912 = vlaneseq
          %v913 = vshrl.u32 %v912, 7
          %v914 = vsub.s32 %v911, %v913
          %v915 = vrot.slane %v899, %v914
          %v917 = vunpack.c.l.s4 1966171168
          %v918 = vunpack.c.0.s8 %v917
          %v919 = vlaneseq
          %v920 = vshrl.u32 %v919, 7
          %v921 = vsub.s32 %v918, %v920
          %v922 = vrot.slane %v906, %v921
          %v924 = vunpack.c.l.s4 1966171168
          %v925 = vunpack.c.0.s8 %v924
          %v926 = vlaneseq
          %v927 = vshrl.u32 %v926, 7
          %v928 = vsub.s32 %v925, %v927
          %v929 = vrot.slane %v907, %v928
          %v931 = vunpack.c.l.s4 1966171168
          %v932 = vunpack.c.0.s8 %v931
          %v933 = vlaneseq
          %v934 = vshrl.u32 %v933, 7
          %v935 = vsub.s32 %v932, %v934
          %v936 = vrot.slane %v908, %v935
          %v937 = vcombine.high %v915, %v915
          %v938 = vcombine.high %v922, %v922
          %v939 = vcombine.high %v929, %v929
          %v940 = vcombine.high %v936, %v936
          %v941 = vcombine.high %v605, %v605
          %v943 = vunpack.c.l.s4 1966171168
          %v944 = vunpack.c.0.s8 %v943
          %v945 = vlaneseq
          %v946 = vshrl.u32 %v945, 7
          %v947 = vsub.s32 %v944, %v946
          %v948 = vrot.slane %v605, %v947
          %v950 = vunpack.c.l.s4 1966171168
          %v951 = vunpack.c.0.s8 %v950
          %v952 = vlaneseq
          %v953 = vshrl.u32 %v952, 7
          %v954 = vsub.s32 %v951, %v953
          %v955 = vrot.slane %v941, %v954
          %v956 = vcombine.high %v948, %v948
          %v957 = vcombine.high %v955, %v955
          %v959 = vunpack.c.l.s4 1966171168
          %v960 = vunpack.c.0.s8 %v959
          %v961 = vlaneseq
          %v962 = vshrl.u32 %v961, 7
          %v963 = vsub.s32 %v960, %v962
          %v964 = vrot.slane %v948, %v963
          %v966 = vunpack.c.l.s4 1966171168
          %v967 = vunpack.c.0.s8 %v966
          %v968 = vlaneseq
          %v969 = vshrl.u32 %v968, 7
          %v970 = vsub.s32 %v967, %v969
          %v971 = vrot.slane %v955, %v970
          %v973 = vunpack.c.l.s4 1966171168
          %v974 = vunpack.c.0.s8 %v973
          %v975 = vlaneseq
          %v976 = vshrl.u32 %v975, 7
          %v977 = vsub.s32 %v974, %v976
          %v978 = vrot.slane %v956, %v977
          %v980 = vunpack.c.l.s4 1966171168
          %v981 = vunpack.c.0.s8 %v980
          %v982 = vlaneseq
          %v983 = vshrl.u32 %v982, 7
          %v984 = vsub.s32 %v981, %v983
          %v985 = vrot.slane %v957, %v984
          %v986 = vcombine.high %v964, %v964
          %v987 = vcombine.high %v971, %v971
          %v988 = vcombine.high %v978, %v978
          %v989 = vcombine.high %v985, %v985
          %v990 = vcombine.high %v606, %v606
          %v992 = vunpack.c.l.s4 1966171168
          %v993 = vunpack.c.0.s8 %v992
          %v994 = vlaneseq
          %v995 = vshrl.u32 %v994, 7
          %v996 = vsub.s32 %v993, %v995
          %v997 = vrot.slane %v606, %v996
          %v999 = vunpack.c.l.s4 1966171168
          %v1000 = vunpack.c.0.s8 %v999
          %v1001 = vlaneseq
          %v1002 = vshrl.u32 %v1001, 7
          %v1003 = vsub.s32 %v1000, %v1002
          %v1004 = vrot.slane %v990, %v1003
          %v1005 = vcombine.high %v997, %v997
          %v1006 = vcombine.high %v1004, %v1004
          %v1008 = vunpack.c.l.s4 1966171168
          %v1009 = vunpack.c.0.s8 %v1008
          %v1010 = vlaneseq
          %v1011 = vshrl.u32 %v1010, 7
          %v1012 = vsub.s32 %v1009, %v1011
          %v1013 = vrot.slane %v997, %v1012
          %v1015 = vunpack.c.l.s4 1966171168
          %v1016 = vunpack.c.0.s8 %v1015
          %v1017 = vlaneseq
          %v1018 = vshrl.u32 %v1017, 7
          %v1019 = vsub.s32 %v1016, %v1018
          %v1020 = vrot.slane %v1004, %v1019
          %v1022 = vunpack.c.l.s4 1966171168
          %v1023 = vunpack.c.0.s8 %v1022
          %v1024 = vlaneseq
          %v1025 = vshrl.u32 %v1024, 7
          %v1026 = vsub.s32 %v1023, %v1025
          %v1027 = vrot.slane %v1005, %v1026
          %v1029 = vunpack.c.l.s4 1966171168
          %v1030 = vunpack.c.0.s8 %v1029
          %v1031 = vlaneseq
          %v1032 = vshrl.u32 %v1031, 7
          %v1033 = vsub.s32 %v1030, %v1032
          %v1034 = vrot.slane %v1006, %v1033
          %v1035 = vcombine.high %v1013, %v1013
          %v1036 = vcombine.high %v1020, %v1020
          %v1037 = vcombine.high %v1027, %v1027
          %v1038 = vcombine.high %v1034, %v1034
          %v1039 = vcombine.high %v607, %v607
          %v1041 = vunpack.c.l.s4 1966171168
          %v1042 = vunpack.c.0.s8 %v1041
          %v1043 = vlaneseq
          %v1044 = vshrl.u32 %v1043, 7
          %v1045 = vsub.s32 %v1042, %v1044
          %v1046 = vrot.slane %v607, %v1045
          %v1048 = vunpack.c.l.s4 1966171168
          %v1049 = vunpack.c.0.s8 %v1048
          %v1050 = vlaneseq
          %v1051 = vshrl.u32 %v1050, 7
          %v1052 = vsub.s32 %v1049, %v1051
          %v1053 = vrot.slane %v1039, %v1052
          %v1054 = vcombine.high %v1046, %v1046
          %v1055 = vcombine.high %v1053, %v1053
          %v1057 = vunpack.c.l.s4 1966171168
          %v1058 = vunpack.c.0.s8 %v1057
          %v1059 = vlaneseq
          %v1060 = vshrl.u32 %v1059, 7
          %v1061 = vsub.s32 %v1058, %v1060
          %v1062 = vrot.slane %v1046, %v1061
          %v1064 = vunpack.c.l.s4 1966171168
          %v1065 = vunpack.c.0.s8 %v1064
          %v1066 = vlaneseq
          %v1067 = vshrl.u32 %v1066, 7
          %v1068 = vsub.s32 %v1065, %v1067
          %v1069 = vrot.slane %v1053, %v1068
          %v1071 = vunpack.c.l.s4 1966171168
          %v1072 = vunpack.c.0.s8 %v1071
          %v1073 = vlaneseq
          %v1074 = vshrl.u32 %v1073, 7
          %v1075 = vsub.s32 %v1072, %v1074
          %v1076 = vrot.slane %v1054, %v1075
          %v1078 = vunpack.c.l.s4 1966171168
          %v1079 = vunpack.c.0.s8 %v1078
          %v1080 = vlaneseq
          %v1081 = vshrl.u32 %v1080, 7
          %v1082 = vsub.s32 %v1079, %v1081
          %v1083 = vrot.slane %v1055, %v1082
          %v1084 = vcombine.high %v1062, %v1062
          %v1085 = vcombine.high %v1069, %v1069
          %v1086 = vcombine.high %v1076, %v1076
          %v1087 = vcombine.high %v1083, %v1083
          %v1088 = vcombine.high %v608, %v608
          %v1090 = vunpack.c.l.s4 1966171168
          %v1091 = vunpack.c.0.s8 %v1090
          %v1092 = vlaneseq
          %v1093 = vshrl.u32 %v1092, 7
          %v1094 = vsub.s32 %v1091, %v1093
          %v1095 = vrot.slane %v608, %v1094
          %v1097 = vunpack.c.l.s4 1966171168
          %v1098 = vunpack.c.0.s8 %v1097
          %v1099 = vlaneseq
          %v1100 = vshrl.u32 %v1099, 7
          %v1101 = vsub.s32 %v1098, %v1100
          %v1102 = vrot.slane %v1088, %v1101
          %v1103 = vcombine.high %v1095, %v1095
          %v1104 = vcombine.high %v1102, %v1102
          %v1106 = vunpack.c.l.s4 1966171168
          %v1107 = vunpack.c.0.s8 %v1106
          %v1108 = vlaneseq
          %v1109 = vshrl.u32 %v1108, 7
          %v1110 = vsub.s32 %v1107, %v1109
          %v1111 = vrot.slane %v1095, %v1110
          %v1113 = vunpack.c.l.s4 1966171168
          %v1114 = vunpack.c.0.s8 %v1113
          %v1115 = vlaneseq
          %v1116 = vshrl.u32 %v1115, 7
          %v1117 = vsub.s32 %v1114, %v1116
          %v1118 = vrot.slane %v1102, %v1117
          %v1120 = vunpack.c.l.s4 1966171168
          %v1121 = vunpack.c.0.s8 %v1120
          %v1122 = vlaneseq
          %v1123 = vshrl.u32 %v1122, 7
          %v1124 = vsub.s32 %v1121, %v1123
          %v1125 = vrot.slane %v1103, %v1124
          %v1127 = vunpack.c.l.s4 1966171168
          %v1128 = vunpack.c.0.s8 %v1127
          %v1129 = vlaneseq
          %v1130 = vshrl.u32 %v1129, 7
          %v1131 = vsub.s32 %v1128, %v1130
          %v1132 = vrot.slane %v1104, %v1131
          %v1133 = vcombine.high %v1111, %v1111
          %v1134 = vcombine.high %v1118, %v1118
          %v1135 = vcombine.high %v1125, %v1125
          %v1136 = vcombine.high %v1132, %v1132
          %v1137 = vcombine.high %v609, %v609
          %v1139 = vunpack.c.l.s4 1966171168
          %v1140 = vunpack.c.0.s8 %v1139
          %v1141 = vlaneseq
          %v1142 = vshrl.u32 %v1141, 7
          %v1143 = vsub.s32 %v1140, %v1142
          %v1144 = vrot.slane %v609, %v1143
          %v1146 = vunpack.c.l.s4 1966171168
          %v1147 = vunpack.c.0.s8 %v1146
          %v1148 = vlaneseq
          %v1149 = vshrl.u32 %v1148, 7
          %v1150 = vsub.s32 %v1147, %v1149
          %v1151 = vrot.slane %v1137, %v1150
          %v1152 = vcombine.high %v1144, %v1144
          %v1153 = vcombine.high %v1151, %v1151
          %v1155 = vunpack.c.l.s4 1966171168
          %v1156 = vunpack.c.0.s8 %v1155
          %v1157 = vlaneseq
          %v1158 = vshrl.u32 %v1157, 7
          %v1159 = vsub.s32 %v1156, %v1158
          %v1160 = vrot.slane %v1144, %v1159
          %v1162 = vunpack.c.l.s4 1966171168
          %v1163 = vunpack.c.0.s8 %v1162
          %v1164 = vlaneseq
          %v1165 = vshrl.u32 %v1164, 7
          %v1166 = vsub.s32 %v1163, %v1165
          %v1167 = vrot.slane %v1151, %v1166
          %v1169 = vunpack.c.l.s4 1966171168
          %v1170 = vunpack.c.0.s8 %v1169
          %v1171 = vlaneseq
          %v1172 = vshrl.u32 %v1171, 7
          %v1173 = vsub.s32 %v1170, %v1172
          %v1174 = vrot.slane %v1152, %v1173
          %v1176 = vunpack.c.l.s4 1966171168
          %v1177 = vunpack.c.0.s8 %v1176
          %v1178 = vlaneseq
          %v1179 = vshrl.u32 %v1178, 7
          %v1180 = vsub.s32 %v1177, %v1179
          %v1181 = vrot.slane %v1153, %v1180
          %v1182 = vcombine.high %v1160, %v1160
          %v1183 = vcombine.high %v1167, %v1167
          %v1184 = vcombine.high %v1174, %v1174
          %v1185 = vcombine.high %v1181, %v1181
          %v1186 = vcombine.high %v610, %v610
          %v1188 = vunpack.c.l.s4 1966171168
          %v1189 = vunpack.c.0.s8 %v1188
          %v1190 = vlaneseq
          %v1191 = vshrl.u32 %v1190, 7
          %v1192 = vsub.s32 %v1189, %v1191
          %v1193 = vrot.slane %v610, %v1192
          %v1195 = vunpack.c.l.s4 1966171168
          %v1196 = vunpack.c.0.s8 %v1195
          %v1197 = vlaneseq
          %v1198 = vshrl.u32 %v1197, 7
          %v1199 = vsub.s32 %v1196, %v1198
          %v1200 = vrot.slane %v1186, %v1199
          %v1201 = vcombine.high %v1193, %v1193
          %v1202 = vcombine.high %v1200, %v1200
          %v1204 = vunpack.c.l.s4 1966171168
          %v1205 = vunpack.c.0.s8 %v1204
          %v1206 = vlaneseq
          %v1207 = vshrl.u32 %v1206, 7
          %v1208 = vsub.s32 %v1205, %v1207
          %v1209 = vrot.slane %v1193, %v1208
          %v1211 = vunpack.c.l.s4 1966171168
          %v1212 = vunpack.c.0.s8 %v1211
          %v1213 = vlaneseq
          %v1214 = vshrl.u32 %v1213, 7
          %v1215 = vsub.s32 %v1212, %v1214
          %v1216 = vrot.slane %v1200, %v1215
          %v1218 = vunpack.c.l.s4 1966171168
          %v1219 = vunpack.c.0.s8 %v1218
          %v1220 = vlaneseq
          %v1221 = vshrl.u32 %v1220, 7
          %v1222 = vsub.s32 %v1219, %v1221
          %v1223 = vrot.slane %v1201, %v1222
          %v1225 = vunpack.c.l.s4 1966171168
          %v1226 = vunpack.c.0.s8 %v1225
          %v1227 = vlaneseq
          %v1228 = vshrl.u32 %v1227, 7
          %v1229 = vsub.s32 %v1226, %v1228
          %v1230 = vrot.slane %v1202, %v1229
          %v1231 = vcombine.high %v1209, %v1209
          %v1232 = vcombine.high %v1216, %v1216
          %v1233 = vcombine.high %v1223, %v1223
          %v1234 = vcombine.high %v1230, %v1230
          %v1235 = vcombine.high %v611, %v611
          %v1237 = vunpack.c.l.s4 1966171168
          %v1238 = vunpack.c.0.s8 %v1237
          %v1239 = vlaneseq
          %v1240 = vshrl.u32 %v1239, 7
          %v1241 = vsub.s32 %v1238, %v1240
          %v1242 = vrot.slane %v611, %v1241
          %v1244 = vunpack.c.l.s4 1966171168
          %v1245 = vunpack.c.0.s8 %v1244
          %v1246 = vlaneseq
          %v1247 = vshrl.u32 %v1246, 7
          %v1248 = vsub.s32 %v1245, %v1247
          %v1249 = vrot.slane %v1235, %v1248
          %v1250 = vcombine.high %v1242, %v1242
          %v1251 = vcombine.high %v1249, %v1249
          %v1253 = vunpack.c.l.s4 1966171168
          %v1254 = vunpack.c.0.s8 %v1253
          %v1255 = vlaneseq
          %v1256 = vshrl.u32 %v1255, 7
          %v1257 = vsub.s32 %v1254, %v1256
          %v1258 = vrot.slane %v1242, %v1257
          %v1260 = vunpack.c.l.s4 1966171168
          %v1261 = vunpack.c.0.s8 %v1260
          %v1262 = vlaneseq
          %v1263 = vshrl.u32 %v1262, 7
          %v1264 = vsub.s32 %v1261, %v1263
          %v1265 = vrot.slane %v1249, %v1264
          %v1267 = vunpack.c.l.s4 1966171168
          %v1268 = vunpack.c.0.s8 %v1267
          %v1269 = vlaneseq
          %v1270 = vshrl.u32 %v1269, 7
          %v1271 = vsub.s32 %v1268, %v1270
          %v1272 = vrot.slane %v1250, %v1271
          %v1274 = vunpack.c.l.s4 1966171168
          %v1275 = vunpack.c.0.s8 %v1274
          %v1276 = vlaneseq
          %v1277 = vshrl.u32 %v1276, 7
          %v1278 = vsub.s32 %v1275, %v1277
          %v1279 = vrot.slane %v1251, %v1278
          %v1280 = vcombine.high %v1258, %v1258
          %v1281 = vcombine.high %v1265, %v1265
          %v1282 = vcombine.high %v1272, %v1272
          %v1283 = vcombine.high %v1279, %v1279
          %v1284 = vcombine.high %v612, %v612
          %v1286 = vunpack.c.l.s4 1966171168
          %v1287 = vunpack.c.0.s8 %v1286
          %v1288 = vlaneseq
          %v1289 = vshrl.u32 %v1288, 7
          %v1290 = vsub.s32 %v1287, %v1289
          %v1291 = vrot.slane %v612, %v1290
          %v1293 = vunpack.c.l.s4 1966171168
          %v1294 = vunpack.c.0.s8 %v1293
          %v1295 = vlaneseq
          %v1296 = vshrl.u32 %v1295, 7
          %v1297 = vsub.s32 %v1294, %v1296
          %v1298 = vrot.slane %v1284, %v1297
          %v1299 = vcombine.high %v1291, %v1291
          %v1300 = vcombine.high %v1298, %v1298
          %v1302 = vunpack.c.l.s4 1966171168
          %v1303 = vunpack.c.0.s8 %v1302
          %v1304 = vlaneseq
          %v1305 = vshrl.u32 %v1304, 7
          %v1306 = vsub.s32 %v1303, %v1305
          %v1307 = vrot.slane %v1291, %v1306
          %v1309 = vunpack.c.l.s4 1966171168
          %v1310 = vunpack.c.0.s8 %v1309
          %v1311 = vlaneseq
          %v1312 = vshrl.u32 %v1311, 7
          %v1313 = vsub.s32 %v1310, %v1312
          %v1314 = vrot.slane %v1298, %v1313
          %v1316 = vunpack.c.l.s4 1966171168
          %v1317 = vunpack.c.0.s8 %v1316
          %v1318 = vlaneseq
          %v1319 = vshrl.u32 %v1318, 7
          %v1320 = vsub.s32 %v1317, %v1319
          %v1321 = vrot.slane %v1299, %v1320
          %v1323 = vunpack.c.l.s4 1966171168
          %v1324 = vunpack.c.0.s8 %v1323
          %v1325 = vlaneseq
          %v1326 = vshrl.u32 %v1325, 7
          %v1327 = vsub.s32 %v1324, %v1326
          %v1328 = vrot.slane %v1300, %v1327
          %v1329 = vcombine.high %v1307, %v1307
          %v1330 = vcombine.high %v1314, %v1314
          %v1331 = vcombine.high %v1321, %v1321
          %v1332 = vcombine.high %v1328, %v1328
          %v1333 = vcombine.high %v613, %v613
          %v1335 = vunpack.c.l.s4 1966171168
          %v1336 = vunpack.c.0.s8 %v1335
          %v1337 = vlaneseq
          %v1338 = vshrl.u32 %v1337, 7
          %v1339 = vsub.s32 %v1336, %v1338
          %v1340 = vrot.slane %v613, %v1339
          %v1342 = vunpack.c.l.s4 1966171168
          %v1343 = vunpack.c.0.s8 %v1342
          %v1344 = vlaneseq
          %v1345 = vshrl.u32 %v1344, 7
          %v1346 = vsub.s32 %v1343, %v1345
          %v1347 = vrot.slane %v1333, %v1346
          %v1348 = vcombine.high %v1340, %v1340
          %v1349 = vcombine.high %v1347, %v1347
          %v1351 = vunpack.c.l.s4 1966171168
          %v1352 = vunpack.c.0.s8 %v1351
          %v1353 = vlaneseq
          %v1354 = vshrl.u32 %v1353, 7
          %v1355 = vsub.s32 %v1352, %v1354
          %v1356 = vrot.slane %v1340, %v1355
          %v1358 = vunpack.c.l.s4 1966171168
          %v1359 = vunpack.c.0.s8 %v1358
          %v1360 = vlaneseq
          %v1361 = vshrl.u32 %v1360, 7
          %v1362 = vsub.s32 %v1359, %v1361
          %v1363 = vrot.slane %v1347, %v1362
          %v1365 = vunpack.c.l.s4 1966171168
          %v1366 = vunpack.c.0.s8 %v1365
          %v1367 = vlaneseq
          %v1368 = vshrl.u32 %v1367, 7
          %v1369 = vsub.s32 %v1366, %v1368
          %v1370 = vrot.slane %v1348, %v1369
          %v1372 = vunpack.c.l.s4 1966171168
          %v1373 = vunpack.c.0.s8 %v1372
          %v1374 = vlaneseq
          %v1375 = vshrl.u32 %v1374, 7
          %v1376 = vsub.s32 %v1373, %v1375
          %v1377 = vrot.slane %v1349, %v1376
          %v1378 = vcombine.high %v1356, %v1356
          %v1379 = vcombine.high %v1363, %v1363
          %v1380 = vcombine.high %v1370, %v1370
          %v1381 = vcombine.high %v1377, %v1377
          %v1382 = vcombine.high %v614, %v614
          %v1384 = vunpack.c.l.s4 1966171168
          %v1385 = vunpack.c.0.s8 %v1384
          %v1386 = vlaneseq
          %v1387 = vshrl.u32 %v1386, 7
          %v1388 = vsub.s32 %v1385, %v1387
          %v1389 = vrot.slane %v614, %v1388
          %v1391 = vunpack.c.l.s4 1966171168
          %v1392 = vunpack.c.0.s8 %v1391
          %v1393 = vlaneseq
          %v1394 = vshrl.u32 %v1393, 7
          %v1395 = vsub.s32 %v1392, %v1394
          %v1396 = vrot.slane %v1382, %v1395
          %v1397 = vcombine.high %v1389, %v1389
          %v1398 = vcombine.high %v1396, %v1396
          %v1400 = vunpack.c.l.s4 1966171168
          %v1401 = vunpack.c.0.s8 %v1400
          %v1402 = vlaneseq
          %v1403 = vshrl.u32 %v1402, 7
          %v1404 = vsub.s32 %v1401, %v1403
          %v1405 = vrot.slane %v1389, %v1404
          %v1407 = vunpack.c.l.s4 1966171168
          %v1408 = vunpack.c.0.s8 %v1407
          %v1409 = vlaneseq
          %v1410 = vshrl.u32 %v1409, 7
          %v1411 = vsub.s32 %v1408, %v1410
          %v1412 = vrot.slane %v1396, %v1411
          %v1414 = vunpack.c.l.s4 1966171168
          %v1415 = vunpack.c.0.s8 %v1414
          %v1416 = vlaneseq
          %v1417 = vshrl.u32 %v1416, 7
          %v1418 = vsub.s32 %v1415, %v1417
          %v1419 = vrot.slane %v1397, %v1418
          %v1421 = vunpack.c.l.s4 1966171168
          %v1422 = vunpack.c.0.s8 %v1421
          %v1423 = vlaneseq
          %v1424 = vshrl.u32 %v1423, 7
          %v1425 = vsub.s32 %v1422, %v1424
          %v1426 = vrot.slane %v1398, %v1425
          %v1427 = vcombine.high %v1405, %v1405
          %v1428 = vcombine.high %v1412, %v1412
          %v1429 = vcombine.high %v1419, %v1419
          %v1430 = vcombine.high %v1426, %v1426
          %v1431 = vcombine.high %v615, %v615
          %v1433 = vunpack.c.l.s4 1966171168
          %v1434 = vunpack.c.0.s8 %v1433
          %v1435 = vlaneseq
          %v1436 = vshrl.u32 %v1435, 7
          %v1437 = vsub.s32 %v1434, %v1436
          %v1438 = vrot.slane %v615, %v1437
          %v1440 = vunpack.c.l.s4 1966171168
          %v1441 = vunpack.c.0.s8 %v1440
          %v1442 = vlaneseq
          %v1443 = vshrl.u32 %v1442, 7
          %v1444 = vsub.s32 %v1441, %v1443
          %v1445 = vrot.slane %v1431, %v1444
          %v1446 = vcombine.high %v1438, %v1438
          %v1447 = vcombine.high %v1445, %v1445
          %v1449 = vunpack.c.l.s4 1966171168
          %v1450 = vunpack.c.0.s8 %v1449
          %v1451 = vlaneseq
          %v1452 = vshrl.u32 %v1451, 7
          %v1453 = vsub.s32 %v1450, %v1452
          %v1454 = vrot.slane %v1438, %v1453
          %v1456 = vunpack.c.l.s4 1966171168
          %v1457 = vunpack.c.0.s8 %v1456
          %v1458 = vlaneseq
          %v1459 = vshrl.u32 %v1458, 7
          %v1460 = vsub.s32 %v1457, %v1459
          %v1461 = vrot.slane %v1445, %v1460
          %v1463 = vunpack.c.l.s4 1966171168
          %v1464 = vunpack.c.0.s8 %v1463
          %v1465 = vlaneseq
          %v1466 = vshrl.u32 %v1465, 7
          %v1467 = vsub.s32 %v1464, %v1466
          %v1468 = vrot.slane %v1446, %v1467
          %v1470 = vunpack.c.l.s4 1966171168
          %v1471 = vunpack.c.0.s8 %v1470
          %v1472 = vlaneseq
          %v1473 = vshrl.u32 %v1472, 7
          %v1474 = vsub.s32 %v1471, %v1473
          %v1475 = vrot.slane %v1447, %v1474
          %v1476 = vcombine.high %v1454, %v1454
          %v1477 = vcombine.high %v1461, %v1461
          %v1478 = vcombine.high %v1468, %v1468
          %v1479 = vcombine.high %v1475, %v1475
          %v1480 = vlaneseq
          %v1481 = vshrl.u32 %v1480, 7
          %v1482 = vsub.s32 0, %v1481
          %v1483 = vrot.slane %v719, %v1482
          %v1484 = vlaneseq
          %v1485 = vshrl.u32 %v1484, 7
          %v1486 = vsub.s32 0, %v1485
          %v1487 = vrot.slane %v733, %v1486
          %v1488 = vlaneseq
          %v1489 = vshrl.u32 %v1488, 7
          %v1490 = vsub.s32 0, %v1489
          %v1491 = vrot.slane %v741, %v1490
          %v1492 = vlaneseq
          %v1493 = vshrl.u32 %v1492, 7
          %v1494 = vsub.s32 0, %v1493
          %v1495 = vrot.slane %v743, %v1494
          %v1496 = vlaneseq
          %v1497 = vshrl.u32 %v1496, 7
          %v1498 = vsub.s32 0, %v1497
          %v1499 = vrot.slane %v726, %v1498
          %v1500 = vlaneseq
          %v1501 = vshrl.u32 %v1500, 7
          %v1502 = vsub.s32 0, %v1501
          %v1503 = vrot.slane %v740, %v1502
          %v1504 = vlaneseq
          %v1505 = vshrl.u32 %v1504, 7
          %v1506 = vsub.s32 0, %v1505
          %v1507 = vrot.slane %v742, %v1506
          %v1508 = vlaneseq
          %v1509 = vshrl.u32 %v1508, 7
          %v1510 = vsub.s32 0, %v1509
          %v1511 = vrot.slane %v744, %v1510
          %v1512 = vlaneseq
          %v1513 = vshrl.u32 %v1512, 7
          %v1514 = vsub.s32 0, %v1513
          %v1515 = vrot.slane %v768, %v1514
          %v1516 = vlaneseq
          %v1517 = vshrl.u32 %v1516, 7
          %v1518 = vsub.s32 0, %v1517
          %v1519 = vrot.slane %v782, %v1518
          %v1520 = vlaneseq
          %v1521 = vshrl.u32 %v1520, 7
          %v1522 = vsub.s32 0, %v1521
          %v1523 = vrot.slane %v790, %v1522
          %v1524 = vlaneseq
          %v1525 = vshrl.u32 %v1524, 7
          %v1526 = vsub.s32 0, %v1525
          %v1527 = vrot.slane %v792, %v1526
          %v1528 = vlaneseq
          %v1529 = vshrl.u32 %v1528, 7
          %v1530 = vsub.s32 0, %v1529
          %v1531 = vrot.slane %v775, %v1530
          %v1532 = vlaneseq
          %v1533 = vshrl.u32 %v1532, 7
          %v1534 = vsub.s32 0, %v1533
          %v1535 = vrot.slane %v789, %v1534
          %v1536 = vlaneseq
          %v1537 = vshrl.u32 %v1536, 7
          %v1538 = vsub.s32 0, %v1537
          %v1539 = vrot.slane %v791, %v1538
          %v1540 = vlaneseq
          %v1541 = vshrl.u32 %v1540, 7
          %v1542 = vsub.s32 0, %v1541
          %v1543 = vrot.slane %v793, %v1542
          %v1544 = vlaneseq
          %v1545 = vshrl.u32 %v1544, 7
          %v1546 = vsub.s32 0, %v1545
          %v1547 = vrot.slane %v817, %v1546
          %v1548 = vlaneseq
          %v1549 = vshrl.u32 %v1548, 7
          %v1550 = vsub.s32 0, %v1549
          %v1551 = vrot.slane %v831, %v1550
          %v1552 = vlaneseq
          %v1553 = vshrl.u32 %v1552, 7
          %v1554 = vsub.s32 0, %v1553
          %v1555 = vrot.slane %v839, %v1554
          %v1556 = vlaneseq
          %v1557 = vshrl.u32 %v1556, 7
          %v1558 = vsub.s32 0, %v1557
          %v1559 = vrot.slane %v841, %v1558
          %v1560 = vlaneseq
          %v1561 = vshrl.u32 %v1560, 7
          %v1562 = vsub.s32 0, %v1561
          %v1563 = vrot.slane %v824, %v1562
          %v1564 = vlaneseq
          %v1565 = vshrl.u32 %v1564, 7
          %v1566 = vsub.s32 0, %v1565
          %v1567 = vrot.slane %v838, %v1566
          %v1568 = vlaneseq
          %v1569 = vshrl.u32 %v1568, 7
          %v1570 = vsub.s32 0, %v1569
          %v1571 = vrot.slane %v840, %v1570
          %v1572 = vlaneseq
          %v1573 = vshrl.u32 %v1572, 7
          %v1574 = vsub.s32 0, %v1573
          %v1575 = vrot.slane %v842, %v1574
          %v1576 = vlaneseq
          %v1577 = vshrl.u32 %v1576, 7
          %v1578 = vsub.s32 0, %v1577
          %v1579 = vrot.slane %v866, %v1578
          %v1580 = vlaneseq
          %v1581 = vshrl.u32 %v1580, 7
          %v1582 = vsub.s32 0, %v1581
          %v1583 = vrot.slane %v880, %v1582
          %v1584 = vlaneseq
          %v1585 = vshrl.u32 %v1584, 7
          %v1586 = vsub.s32 0, %v1585
          %v1587 = vrot.slane %v888, %v1586
          %v1588 = vlaneseq
          %v1589 = vshrl.u32 %v1588, 7
          %v1590 = vsub.s32 0, %v1589
          %v1591 = vrot.slane %v890, %v1590
          %v1592 = vlaneseq
          %v1593 = vshrl.u32 %v1592, 7
          %v1594 = vsub.s32 0, %v1593
          %v1595 = vrot.slane %v873, %v1594
          %v1596 = vlaneseq
          %v1597 = vshrl.u32 %v1596, 7
          %v1598 = vsub.s32 0, %v1597
          %v1599 = vrot.slane %v887, %v1598
          %v1600 = vlaneseq
          %v1601 = vshrl.u32 %v1600, 7
          %v1602 = vsub.s32 0, %v1601
          %v1603 = vrot.slane %v889, %v1602
          %v1604 = vlaneseq
          %v1605 = vshrl.u32 %v1604, 7
          %v1606 = vsub.s32 0, %v1605
          %v1607 = vrot.slane %v891, %v1606
          %v1608 = vlaneseq
          %v1609 = vshrl.u32 %v1608, 7
          %v1610 = vsub.s32 0, %v1609
          %v1611 = vrot.slane %v915, %v1610
          %v1612 = vlaneseq
          %v1613 = vshrl.u32 %v1612, 7
          %v1614 = vsub.s32 0, %v1613
          %v1615 = vrot.slane %v929, %v1614
          %v1616 = vlaneseq
          %v1617 = vshrl.u32 %v1616, 7
          %v1618 = vsub.s32 0, %v1617
          %v1619 = vrot.slane %v937, %v1618
          %v1620 = vlaneseq
          %v1621 = vshrl.u32 %v1620, 7
          %v1622 = vsub.s32 0, %v1621
          %v1623 = vrot.slane %v939, %v1622
          %v1624 = vlaneseq
          %v1625 = vshrl.u32 %v1624, 7
          %v1626 = vsub.s32 0, %v1625
          %v1627 = vrot.slane %v922, %v1626
          %v1628 = vlaneseq
          %v1629 = vshrl.u32 %v1628, 7
          %v1630 = vsub.s32 0, %v1629
          %v1631 = vrot.slane %v936, %v1630
          %v1632 = vlaneseq
          %v1633 = vshrl.u32 %v1632, 7
          %v1634 = vsub.s32 0, %v1633
          %v1635 = vrot.slane %v938, %v1634
          %v1636 = vlaneseq
          %v1637 = vshrl.u32 %v1636, 7
          %v1638 = vsub.s32 0, %v1637
          %v1639 = vrot.slane %v940, %v1638
          %v1640 = vlaneseq
          %v1641 = vshrl.u32 %v1640, 7
          %v1642 = vsub.s32 0, %v1641
          %v1643 = vrot.slane %v964, %v1642
          %v1644 = vlaneseq
          %v1645 = vshrl.u32 %v1644, 7
          %v1646 = vsub.s32 0, %v1645
          %v1647 = vrot.slane %v978, %v1646
          %v1648 = vlaneseq
          %v1649 = vshrl.u32 %v1648, 7
          %v1650 = vsub.s32 0, %v1649
          %v1651 = vrot.slane %v986, %v1650
          %v1652 = vlaneseq
          %v1653 = vshrl.u32 %v1652, 7
          %v1654 = vsub.s32 0, %v1653
          %v1655 = vrot.slane %v988, %v1654
          %v1656 = vlaneseq
          %v1657 = vshrl.u32 %v1656, 7
          %v1658 = vsub.s32 0, %v1657
          %v1659 = vrot.slane %v971, %v1658
          %v1660 = vlaneseq
          %v1661 = vshrl.u32 %v1660, 7
          %v1662 = vsub.s32 0, %v1661
          %v1663 = vrot.slane %v985, %v1662
          %v1664 = vlaneseq
          %v1665 = vshrl.u32 %v1664, 7
          %v1666 = vsub.s32 0, %v1665
          %v1667 = vrot.slane %v987, %v1666
          %v1668 = vlaneseq
          %v1669 = vshrl.u32 %v1668, 7
          %v1670 = vsub.s32 0, %v1669
          %v1671 = vrot.slane %v989, %v1670
          %v1672 = vlaneseq
          %v1673 = vshrl.u32 %v1672, 7
          %v1674 = vsub.s32 0, %v1673
          %v1675 = vrot.slane %v1013, %v1674
          %v1676 = vlaneseq
          %v1677 = vshrl.u32 %v1676, 7
          %v1678 = vsub.s32 0, %v1677
          %v1679 = vrot.slane %v1027, %v1678
          %v1680 = vlaneseq
          %v1681 = vshrl.u32 %v1680, 7
          %v1682 = vsub.s32 0, %v1681
          %v1683 = vrot.slane %v1035, %v1682
          %v1684 = vlaneseq
          %v1685 = vshrl.u32 %v1684, 7
          %v1686 = vsub.s32 0, %v1685
          %v1687 = vrot.slane %v1037, %v1686
          %v1688 = vlaneseq
          %v1689 = vshrl.u32 %v1688, 7
          %v1690 = vsub.s32 0, %v1689
          %v1691 = vrot.slane %v1020, %v1690
          %v1692 = vlaneseq
          %v1693 = vshrl.u32 %v1692, 7
          %v1694 = vsub.s32 0, %v1693
          %v1695 = vrot.slane %v1034, %v1694
          %v1696 = vlaneseq
          %v1697 = vshrl.u32 %v1696, 7
          %v1698 = vsub.s32 0, %v1697
          %v1699 = vrot.slane %v1036, %v1698
          %v1700 = vlaneseq
          %v1701 = vshrl.u32 %v1700, 7
          %v1702 = vsub.s32 0, %v1701
          %v1703 = vrot.slane %v1038, %v1702
          %v1704 = vlaneseq
          %v1705 = vshrl.u32 %v1704, 7
          %v1706 = vsub.s32 0, %v1705
          %v1707 = vrot.slane %v1062, %v1706
          %v1708 = vlaneseq
          %v1709 = vshrl.u32 %v1708, 7
          %v1710 = vsub.s32 0, %v1709
          %v1711 = vrot.slane %v1076, %v1710
          %v1712 = vlaneseq
          %v1713 = vshrl.u32 %v1712, 7
          %v1714 = vsub.s32 0, %v1713
          %v1715 = vrot.slane %v1084, %v1714
          %v1716 = vlaneseq
          %v1717 = vshrl.u32 %v1716, 7
          %v1718 = vsub.s32 0, %v1717
          %v1719 = vrot.slane %v1086, %v1718
          %v1720 = vlaneseq
          %v1721 = vshrl.u32 %v1720, 7
          %v1722 = vsub.s32 0, %v1721
          %v1723 = vrot.slane %v1069, %v1722
          %v1724 = vlaneseq
          %v1725 = vshrl.u32 %v1724, 7
          %v1726 = vsub.s32 0, %v1725
          %v1727 = vrot.slane %v1083, %v1726
          %v1728 = vlaneseq
          %v1729 = vshrl.u32 %v1728, 7
          %v1730 = vsub.s32 0, %v1729
          %v1731 = vrot.slane %v1085, %v1730
          %v1732 = vlaneseq
          %v1733 = vshrl.u32 %v1732, 7
          %v1734 = vsub.s32 0, %v1733
          %v1735 = vrot.slane %v1087, %v1734
          %v1736 = vlaneseq
          %v1737 = vshrl.u32 %v1736, 7
          %v1738 = vsub.s32 0, %v1737
          %v1739 = vrot.slane %v1111, %v1738
          %v1740 = vlaneseq
          %v1741 = vshrl.u32 %v1740, 7
          %v1742 = vsub.s32 0, %v1741
          %v1743 = vrot.slane %v1125, %v1742
          %v1744 = vlaneseq
          %v1745 = vshrl.u32 %v1744, 7
          %v1746 = vsub.s32 0, %v1745
          %v1747 = vrot.slane %v1133, %v1746
          %v1748 = vlaneseq
          %v1749 = vshrl.u32 %v1748, 7
          %v1750 = vsub.s32 0, %v1749
          %v1751 = vrot.slane %v1135, %v1750
          %v1752 = vlaneseq
          %v1753 = vshrl.u32 %v1752, 7
          %v1754 = vsub.s32 0, %v1753
          %v1755 = vrot.slane %v1118, %v1754
          %v1756 = vlaneseq
          %v1757 = vshrl.u32 %v1756, 7
          %v1758 = vsub.s32 0, %v1757
          %v1759 = vrot.slane %v1132, %v1758
          %v1760 = vlaneseq
          %v1761 = vshrl.u32 %v1760, 7
          %v1762 = vsub.s32 0, %v1761
          %v1763 = vrot.slane %v1134, %v1762
          %v1764 = vlaneseq
          %v1765 = vshrl.u32 %v1764, 7
          %v1766 = vsub.s32 0, %v1765
          %v1767 = vrot.slane %v1136, %v1766
          %v1768 = vlaneseq
          %v1769 = vshrl.u32 %v1768, 7
          %v1770 = vsub.s32 0, %v1769
          %v1771 = vrot.slane %v1160, %v1770
          %v1772 = vlaneseq
          %v1773 = vshrl.u32 %v1772, 7
          %v1774 = vsub.s32 0, %v1773
          %v1775 = vrot.slane %v1174, %v1774
          %v1776 = vlaneseq
          %v1777 = vshrl.u32 %v1776, 7
          %v1778 = vsub.s32 0, %v1777
          %v1779 = vrot.slane %v1182, %v1778
          %v1780 = vlaneseq
          %v1781 = vshrl.u32 %v1780, 7
          %v1782 = vsub.s32 0, %v1781
          %v1783 = vrot.slane %v1184, %v1782
          %v1784 = vlaneseq
          %v1785 = vshrl.u32 %v1784, 7
          %v1786 = vsub.s32 0, %v1785
          %v1787 = vrot.slane %v1167, %v1786
          %v1788 = vlaneseq
          %v1789 = vshrl.u32 %v1788, 7
          %v1790 = vsub.s32 0, %v1789
          %v1791 = vrot.slane %v1181, %v1790
          %v1792 = vlaneseq
          %v1793 = vshrl.u32 %v1792, 7
          %v1794 = vsub.s32 0, %v1793
          %v1795 = vrot.slane %v1183, %v1794
          %v1796 = vlaneseq
          %v1797 = vshrl.u32 %v1796, 7
          %v1798 = vsub.s32 0, %v1797
          %v1799 = vrot.slane %v1185, %v1798
          %v1800 = vlaneseq
          %v1801 = vshrl.u32 %v1800, 7
          %v1802 = vsub.s32 0, %v1801
          %v1803 = vrot.slane %v1209, %v1802
          %v1804 = vlaneseq
          %v1805 = vshrl.u32 %v1804, 7
          %v1806 = vsub.s32 0, %v1805
          %v1807 = vrot.slane %v1223, %v1806
          %v1808 = vlaneseq
          %v1809 = vshrl.u32 %v1808, 7
          %v1810 = vsub.s32 0, %v1809
          %v1811 = vrot.slane %v1231, %v1810
          %v1812 = vlaneseq
          %v1813 = vshrl.u32 %v1812, 7
          %v1814 = vsub.s32 0, %v1813
          %v1815 = vrot.slane %v1233, %v1814
          %v1816 = vlaneseq
          %v1817 = vshrl.u32 %v1816, 7
          %v1818 = vsub.s32 0, %v1817
          %v1819 = vrot.slane %v1216, %v1818
          %v1820 = vlaneseq
          %v1821 = vshrl.u32 %v1820, 7
          %v1822 = vsub.s32 0, %v1821
          %v1823 = vrot.slane %v1230, %v1822
          %v1824 = vlaneseq
          %v1825 = vshrl.u32 %v1824, 7
          %v1826 = vsub.s32 0, %v1825
          %v1827 = vrot.slane %v1232, %v1826
          %v1828 = vlaneseq
          %v1829 = vshrl.u32 %v1828, 7
          %v1830 = vsub.s32 0, %v1829
          %v1831 = vrot.slane %v1234, %v1830
          %v1832 = vlaneseq
          %v1833 = vshrl.u32 %v1832, 7
          %v1834 = vsub.s32 0, %v1833
          %v1835 = vrot.slane %v1258, %v1834
          %v1836 = vlaneseq
          %v1837 = vshrl.u32 %v1836, 7
          %v1838 = vsub.s32 0, %v1837
          %v1839 = vrot.slane %v1272, %v1838
          %v1840 = vlaneseq
          %v1841 = vshrl.u32 %v1840, 7
          %v1842 = vsub.s32 0, %v1841
          %v1843 = vrot.slane %v1280, %v1842
          %v1844 = vlaneseq
          %v1845 = vshrl.u32 %v1844, 7
          %v1846 = vsub.s32 0, %v1845
          %v1847 = vrot.slane %v1282, %v1846
          %v1848 = vlaneseq
          %v1849 = vshrl.u32 %v1848, 7
          %v1850 = vsub.s32 0, %v1849
          %v1851 = vrot.slane %v1265, %v1850
          %v1852 = vlaneseq
          %v1853 = vshrl.u32 %v1852, 7
          %v1854 = vsub.s32 0, %v1853
          %v1855 = vrot.slane %v1279, %v1854
          %v1856 = vlaneseq
          %v1857 = vshrl.u32 %v1856, 7
          %v1858 = vsub.s32 0, %v1857
          %v1859 = vrot.slane %v1281, %v1858
          %v1860 = vlaneseq
          %v1861 = vshrl.u32 %v1860, 7
          %v1862 = vsub.s32 0, %v1861
          %v1863 = vrot.slane %v1283, %v1862
          %v1864 = vlaneseq
          %v1865 = vshrl.u32 %v1864, 7
          %v1866 = vsub.s32 0, %v1865
          %v1867 = vrot.slane %v1307, %v1866
          %v1868 = vlaneseq
          %v1869 = vshrl.u32 %v1868, 7
          %v1870 = vsub.s32 0, %v1869
          %v1871 = vrot.slane %v1321, %v1870
          %v1872 = vlaneseq
          %v1873 = vshrl.u32 %v1872, 7
          %v1874 = vsub.s32 0, %v1873
          %v1875 = vrot.slane %v1329, %v1874
          %v1876 = vlaneseq
          %v1877 = vshrl.u32 %v1876, 7
          %v1878 = vsub.s32 0, %v1877
          %v1879 = vrot.slane %v1331, %v1878
          %v1880 = vlaneseq
          %v1881 = vshrl.u32 %v1880, 7
          %v1882 = vsub.s32 0, %v1881
          %v1883 = vrot.slane %v1314, %v1882
          %v1884 = vlaneseq
          %v1885 = vshrl.u32 %v1884, 7
          %v1886 = vsub.s32 0, %v1885
          %v1887 = vrot.slane %v1328, %v1886
          %v1888 = vlaneseq
          %v1889 = vshrl.u32 %v1888, 7
          %v1890 = vsub.s32 0, %v1889
          %v1891 = vrot.slane %v1330, %v1890
          %v1892 = vlaneseq
          %v1893 = vshrl.u32 %v1892, 7
          %v1894 = vsub.s32 0, %v1893
          %v1895 = vrot.slane %v1332, %v1894
          %v1896 = vlaneseq
          %v1897 = vshrl.u32 %v1896, 7
          %v1898 = vsub.s32 0, %v1897
          %v1899 = vrot.slane %v1356, %v1898
          %v1900 = vlaneseq
          %v1901 = vshrl.u32 %v1900, 7
          %v1902 = vsub.s32 0, %v1901
          %v1903 = vrot.slane %v1370, %v1902
          %v1904 = vlaneseq
          %v1905 = vshrl.u32 %v1904, 7
          %v1906 = vsub.s32 0, %v1905
          %v1907 = vrot.slane %v1378, %v1906
          %v1908 = vlaneseq
          %v1909 = vshrl.u32 %v1908, 7
          %v1910 = vsub.s32 0, %v1909
          %v1911 = vrot.slane %v1380, %v1910
          %v1912 = vlaneseq
          %v1913 = vshrl.u32 %v1912, 7
          %v1914 = vsub.s32 0, %v1913
          %v1915 = vrot.slane %v1363, %v1914
          %v1916 = vlaneseq
          %v1917 = vshrl.u32 %v1916, 7
          %v1918 = vsub.s32 0, %v1917
          %v1919 = vrot.slane %v1377, %v1918
          %v1920 = vlaneseq
          %v1921 = vshrl.u32 %v1920, 7
          %v1922 = vsub.s32 0, %v1921
          %v1923 = vrot.slane %v1379, %v1922
          %v1924 = vlaneseq
          %v1925 = vshrl.u32 %v1924, 7
          %v1926 = vsub.s32 0, %v1925
          %v1927 = vrot.slane %v1381, %v1926
          %v1928 = vlaneseq
          %v1929 = vshrl.u32 %v1928, 7
          %v1930 = vsub.s32 0, %v1929
          %v1931 = vrot.slane %v1405, %v1930
          %v1932 = vlaneseq
          %v1933 = vshrl.u32 %v1932, 7
          %v1934 = vsub.s32 0, %v1933
          %v1935 = vrot.slane %v1419, %v1934
          %v1936 = vlaneseq
          %v1937 = vshrl.u32 %v1936, 7
          %v1938 = vsub.s32 0, %v1937
          %v1939 = vrot.slane %v1427, %v1938
          %v1940 = vlaneseq
          %v1941 = vshrl.u32 %v1940, 7
          %v1942 = vsub.s32 0, %v1941
          %v1943 = vrot.slane %v1429, %v1942
          %v1944 = vlaneseq
          %v1945 = vshrl.u32 %v1944, 7
          %v1946 = vsub.s32 0, %v1945
          %v1947 = vrot.slane %v1412, %v1946
          %v1948 = vlaneseq
          %v1949 = vshrl.u32 %v1948, 7
          %v1950 = vsub.s32 0, %v1949
          %v1951 = vrot.slane %v1426, %v1950
          %v1952 = vlaneseq
          %v1953 = vshrl.u32 %v1952, 7
          %v1954 = vsub.s32 0, %v1953
          %v1955 = vrot.slane %v1428, %v1954
          %v1956 = vlaneseq
          %v1957 = vshrl.u32 %v1956, 7
          %v1958 = vsub.s32 0, %v1957
          %v1959 = vrot.slane %v1430, %v1958
          %v1960 = vlaneseq
          %v1961 = vshrl.u32 %v1960, 7
          %v1962 = vsub.s32 0, %v1961
          %v1963 = vrot.slane %v1454, %v1962
          %v1964 = vlaneseq
          %v1965 = vshrl.u32 %v1964, 7
          %v1966 = vsub.s32 0, %v1965
          %v1967 = vrot.slane %v1468, %v1966
          %v1968 = vlaneseq
          %v1969 = vshrl.u32 %v1968, 7
          %v1970 = vsub.s32 0, %v1969
          %v1971 = vrot.slane %v1476, %v1970
          %v1972 = vlaneseq
          %v1973 = vshrl.u32 %v1972, 7
          %v1974 = vsub.s32 0, %v1973
          %v1975 = vrot.slane %v1478, %v1974
          %v1976 = vlaneseq
          %v1977 = vshrl.u32 %v1976, 7
          %v1978 = vsub.s32 0, %v1977
          %v1979 = vrot.slane %v1461, %v1978
          %v1980 = vlaneseq
          %v1981 = vshrl.u32 %v1980, 7
          %v1982 = vsub.s32 0, %v1981
          %v1983 = vrot.slane %v1475, %v1982
          %v1984 = vlaneseq
          %v1985 = vshrl.u32 %v1984, 7
          %v1986 = vsub.s32 0, %v1985
          %v1987 = vrot.slane %v1477, %v1986
          %v1988 = vlaneseq
          %v1989 = vshrl.u32 %v1988, 7
          %v1990 = vsub.s32 0, %v1989
          %v1991 = vrot.slane %v1479, %v1990
          %v2120 = vmul.f32 %v1483, %v648
          %v2121 = vmul.f32 %v1483, %v649
          %v2122 = vmul.f32 %v1487, %v650
          %v2123 = vmul.f32 %v1487, %v651
          %v2124 = vmul.f32 %v1491, %v652
          %v2125 = vmul.f32 %v1491, %v653
          %v2126 = vmul.f32 %v1495, %v654
          %v2127 = vmul.f32 %v1495, %v655
          %v2128 = vmul.f32 %v1499, %v656
          %v2129 = vmul.f32 %v1499, %v657
          %v2130 = vmul.f32 %v1503, %v658
          %v2131 = vmul.f32 %v1503, %v659
          %v2132 = vmul.f32 %v1507, %v660
          %v2133 = vmul.f32 %v1507, %v661
          %v2134 = vmul.f32 %v1511, %v662
          %v2135 = vmul.f32 %v1511, %v663
          %v2136 = vmul.f32 %v1515, %v664
          %v2137 = vmul.f32 %v1515, %v665
          %v2138 = vmul.f32 %v1519, %v666
          %v2139 = vmul.f32 %v1519, %v667
          %v2140 = vmul.f32 %v1523, %v668
          %v2141 = vmul.f32 %v1523, %v669
          %v2142 = vmul.f32 %v1527, %v670
          %v2143 = vmul.f32 %v1527, %v671
          %v2144 = vmul.f32 %v1531, %v672
          %v2145 = vmul.f32 %v1531, %v673
          %v2146 = vmul.f32 %v1535, %v674
          %v2147 = vmul.f32 %v1535, %v675
          %v2148 = vmul.f32 %v1539, %v676
          %v2149 = vmul.f32 %v1539, %v677
          %v2150 = vmul.f32 %v1543, %v678
          %v2151 = vmul.f32 %v1543, %v679
          %v2152 = vmul.f32 %v1547, %v648
          %v2153 = vmul.f32 %v1547, %v649
          %v2154 = vmul.f32 %v1551, %v650
          %v2155 = vmul.f32 %v1551, %v651
          %v2156 = vmul.f32 %v1555, %v652
          %v2157 = vmul.f32 %v1555, %v653
          %v2158 = vmul.f32 %v1559, %v654
          %v2159 = vmul.f32 %v1559, %v655
          %v2160 = vmul.f32 %v1563, %v656
          %v2161 = vmul.f32 %v1563, %v657
          %v2162 = vmul.f32 %v1567, %v658
          %v2163 = vmul.f32 %v1567, %v659
          %v2164 = vmul.f32 %v1571, %v660
          %v2165 = vmul.f32 %v1571, %v661
          %v2166 = vmul.f32 %v1575, %v662
          %v2167 = vmul.f32 %v1575, %v663
          %v2168 = vmul.f32 %v1579, %v664
          %v2169 = vmul.f32 %v1579, %v665
          %v2170 = vmul.f32 %v1583, %v666
          %v2171 = vmul.f32 %v1583, %v667
          %v2172 = vmul.f32 %v1587, %v668
          %v2173 = vmul.f32 %v1587, %v669
          %v2174 = vmul.f32 %v1591, %v670
          %v2175 = vmul.f32 %v1591, %v671
          %v2176 = vmul.f32 %v1595, %v672
          %v2177 = vmul.f32 %v1595, %v673
          %v2178 = vmul.f32 %v1599, %v674
          %v2179 = vmul.f32 %v1599, %v675
          %v2180 = vmul.f32 %v1603, %v676
          %v2181 = vmul.f32 %v1603, %v677
          %v2182 = vmul.f32 %v1607, %v678
          %v2183 = vmul.f32 %v1607, %v679
          %v2184 = vmul.f32 %v1611, %v648
          %v2185 = vmul.f32 %v1611, %v649
          %v2186 = vmul.f32 %v1615, %v650
          %v2187 = vmul.f32 %v1615, %v651
          %v2188 = vmul.f32 %v1619, %v652
          %v2189 = vmul.f32 %v1619, %v653
          %v2190 = vmul.f32 %v1623, %v654
          %v2191 = vmul.f32 %v1623, %v655
          %v2192 = vmul.f32 %v1627, %v656
          %v2193 = vmul.f32 %v1627, %v657
          %v2194 = vmul.f32 %v1631, %v658
          %v2195 = vmul.f32 %v1631, %v659
          %v2196 = vmul.f32 %v1635, %v660
          %v2197 = vmul.f32 %v1635, %v661
          %v2198 = vmul.f32 %v1639, %v662
          %v2199 = vmul.f32 %v1639, %v663
          %v2200 = vmul.f32 %v1643, %v664
          %v2201 = vmul.f32 %v1643, %v665
          %v2202 = vmul.f32 %v1647, %v666
          %v2203 = vmul.f32 %v1647, %v667
          %v2204 = vmul.f32 %v1651, %v668
          %v2205 = vmul.f32 %v1651, %v669
          %v2206 = vmul.f32 %v1655, %v670
          %v2207 = vmul.f32 %v1655, %v671
          %v2208 = vmul.f32 %v1659, %v672
          %v2209 = vmul.f32 %v1659, %v673
          %v2210 = vmul.f32 %v1663, %v674
          %v2211 = vmul.f32 %v1663, %v675
          %v2212 = vmul.f32 %v1667, %v676
          %v2213 = vmul.f32 %v1667, %v677
          %v2214 = vmul.f32 %v1671, %v678
          %v2215 = vmul.f32 %v1671, %v679
          %v2216 = vmul.f32 %v1675, %v648
          %v2217 = vmul.f32 %v1675, %v649
          %v2218 = vmul.f32 %v1679, %v650
          %v2219 = vmul.f32 %v1679, %v651
          %v2220 = vmul.f32 %v1683, %v652
          %v2221 = vmul.f32 %v1683, %v653
          %v2222 = vmul.f32 %v1687, %v654
          %v2223 = vmul.f32 %v1687, %v655
          %v2224 = vmul.f32 %v1691, %v656
          %v2225 = vmul.f32 %v1691, %v657
          %v2226 = vmul.f32 %v1695, %v658
          %v2227 = vmul.f32 %v1695, %v659
          %v2228 = vmul.f32 %v1699, %v660
          %v2229 = vmul.f32 %v1699, %v661
          %v2230 = vmul.f32 %v1703, %v662
          %v2231 = vmul.f32 %v1703, %v663
          %v2232 = vmul.f32 %v1707, %v664
          %v2233 = vmul.f32 %v1707, %v665
          %v2234 = vmul.f32 %v1711, %v666
          %v2235 = vmul.f32 %v1711, %v667
          %v2236 = vmul.f32 %v1715, %v668
          %v2237 = vmul.f32 %v1715, %v669
          %v2238 = vmul.f32 %v1719, %v670
          %v2239 = vmul.f32 %v1719, %v671
          %v2240 = vmul.f32 %v1723, %v672
          %v2241 = vmul.f32 %v1723, %v673
          %v2242 = vmul.f32 %v1727, %v674
          %v2243 = vmul.f32 %v1727, %v675
          %v2244 = vmul.f32 %v1731, %v676
          %v2245 = vmul.f32 %v1731, %v677
          %v2246 = vmul.f32 %v1735, %v678
          %v2247 = vmul.f32 %v1735, %v679
          %v2248 = vmul.f32 %v1739, %v648
          %v2249 = vmul.f32 %v1739, %v649
          %v2250 = vmul.f32 %v1743, %v650
          %v2251 = vmul.f32 %v1743, %v651
          %v2252 = vmul.f32 %v1747, %v652
          %v2253 = vmul.f32 %v1747, %v653
          %v2254 = vmul.f32 %v1751, %v654
          %v2255 = vmul.f32 %v1751, %v655
          %v2256 = vmul.f32 %v1755, %v656
          %v2257 = vmul.f32 %v1755, %v657
          %v2258 = vmul.f32 %v1759, %v658
          %v2259 = vmul.f32 %v1759, %v659
          %v2260 = vmul.f32 %v1763, %v660
          %v2261 = vmul.f32 %v1763, %v661
          %v2262 = vmul.f32 %v1767, %v662
          %v2263 = vmul.f32 %v1767, %v663
          %v2264 = vmul.f32 %v1771, %v664
          %v2265 = vmul.f32 %v1771, %v665
          %v2266 = vmul.f32 %v1775, %v666
          %v2267 = vmul.f32 %v1775, %v667
          %v2268 = vmul.f32 %v1779, %v668
          %v2269 = vmul.f32 %v1779, %v669
          %v2270 = vmul.f32 %v1783, %v670
          %v2271 = vmul.f32 %v1783, %v671
          %v2272 = vmul.f32 %v1787, %v672
          %v2273 = vmul.f32 %v1787, %v673
          %v2274 = vmul.f32 %v1791, %v674
          %v2275 = vmul.f32 %v1791, %v675
          %v2276 = vmul.f32 %v1795, %v676
          %v2277 = vmul.f32 %v1795, %v677
          %v2278 = vmul.f32 %v1799, %v678
          %v2279 = vmul.f32 %v1799, %v679
          %v2280 = vmul.f32 %v1803, %v648
          %v2281 = vmul.f32 %v1803, %v649
          %v2282 = vmul.f32 %v1807, %v650
          %v2283 = vmul.f32 %v1807, %v651
          %v2284 = vmul.f32 %v1811, %v652
          %v2285 = vmul.f32 %v1811, %v653
          %v2286 = vmul.f32 %v1815, %v654
          %v2287 = vmul.f32 %v1815, %v655
          %v2288 = vmul.f32 %v1819, %v656
          %v2289 = vmul.f32 %v1819, %v657
          %v2290 = vmul.f32 %v1823, %v658
          %v2291 = vmul.f32 %v1823, %v659
          %v2292 = vmul.f32 %v1827, %v660
          %v2293 = vmul.f32 %v1827, %v661
          %v2294 = vmul.f32 %v1831, %v662
          %v2295 = vmul.f32 %v1831, %v663
          %v2296 = vmul.f32 %v1835, %v664
          %v2297 = vmul.f32 %v1835, %v665
          %v2298 = vmul.f32 %v1839, %v666
          %v2299 = vmul.f32 %v1839, %v667
          %v2300 = vmul.f32 %v1843, %v668
          %v2301 = vmul.f32 %v1843, %v669
          %v2302 = vmul.f32 %v1847, %v670
          %v2303 = vmul.f32 %v1847, %v671
          %v2304 = vmul.f32 %v1851, %v672
          %v2305 = vmul.f32 %v1851, %v673
          %v2306 = vmul.f32 %v1855, %v674
          %v2307 = vmul.f32 %v1855, %v675
          %v2308 = vmul.f32 %v1859, %v676
          %v2309 = vmul.f32 %v1859, %v677
          %v2310 = vmul.f32 %v1863, %v678
          %v2311 = vmul.f32 %v1863, %v679
          %v2312 = vmul.f32 %v1867, %v648
          %v2313 = vmul.f32 %v1867, %v649
          %v2314 = vmul.f32 %v1871, %v650
          %v2315 = vmul.f32 %v1871, %v651
          %v2316 = vmul.f32 %v1875, %v652
          %v2317 = vmul.f32 %v1875, %v653
          %v2318 = vmul.f32 %v1879, %v654
          %v2319 = vmul.f32 %v1879, %v655
          %v2320 = vmul.f32 %v1883, %v656
          %v2321 = vmul.f32 %v1883, %v657
          %v2322 = vmul.f32 %v1887, %v658
          %v2323 = vmul.f32 %v1887, %v659
          %v2324 = vmul.f32 %v1891, %v660
          %v2325 = vmul.f32 %v1891, %v661
          %v2326 = vmul.f32 %v1895, %v662
          %v2327 = vmul.f32 %v1895, %v663
          %v2328 = vmul.f32 %v1899, %v664
          %v2329 = vmul.f32 %v1899, %v665
          %v2330 = vmul.f32 %v1903, %v666
          %v2331 = vmul.f32 %v1903, %v667
          %v2332 = vmul.f32 %v1907, %v668
          %v2333 = vmul.f32 %v1907, %v669
          %v2334 = vmul.f32 %v1911, %v670
          %v2335 = vmul.f32 %v1911, %v671
          %v2336 = vmul.f32 %v1915, %v672
          %v2337 = vmul.f32 %v1915, %v673
          %v2338 = vmul.f32 %v1919, %v674
          %v2339 = vmul.f32 %v1919, %v675
          %v2340 = vmul.f32 %v1923, %v676
          %v2341 = vmul.f32 %v1923, %v677
          %v2342 = vmul.f32 %v1927, %v678
          %v2343 = vmul.f32 %v1927, %v679
          %v2344 = vmul.f32 %v1931, %v648
          %v2345 = vmul.f32 %v1931, %v649
          %v2346 = vmul.f32 %v1935, %v650
          %v2347 = vmul.f32 %v1935, %v651
          %v2348 = vmul.f32 %v1939, %v652
          %v2349 = vmul.f32 %v1939, %v653
          %v2350 = vmul.f32 %v1943, %v654
          %v2351 = vmul.f32 %v1943, %v655
          %v2352 = vmul.f32 %v1947, %v656
          %v2353 = vmul.f32 %v1947, %v657
          %v2354 = vmul.f32 %v1951, %v658
          %v2355 = vmul.f32 %v1951, %v659
          %v2356 = vmul.f32 %v1955, %v660
          %v2357 = vmul.f32 %v1955, %v661
          %v2358 = vmul.f32 %v1959, %v662
          %v2359 = vmul.f32 %v1959, %v663
          %v2360 = vmul.f32 %v1963, %v664
          %v2361 = vmul.f32 %v1963, %v665
          %v2362 = vmul.f32 %v1967, %v666
          %v2363 = vmul.f32 %v1967, %v667
          %v2364 = vmul.f32 %v1971, %v668
          %v2365 = vmul.f32 %v1971, %v669
          %v2366 = vmul.f32 %v1975, %v670
          %v2367 = vmul.f32 %v1975, %v671
          %v2368 = vmul.f32 %v1979, %v672
          %v2369 = vmul.f32 %v1979, %v673
          %v2370 = vmul.f32 %v1983, %v674
          %v2371 = vmul.f32 %v1983, %v675
          %v2372 = vmul.f32 %v1987, %v676
          %v2373 = vmul.f32 %v1987, %v677
          %v2374 = vmul.f32 %v1991, %v678
          %v2375 = vmul.f32 %v1991, %v679
          %v2376 = vsel %vm583, %v2120, 0.0
          %2377 = vadd.xlane.f32.xlu0 %v2376
          %v2378 = vpop.xlane.xlu0 %2377
          %v2379 = vsel %vm583, %v2121, 0.0
          %2380 = vadd.xlane.f32.xlu0 %v2379
          %v2381 = vpop.xlane.xlu0 %2380
          %v2382 = vsel %vm583, %v2122, 0.0
          %2383 = vadd.xlane.f32.xlu0 %v2382
          %v2384 = vpop.xlane.xlu0 %2383
          %v2385 = vsel %vm583, %v2123, 0.0
          %2386 = vadd.xlane.f32.xlu0 %v2385
          %v2387 = vpop.xlane.xlu0 %2386
          %v2388 = vsel %vm583, %v2124, 0.0
          %2389 = vadd.xlane.f32.xlu0 %v2388
          %v2390 = vpop.xlane.xlu0 %2389
          %v2391 = vsel %vm583, %v2125, 0.0
          %2392 = vadd.xlane.f32.xlu0 %v2391
          %v2393 = vpop.xlane.xlu0 %2392
          %v2394 = vsel %vm583, %v2126, 0.0
          %2395 = vadd.xlane.f32.xlu0 %v2394
          %v2396 = vpop.xlane.xlu0 %2395
          %v2397 = vsel %vm583, %v2127, 0.0
          %2398 = vadd.xlane.f32.xlu0 %v2397
          %v2399 = vpop.xlane.xlu0 %2398
          %v2400 = vsel %vm583, %v2128, 0.0
          %2401 = vadd.xlane.f32.xlu0 %v2400
          %v2402 = vpop.xlane.xlu0 %2401
          %v2403 = vsel %vm583, %v2129, 0.0
          %2404 = vadd.xlane.f32.xlu0 %v2403
          %v2405 = vpop.xlane.xlu0 %2404
          %v2406 = vsel %vm583, %v2130, 0.0
          %2407 = vadd.xlane.f32.xlu0 %v2406
          %v2408 = vpop.xlane.xlu0 %2407
          %v2409 = vsel %vm583, %v2131, 0.0
          %2410 = vadd.xlane.f32.xlu0 %v2409
          %v2411 = vpop.xlane.xlu0 %2410
          %v2412 = vsel %vm583, %v2132, 0.0
          %2413 = vadd.xlane.f32.xlu0 %v2412
          %v2414 = vpop.xlane.xlu0 %2413
          %v2415 = vsel %vm583, %v2133, 0.0
          %2416 = vadd.xlane.f32.xlu0 %v2415
          %v2417 = vpop.xlane.xlu0 %2416
          %v2418 = vsel %vm583, %v2134, 0.0
          %2419 = vadd.xlane.f32.xlu0 %v2418
          %v2420 = vpop.xlane.xlu0 %2419
          %v2421 = vsel %vm583, %v2135, 0.0
          %2422 = vadd.xlane.f32.xlu0 %v2421
          %v2423 = vpop.xlane.xlu0 %2422
          %v2424 = vsel %vm583, %v2136, 0.0
          %2425 = vadd.xlane.f32.xlu0 %v2424
          %v2426 = vpop.xlane.xlu0 %2425
          %v2427 = vsel %vm583, %v2137, 0.0
          %2428 = vadd.xlane.f32.xlu0 %v2427
          %v2429 = vpop.xlane.xlu0 %2428
          %v2430 = vsel %vm583, %v2138, 0.0
          %2431 = vadd.xlane.f32.xlu0 %v2430
          %v2432 = vpop.xlane.xlu0 %2431
          %v2433 = vsel %vm583, %v2139, 0.0
          %2434 = vadd.xlane.f32.xlu0 %v2433
          %v2435 = vpop.xlane.xlu0 %2434
          %v2436 = vsel %vm583, %v2140, 0.0
          %2437 = vadd.xlane.f32.xlu0 %v2436
          %v2438 = vpop.xlane.xlu0 %2437
          %v2439 = vsel %vm583, %v2141, 0.0
          %2440 = vadd.xlane.f32.xlu0 %v2439
          %v2441 = vpop.xlane.xlu0 %2440
          %v2442 = vsel %vm583, %v2142, 0.0
          %2443 = vadd.xlane.f32.xlu0 %v2442
          %v2444 = vpop.xlane.xlu0 %2443
          %v2445 = vsel %vm583, %v2143, 0.0
          %2446 = vadd.xlane.f32.xlu0 %v2445
          %v2447 = vpop.xlane.xlu0 %2446
          %v2448 = vsel %vm583, %v2144, 0.0
          %2449 = vadd.xlane.f32.xlu0 %v2448
          %v2450 = vpop.xlane.xlu0 %2449
          %v2451 = vsel %vm583, %v2145, 0.0
          %2452 = vadd.xlane.f32.xlu0 %v2451
          %v2453 = vpop.xlane.xlu0 %2452
          %v2454 = vsel %vm583, %v2146, 0.0
          %2455 = vadd.xlane.f32.xlu0 %v2454
          %v2456 = vpop.xlane.xlu0 %2455
          %v2457 = vsel %vm583, %v2147, 0.0
          %2458 = vadd.xlane.f32.xlu0 %v2457
          %v2459 = vpop.xlane.xlu0 %2458
          %v2460 = vsel %vm583, %v2148, 0.0
          %2461 = vadd.xlane.f32.xlu0 %v2460
          %v2462 = vpop.xlane.xlu0 %2461
          %v2463 = vsel %vm583, %v2149, 0.0
          %2464 = vadd.xlane.f32.xlu0 %v2463
          %v2465 = vpop.xlane.xlu0 %2464
          %v2466 = vsel %vm583, %v2150, 0.0
          %2467 = vadd.xlane.f32.xlu0 %v2466
          %v2468 = vpop.xlane.xlu0 %2467
          %v2469 = vsel %vm583, %v2151, 0.0
          %2470 = vadd.xlane.f32.xlu0 %v2469
          %v2471 = vpop.xlane.xlu0 %2470
          %v2472 = vsel %vm583, %v2152, 0.0
          %2473 = vadd.xlane.f32.xlu0 %v2472
          %v2474 = vpop.xlane.xlu0 %2473
          %v2475 = vsel %vm583, %v2153, 0.0
          %2476 = vadd.xlane.f32.xlu0 %v2475
          %v2477 = vpop.xlane.xlu0 %2476
          %v2478 = vsel %vm583, %v2154, 0.0
          %2479 = vadd.xlane.f32.xlu0 %v2478
          %v2480 = vpop.xlane.xlu0 %2479
          %v2481 = vsel %vm583, %v2155, 0.0
          %2482 = vadd.xlane.f32.xlu0 %v2481
          %v2483 = vpop.xlane.xlu0 %2482
          %v2484 = vsel %vm583, %v2156, 0.0
          %2485 = vadd.xlane.f32.xlu0 %v2484
          %v2486 = vpop.xlane.xlu0 %2485
          %v2487 = vsel %vm583, %v2157, 0.0
          %2488 = vadd.xlane.f32.xlu0 %v2487
          %v2489 = vpop.xlane.xlu0 %2488
          %v2490 = vsel %vm583, %v2158, 0.0
          %2491 = vadd.xlane.f32.xlu0 %v2490
          %v2492 = vpop.xlane.xlu0 %2491
          %v2493 = vsel %vm583, %v2159, 0.0
          %2494 = vadd.xlane.f32.xlu0 %v2493
          %v2495 = vpop.xlane.xlu0 %2494
          %v2496 = vsel %vm583, %v2160, 0.0
          %2497 = vadd.xlane.f32.xlu0 %v2496
          %v2498 = vpop.xlane.xlu0 %2497
          %v2499 = vsel %vm583, %v2161, 0.0
          %2500 = vadd.xlane.f32.xlu0 %v2499
          %v2501 = vpop.xlane.xlu0 %2500
          %v2502 = vsel %vm583, %v2162, 0.0
          %2503 = vadd.xlane.f32.xlu0 %v2502
          %v2504 = vpop.xlane.xlu0 %2503
          %v2505 = vsel %vm583, %v2163, 0.0
          %2506 = vadd.xlane.f32.xlu0 %v2505
          %v2507 = vpop.xlane.xlu0 %2506
          %v2508 = vsel %vm583, %v2164, 0.0
          %2509 = vadd.xlane.f32.xlu0 %v2508
          %v2510 = vpop.xlane.xlu0 %2509
          %v2511 = vsel %vm583, %v2165, 0.0
          %2512 = vadd.xlane.f32.xlu0 %v2511
          %v2513 = vpop.xlane.xlu0 %2512
          %v2514 = vsel %vm583, %v2166, 0.0
          %2515 = vadd.xlane.f32.xlu0 %v2514
          %v2516 = vpop.xlane.xlu0 %2515
          %v2517 = vsel %vm583, %v2167, 0.0
          %2518 = vadd.xlane.f32.xlu0 %v2517
          %v2519 = vpop.xlane.xlu0 %2518
          %v2520 = vsel %vm583, %v2168, 0.0
          %2521 = vadd.xlane.f32.xlu0 %v2520
          %v2522 = vpop.xlane.xlu0 %2521
          %v2523 = vsel %vm583, %v2169, 0.0
          %2524 = vadd.xlane.f32.xlu0 %v2523
          %v2525 = vpop.xlane.xlu0 %2524
          %v2526 = vsel %vm583, %v2170, 0.0
          %2527 = vadd.xlane.f32.xlu0 %v2526
          %v2528 = vpop.xlane.xlu0 %2527
          %v2529 = vsel %vm583, %v2171, 0.0
          %2530 = vadd.xlane.f32.xlu0 %v2529
          %v2531 = vpop.xlane.xlu0 %2530
          %v2532 = vsel %vm583, %v2172, 0.0
          %2533 = vadd.xlane.f32.xlu0 %v2532
          %v2534 = vpop.xlane.xlu0 %2533
          %v2535 = vsel %vm583, %v2173, 0.0
          %2536 = vadd.xlane.f32.xlu0 %v2535
          %v2537 = vpop.xlane.xlu0 %2536
          %v2538 = vsel %vm583, %v2174, 0.0
          %2539 = vadd.xlane.f32.xlu0 %v2538
          %v2540 = vpop.xlane.xlu0 %2539
          %v2541 = vsel %vm583, %v2175, 0.0
          %2542 = vadd.xlane.f32.xlu0 %v2541
          %v2543 = vpop.xlane.xlu0 %2542
          %v2544 = vsel %vm583, %v2176, 0.0
          %2545 = vadd.xlane.f32.xlu0 %v2544
          %v2546 = vpop.xlane.xlu0 %2545
          %v2547 = vsel %vm583, %v2177, 0.0
          %2548 = vadd.xlane.f32.xlu0 %v2547
          %v2549 = vpop.xlane.xlu0 %2548
          %v2550 = vsel %vm583, %v2178, 0.0
          %2551 = vadd.xlane.f32.xlu0 %v2550
          %v2552 = vpop.xlane.xlu0 %2551
          %v2553 = vsel %vm583, %v2179, 0.0
          %2554 = vadd.xlane.f32.xlu0 %v2553
          %v2555 = vpop.xlane.xlu0 %2554
          %v2556 = vsel %vm583, %v2180, 0.0
          %2557 = vadd.xlane.f32.xlu0 %v2556
          %v2558 = vpop.xlane.xlu0 %2557
          %v2559 = vsel %vm583, %v2181, 0.0
          %2560 = vadd.xlane.f32.xlu0 %v2559
          %v2561 = vpop.xlane.xlu0 %2560
          %v2562 = vsel %vm583, %v2182, 0.0
          %2563 = vadd.xlane.f32.xlu0 %v2562
          %v2564 = vpop.xlane.xlu0 %2563
          %v2565 = vsel %vm583, %v2183, 0.0
          %2566 = vadd.xlane.f32.xlu0 %v2565
          %v2567 = vpop.xlane.xlu0 %2566
          %v2568 = vsel %vm583, %v2184, 0.0
          %2569 = vadd.xlane.f32.xlu0 %v2568
          %v2570 = vpop.xlane.xlu0 %2569
          %v2571 = vsel %vm583, %v2185, 0.0
          %2572 = vadd.xlane.f32.xlu0 %v2571
          %v2573 = vpop.xlane.xlu0 %2572
          %v2574 = vsel %vm583, %v2186, 0.0
          %2575 = vadd.xlane.f32.xlu0 %v2574
          %v2576 = vpop.xlane.xlu0 %2575
          %v2577 = vsel %vm583, %v2187, 0.0
          %2578 = vadd.xlane.f32.xlu0 %v2577
          %v2579 = vpop.xlane.xlu0 %2578
          %v2580 = vsel %vm583, %v2188, 0.0
          %2581 = vadd.xlane.f32.xlu0 %v2580
          %v2582 = vpop.xlane.xlu0 %2581
          %v2583 = vsel %vm583, %v2189, 0.0
          %2584 = vadd.xlane.f32.xlu0 %v2583
          %v2585 = vpop.xlane.xlu0 %2584
          %v2586 = vsel %vm583, %v2190, 0.0
          %2587 = vadd.xlane.f32.xlu0 %v2586
          %v2588 = vpop.xlane.xlu0 %2587
          %v2589 = vsel %vm583, %v2191, 0.0
          %2590 = vadd.xlane.f32.xlu0 %v2589
          %v2591 = vpop.xlane.xlu0 %2590
          %v2592 = vsel %vm583, %v2192, 0.0
          %2593 = vadd.xlane.f32.xlu0 %v2592
          %v2594 = vpop.xlane.xlu0 %2593
          %v2595 = vsel %vm583, %v2193, 0.0
          %2596 = vadd.xlane.f32.xlu0 %v2595
          %v2597 = vpop.xlane.xlu0 %2596
          %v2598 = vsel %vm583, %v2194, 0.0
          %2599 = vadd.xlane.f32.xlu0 %v2598
          %v2600 = vpop.xlane.xlu0 %2599
          %v2601 = vsel %vm583, %v2195, 0.0
          %2602 = vadd.xlane.f32.xlu0 %v2601
          %v2603 = vpop.xlane.xlu0 %2602
          %v2604 = vsel %vm583, %v2196, 0.0
          %2605 = vadd.xlane.f32.xlu0 %v2604
          %v2606 = vpop.xlane.xlu0 %2605
          %v2607 = vsel %vm583, %v2197, 0.0
          %2608 = vadd.xlane.f32.xlu0 %v2607
          %v2609 = vpop.xlane.xlu0 %2608
          %v2610 = vsel %vm583, %v2198, 0.0
          %2611 = vadd.xlane.f32.xlu0 %v2610
          %v2612 = vpop.xlane.xlu0 %2611
          %v2613 = vsel %vm583, %v2199, 0.0
          %2614 = vadd.xlane.f32.xlu0 %v2613
          %v2615 = vpop.xlane.xlu0 %2614
          %v2616 = vsel %vm583, %v2200, 0.0
          %2617 = vadd.xlane.f32.xlu0 %v2616
          %v2618 = vpop.xlane.xlu0 %2617
          %v2619 = vsel %vm583, %v2201, 0.0
          %2620 = vadd.xlane.f32.xlu0 %v2619
          %v2621 = vpop.xlane.xlu0 %2620
          %v2622 = vsel %vm583, %v2202, 0.0
          %2623 = vadd.xlane.f32.xlu0 %v2622
          %v2624 = vpop.xlane.xlu0 %2623
          %v2625 = vsel %vm583, %v2203, 0.0
          %2626 = vadd.xlane.f32.xlu0 %v2625
          %v2627 = vpop.xlane.xlu0 %2626
          %v2628 = vsel %vm583, %v2204, 0.0
          %2629 = vadd.xlane.f32.xlu0 %v2628
          %v2630 = vpop.xlane.xlu0 %2629
          %v2631 = vsel %vm583, %v2205, 0.0
          %2632 = vadd.xlane.f32.xlu0 %v2631
          %v2633 = vpop.xlane.xlu0 %2632
          %v2634 = vsel %vm583, %v2206, 0.0
          %2635 = vadd.xlane.f32.xlu0 %v2634
          %v2636 = vpop.xlane.xlu0 %2635
          %v2637 = vsel %vm583, %v2207, 0.0
          %2638 = vadd.xlane.f32.xlu0 %v2637
          %v2639 = vpop.xlane.xlu0 %2638
          %v2640 = vsel %vm583, %v2208, 0.0
          %2641 = vadd.xlane.f32.xlu0 %v2640
          %v2642 = vpop.xlane.xlu0 %2641
          %v2643 = vsel %vm583, %v2209, 0.0
          %2644 = vadd.xlane.f32.xlu0 %v2643
          %v2645 = vpop.xlane.xlu0 %2644
          %v2646 = vsel %vm583, %v2210, 0.0
          %2647 = vadd.xlane.f32.xlu0 %v2646
          %v2648 = vpop.xlane.xlu0 %2647
          %v2649 = vsel %vm583, %v2211, 0.0
          %2650 = vadd.xlane.f32.xlu0 %v2649
          %v2651 = vpop.xlane.xlu0 %2650
          %v2652 = vsel %vm583, %v2212, 0.0
          %2653 = vadd.xlane.f32.xlu0 %v2652
          %v2654 = vpop.xlane.xlu0 %2653
          %v2655 = vsel %vm583, %v2213, 0.0
          %2656 = vadd.xlane.f32.xlu0 %v2655
          %v2657 = vpop.xlane.xlu0 %2656
          %v2658 = vsel %vm583, %v2214, 0.0
          %2659 = vadd.xlane.f32.xlu0 %v2658
          %v2660 = vpop.xlane.xlu0 %2659
          %v2661 = vsel %vm583, %v2215, 0.0
          %2662 = vadd.xlane.f32.xlu0 %v2661
          %v2663 = vpop.xlane.xlu0 %2662
          %v2664 = vsel %vm583, %v2216, 0.0
          %2665 = vadd.xlane.f32.xlu0 %v2664
          %v2666 = vpop.xlane.xlu0 %2665
          %v2667 = vsel %vm583, %v2217, 0.0
          %2668 = vadd.xlane.f32.xlu0 %v2667
          %v2669 = vpop.xlane.xlu0 %2668
          %v2670 = vsel %vm583, %v2218, 0.0
          %2671 = vadd.xlane.f32.xlu0 %v2670
          %v2672 = vpop.xlane.xlu0 %2671
          %v2673 = vsel %vm583, %v2219, 0.0
          %2674 = vadd.xlane.f32.xlu0 %v2673
          %v2675 = vpop.xlane.xlu0 %2674
          %v2676 = vsel %vm583, %v2220, 0.0
          %2677 = vadd.xlane.f32.xlu0 %v2676
          %v2678 = vpop.xlane.xlu0 %2677
          %v2679 = vsel %vm583, %v2221, 0.0
          %2680 = vadd.xlane.f32.xlu0 %v2679
          %v2681 = vpop.xlane.xlu0 %2680
          %v2682 = vsel %vm583, %v2222, 0.0
          %2683 = vadd.xlane.f32.xlu0 %v2682
          %v2684 = vpop.xlane.xlu0 %2683
          %v2685 = vsel %vm583, %v2223, 0.0
          %2686 = vadd.xlane.f32.xlu0 %v2685
          %v2687 = vpop.xlane.xlu0 %2686
          %v2688 = vsel %vm583, %v2224, 0.0
          %2689 = vadd.xlane.f32.xlu0 %v2688
          %v2690 = vpop.xlane.xlu0 %2689
          %v2691 = vsel %vm583, %v2225, 0.0
          %2692 = vadd.xlane.f32.xlu0 %v2691
          %v2693 = vpop.xlane.xlu0 %2692
          %v2694 = vsel %vm583, %v2226, 0.0
          %2695 = vadd.xlane.f32.xlu0 %v2694
          %v2696 = vpop.xlane.xlu0 %2695
          %v2697 = vsel %vm583, %v2227, 0.0
          %2698 = vadd.xlane.f32.xlu0 %v2697
          %v2699 = vpop.xlane.xlu0 %2698
          %v2700 = vsel %vm583, %v2228, 0.0
          %2701 = vadd.xlane.f32.xlu0 %v2700
          %v2702 = vpop.xlane.xlu0 %2701
          %v2703 = vsel %vm583, %v2229, 0.0
          %2704 = vadd.xlane.f32.xlu0 %v2703
          %v2705 = vpop.xlane.xlu0 %2704
          %v2706 = vsel %vm583, %v2230, 0.0
          %2707 = vadd.xlane.f32.xlu0 %v2706
          %v2708 = vpop.xlane.xlu0 %2707
          %v2709 = vsel %vm583, %v2231, 0.0
          %2710 = vadd.xlane.f32.xlu0 %v2709
          %v2711 = vpop.xlane.xlu0 %2710
          %v2712 = vsel %vm583, %v2232, 0.0
          %2713 = vadd.xlane.f32.xlu0 %v2712
          %v2714 = vpop.xlane.xlu0 %2713
          %v2715 = vsel %vm583, %v2233, 0.0
          %2716 = vadd.xlane.f32.xlu0 %v2715
          %v2717 = vpop.xlane.xlu0 %2716
          %v2718 = vsel %vm583, %v2234, 0.0
          %2719 = vadd.xlane.f32.xlu0 %v2718
          %v2720 = vpop.xlane.xlu0 %2719
          %v2721 = vsel %vm583, %v2235, 0.0
          %2722 = vadd.xlane.f32.xlu0 %v2721
          %v2723 = vpop.xlane.xlu0 %2722
          %v2724 = vsel %vm583, %v2236, 0.0
          %2725 = vadd.xlane.f32.xlu0 %v2724
          %v2726 = vpop.xlane.xlu0 %2725
          %v2727 = vsel %vm583, %v2237, 0.0
          %2728 = vadd.xlane.f32.xlu0 %v2727
          %v2729 = vpop.xlane.xlu0 %2728
          %v2730 = vsel %vm583, %v2238, 0.0
          %2731 = vadd.xlane.f32.xlu0 %v2730
          %v2732 = vpop.xlane.xlu0 %2731
          %v2733 = vsel %vm583, %v2239, 0.0
          %2734 = vadd.xlane.f32.xlu0 %v2733
          %v2735 = vpop.xlane.xlu0 %2734
          %v2736 = vsel %vm583, %v2240, 0.0
          %2737 = vadd.xlane.f32.xlu0 %v2736
          %v2738 = vpop.xlane.xlu0 %2737
          %v2739 = vsel %vm583, %v2241, 0.0
          %2740 = vadd.xlane.f32.xlu0 %v2739
          %v2741 = vpop.xlane.xlu0 %2740
          %v2742 = vsel %vm583, %v2242, 0.0
          %2743 = vadd.xlane.f32.xlu0 %v2742
          %v2744 = vpop.xlane.xlu0 %2743
          %v2745 = vsel %vm583, %v2243, 0.0
          %2746 = vadd.xlane.f32.xlu0 %v2745
          %v2747 = vpop.xlane.xlu0 %2746
          %v2748 = vsel %vm583, %v2244, 0.0
          %2749 = vadd.xlane.f32.xlu0 %v2748
          %v2750 = vpop.xlane.xlu0 %2749
          %v2751 = vsel %vm583, %v2245, 0.0
          %2752 = vadd.xlane.f32.xlu0 %v2751
          %v2753 = vpop.xlane.xlu0 %2752
          %v2754 = vsel %vm583, %v2246, 0.0
          %2755 = vadd.xlane.f32.xlu0 %v2754
          %v2756 = vpop.xlane.xlu0 %2755
          %v2757 = vsel %vm583, %v2247, 0.0
          %2758 = vadd.xlane.f32.xlu0 %v2757
          %v2759 = vpop.xlane.xlu0 %2758
          %v2760 = vsel %vm583, %v2248, 0.0
          %2761 = vadd.xlane.f32.xlu0 %v2760
          %v2762 = vpop.xlane.xlu0 %2761
          %v2763 = vsel %vm583, %v2249, 0.0
          %2764 = vadd.xlane.f32.xlu0 %v2763
          %v2765 = vpop.xlane.xlu0 %2764
          %v2766 = vsel %vm583, %v2250, 0.0
          %2767 = vadd.xlane.f32.xlu0 %v2766
          %v2768 = vpop.xlane.xlu0 %2767
          %v2769 = vsel %vm583, %v2251, 0.0
          %2770 = vadd.xlane.f32.xlu0 %v2769
          %v2771 = vpop.xlane.xlu0 %2770
          %v2772 = vsel %vm583, %v2252, 0.0
          %2773 = vadd.xlane.f32.xlu0 %v2772
          %v2774 = vpop.xlane.xlu0 %2773
          %v2775 = vsel %vm583, %v2253, 0.0
          %2776 = vadd.xlane.f32.xlu0 %v2775
          %v2777 = vpop.xlane.xlu0 %2776
          %v2778 = vsel %vm583, %v2254, 0.0
          %2779 = vadd.xlane.f32.xlu0 %v2778
          %v2780 = vpop.xlane.xlu0 %2779
          %v2781 = vsel %vm583, %v2255, 0.0
          %2782 = vadd.xlane.f32.xlu0 %v2781
          %v2783 = vpop.xlane.xlu0 %2782
          %v2784 = vsel %vm583, %v2256, 0.0
          %2785 = vadd.xlane.f32.xlu0 %v2784
          %v2786 = vpop.xlane.xlu0 %2785
          %v2787 = vsel %vm583, %v2257, 0.0
          %2788 = vadd.xlane.f32.xlu0 %v2787
          %v2789 = vpop.xlane.xlu0 %2788
          %v2790 = vsel %vm583, %v2258, 0.0
          %2791 = vadd.xlane.f32.xlu0 %v2790
          %v2792 = vpop.xlane.xlu0 %2791
          %v2793 = vsel %vm583, %v2259, 0.0
          %2794 = vadd.xlane.f32.xlu0 %v2793
          %v2795 = vpop.xlane.xlu0 %2794
          %v2796 = vsel %vm583, %v2260, 0.0
          %2797 = vadd.xlane.f32.xlu0 %v2796
          %v2798 = vpop.xlane.xlu0 %2797
          %v2799 = vsel %vm583, %v2261, 0.0
          %2800 = vadd.xlane.f32.xlu0 %v2799
          %v2801 = vpop.xlane.xlu0 %2800
          %v2802 = vsel %vm583, %v2262, 0.0
          %2803 = vadd.xlane.f32.xlu0 %v2802
          %v2804 = vpop.xlane.xlu0 %2803
          %v2805 = vsel %vm583, %v2263, 0.0
          %2806 = vadd.xlane.f32.xlu0 %v2805
          %v2807 = vpop.xlane.xlu0 %2806
          %v2808 = vsel %vm583, %v2264, 0.0
          %2809 = vadd.xlane.f32.xlu0 %v2808
          %v2810 = vpop.xlane.xlu0 %2809
          %v2811 = vsel %vm583, %v2265, 0.0
          %2812 = vadd.xlane.f32.xlu0 %v2811
          %v2813 = vpop.xlane.xlu0 %2812
          %v2814 = vsel %vm583, %v2266, 0.0
          %2815 = vadd.xlane.f32.xlu0 %v2814
          %v2816 = vpop.xlane.xlu0 %2815
          %v2817 = vsel %vm583, %v2267, 0.0
          %2818 = vadd.xlane.f32.xlu0 %v2817
          %v2819 = vpop.xlane.xlu0 %2818
          %v2820 = vsel %vm583, %v2268, 0.0
          %2821 = vadd.xlane.f32.xlu0 %v2820
          %v2822 = vpop.xlane.xlu0 %2821
          %v2823 = vsel %vm583, %v2269, 0.0
          %2824 = vadd.xlane.f32.xlu0 %v2823
          %v2825 = vpop.xlane.xlu0 %2824
          %v2826 = vsel %vm583, %v2270, 0.0
          %2827 = vadd.xlane.f32.xlu0 %v2826
          %v2828 = vpop.xlane.xlu0 %2827
          %v2829 = vsel %vm583, %v2271, 0.0
          %2830 = vadd.xlane.f32.xlu0 %v2829
          %v2831 = vpop.xlane.xlu0 %2830
          %v2832 = vsel %vm583, %v2272, 0.0
          %2833 = vadd.xlane.f32.xlu0 %v2832
          %v2834 = vpop.xlane.xlu0 %2833
          %v2835 = vsel %vm583, %v2273, 0.0
          %2836 = vadd.xlane.f32.xlu0 %v2835
          %v2837 = vpop.xlane.xlu0 %2836
          %v2838 = vsel %vm583, %v2274, 0.0
          %2839 = vadd.xlane.f32.xlu0 %v2838
          %v2840 = vpop.xlane.xlu0 %2839
          %v2841 = vsel %vm583, %v2275, 0.0
          %2842 = vadd.xlane.f32.xlu0 %v2841
          %v2843 = vpop.xlane.xlu0 %2842
          %v2844 = vsel %vm583, %v2276, 0.0
          %2845 = vadd.xlane.f32.xlu0 %v2844
          %v2846 = vpop.xlane.xlu0 %2845
          %v2847 = vsel %vm583, %v2277, 0.0
          %2848 = vadd.xlane.f32.xlu0 %v2847
          %v2849 = vpop.xlane.xlu0 %2848
          %v2850 = vsel %vm583, %v2278, 0.0
          %2851 = vadd.xlane.f32.xlu0 %v2850
          %v2852 = vpop.xlane.xlu0 %2851
          %v2853 = vsel %vm583, %v2279, 0.0
          %2854 = vadd.xlane.f32.xlu0 %v2853
          %v2855 = vpop.xlane.xlu0 %2854
          %v2856 = vsel %vm583, %v2280, 0.0
          %2857 = vadd.xlane.f32.xlu0 %v2856
          %v2858 = vpop.xlane.xlu0 %2857
          %v2859 = vsel %vm583, %v2281, 0.0
          %2860 = vadd.xlane.f32.xlu0 %v2859
          %v2861 = vpop.xlane.xlu0 %2860
          %v2862 = vsel %vm583, %v2282, 0.0
          %2863 = vadd.xlane.f32.xlu0 %v2862
          %v2864 = vpop.xlane.xlu0 %2863
          %v2865 = vsel %vm583, %v2283, 0.0
          %2866 = vadd.xlane.f32.xlu0 %v2865
          %v2867 = vpop.xlane.xlu0 %2866
          %v2868 = vsel %vm583, %v2284, 0.0
          %2869 = vadd.xlane.f32.xlu0 %v2868
          %v2870 = vpop.xlane.xlu0 %2869
          %v2871 = vsel %vm583, %v2285, 0.0
          %2872 = vadd.xlane.f32.xlu0 %v2871
          %v2873 = vpop.xlane.xlu0 %2872
          %v2874 = vsel %vm583, %v2286, 0.0
          %2875 = vadd.xlane.f32.xlu0 %v2874
          %v2876 = vpop.xlane.xlu0 %2875
          %v2877 = vsel %vm583, %v2287, 0.0
          %2878 = vadd.xlane.f32.xlu0 %v2877
          %v2879 = vpop.xlane.xlu0 %2878
          %v2880 = vsel %vm583, %v2288, 0.0
          %2881 = vadd.xlane.f32.xlu0 %v2880
          %v2882 = vpop.xlane.xlu0 %2881
          %v2883 = vsel %vm583, %v2289, 0.0
          %2884 = vadd.xlane.f32.xlu0 %v2883
          %v2885 = vpop.xlane.xlu0 %2884
          %v2886 = vsel %vm583, %v2290, 0.0
          %2887 = vadd.xlane.f32.xlu0 %v2886
          %v2888 = vpop.xlane.xlu0 %2887
          %v2889 = vsel %vm583, %v2291, 0.0
          %2890 = vadd.xlane.f32.xlu0 %v2889
          %v2891 = vpop.xlane.xlu0 %2890
          %v2892 = vsel %vm583, %v2292, 0.0
          %2893 = vadd.xlane.f32.xlu0 %v2892
          %v2894 = vpop.xlane.xlu0 %2893
          %v2895 = vsel %vm583, %v2293, 0.0
          %2896 = vadd.xlane.f32.xlu0 %v2895
          %v2897 = vpop.xlane.xlu0 %2896
          %v2898 = vsel %vm583, %v2294, 0.0
          %2899 = vadd.xlane.f32.xlu0 %v2898
          %v2900 = vpop.xlane.xlu0 %2899
          %v2901 = vsel %vm583, %v2295, 0.0
          %2902 = vadd.xlane.f32.xlu0 %v2901
          %v2903 = vpop.xlane.xlu0 %2902
          %v2904 = vsel %vm583, %v2296, 0.0
          %2905 = vadd.xlane.f32.xlu0 %v2904
          %v2906 = vpop.xlane.xlu0 %2905
          %v2907 = vsel %vm583, %v2297, 0.0
          %2908 = vadd.xlane.f32.xlu0 %v2907
          %v2909 = vpop.xlane.xlu0 %2908
          %v2910 = vsel %vm583, %v2298, 0.0
          %2911 = vadd.xlane.f32.xlu0 %v2910
          %v2912 = vpop.xlane.xlu0 %2911
          %v2913 = vsel %vm583, %v2299, 0.0
          %2914 = vadd.xlane.f32.xlu0 %v2913
          %v2915 = vpop.xlane.xlu0 %2914
          %v2916 = vsel %vm583, %v2300, 0.0
          %2917 = vadd.xlane.f32.xlu0 %v2916
          %v2918 = vpop.xlane.xlu0 %2917
          %v2919 = vsel %vm583, %v2301, 0.0
          %2920 = vadd.xlane.f32.xlu0 %v2919
          %v2921 = vpop.xlane.xlu0 %2920
          %v2922 = vsel %vm583, %v2302, 0.0
          %2923 = vadd.xlane.f32.xlu0 %v2922
          %v2924 = vpop.xlane.xlu0 %2923
          %v2925 = vsel %vm583, %v2303, 0.0
          %2926 = vadd.xlane.f32.xlu0 %v2925
          %v2927 = vpop.xlane.xlu0 %2926
          %v2928 = vsel %vm583, %v2304, 0.0
          %2929 = vadd.xlane.f32.xlu0 %v2928
          %v2930 = vpop.xlane.xlu0 %2929
          %v2931 = vsel %vm583, %v2305, 0.0
          %2932 = vadd.xlane.f32.xlu0 %v2931
          %v2933 = vpop.xlane.xlu0 %2932
          %v2934 = vsel %vm583, %v2306, 0.0
          %2935 = vadd.xlane.f32.xlu0 %v2934
          %v2936 = vpop.xlane.xlu0 %2935
          %v2937 = vsel %vm583, %v2307, 0.0
          %2938 = vadd.xlane.f32.xlu0 %v2937
          %v2939 = vpop.xlane.xlu0 %2938
          %v2940 = vsel %vm583, %v2308, 0.0
          %2941 = vadd.xlane.f32.xlu0 %v2940
          %v2942 = vpop.xlane.xlu0 %2941
          %v2943 = vsel %vm583, %v2309, 0.0
          %2944 = vadd.xlane.f32.xlu0 %v2943
          %v2945 = vpop.xlane.xlu0 %2944
          %v2946 = vsel %vm583, %v2310, 0.0
          %2947 = vadd.xlane.f32.xlu0 %v2946
          %v2948 = vpop.xlane.xlu0 %2947
          %v2949 = vsel %vm583, %v2311, 0.0
          %2950 = vadd.xlane.f32.xlu0 %v2949
          %v2951 = vpop.xlane.xlu0 %2950
          %v2952 = vsel %vm583, %v2312, 0.0
          %2953 = vadd.xlane.f32.xlu0 %v2952
          %v2954 = vpop.xlane.xlu0 %2953
          %v2955 = vsel %vm583, %v2313, 0.0
          %2956 = vadd.xlane.f32.xlu0 %v2955
          %v2957 = vpop.xlane.xlu0 %2956
          %v2958 = vsel %vm583, %v2314, 0.0
          %2959 = vadd.xlane.f32.xlu0 %v2958
          %v2960 = vpop.xlane.xlu0 %2959
          %v2961 = vsel %vm583, %v2315, 0.0
          %2962 = vadd.xlane.f32.xlu0 %v2961
          %v2963 = vpop.xlane.xlu0 %2962
          %v2964 = vsel %vm583, %v2316, 0.0
          %2965 = vadd.xlane.f32.xlu0 %v2964
          %v2966 = vpop.xlane.xlu0 %2965
          %v2967 = vsel %vm583, %v2317, 0.0
          %2968 = vadd.xlane.f32.xlu0 %v2967
          %v2969 = vpop.xlane.xlu0 %2968
          %v2970 = vsel %vm583, %v2318, 0.0
          %2971 = vadd.xlane.f32.xlu0 %v2970
          %v2972 = vpop.xlane.xlu0 %2971
          %v2973 = vsel %vm583, %v2319, 0.0
          %2974 = vadd.xlane.f32.xlu0 %v2973
          %v2975 = vpop.xlane.xlu0 %2974
          %v2976 = vsel %vm583, %v2320, 0.0
          %2977 = vadd.xlane.f32.xlu0 %v2976
          %v2978 = vpop.xlane.xlu0 %2977
          %v2979 = vsel %vm583, %v2321, 0.0
          %2980 = vadd.xlane.f32.xlu0 %v2979
          %v2981 = vpop.xlane.xlu0 %2980
          %v2982 = vsel %vm583, %v2322, 0.0
          %2983 = vadd.xlane.f32.xlu0 %v2982
          %v2984 = vpop.xlane.xlu0 %2983
          %v2985 = vsel %vm583, %v2323, 0.0
          %2986 = vadd.xlane.f32.xlu0 %v2985
          %v2987 = vpop.xlane.xlu0 %2986
          %v2988 = vsel %vm583, %v2324, 0.0
          %2989 = vadd.xlane.f32.xlu0 %v2988
          %v2990 = vpop.xlane.xlu0 %2989
          %v2991 = vsel %vm583, %v2325, 0.0
          %2992 = vadd.xlane.f32.xlu0 %v2991
          %v2993 = vpop.xlane.xlu0 %2992
          %v2994 = vsel %vm583, %v2326, 0.0
          %2995 = vadd.xlane.f32.xlu0 %v2994
          %v2996 = vpop.xlane.xlu0 %2995
          %v2997 = vsel %vm583, %v2327, 0.0
          %2998 = vadd.xlane.f32.xlu0 %v2997
          %v2999 = vpop.xlane.xlu0 %2998
          %v3000 = vsel %vm583, %v2328, 0.0
          %3001 = vadd.xlane.f32.xlu0 %v3000
          %v3002 = vpop.xlane.xlu0 %3001
          %v3003 = vsel %vm583, %v2329, 0.0
          %3004 = vadd.xlane.f32.xlu0 %v3003
          %v3005 = vpop.xlane.xlu0 %3004
          %v3006 = vsel %vm583, %v2330, 0.0
          %3007 = vadd.xlane.f32.xlu0 %v3006
          %v3008 = vpop.xlane.xlu0 %3007
          %v3009 = vsel %vm583, %v2331, 0.0
          %3010 = vadd.xlane.f32.xlu0 %v3009
          %v3011 = vpop.xlane.xlu0 %3010
          %v3012 = vsel %vm583, %v2332, 0.0
          %3013 = vadd.xlane.f32.xlu0 %v3012
          %v3014 = vpop.xlane.xlu0 %3013
          %v3015 = vsel %vm583, %v2333, 0.0
          %3016 = vadd.xlane.f32.xlu0 %v3015
          %v3017 = vpop.xlane.xlu0 %3016
          %v3018 = vsel %vm583, %v2334, 0.0
          %3019 = vadd.xlane.f32.xlu0 %v3018
          %v3020 = vpop.xlane.xlu0 %3019
          %v3021 = vsel %vm583, %v2335, 0.0
          %3022 = vadd.xlane.f32.xlu0 %v3021
          %v3023 = vpop.xlane.xlu0 %3022
          %v3024 = vsel %vm583, %v2336, 0.0
          %3025 = vadd.xlane.f32.xlu0 %v3024
          %v3026 = vpop.xlane.xlu0 %3025
          %v3027 = vsel %vm583, %v2337, 0.0
          %3028 = vadd.xlane.f32.xlu0 %v3027
          %v3029 = vpop.xlane.xlu0 %3028
          %v3030 = vsel %vm583, %v2338, 0.0
          %3031 = vadd.xlane.f32.xlu0 %v3030
          %v3032 = vpop.xlane.xlu0 %3031
          %v3033 = vsel %vm583, %v2339, 0.0
          %3034 = vadd.xlane.f32.xlu0 %v3033
          %v3035 = vpop.xlane.xlu0 %3034
          %v3036 = vsel %vm583, %v2340, 0.0
          %3037 = vadd.xlane.f32.xlu0 %v3036
          %v3038 = vpop.xlane.xlu0 %3037
          %v3039 = vsel %vm583, %v2341, 0.0
          %3040 = vadd.xlane.f32.xlu0 %v3039
          %v3041 = vpop.xlane.xlu0 %3040
          %v3042 = vsel %vm583, %v2342, 0.0
          %3043 = vadd.xlane.f32.xlu0 %v3042
          %v3044 = vpop.xlane.xlu0 %3043
          %v3045 = vsel %vm583, %v2343, 0.0
          %3046 = vadd.xlane.f32.xlu0 %v3045
          %v3047 = vpop.xlane.xlu0 %3046
          %v3048 = vsel %vm583, %v2344, 0.0
          %3049 = vadd.xlane.f32.xlu0 %v3048
          %v3050 = vpop.xlane.xlu0 %3049
          %v3051 = vsel %vm583, %v2345, 0.0
          %3052 = vadd.xlane.f32.xlu0 %v3051
          %v3053 = vpop.xlane.xlu0 %3052
          %v3054 = vsel %vm583, %v2346, 0.0
          %3055 = vadd.xlane.f32.xlu0 %v3054
          %v3056 = vpop.xlane.xlu0 %3055
          %v3057 = vsel %vm583, %v2347, 0.0
          %3058 = vadd.xlane.f32.xlu0 %v3057
          %v3059 = vpop.xlane.xlu0 %3058
          %v3060 = vsel %vm583, %v2348, 0.0
          %3061 = vadd.xlane.f32.xlu0 %v3060
          %v3062 = vpop.xlane.xlu0 %3061
          %v3063 = vsel %vm583, %v2349, 0.0
          %3064 = vadd.xlane.f32.xlu0 %v3063
          %v3065 = vpop.xlane.xlu0 %3064
          %v3066 = vsel %vm583, %v2350, 0.0
          %3067 = vadd.xlane.f32.xlu0 %v3066
          %v3068 = vpop.xlane.xlu0 %3067
          %v3069 = vsel %vm583, %v2351, 0.0
          %3070 = vadd.xlane.f32.xlu0 %v3069
          %v3071 = vpop.xlane.xlu0 %3070
          %v3072 = vsel %vm583, %v2352, 0.0
          %3073 = vadd.xlane.f32.xlu0 %v3072
          %v3074 = vpop.xlane.xlu0 %3073
          %v3075 = vsel %vm583, %v2353, 0.0
          %3076 = vadd.xlane.f32.xlu0 %v3075
          %v3077 = vpop.xlane.xlu0 %3076
          %v3078 = vsel %vm583, %v2354, 0.0
          %3079 = vadd.xlane.f32.xlu0 %v3078
          %v3080 = vpop.xlane.xlu0 %3079
          %v3081 = vsel %vm583, %v2355, 0.0
          %3082 = vadd.xlane.f32.xlu0 %v3081
          %v3083 = vpop.xlane.xlu0 %3082
          %v3084 = vsel %vm583, %v2356, 0.0
          %3085 = vadd.xlane.f32.xlu0 %v3084
          %v3086 = vpop.xlane.xlu0 %3085
          %v3087 = vsel %vm583, %v2357, 0.0
          %3088 = vadd.xlane.f32.xlu0 %v3087
          %v3089 = vpop.xlane.xlu0 %3088
          %v3090 = vsel %vm583, %v2358, 0.0
          %3091 = vadd.xlane.f32.xlu0 %v3090
          %v3092 = vpop.xlane.xlu0 %3091
          %v3093 = vsel %vm583, %v2359, 0.0
          %3094 = vadd.xlane.f32.xlu0 %v3093
          %v3095 = vpop.xlane.xlu0 %3094
          %v3096 = vsel %vm583, %v2360, 0.0
          %3097 = vadd.xlane.f32.xlu0 %v3096
          %v3098 = vpop.xlane.xlu0 %3097
          %v3099 = vsel %vm583, %v2361, 0.0
          %3100 = vadd.xlane.f32.xlu0 %v3099
          %v3101 = vpop.xlane.xlu0 %3100
          %v3102 = vsel %vm583, %v2362, 0.0
          %3103 = vadd.xlane.f32.xlu0 %v3102
          %v3104 = vpop.xlane.xlu0 %3103
          %v3105 = vsel %vm583, %v2363, 0.0
          %3106 = vadd.xlane.f32.xlu0 %v3105
          %v3107 = vpop.xlane.xlu0 %3106
          %v3108 = vsel %vm583, %v2364, 0.0
          %3109 = vadd.xlane.f32.xlu0 %v3108
          %v3110 = vpop.xlane.xlu0 %3109
          %v3111 = vsel %vm583, %v2365, 0.0
          %3112 = vadd.xlane.f32.xlu0 %v3111
          %v3113 = vpop.xlane.xlu0 %3112
          %v3114 = vsel %vm583, %v2366, 0.0
          %3115 = vadd.xlane.f32.xlu0 %v3114
          %v3116 = vpop.xlane.xlu0 %3115
          %v3117 = vsel %vm583, %v2367, 0.0
          %3118 = vadd.xlane.f32.xlu0 %v3117
          %v3119 = vpop.xlane.xlu0 %3118
          %v3120 = vsel %vm583, %v2368, 0.0
          %3121 = vadd.xlane.f32.xlu0 %v3120
          %v3122 = vpop.xlane.xlu0 %3121
          %v3123 = vsel %vm583, %v2369, 0.0
          %3124 = vadd.xlane.f32.xlu0 %v3123
          %v3125 = vpop.xlane.xlu0 %3124
          %v3126 = vsel %vm583, %v2370, 0.0
          %3127 = vadd.xlane.f32.xlu0 %v3126
          %v3128 = vpop.xlane.xlu0 %3127
          %v3129 = vsel %vm583, %v2371, 0.0
          %3130 = vadd.xlane.f32.xlu0 %v3129
          %v3131 = vpop.xlane.xlu0 %3130
          %v3132 = vsel %vm583, %v2372, 0.0
          %3133 = vadd.xlane.f32.xlu0 %v3132
          %v3134 = vpop.xlane.xlu0 %3133
          %v3135 = vsel %vm583, %v2373, 0.0
          %3136 = vadd.xlane.f32.xlu0 %v3135
          %v3137 = vpop.xlane.xlu0 %3136
          %v3138 = vsel %vm583, %v2374, 0.0
          %3139 = vadd.xlane.f32.xlu0 %v3138
          %v3140 = vpop.xlane.xlu0 %3139
          %v3141 = vsel %vm583, %v2375, 0.0
          %3142 = vadd.xlane.f32.xlu0 %v3141
          %v3143 = vpop.xlane.xlu0 %3142
          %v3400 = vlaneseq
          %v3401 = vand.u32 %v3400, 127
          %v3402 = vlaneseq
          %v3403 = vshrl.u32 %v3402, 7
          %v3404 = vsub.s32 %v3401, %v3403
          %v3405 = vrot.slane %v2378, %v3404
          %v3406 = vadd.s32 %v3401, 4294967288
          %v3407 = vlaneseq
          %v3408 = vshrl.u32 %v3407, 7
          %v3409 = vsub.s32 %v3406, %v3408
          %v3410 = vrot.slane %v2381, %v3409
          %vm3411 = vcmask 130112
          %v3412 = vsel %vm3411, %v3410, %v3405
          %v3413 = vlaneseq
          %v3414 = vshrl.u32 %v3413, 7
          %v3415 = vsub.s32 %v3401, %v3414
          %v3416 = vrot.slane %v2384, %v3415
          %v3417 = vlaneseq
          %v3418 = vshrl.u32 %v3417, 7
          %v3419 = vsub.s32 %v3406, %v3418
          %v3420 = vrot.slane %v2387, %v3419
          %v3421 = vsel %vm3411, %v3420, %v3416
          %v3422 = vlaneseq
          %v3423 = vshrl.u32 %v3422, 7
          %v3424 = vsub.s32 %v3401, %v3423
          %v3425 = vrot.slane %v2390, %v3424
          %v3426 = vlaneseq
          %v3427 = vshrl.u32 %v3426, 7
          %v3428 = vsub.s32 %v3406, %v3427
          %v3429 = vrot.slane %v2393, %v3428
          %v3430 = vsel %vm3411, %v3429, %v3425
          %v3431 = vlaneseq
          %v3432 = vshrl.u32 %v3431, 7
          %v3433 = vsub.s32 %v3401, %v3432
          %v3434 = vrot.slane %v2396, %v3433
          %v3435 = vlaneseq
          %v3436 = vshrl.u32 %v3435, 7
          %v3437 = vsub.s32 %v3406, %v3436
          %v3438 = vrot.slane %v2399, %v3437
          %v3439 = vsel %vm3411, %v3438, %v3434
          %v3440 = vlaneseq
          %v3441 = vshrl.u32 %v3440, 7
          %v3442 = vsub.s32 %v3401, %v3441
          %v3443 = vrot.slane %v2402, %v3442
          %v3444 = vlaneseq
          %v3445 = vshrl.u32 %v3444, 7
          %v3446 = vsub.s32 %v3406, %v3445
          %v3447 = vrot.slane %v2405, %v3446
          %v3448 = vsel %vm3411, %v3447, %v3443
          %v3449 = vlaneseq
          %v3450 = vshrl.u32 %v3449, 7
          %v3451 = vsub.s32 %v3401, %v3450
          %v3452 = vrot.slane %v2408, %v3451
          %v3453 = vlaneseq
          %v3454 = vshrl.u32 %v3453, 7
          %v3455 = vsub.s32 %v3406, %v3454
          %v3456 = vrot.slane %v2411, %v3455
          %v3457 = vsel %vm3411, %v3456, %v3452
          %v3458 = vlaneseq
          %v3459 = vshrl.u32 %v3458, 7
          %v3460 = vsub.s32 %v3401, %v3459
          %v3461 = vrot.slane %v2414, %v3460
          %v3462 = vlaneseq
          %v3463 = vshrl.u32 %v3462, 7
          %v3464 = vsub.s32 %v3406, %v3463
          %v3465 = vrot.slane %v2417, %v3464
          %v3466 = vsel %vm3411, %v3465, %v3461
          %v3467 = vlaneseq
          %v3468 = vshrl.u32 %v3467, 7
          %v3469 = vsub.s32 %v3401, %v3468
          %v3470 = vrot.slane %v2420, %v3469
          %v3471 = vlaneseq
          %v3472 = vshrl.u32 %v3471, 7
          %v3473 = vsub.s32 %v3406, %v3472
          %v3474 = vrot.slane %v2423, %v3473
          %v3475 = vsel %vm3411, %v3474, %v3470
          %v3476 = vlaneseq
          %v3477 = vshrl.u32 %v3476, 7
          %v3478 = vsub.s32 %v3401, %v3477
          %v3479 = vrot.slane %v2426, %v3478
          %v3480 = vlaneseq
          %v3481 = vshrl.u32 %v3480, 7
          %v3482 = vsub.s32 %v3406, %v3481
          %v3483 = vrot.slane %v2429, %v3482
          %v3484 = vsel %vm3411, %v3483, %v3479
          %v3485 = vlaneseq
          %v3486 = vshrl.u32 %v3485, 7
          %v3487 = vsub.s32 %v3401, %v3486
          %v3488 = vrot.slane %v2432, %v3487
          %v3489 = vlaneseq
          %v3490 = vshrl.u32 %v3489, 7
          %v3491 = vsub.s32 %v3406, %v3490
          %v3492 = vrot.slane %v2435, %v3491
          %v3493 = vsel %vm3411, %v3492, %v3488
          %v3494 = vlaneseq
          %v3495 = vshrl.u32 %v3494, 7
          %v3496 = vsub.s32 %v3401, %v3495
          %v3497 = vrot.slane %v2438, %v3496
          %v3498 = vlaneseq
          %v3499 = vshrl.u32 %v3498, 7
          %v3500 = vsub.s32 %v3406, %v3499
          %v3501 = vrot.slane %v2441, %v3500
          %v3502 = vsel %vm3411, %v3501, %v3497
          %v3503 = vlaneseq
          %v3504 = vshrl.u32 %v3503, 7
          %v3505 = vsub.s32 %v3401, %v3504
          %v3506 = vrot.slane %v2444, %v3505
          %v3507 = vlaneseq
          %v3508 = vshrl.u32 %v3507, 7
          %v3509 = vsub.s32 %v3406, %v3508
          %v3510 = vrot.slane %v2447, %v3509
          %v3511 = vsel %vm3411, %v3510, %v3506
          %v3512 = vlaneseq
          %v3513 = vshrl.u32 %v3512, 7
          %v3514 = vsub.s32 %v3401, %v3513
          %v3515 = vrot.slane %v2450, %v3514
          %v3516 = vlaneseq
          %v3517 = vshrl.u32 %v3516, 7
          %v3518 = vsub.s32 %v3406, %v3517
          %v3519 = vrot.slane %v2453, %v3518
          %v3520 = vsel %vm3411, %v3519, %v3515
          %v3521 = vlaneseq
          %v3522 = vshrl.u32 %v3521, 7
          %v3523 = vsub.s32 %v3401, %v3522
          %v3524 = vrot.slane %v2456, %v3523
          %v3525 = vlaneseq
          %v3526 = vshrl.u32 %v3525, 7
          %v3527 = vsub.s32 %v3406, %v3526
          %v3528 = vrot.slane %v2459, %v3527
          %v3529 = vsel %vm3411, %v3528, %v3524
          %v3530 = vlaneseq
          %v3531 = vshrl.u32 %v3530, 7
          %v3532 = vsub.s32 %v3401, %v3531
          %v3533 = vrot.slane %v2462, %v3532
          %v3534 = vlaneseq
          %v3535 = vshrl.u32 %v3534, 7
          %v3536 = vsub.s32 %v3406, %v3535
          %v3537 = vrot.slane %v2465, %v3536
          %v3538 = vsel %vm3411, %v3537, %v3533
          %v3539 = vlaneseq
          %v3540 = vshrl.u32 %v3539, 7
          %v3541 = vsub.s32 %v3401, %v3540
          %v3542 = vrot.slane %v2468, %v3541
          %v3543 = vlaneseq
          %v3544 = vshrl.u32 %v3543, 7
          %v3545 = vsub.s32 %v3406, %v3544
          %v3546 = vrot.slane %v2471, %v3545
          %v3547 = vsel %vm3411, %v3546, %v3542
          %v3548 = vlaneseq
          %v3549 = vshrl.u32 %v3548, 7
          %v3550 = vsub.s32 %v3401, %v3549
          %v3551 = vrot.slane %v2474, %v3550
          %v3552 = vlaneseq
          %v3553 = vshrl.u32 %v3552, 7
          %v3554 = vsub.s32 %v3406, %v3553
          %v3555 = vrot.slane %v2477, %v3554
          %v3556 = vsel %vm3411, %v3555, %v3551
          %v3557 = vlaneseq
          %v3558 = vshrl.u32 %v3557, 7
          %v3559 = vsub.s32 %v3401, %v3558
          %v3560 = vrot.slane %v2480, %v3559
          %v3561 = vlaneseq
          %v3562 = vshrl.u32 %v3561, 7
          %v3563 = vsub.s32 %v3406, %v3562
          %v3564 = vrot.slane %v2483, %v3563
          %v3565 = vsel %vm3411, %v3564, %v3560
          %v3566 = vlaneseq
          %v3567 = vshrl.u32 %v3566, 7
          %v3568 = vsub.s32 %v3401, %v3567
          %v3569 = vrot.slane %v2486, %v3568
          %v3570 = vlaneseq
          %v3571 = vshrl.u32 %v3570, 7
          %v3572 = vsub.s32 %v3406, %v3571
          %v3573 = vrot.slane %v2489, %v3572
          %v3574 = vsel %vm3411, %v3573, %v3569
          %v3575 = vlaneseq
          %v3576 = vshrl.u32 %v3575, 7
          %v3577 = vsub.s32 %v3401, %v3576
          %v3578 = vrot.slane %v2492, %v3577
          %v3579 = vlaneseq
          %v3580 = vshrl.u32 %v3579, 7
          %v3581 = vsub.s32 %v3406, %v3580
          %v3582 = vrot.slane %v2495, %v3581
          %v3583 = vsel %vm3411, %v3582, %v3578
          %v3584 = vlaneseq
          %v3585 = vshrl.u32 %v3584, 7
          %v3586 = vsub.s32 %v3401, %v3585
          %v3587 = vrot.slane %v2498, %v3586
          %v3588 = vlaneseq
          %v3589 = vshrl.u32 %v3588, 7
          %v3590 = vsub.s32 %v3406, %v3589
          %v3591 = vrot.slane %v2501, %v3590
          %v3592 = vsel %vm3411, %v3591, %v3587
          %v3593 = vlaneseq
          %v3594 = vshrl.u32 %v3593, 7
          %v3595 = vsub.s32 %v3401, %v3594
          %v3596 = vrot.slane %v2504, %v3595
          %v3597 = vlaneseq
          %v3598 = vshrl.u32 %v3597, 7
          %v3599 = vsub.s32 %v3406, %v3598
          %v3600 = vrot.slane %v2507, %v3599
          %v3601 = vsel %vm3411, %v3600, %v3596
          %v3602 = vlaneseq
          %v3603 = vshrl.u32 %v3602, 7
          %v3604 = vsub.s32 %v3401, %v3603
          %v3605 = vrot.slane %v2510, %v3604
          %v3606 = vlaneseq
          %v3607 = vshrl.u32 %v3606, 7
          %v3608 = vsub.s32 %v3406, %v3607
          %v3609 = vrot.slane %v2513, %v3608
          %v3610 = vsel %vm3411, %v3609, %v3605
          %v3611 = vlaneseq
          %v3612 = vshrl.u32 %v3611, 7
          %v3613 = vsub.s32 %v3401, %v3612
          %v3614 = vrot.slane %v2516, %v3613
          %v3615 = vlaneseq
          %v3616 = vshrl.u32 %v3615, 7
          %v3617 = vsub.s32 %v3406, %v3616
          %v3618 = vrot.slane %v2519, %v3617
          %v3619 = vsel %vm3411, %v3618, %v3614
          %v3620 = vlaneseq
          %v3621 = vshrl.u32 %v3620, 7
          %v3622 = vsub.s32 %v3401, %v3621
          %v3623 = vrot.slane %v2522, %v3622
          %v3624 = vlaneseq
          %v3625 = vshrl.u32 %v3624, 7
          %v3626 = vsub.s32 %v3406, %v3625
          %v3627 = vrot.slane %v2525, %v3626
          %v3628 = vsel %vm3411, %v3627, %v3623
          %v3629 = vlaneseq
          %v3630 = vshrl.u32 %v3629, 7
          %v3631 = vsub.s32 %v3401, %v3630
          %v3632 = vrot.slane %v2528, %v3631
          %v3633 = vlaneseq
          %v3634 = vshrl.u32 %v3633, 7
          %v3635 = vsub.s32 %v3406, %v3634
          %v3636 = vrot.slane %v2531, %v3635
          %v3637 = vsel %vm3411, %v3636, %v3632
          %v3638 = vlaneseq
          %v3639 = vshrl.u32 %v3638, 7
          %v3640 = vsub.s32 %v3401, %v3639
          %v3641 = vrot.slane %v2534, %v3640
          %v3642 = vlaneseq
          %v3643 = vshrl.u32 %v3642, 7
          %v3644 = vsub.s32 %v3406, %v3643
          %v3645 = vrot.slane %v2537, %v3644
          %v3646 = vsel %vm3411, %v3645, %v3641
          %v3647 = vlaneseq
          %v3648 = vshrl.u32 %v3647, 7
          %v3649 = vsub.s32 %v3401, %v3648
          %v3650 = vrot.slane %v2540, %v3649
          %v3651 = vlaneseq
          %v3652 = vshrl.u32 %v3651, 7
          %v3653 = vsub.s32 %v3406, %v3652
          %v3654 = vrot.slane %v2543, %v3653
          %v3655 = vsel %vm3411, %v3654, %v3650
          %v3656 = vlaneseq
          %v3657 = vshrl.u32 %v3656, 7
          %v3658 = vsub.s32 %v3401, %v3657
          %v3659 = vrot.slane %v2546, %v3658
          %v3660 = vlaneseq
          %v3661 = vshrl.u32 %v3660, 7
          %v3662 = vsub.s32 %v3406, %v3661
          %v3663 = vrot.slane %v2549, %v3662
          %v3664 = vsel %vm3411, %v3663, %v3659
          %v3665 = vlaneseq
          %v3666 = vshrl.u32 %v3665, 7
          %v3667 = vsub.s32 %v3401, %v3666
          %v3668 = vrot.slane %v2552, %v3667
          %v3669 = vlaneseq
          %v3670 = vshrl.u32 %v3669, 7
          %v3671 = vsub.s32 %v3406, %v3670
          %v3672 = vrot.slane %v2555, %v3671
          %v3673 = vsel %vm3411, %v3672, %v3668
          %v3674 = vlaneseq
          %v3675 = vshrl.u32 %v3674, 7
          %v3676 = vsub.s32 %v3401, %v3675
          %v3677 = vrot.slane %v2558, %v3676
          %v3678 = vlaneseq
          %v3679 = vshrl.u32 %v3678, 7
          %v3680 = vsub.s32 %v3406, %v3679
          %v3681 = vrot.slane %v2561, %v3680
          %v3682 = vsel %vm3411, %v3681, %v3677
          %v3683 = vlaneseq
          %v3684 = vshrl.u32 %v3683, 7
          %v3685 = vsub.s32 %v3401, %v3684
          %v3686 = vrot.slane %v2564, %v3685
          %v3687 = vlaneseq
          %v3688 = vshrl.u32 %v3687, 7
          %v3689 = vsub.s32 %v3406, %v3688
          %v3690 = vrot.slane %v2567, %v3689
          %v3691 = vsel %vm3411, %v3690, %v3686
          %v3692 = vlaneseq
          %v3693 = vshrl.u32 %v3692, 7
          %v3694 = vsub.s32 %v3401, %v3693
          %v3695 = vrot.slane %v2570, %v3694
          %v3696 = vlaneseq
          %v3697 = vshrl.u32 %v3696, 7
          %v3698 = vsub.s32 %v3406, %v3697
          %v3699 = vrot.slane %v2573, %v3698
          %v3700 = vsel %vm3411, %v3699, %v3695
          %v3701 = vlaneseq
          %v3702 = vshrl.u32 %v3701, 7
          %v3703 = vsub.s32 %v3401, %v3702
          %v3704 = vrot.slane %v2576, %v3703
          %v3705 = vlaneseq
          %v3706 = vshrl.u32 %v3705, 7
          %v3707 = vsub.s32 %v3406, %v3706
          %v3708 = vrot.slane %v2579, %v3707
          %v3709 = vsel %vm3411, %v3708, %v3704
          %v3710 = vlaneseq
          %v3711 = vshrl.u32 %v3710, 7
          %v3712 = vsub.s32 %v3401, %v3711
          %v3713 = vrot.slane %v2582, %v3712
          %v3714 = vlaneseq
          %v3715 = vshrl.u32 %v3714, 7
          %v3716 = vsub.s32 %v3406, %v3715
          %v3717 = vrot.slane %v2585, %v3716
          %v3718 = vsel %vm3411, %v3717, %v3713
          %v3719 = vlaneseq
          %v3720 = vshrl.u32 %v3719, 7
          %v3721 = vsub.s32 %v3401, %v3720
          %v3722 = vrot.slane %v2588, %v3721
          %v3723 = vlaneseq
          %v3724 = vshrl.u32 %v3723, 7
          %v3725 = vsub.s32 %v3406, %v3724
          %v3726 = vrot.slane %v2591, %v3725
          %v3727 = vsel %vm3411, %v3726, %v3722
          %v3728 = vlaneseq
          %v3729 = vshrl.u32 %v3728, 7
          %v3730 = vsub.s32 %v3401, %v3729
          %v3731 = vrot.slane %v2594, %v3730
          %v3732 = vlaneseq
          %v3733 = vshrl.u32 %v3732, 7
          %v3734 = vsub.s32 %v3406, %v3733
          %v3735 = vrot.slane %v2597, %v3734
          %v3736 = vsel %vm3411, %v3735, %v3731
          %v3737 = vlaneseq
          %v3738 = vshrl.u32 %v3737, 7
          %v3739 = vsub.s32 %v3401, %v3738
          %v3740 = vrot.slane %v2600, %v3739
          %v3741 = vlaneseq
          %v3742 = vshrl.u32 %v3741, 7
          %v3743 = vsub.s32 %v3406, %v3742
          %v3744 = vrot.slane %v2603, %v3743
          %v3745 = vsel %vm3411, %v3744, %v3740
          %v3746 = vlaneseq
          %v3747 = vshrl.u32 %v3746, 7
          %v3748 = vsub.s32 %v3401, %v3747
          %v3749 = vrot.slane %v2606, %v3748
          %v3750 = vlaneseq
          %v3751 = vshrl.u32 %v3750, 7
          %v3752 = vsub.s32 %v3406, %v3751
          %v3753 = vrot.slane %v2609, %v3752
          %v3754 = vsel %vm3411, %v3753, %v3749
          %v3755 = vlaneseq
          %v3756 = vshrl.u32 %v3755, 7
          %v3757 = vsub.s32 %v3401, %v3756
          %v3758 = vrot.slane %v2612, %v3757
          %v3759 = vlaneseq
          %v3760 = vshrl.u32 %v3759, 7
          %v3761 = vsub.s32 %v3406, %v3760
          %v3762 = vrot.slane %v2615, %v3761
          %v3763 = vsel %vm3411, %v3762, %v3758
          %v3764 = vlaneseq
          %v3765 = vshrl.u32 %v3764, 7
          %v3766 = vsub.s32 %v3401, %v3765
          %v3767 = vrot.slane %v2618, %v3766
          %v3768 = vlaneseq
          %v3769 = vshrl.u32 %v3768, 7
          %v3770 = vsub.s32 %v3406, %v3769
          %v3771 = vrot.slane %v2621, %v3770
          %v3772 = vsel %vm3411, %v3771, %v3767
          %v3773 = vlaneseq
          %v3774 = vshrl.u32 %v3773, 7
          %v3775 = vsub.s32 %v3401, %v3774
          %v3776 = vrot.slane %v2624, %v3775
          %v3777 = vlaneseq
          %v3778 = vshrl.u32 %v3777, 7
          %v3779 = vsub.s32 %v3406, %v3778
          %v3780 = vrot.slane %v2627, %v3779
          %v3781 = vsel %vm3411, %v3780, %v3776
          %v3782 = vlaneseq
          %v3783 = vshrl.u32 %v3782, 7
          %v3784 = vsub.s32 %v3401, %v3783
          %v3785 = vrot.slane %v2630, %v3784
          %v3786 = vlaneseq
          %v3787 = vshrl.u32 %v3786, 7
          %v3788 = vsub.s32 %v3406, %v3787
          %v3789 = vrot.slane %v2633, %v3788
          %v3790 = vsel %vm3411, %v3789, %v3785
          %v3791 = vlaneseq
          %v3792 = vshrl.u32 %v3791, 7
          %v3793 = vsub.s32 %v3401, %v3792
          %v3794 = vrot.slane %v2636, %v3793
          %v3795 = vlaneseq
          %v3796 = vshrl.u32 %v3795, 7
          %v3797 = vsub.s32 %v3406, %v3796
          %v3798 = vrot.slane %v2639, %v3797
          %v3799 = vsel %vm3411, %v3798, %v3794
          %v3800 = vlaneseq
          %v3801 = vshrl.u32 %v3800, 7
          %v3802 = vsub.s32 %v3401, %v3801
          %v3803 = vrot.slane %v2642, %v3802
          %v3804 = vlaneseq
          %v3805 = vshrl.u32 %v3804, 7
          %v3806 = vsub.s32 %v3406, %v3805
          %v3807 = vrot.slane %v2645, %v3806
          %v3808 = vsel %vm3411, %v3807, %v3803
          %v3809 = vlaneseq
          %v3810 = vshrl.u32 %v3809, 7
          %v3811 = vsub.s32 %v3401, %v3810
          %v3812 = vrot.slane %v2648, %v3811
          %v3813 = vlaneseq
          %v3814 = vshrl.u32 %v3813, 7
          %v3815 = vsub.s32 %v3406, %v3814
          %v3816 = vrot.slane %v2651, %v3815
          %v3817 = vsel %vm3411, %v3816, %v3812
          %v3818 = vlaneseq
          %v3819 = vshrl.u32 %v3818, 7
          %v3820 = vsub.s32 %v3401, %v3819
          %v3821 = vrot.slane %v2654, %v3820
          %v3822 = vlaneseq
          %v3823 = vshrl.u32 %v3822, 7
          %v3824 = vsub.s32 %v3406, %v3823
          %v3825 = vrot.slane %v2657, %v3824
          %v3826 = vsel %vm3411, %v3825, %v3821
          %v3827 = vlaneseq
          %v3828 = vshrl.u32 %v3827, 7
          %v3829 = vsub.s32 %v3401, %v3828
          %v3830 = vrot.slane %v2660, %v3829
          %v3831 = vlaneseq
          %v3832 = vshrl.u32 %v3831, 7
          %v3833 = vsub.s32 %v3406, %v3832
          %v3834 = vrot.slane %v2663, %v3833
          %v3835 = vsel %vm3411, %v3834, %v3830
          %v3836 = vlaneseq
          %v3837 = vshrl.u32 %v3836, 7
          %v3838 = vsub.s32 %v3401, %v3837
          %v3839 = vrot.slane %v2666, %v3838
          %v3840 = vlaneseq
          %v3841 = vshrl.u32 %v3840, 7
          %v3842 = vsub.s32 %v3406, %v3841
          %v3843 = vrot.slane %v2669, %v3842
          %v3844 = vsel %vm3411, %v3843, %v3839
          %v3845 = vlaneseq
          %v3846 = vshrl.u32 %v3845, 7
          %v3847 = vsub.s32 %v3401, %v3846
          %v3848 = vrot.slane %v2672, %v3847
          %v3849 = vlaneseq
          %v3850 = vshrl.u32 %v3849, 7
          %v3851 = vsub.s32 %v3406, %v3850
          %v3852 = vrot.slane %v2675, %v3851
          %v3853 = vsel %vm3411, %v3852, %v3848
          %v3854 = vlaneseq
          %v3855 = vshrl.u32 %v3854, 7
          %v3856 = vsub.s32 %v3401, %v3855
          %v3857 = vrot.slane %v2678, %v3856
          %v3858 = vlaneseq
          %v3859 = vshrl.u32 %v3858, 7
          %v3860 = vsub.s32 %v3406, %v3859
          %v3861 = vrot.slane %v2681, %v3860
          %v3862 = vsel %vm3411, %v3861, %v3857
          %v3863 = vlaneseq
          %v3864 = vshrl.u32 %v3863, 7
          %v3865 = vsub.s32 %v3401, %v3864
          %v3866 = vrot.slane %v2684, %v3865
          %v3867 = vlaneseq
          %v3868 = vshrl.u32 %v3867, 7
          %v3869 = vsub.s32 %v3406, %v3868
          %v3870 = vrot.slane %v2687, %v3869
          %v3871 = vsel %vm3411, %v3870, %v3866
          %v3872 = vlaneseq
          %v3873 = vshrl.u32 %v3872, 7
          %v3874 = vsub.s32 %v3401, %v3873
          %v3875 = vrot.slane %v2690, %v3874
          %v3876 = vlaneseq
          %v3877 = vshrl.u32 %v3876, 7
          %v3878 = vsub.s32 %v3406, %v3877
          %v3879 = vrot.slane %v2693, %v3878
          %v3880 = vsel %vm3411, %v3879, %v3875
          %v3881 = vlaneseq
          %v3882 = vshrl.u32 %v3881, 7
          %v3883 = vsub.s32 %v3401, %v3882
          %v3884 = vrot.slane %v2696, %v3883
          %v3885 = vlaneseq
          %v3886 = vshrl.u32 %v3885, 7
          %v3887 = vsub.s32 %v3406, %v3886
          %v3888 = vrot.slane %v2699, %v3887
          %v3889 = vsel %vm3411, %v3888, %v3884
          %v3890 = vlaneseq
          %v3891 = vshrl.u32 %v3890, 7
          %v3892 = vsub.s32 %v3401, %v3891
          %v3893 = vrot.slane %v2702, %v3892
          %v3894 = vlaneseq
          %v3895 = vshrl.u32 %v3894, 7
          %v3896 = vsub.s32 %v3406, %v3895
          %v3897 = vrot.slane %v2705, %v3896
          %v3898 = vsel %vm3411, %v3897, %v3893
          %v3899 = vlaneseq
          %v3900 = vshrl.u32 %v3899, 7
          %v3901 = vsub.s32 %v3401, %v3900
          %v3902 = vrot.slane %v2708, %v3901
          %v3903 = vlaneseq
          %v3904 = vshrl.u32 %v3903, 7
          %v3905 = vsub.s32 %v3406, %v3904
          %v3906 = vrot.slane %v2711, %v3905
          %v3907 = vsel %vm3411, %v3906, %v3902
          %v3908 = vlaneseq
          %v3909 = vshrl.u32 %v3908, 7
          %v3910 = vsub.s32 %v3401, %v3909
          %v3911 = vrot.slane %v2714, %v3910
          %v3912 = vlaneseq
          %v3913 = vshrl.u32 %v3912, 7
          %v3914 = vsub.s32 %v3406, %v3913
          %v3915 = vrot.slane %v2717, %v3914
          %v3916 = vsel %vm3411, %v3915, %v3911
          %v3917 = vlaneseq
          %v3918 = vshrl.u32 %v3917, 7
          %v3919 = vsub.s32 %v3401, %v3918
          %v3920 = vrot.slane %v2720, %v3919
          %v3921 = vlaneseq
          %v3922 = vshrl.u32 %v3921, 7
          %v3923 = vsub.s32 %v3406, %v3922
          %v3924 = vrot.slane %v2723, %v3923
          %v3925 = vsel %vm3411, %v3924, %v3920
          %v3926 = vlaneseq
          %v3927 = vshrl.u32 %v3926, 7
          %v3928 = vsub.s32 %v3401, %v3927
          %v3929 = vrot.slane %v2726, %v3928
          %v3930 = vlaneseq
          %v3931 = vshrl.u32 %v3930, 7
          %v3932 = vsub.s32 %v3406, %v3931
          %v3933 = vrot.slane %v2729, %v3932
          %v3934 = vsel %vm3411, %v3933, %v3929
          %v3935 = vlaneseq
          %v3936 = vshrl.u32 %v3935, 7
          %v3937 = vsub.s32 %v3401, %v3936
          %v3938 = vrot.slane %v2732, %v3937
          %v3939 = vlaneseq
          %v3940 = vshrl.u32 %v3939, 7
          %v3941 = vsub.s32 %v3406, %v3940
          %v3942 = vrot.slane %v2735, %v3941
          %v3943 = vsel %vm3411, %v3942, %v3938
          %v3944 = vlaneseq
          %v3945 = vshrl.u32 %v3944, 7
          %v3946 = vsub.s32 %v3401, %v3945
          %v3947 = vrot.slane %v2738, %v3946
          %v3948 = vlaneseq
          %v3949 = vshrl.u32 %v3948, 7
          %v3950 = vsub.s32 %v3406, %v3949
          %v3951 = vrot.slane %v2741, %v3950
          %v3952 = vsel %vm3411, %v3951, %v3947
          %v3953 = vlaneseq
          %v3954 = vshrl.u32 %v3953, 7
          %v3955 = vsub.s32 %v3401, %v3954
          %v3956 = vrot.slane %v2744, %v3955
          %v3957 = vlaneseq
          %v3958 = vshrl.u32 %v3957, 7
          %v3959 = vsub.s32 %v3406, %v3958
          %v3960 = vrot.slane %v2747, %v3959
          %v3961 = vsel %vm3411, %v3960, %v3956
          %v3962 = vlaneseq
          %v3963 = vshrl.u32 %v3962, 7
          %v3964 = vsub.s32 %v3401, %v3963
          %v3965 = vrot.slane %v2750, %v3964
          %v3966 = vlaneseq
          %v3967 = vshrl.u32 %v3966, 7
          %v3968 = vsub.s32 %v3406, %v3967
          %v3969 = vrot.slane %v2753, %v3968
          %v3970 = vsel %vm3411, %v3969, %v3965
          %v3971 = vlaneseq
          %v3972 = vshrl.u32 %v3971, 7
          %v3973 = vsub.s32 %v3401, %v3972
          %v3974 = vrot.slane %v2756, %v3973
          %v3975 = vlaneseq
          %v3976 = vshrl.u32 %v3975, 7
          %v3977 = vsub.s32 %v3406, %v3976
          %v3978 = vrot.slane %v2759, %v3977
          %v3979 = vsel %vm3411, %v3978, %v3974
          %v3980 = vlaneseq
          %v3981 = vshrl.u32 %v3980, 7
          %v3982 = vsub.s32 %v3401, %v3981
          %v3983 = vrot.slane %v2762, %v3982
          %v3984 = vlaneseq
          %v3985 = vshrl.u32 %v3984, 7
          %v3986 = vsub.s32 %v3406, %v3985
          %v3987 = vrot.slane %v2765, %v3986
          %v3988 = vsel %vm3411, %v3987, %v3983
          %v3989 = vlaneseq
          %v3990 = vshrl.u32 %v3989, 7
          %v3991 = vsub.s32 %v3401, %v3990
          %v3992 = vrot.slane %v2768, %v3991
          %v3993 = vlaneseq
          %v3994 = vshrl.u32 %v3993, 7
          %v3995 = vsub.s32 %v3406, %v3994
          %v3996 = vrot.slane %v2771, %v3995
          %v3997 = vsel %vm3411, %v3996, %v3992
          %v3998 = vlaneseq
          %v3999 = vshrl.u32 %v3998, 7
          %v4000 = vsub.s32 %v3401, %v3999
          %v4001 = vrot.slane %v2774, %v4000
          %v4002 = vlaneseq
          %v4003 = vshrl.u32 %v4002, 7
          %v4004 = vsub.s32 %v3406, %v4003
          %v4005 = vrot.slane %v2777, %v4004
          %v4006 = vsel %vm3411, %v4005, %v4001
          %v4007 = vlaneseq
          %v4008 = vshrl.u32 %v4007, 7
          %v4009 = vsub.s32 %v3401, %v4008
          %v4010 = vrot.slane %v2780, %v4009
          %v4011 = vlaneseq
          %v4012 = vshrl.u32 %v4011, 7
          %v4013 = vsub.s32 %v3406, %v4012
          %v4014 = vrot.slane %v2783, %v4013
          %v4015 = vsel %vm3411, %v4014, %v4010
          %v4016 = vlaneseq
          %v4017 = vshrl.u32 %v4016, 7
          %v4018 = vsub.s32 %v3401, %v4017
          %v4019 = vrot.slane %v2786, %v4018
          %v4020 = vlaneseq
          %v4021 = vshrl.u32 %v4020, 7
          %v4022 = vsub.s32 %v3406, %v4021
          %v4023 = vrot.slane %v2789, %v4022
          %v4024 = vsel %vm3411, %v4023, %v4019
          %v4025 = vlaneseq
          %v4026 = vshrl.u32 %v4025, 7
          %v4027 = vsub.s32 %v3401, %v4026
          %v4028 = vrot.slane %v2792, %v4027
          %v4029 = vlaneseq
          %v4030 = vshrl.u32 %v4029, 7
          %v4031 = vsub.s32 %v3406, %v4030
          %v4032 = vrot.slane %v2795, %v4031
          %v4033 = vsel %vm3411, %v4032, %v4028
          %v4034 = vlaneseq
          %v4035 = vshrl.u32 %v4034, 7
          %v4036 = vsub.s32 %v3401, %v4035
          %v4037 = vrot.slane %v2798, %v4036
          %v4038 = vlaneseq
          %v4039 = vshrl.u32 %v4038, 7
          %v4040 = vsub.s32 %v3406, %v4039
          %v4041 = vrot.slane %v2801, %v4040
          %v4042 = vsel %vm3411, %v4041, %v4037
          %v4043 = vlaneseq
          %v4044 = vshrl.u32 %v4043, 7
          %v4045 = vsub.s32 %v3401, %v4044
          %v4046 = vrot.slane %v2804, %v4045
          %v4047 = vlaneseq
          %v4048 = vshrl.u32 %v4047, 7
          %v4049 = vsub.s32 %v3406, %v4048
          %v4050 = vrot.slane %v2807, %v4049
          %v4051 = vsel %vm3411, %v4050, %v4046
          %v4052 = vlaneseq
          %v4053 = vshrl.u32 %v4052, 7
          %v4054 = vsub.s32 %v3401, %v4053
          %v4055 = vrot.slane %v2810, %v4054
          %v4056 = vlaneseq
          %v4057 = vshrl.u32 %v4056, 7
          %v4058 = vsub.s32 %v3406, %v4057
          %v4059 = vrot.slane %v2813, %v4058
          %v4060 = vsel %vm3411, %v4059, %v4055
          %v4061 = vlaneseq
          %v4062 = vshrl.u32 %v4061, 7
          %v4063 = vsub.s32 %v3401, %v4062
          %v4064 = vrot.slane %v2816, %v4063
          %v4065 = vlaneseq
          %v4066 = vshrl.u32 %v4065, 7
          %v4067 = vsub.s32 %v3406, %v4066
          %v4068 = vrot.slane %v2819, %v4067
          %v4069 = vsel %vm3411, %v4068, %v4064
          %v4070 = vlaneseq
          %v4071 = vshrl.u32 %v4070, 7
          %v4072 = vsub.s32 %v3401, %v4071
          %v4073 = vrot.slane %v2822, %v4072
          %v4074 = vlaneseq
          %v4075 = vshrl.u32 %v4074, 7
          %v4076 = vsub.s32 %v3406, %v4075
          %v4077 = vrot.slane %v2825, %v4076
          %v4078 = vsel %vm3411, %v4077, %v4073
          %v4079 = vlaneseq
          %v4080 = vshrl.u32 %v4079, 7
          %v4081 = vsub.s32 %v3401, %v4080
          %v4082 = vrot.slane %v2828, %v4081
          %v4083 = vlaneseq
          %v4084 = vshrl.u32 %v4083, 7
          %v4085 = vsub.s32 %v3406, %v4084
          %v4086 = vrot.slane %v2831, %v4085
          %v4087 = vsel %vm3411, %v4086, %v4082
          %v4088 = vlaneseq
          %v4089 = vshrl.u32 %v4088, 7
          %v4090 = vsub.s32 %v3401, %v4089
          %v4091 = vrot.slane %v2834, %v4090
          %v4092 = vlaneseq
          %v4093 = vshrl.u32 %v4092, 7
          %v4094 = vsub.s32 %v3406, %v4093
          %v4095 = vrot.slane %v2837, %v4094
          %v4096 = vsel %vm3411, %v4095, %v4091
          %v4097 = vlaneseq
          %v4098 = vshrl.u32 %v4097, 7
          %v4099 = vsub.s32 %v3401, %v4098
          %v4100 = vrot.slane %v2840, %v4099
          %v4101 = vlaneseq
          %v4102 = vshrl.u32 %v4101, 7
          %v4103 = vsub.s32 %v3406, %v4102
          %v4104 = vrot.slane %v2843, %v4103
          %v4105 = vsel %vm3411, %v4104, %v4100
          %v4106 = vlaneseq
          %v4107 = vshrl.u32 %v4106, 7
          %v4108 = vsub.s32 %v3401, %v4107
          %v4109 = vrot.slane %v2846, %v4108
          %v4110 = vlaneseq
          %v4111 = vshrl.u32 %v4110, 7
          %v4112 = vsub.s32 %v3406, %v4111
          %v4113 = vrot.slane %v2849, %v4112
          %v4114 = vsel %vm3411, %v4113, %v4109
          %v4115 = vlaneseq
          %v4116 = vshrl.u32 %v4115, 7
          %v4117 = vsub.s32 %v3401, %v4116
          %v4118 = vrot.slane %v2852, %v4117
          %v4119 = vlaneseq
          %v4120 = vshrl.u32 %v4119, 7
          %v4121 = vsub.s32 %v3406, %v4120
          %v4122 = vrot.slane %v2855, %v4121
          %v4123 = vsel %vm3411, %v4122, %v4118
          %v4124 = vlaneseq
          %v4125 = vshrl.u32 %v4124, 7
          %v4126 = vsub.s32 %v3401, %v4125
          %v4127 = vrot.slane %v2858, %v4126
          %v4128 = vlaneseq
          %v4129 = vshrl.u32 %v4128, 7
          %v4130 = vsub.s32 %v3406, %v4129
          %v4131 = vrot.slane %v2861, %v4130
          %v4132 = vsel %vm3411, %v4131, %v4127
          %v4133 = vlaneseq
          %v4134 = vshrl.u32 %v4133, 7
          %v4135 = vsub.s32 %v3401, %v4134
          %v4136 = vrot.slane %v2864, %v4135
          %v4137 = vlaneseq
          %v4138 = vshrl.u32 %v4137, 7
          %v4139 = vsub.s32 %v3406, %v4138
          %v4140 = vrot.slane %v2867, %v4139
          %v4141 = vsel %vm3411, %v4140, %v4136
          %v4142 = vlaneseq
          %v4143 = vshrl.u32 %v4142, 7
          %v4144 = vsub.s32 %v3401, %v4143
          %v4145 = vrot.slane %v2870, %v4144
          %v4146 = vlaneseq
          %v4147 = vshrl.u32 %v4146, 7
          %v4148 = vsub.s32 %v3406, %v4147
          %v4149 = vrot.slane %v2873, %v4148
          %v4150 = vsel %vm3411, %v4149, %v4145
          %v4151 = vlaneseq
          %v4152 = vshrl.u32 %v4151, 7
          %v4153 = vsub.s32 %v3401, %v4152
          %v4154 = vrot.slane %v2876, %v4153
          %v4155 = vlaneseq
          %v4156 = vshrl.u32 %v4155, 7
          %v4157 = vsub.s32 %v3406, %v4156
          %v4158 = vrot.slane %v2879, %v4157
          %v4159 = vsel %vm3411, %v4158, %v4154
          %v4160 = vlaneseq
          %v4161 = vshrl.u32 %v4160, 7
          %v4162 = vsub.s32 %v3401, %v4161
          %v4163 = vrot.slane %v2882, %v4162
          %v4164 = vlaneseq
          %v4165 = vshrl.u32 %v4164, 7
          %v4166 = vsub.s32 %v3406, %v4165
          %v4167 = vrot.slane %v2885, %v4166
          %v4168 = vsel %vm3411, %v4167, %v4163
          %v4169 = vlaneseq
          %v4170 = vshrl.u32 %v4169, 7
          %v4171 = vsub.s32 %v3401, %v4170
          %v4172 = vrot.slane %v2888, %v4171
          %v4173 = vlaneseq
          %v4174 = vshrl.u32 %v4173, 7
          %v4175 = vsub.s32 %v3406, %v4174
          %v4176 = vrot.slane %v2891, %v4175
          %v4177 = vsel %vm3411, %v4176, %v4172
          %v4178 = vlaneseq
          %v4179 = vshrl.u32 %v4178, 7
          %v4180 = vsub.s32 %v3401, %v4179
          %v4181 = vrot.slane %v2894, %v4180
          %v4182 = vlaneseq
          %v4183 = vshrl.u32 %v4182, 7
          %v4184 = vsub.s32 %v3406, %v4183
          %v4185 = vrot.slane %v2897, %v4184
          %v4186 = vsel %vm3411, %v4185, %v4181
          %v4187 = vlaneseq
          %v4188 = vshrl.u32 %v4187, 7
          %v4189 = vsub.s32 %v3401, %v4188
          %v4190 = vrot.slane %v2900, %v4189
          %v4191 = vlaneseq
          %v4192 = vshrl.u32 %v4191, 7
          %v4193 = vsub.s32 %v3406, %v4192
          %v4194 = vrot.slane %v2903, %v4193
          %v4195 = vsel %vm3411, %v4194, %v4190
          %v4196 = vlaneseq
          %v4197 = vshrl.u32 %v4196, 7
          %v4198 = vsub.s32 %v3401, %v4197
          %v4199 = vrot.slane %v2906, %v4198
          %v4200 = vlaneseq
          %v4201 = vshrl.u32 %v4200, 7
          %v4202 = vsub.s32 %v3406, %v4201
          %v4203 = vrot.slane %v2909, %v4202
          %v4204 = vsel %vm3411, %v4203, %v4199
          %v4205 = vlaneseq
          %v4206 = vshrl.u32 %v4205, 7
          %v4207 = vsub.s32 %v3401, %v4206
          %v4208 = vrot.slane %v2912, %v4207
          %v4209 = vlaneseq
          %v4210 = vshrl.u32 %v4209, 7
          %v4211 = vsub.s32 %v3406, %v4210
          %v4212 = vrot.slane %v2915, %v4211
          %v4213 = vsel %vm3411, %v4212, %v4208
          %v4214 = vlaneseq
          %v4215 = vshrl.u32 %v4214, 7
          %v4216 = vsub.s32 %v3401, %v4215
          %v4217 = vrot.slane %v2918, %v4216
          %v4218 = vlaneseq
          %v4219 = vshrl.u32 %v4218, 7
          %v4220 = vsub.s32 %v3406, %v4219
          %v4221 = vrot.slane %v2921, %v4220
          %v4222 = vsel %vm3411, %v4221, %v4217
          %v4223 = vlaneseq
          %v4224 = vshrl.u32 %v4223, 7
          %v4225 = vsub.s32 %v3401, %v4224
          %v4226 = vrot.slane %v2924, %v4225
          %v4227 = vlaneseq
          %v4228 = vshrl.u32 %v4227, 7
          %v4229 = vsub.s32 %v3406, %v4228
          %v4230 = vrot.slane %v2927, %v4229
          %v4231 = vsel %vm3411, %v4230, %v4226
          %v4232 = vlaneseq
          %v4233 = vshrl.u32 %v4232, 7
          %v4234 = vsub.s32 %v3401, %v4233
          %v4235 = vrot.slane %v2930, %v4234
          %v4236 = vlaneseq
          %v4237 = vshrl.u32 %v4236, 7
          %v4238 = vsub.s32 %v3406, %v4237
          %v4239 = vrot.slane %v2933, %v4238
          %v4240 = vsel %vm3411, %v4239, %v4235
          %v4241 = vlaneseq
          %v4242 = vshrl.u32 %v4241, 7
          %v4243 = vsub.s32 %v3401, %v4242
          %v4244 = vrot.slane %v2936, %v4243
          %v4245 = vlaneseq
          %v4246 = vshrl.u32 %v4245, 7
          %v4247 = vsub.s32 %v3406, %v4246
          %v4248 = vrot.slane %v2939, %v4247
          %v4249 = vsel %vm3411, %v4248, %v4244
          %v4250 = vlaneseq
          %v4251 = vshrl.u32 %v4250, 7
          %v4252 = vsub.s32 %v3401, %v4251
          %v4253 = vrot.slane %v2942, %v4252
          %v4254 = vlaneseq
          %v4255 = vshrl.u32 %v4254, 7
          %v4256 = vsub.s32 %v3406, %v4255
          %v4257 = vrot.slane %v2945, %v4256
          %v4258 = vsel %vm3411, %v4257, %v4253
          %v4259 = vlaneseq
          %v4260 = vshrl.u32 %v4259, 7
          %v4261 = vsub.s32 %v3401, %v4260
          %v4262 = vrot.slane %v2948, %v4261
          %v4263 = vlaneseq
          %v4264 = vshrl.u32 %v4263, 7
          %v4265 = vsub.s32 %v3406, %v4264
          %v4266 = vrot.slane %v2951, %v4265
          %v4267 = vsel %vm3411, %v4266, %v4262
          %v4268 = vlaneseq
          %v4269 = vshrl.u32 %v4268, 7
          %v4270 = vsub.s32 %v3401, %v4269
          %v4271 = vrot.slane %v2954, %v4270
          %v4272 = vlaneseq
          %v4273 = vshrl.u32 %v4272, 7
          %v4274 = vsub.s32 %v3406, %v4273
          %v4275 = vrot.slane %v2957, %v4274
          %v4276 = vsel %vm3411, %v4275, %v4271
          %v4277 = vlaneseq
          %v4278 = vshrl.u32 %v4277, 7
          %v4279 = vsub.s32 %v3401, %v4278
          %v4280 = vrot.slane %v2960, %v4279
          %v4281 = vlaneseq
          %v4282 = vshrl.u32 %v4281, 7
          %v4283 = vsub.s32 %v3406, %v4282
          %v4284 = vrot.slane %v2963, %v4283
          %v4285 = vsel %vm3411, %v4284, %v4280
          %v4286 = vlaneseq
          %v4287 = vshrl.u32 %v4286, 7
          %v4288 = vsub.s32 %v3401, %v4287
          %v4289 = vrot.slane %v2966, %v4288
          %v4290 = vlaneseq
          %v4291 = vshrl.u32 %v4290, 7
          %v4292 = vsub.s32 %v3406, %v4291
          %v4293 = vrot.slane %v2969, %v4292
          %v4294 = vsel %vm3411, %v4293, %v4289
          %v4295 = vlaneseq
          %v4296 = vshrl.u32 %v4295, 7
          %v4297 = vsub.s32 %v3401, %v4296
          %v4298 = vrot.slane %v2972, %v4297
          %v4299 = vlaneseq
          %v4300 = vshrl.u32 %v4299, 7
          %v4301 = vsub.s32 %v3406, %v4300
          %v4302 = vrot.slane %v2975, %v4301
          %v4303 = vsel %vm3411, %v4302, %v4298
          %v4304 = vlaneseq
          %v4305 = vshrl.u32 %v4304, 7
          %v4306 = vsub.s32 %v3401, %v4305
          %v4307 = vrot.slane %v2978, %v4306
          %v4308 = vlaneseq
          %v4309 = vshrl.u32 %v4308, 7
          %v4310 = vsub.s32 %v3406, %v4309
          %v4311 = vrot.slane %v2981, %v4310
          %v4312 = vsel %vm3411, %v4311, %v4307
          %v4313 = vlaneseq
          %v4314 = vshrl.u32 %v4313, 7
          %v4315 = vsub.s32 %v3401, %v4314
          %v4316 = vrot.slane %v2984, %v4315
          %v4317 = vlaneseq
          %v4318 = vshrl.u32 %v4317, 7
          %v4319 = vsub.s32 %v3406, %v4318
          %v4320 = vrot.slane %v2987, %v4319
          %v4321 = vsel %vm3411, %v4320, %v4316
          %v4322 = vlaneseq
          %v4323 = vshrl.u32 %v4322, 7
          %v4324 = vsub.s32 %v3401, %v4323
          %v4325 = vrot.slane %v2990, %v4324
          %v4326 = vlaneseq
          %v4327 = vshrl.u32 %v4326, 7
          %v4328 = vsub.s32 %v3406, %v4327
          %v4329 = vrot.slane %v2993, %v4328
          %v4330 = vsel %vm3411, %v4329, %v4325
          %v4331 = vlaneseq
          %v4332 = vshrl.u32 %v4331, 7
          %v4333 = vsub.s32 %v3401, %v4332
          %v4334 = vrot.slane %v2996, %v4333
          %v4335 = vlaneseq
          %v4336 = vshrl.u32 %v4335, 7
          %v4337 = vsub.s32 %v3406, %v4336
          %v4338 = vrot.slane %v2999, %v4337
          %v4339 = vsel %vm3411, %v4338, %v4334
          %v4340 = vlaneseq
          %v4341 = vshrl.u32 %v4340, 7
          %v4342 = vsub.s32 %v3401, %v4341
          %v4343 = vrot.slane %v3002, %v4342
          %v4344 = vlaneseq
          %v4345 = vshrl.u32 %v4344, 7
          %v4346 = vsub.s32 %v3406, %v4345
          %v4347 = vrot.slane %v3005, %v4346
          %v4348 = vsel %vm3411, %v4347, %v4343
          %v4349 = vlaneseq
          %v4350 = vshrl.u32 %v4349, 7
          %v4351 = vsub.s32 %v3401, %v4350
          %v4352 = vrot.slane %v3008, %v4351
          %v4353 = vlaneseq
          %v4354 = vshrl.u32 %v4353, 7
          %v4355 = vsub.s32 %v3406, %v4354
          %v4356 = vrot.slane %v3011, %v4355
          %v4357 = vsel %vm3411, %v4356, %v4352
          %v4358 = vlaneseq
          %v4359 = vshrl.u32 %v4358, 7
          %v4360 = vsub.s32 %v3401, %v4359
          %v4361 = vrot.slane %v3014, %v4360
          %v4362 = vlaneseq
          %v4363 = vshrl.u32 %v4362, 7
          %v4364 = vsub.s32 %v3406, %v4363
          %v4365 = vrot.slane %v3017, %v4364
          %v4366 = vsel %vm3411, %v4365, %v4361
          %v4367 = vlaneseq
          %v4368 = vshrl.u32 %v4367, 7
          %v4369 = vsub.s32 %v3401, %v4368
          %v4370 = vrot.slane %v3020, %v4369
          %v4371 = vlaneseq
          %v4372 = vshrl.u32 %v4371, 7
          %v4373 = vsub.s32 %v3406, %v4372
          %v4374 = vrot.slane %v3023, %v4373
          %v4375 = vsel %vm3411, %v4374, %v4370
          %v4376 = vlaneseq
          %v4377 = vshrl.u32 %v4376, 7
          %v4378 = vsub.s32 %v3401, %v4377
          %v4379 = vrot.slane %v3026, %v4378
          %v4380 = vlaneseq
          %v4381 = vshrl.u32 %v4380, 7
          %v4382 = vsub.s32 %v3406, %v4381
          %v4383 = vrot.slane %v3029, %v4382
          %v4384 = vsel %vm3411, %v4383, %v4379
          %v4385 = vlaneseq
          %v4386 = vshrl.u32 %v4385, 7
          %v4387 = vsub.s32 %v3401, %v4386
          %v4388 = vrot.slane %v3032, %v4387
          %v4389 = vlaneseq
          %v4390 = vshrl.u32 %v4389, 7
          %v4391 = vsub.s32 %v3406, %v4390
          %v4392 = vrot.slane %v3035, %v4391
          %v4393 = vsel %vm3411, %v4392, %v4388
          %v4394 = vlaneseq
          %v4395 = vshrl.u32 %v4394, 7
          %v4396 = vsub.s32 %v3401, %v4395
          %v4397 = vrot.slane %v3038, %v4396
          %v4398 = vlaneseq
          %v4399 = vshrl.u32 %v4398, 7
          %v4400 = vsub.s32 %v3406, %v4399
          %v4401 = vrot.slane %v3041, %v4400
          %v4402 = vsel %vm3411, %v4401, %v4397
          %v4403 = vlaneseq
          %v4404 = vshrl.u32 %v4403, 7
          %v4405 = vsub.s32 %v3401, %v4404
          %v4406 = vrot.slane %v3044, %v4405
          %v4407 = vlaneseq
          %v4408 = vshrl.u32 %v4407, 7
          %v4409 = vsub.s32 %v3406, %v4408
          %v4410 = vrot.slane %v3047, %v4409
          %v4411 = vsel %vm3411, %v4410, %v4406
          %v4412 = vlaneseq
          %v4413 = vshrl.u32 %v4412, 7
          %v4414 = vsub.s32 %v3401, %v4413
          %v4415 = vrot.slane %v3050, %v4414
          %v4416 = vlaneseq
          %v4417 = vshrl.u32 %v4416, 7
          %v4418 = vsub.s32 %v3406, %v4417
          %v4419 = vrot.slane %v3053, %v4418
          %v4420 = vsel %vm3411, %v4419, %v4415
          %v4421 = vlaneseq
          %v4422 = vshrl.u32 %v4421, 7
          %v4423 = vsub.s32 %v3401, %v4422
          %v4424 = vrot.slane %v3056, %v4423
          %v4425 = vlaneseq
          %v4426 = vshrl.u32 %v4425, 7
          %v4427 = vsub.s32 %v3406, %v4426
          %v4428 = vrot.slane %v3059, %v4427
          %v4429 = vsel %vm3411, %v4428, %v4424
          %v4430 = vlaneseq
          %v4431 = vshrl.u32 %v4430, 7
          %v4432 = vsub.s32 %v3401, %v4431
          %v4433 = vrot.slane %v3062, %v4432
          %v4434 = vlaneseq
          %v4435 = vshrl.u32 %v4434, 7
          %v4436 = vsub.s32 %v3406, %v4435
          %v4437 = vrot.slane %v3065, %v4436
          %v4438 = vsel %vm3411, %v4437, %v4433
          %v4439 = vlaneseq
          %v4440 = vshrl.u32 %v4439, 7
          %v4441 = vsub.s32 %v3401, %v4440
          %v4442 = vrot.slane %v3068, %v4441
          %v4443 = vlaneseq
          %v4444 = vshrl.u32 %v4443, 7
          %v4445 = vsub.s32 %v3406, %v4444
          %v4446 = vrot.slane %v3071, %v4445
          %v4447 = vsel %vm3411, %v4446, %v4442
          %v4448 = vlaneseq
          %v4449 = vshrl.u32 %v4448, 7
          %v4450 = vsub.s32 %v3401, %v4449
          %v4451 = vrot.slane %v3074, %v4450
          %v4452 = vlaneseq
          %v4453 = vshrl.u32 %v4452, 7
          %v4454 = vsub.s32 %v3406, %v4453
          %v4455 = vrot.slane %v3077, %v4454
          %v4456 = vsel %vm3411, %v4455, %v4451
          %v4457 = vlaneseq
          %v4458 = vshrl.u32 %v4457, 7
          %v4459 = vsub.s32 %v3401, %v4458
          %v4460 = vrot.slane %v3080, %v4459
          %v4461 = vlaneseq
          %v4462 = vshrl.u32 %v4461, 7
          %v4463 = vsub.s32 %v3406, %v4462
          %v4464 = vrot.slane %v3083, %v4463
          %v4465 = vsel %vm3411, %v4464, %v4460
          %v4466 = vlaneseq
          %v4467 = vshrl.u32 %v4466, 7
          %v4468 = vsub.s32 %v3401, %v4467
          %v4469 = vrot.slane %v3086, %v4468
          %v4470 = vlaneseq
          %v4471 = vshrl.u32 %v4470, 7
          %v4472 = vsub.s32 %v3406, %v4471
          %v4473 = vrot.slane %v3089, %v4472
          %v4474 = vsel %vm3411, %v4473, %v4469
          %v4475 = vlaneseq
          %v4476 = vshrl.u32 %v4475, 7
          %v4477 = vsub.s32 %v3401, %v4476
          %v4478 = vrot.slane %v3092, %v4477
          %v4479 = vlaneseq
          %v4480 = vshrl.u32 %v4479, 7
          %v4481 = vsub.s32 %v3406, %v4480
          %v4482 = vrot.slane %v3095, %v4481
          %v4483 = vsel %vm3411, %v4482, %v4478
          %v4484 = vlaneseq
          %v4485 = vshrl.u32 %v4484, 7
          %v4486 = vsub.s32 %v3401, %v4485
          %v4487 = vrot.slane %v3098, %v4486
          %v4488 = vlaneseq
          %v4489 = vshrl.u32 %v4488, 7
          %v4490 = vsub.s32 %v3406, %v4489
          %v4491 = vrot.slane %v3101, %v4490
          %v4492 = vsel %vm3411, %v4491, %v4487
          %v4493 = vlaneseq
          %v4494 = vshrl.u32 %v4493, 7
          %v4495 = vsub.s32 %v3401, %v4494
          %v4496 = vrot.slane %v3104, %v4495
          %v4497 = vlaneseq
          %v4498 = vshrl.u32 %v4497, 7
          %v4499 = vsub.s32 %v3406, %v4498
          %v4500 = vrot.slane %v3107, %v4499
          %v4501 = vsel %vm3411, %v4500, %v4496
          %v4502 = vlaneseq
          %v4503 = vshrl.u32 %v4502, 7
          %v4504 = vsub.s32 %v3401, %v4503
          %v4505 = vrot.slane %v3110, %v4504
          %v4506 = vlaneseq
          %v4507 = vshrl.u32 %v4506, 7
          %v4508 = vsub.s32 %v3406, %v4507
          %v4509 = vrot.slane %v3113, %v4508
          %v4510 = vsel %vm3411, %v4509, %v4505
          %v4511 = vlaneseq
          %v4512 = vshrl.u32 %v4511, 7
          %v4513 = vsub.s32 %v3401, %v4512
          %v4514 = vrot.slane %v3116, %v4513
          %v4515 = vlaneseq
          %v4516 = vshrl.u32 %v4515, 7
          %v4517 = vsub.s32 %v3406, %v4516
          %v4518 = vrot.slane %v3119, %v4517
          %v4519 = vsel %vm3411, %v4518, %v4514
          %v4520 = vlaneseq
          %v4521 = vshrl.u32 %v4520, 7
          %v4522 = vsub.s32 %v3401, %v4521
          %v4523 = vrot.slane %v3122, %v4522
          %v4524 = vlaneseq
          %v4525 = vshrl.u32 %v4524, 7
          %v4526 = vsub.s32 %v3406, %v4525
          %v4527 = vrot.slane %v3125, %v4526
          %v4528 = vsel %vm3411, %v4527, %v4523
          %v4529 = vlaneseq
          %v4530 = vshrl.u32 %v4529, 7
          %v4531 = vsub.s32 %v3401, %v4530
          %v4532 = vrot.slane %v3128, %v4531
          %v4533 = vlaneseq
          %v4534 = vshrl.u32 %v4533, 7
          %v4535 = vsub.s32 %v3406, %v4534
          %v4536 = vrot.slane %v3131, %v4535
          %v4537 = vsel %vm3411, %v4536, %v4532
          %v4538 = vlaneseq
          %v4539 = vshrl.u32 %v4538, 7
          %v4540 = vsub.s32 %v3401, %v4539
          %v4541 = vrot.slane %v3134, %v4540
          %v4542 = vlaneseq
          %v4543 = vshrl.u32 %v4542, 7
          %v4544 = vsub.s32 %v3406, %v4543
          %v4545 = vrot.slane %v3137, %v4544
          %v4546 = vsel %vm3411, %v4545, %v4541
          %v4547 = vlaneseq
          %v4548 = vshrl.u32 %v4547, 7
          %v4549 = vsub.s32 %v3401, %v4548
          %v4550 = vrot.slane %v3140, %v4549
          %v4551 = vlaneseq
          %v4552 = vshrl.u32 %v4551, 7
          %v4553 = vsub.s32 %v3406, %v4552
          %v4554 = vrot.slane %v3143, %v4553
          %v4555 = vsel %vm3411, %v4554, %v4550
          %vm4556 = vcmask 1041409
          %v4557 = vsel %vm4556, %v3421, %v3412
          %vm4558 = vcmask 1042434
          %v4559 = vsel %vm4558, %v3430, %v4557
          %vm4560 = vcmask 1043459
          %v4561 = vsel %vm4560, %v3439, %v4559
          %vm4562 = vcmask 1044484
          %v4563 = vsel %vm4562, %v3448, %v4561
          %vm4564 = vcmask 1045509
          %v4565 = vsel %vm4564, %v3457, %v4563
          %vm4566 = vcmask 1046534
          %v4567 = vsel %vm4566, %v3466, %v4565
          %vm4568 = vcmask 1047559
          %v4569 = vsel %vm4568, %v3475, %v4567
          %v4570 = vsel %vm4556, %v3493, %v3484
          %v4571 = vsel %vm4558, %v3502, %v4570
          %v4572 = vsel %vm4560, %v3511, %v4571
          %v4573 = vsel %vm4562, %v3520, %v4572
          %v4574 = vsel %vm4564, %v3529, %v4573
          %v4575 = vsel %vm4566, %v3538, %v4574
          %v4576 = vsel %vm4568, %v3547, %v4575
          %v4577 = vsel %vm4556, %v3565, %v3556
          %v4578 = vsel %vm4558, %v3574, %v4577
          %v4579 = vsel %vm4560, %v3583, %v4578
          %v4580 = vsel %vm4562, %v3592, %v4579
          %v4581 = vsel %vm4564, %v3601, %v4580
          %v4582 = vsel %vm4566, %v3610, %v4581
          %v4583 = vsel %vm4568, %v3619, %v4582
          %v4584 = vsel %vm4556, %v3637, %v3628
          %v4585 = vsel %vm4558, %v3646, %v4584
          %v4586 = vsel %vm4560, %v3655, %v4585
          %v4587 = vsel %vm4562, %v3664, %v4586
          %v4588 = vsel %vm4564, %v3673, %v4587
          %v4589 = vsel %vm4566, %v3682, %v4588
          %v4590 = vsel %vm4568, %v3691, %v4589
          %v4591 = vsel %vm4556, %v3709, %v3700
          %v4592 = vsel %vm4558, %v3718, %v4591
          %v4593 = vsel %vm4560, %v3727, %v4592
          %v4594 = vsel %vm4562, %v3736, %v4593
          %v4595 = vsel %vm4564, %v3745, %v4594
          %v4596 = vsel %vm4566, %v3754, %v4595
          %v4597 = vsel %vm4568, %v3763, %v4596
          %v4598 = vsel %vm4556, %v3781, %v3772
          %v4599 = vsel %vm4558, %v3790, %v4598
          %v4600 = vsel %vm4560, %v3799, %v4599
          %v4601 = vsel %vm4562, %v3808, %v4600
          %v4602 = vsel %vm4564, %v3817, %v4601
          %v4603 = vsel %vm4566, %v3826, %v4602
          %v4604 = vsel %vm4568, %v3835, %v4603
          %v4605 = vsel %vm4556, %v3853, %v3844
          %v4606 = vsel %vm4558, %v3862, %v4605
          %v4607 = vsel %vm4560, %v3871, %v4606
          %v4608 = vsel %vm4562, %v3880, %v4607
          %v4609 = vsel %vm4564, %v3889, %v4608
          %v4610 = vsel %vm4566, %v3898, %v4609
          %v4611 = vsel %vm4568, %v3907, %v4610
          %v4612 = vsel %vm4556, %v3925, %v3916
          %v4613 = vsel %vm4558, %v3934, %v4612
          %v4614 = vsel %vm4560, %v3943, %v4613
          %v4615 = vsel %vm4562, %v3952, %v4614
          %v4616 = vsel %vm4564, %v3961, %v4615
          %v4617 = vsel %vm4566, %v3970, %v4616
          %v4618 = vsel %vm4568, %v3979, %v4617
          %v4619 = vsel %vm4556, %v3997, %v3988
          %v4620 = vsel %vm4558, %v4006, %v4619
          %v4621 = vsel %vm4560, %v4015, %v4620
          %v4622 = vsel %vm4562, %v4024, %v4621
          %v4623 = vsel %vm4564, %v4033, %v4622
          %v4624 = vsel %vm4566, %v4042, %v4623
          %v4625 = vsel %vm4568, %v4051, %v4624
          %v4626 = vsel %vm4556, %v4069, %v4060
          %v4627 = vsel %vm4558, %v4078, %v4626
          %v4628 = vsel %vm4560, %v4087, %v4627
          %v4629 = vsel %vm4562, %v4096, %v4628
          %v4630 = vsel %vm4564, %v4105, %v4629
          %v4631 = vsel %vm4566, %v4114, %v4630
          %v4632 = vsel %vm4568, %v4123, %v4631
          %v4633 = vsel %vm4556, %v4141, %v4132
          %v4634 = vsel %vm4558, %v4150, %v4633
          %v4635 = vsel %vm4560, %v4159, %v4634
          %v4636 = vsel %vm4562, %v4168, %v4635
          %v4637 = vsel %vm4564, %v4177, %v4636
          %v4638 = vsel %vm4566, %v4186, %v4637
          %v4639 = vsel %vm4568, %v4195, %v4638
          %v4640 = vsel %vm4556, %v4213, %v4204
          %v4641 = vsel %vm4558, %v4222, %v4640
          %v4642 = vsel %vm4560, %v4231, %v4641
          %v4643 = vsel %vm4562, %v4240, %v4642
          %v4644 = vsel %vm4564, %v4249, %v4643
          %v4645 = vsel %vm4566, %v4258, %v4644
          %v4646 = vsel %vm4568, %v4267, %v4645
          %v4647 = vsel %vm4556, %v4285, %v4276
          %v4648 = vsel %vm4558, %v4294, %v4647
          %v4649 = vsel %vm4560, %v4303, %v4648
          %v4650 = vsel %vm4562, %v4312, %v4649
          %v4651 = vsel %vm4564, %v4321, %v4650
          %v4652 = vsel %vm4566, %v4330, %v4651
          %v4653 = vsel %vm4568, %v4339, %v4652
          %v4654 = vsel %vm4556, %v4357, %v4348
          %v4655 = vsel %vm4558, %v4366, %v4654
          %v4656 = vsel %vm4560, %v4375, %v4655
          %v4657 = vsel %vm4562, %v4384, %v4656
          %v4658 = vsel %vm4564, %v4393, %v4657
          %v4659 = vsel %vm4566, %v4402, %v4658
          %v4660 = vsel %vm4568, %v4411, %v4659
          %v4661 = vsel %vm4556, %v4429, %v4420
          %v4662 = vsel %vm4558, %v4438, %v4661
          %v4663 = vsel %vm4560, %v4447, %v4662
          %v4664 = vsel %vm4562, %v4456, %v4663
          %v4665 = vsel %vm4564, %v4465, %v4664
          %v4666 = vsel %vm4566, %v4474, %v4665
          %v4667 = vsel %vm4568, %v4483, %v4666
          %v4668 = vsel %vm4556, %v4501, %v4492
          %v4669 = vsel %vm4558, %v4510, %v4668
          %v4670 = vsel %vm4560, %v4519, %v4669
          %v4671 = vsel %vm4562, %v4528, %v4670
          %v4672 = vsel %vm4564, %v4537, %v4671
          %v4673 = vsel %vm4566, %v4546, %v4672
          %v4674 = vsel %vm4568, %v4555, %v4673
          %vm4691 = vcmask 130048
          %4692 = vst.msk [vmem:[#allocation5] sm:$0xff] %vm4691, %v4569
          %4693 = vst.msk [vmem:[#allocation5 + $0x8] sm:$0xff] %vm4691, %v4576
          %4694 = vst.msk [vmem:[#allocation5 + $0x10] sm:$0xff] %vm4691, %v4583
          %4695 = vst.msk [vmem:[#allocation5 + $0x18] sm:$0xff] %vm4691, %v4590
          %4696 = vst.msk [vmem:[#allocation5 + $0x20] sm:$0xff] %vm4691, %v4597
          %4697 = vst.msk [vmem:[#allocation5 + $0x28] sm:$0xff] %vm4691, %v4604
          %4698 = vst.msk [vmem:[#allocation5 + $0x30] sm:$0xff] %vm4691, %v4611
          %4699 = vst.msk [vmem:[#allocation5 + $0x38] sm:$0xff] %vm4691, %v4618
          %4700 = vst.msk [vmem:[#allocation5 + $0x40] sm:$0xff] %vm4691, %v4625
          %4701 = vst.msk [vmem:[#allocation5 + $0x48] sm:$0xff] %vm4691, %v4632
          %4702 = vst.msk [vmem:[#allocation5 + $0x50] sm:$0xff] %vm4691, %v4639
          %4703 = vst.msk [vmem:[#allocation5 + $0x58] sm:$0xff] %vm4691, %v4646
          %4704 = vst.msk [vmem:[#allocation5 + $0x60] sm:$0xff] %vm4691, %v4653
          %4705 = vst.msk [vmem:[#allocation5 + $0x68] sm:$0xff] %vm4691, %v4660
          %4706 = vst.msk [vmem:[#allocation5 + $0x70] sm:$0xff] %vm4691, %v4667
          %4707 = vst.msk [vmem:[#allocation5 + $0x78] sm:$0xff] %vm4691, %v4674
        $region85: #{attention_forward.4} parent=76 // pred_fallthru
          _
        %v4708 = vld [vmem:[%s368] sm:$0xf]
        %v4709 = vld [vmem:[%s368 + $0x4] sm:$0xf]
        %v4710 = vld [vmem:[%s368 + $0x8] sm:$0xf]
        %v4711 = vld [vmem:[%s368 + $0xc] sm:$0xf]
        %v4712 = vld [vmem:[%s368 + $0x10] sm:$0xf]
        %v4713 = vld [vmem:[%s368 + $0x14] sm:$0xf]
        %v4714 = vld [vmem:[%s368 + $0x18] sm:$0xf]
        %v4715 = vld [vmem:[%s368 + $0x1c] sm:$0xf]
        %v4718 = vunpack.c.l.b16 %v498
        %v4719 = vunpack.c.l.b16 %v499
        %v4720 = vpack.c.b16 %v4719, %v4718
        %vm4721 = vcmask 64512
        %v4723 = vsel %vm4721, %v4720, 0
        %v4726 = vsel %vm4721, %v4708, 0
        %4728 = vmatprep.subr.bf16.mxu0 0
        %4729 = vmatpush1.bf16.xpose.msra.mxu0 %v4726
        %4730 = vmatprep.subr.bf16.mxu0 0
        %4731 = vmatpush1.bf16.xpose.msra.mxu0 0
        %4732 = vmatprep.subr.bf16.mxu0 0
        %4733 = vmatpush1.bf16.xpose.msra.mxu0 0
        %4734 = vmatprep.subr.bf16.mxu0 0
        %4735 = vmatpush1.bf16.xpose.msra.mxu0 0
        %4736 = vmatprep.subr.bf16.mxu0 0
        %4737 = vmatpush1.bf16.xpose.msra.mxu0 0
        %4738 = vmatprep.subr.bf16.mxu0 0
        %4739 = vmatpush1.bf16.xpose.msra.mxu0 0
        %4740 = vmatprep.subr.bf16.mxu0 0
        %4741 = vmatpush1.bf16.xpose.msra.mxu0 0
        %4742 = vmatprep.subr.bf16.mxu0 0
        %4743 = vmatpush1.bf16.xpose.msra.mxu0 0
        %4744 = vmatprep.subr.bf16.mxu0 0
        %4745 = vmatpush1.bf16.xpose.msra.mxu0 0
        %4746 = vmatprep.subr.bf16.mxu0 0
        %4747 = vmatpush1.bf16.xpose.msra.mxu0 0
        %4748 = vmatprep.subr.bf16.mxu0 0
        %4749 = vmatpush1.bf16.xpose.msra.mxu0 0
        %4750 = vmatprep.subr.bf16.mxu0 0
        %4751 = vmatpush1.bf16.xpose.msra.mxu0 0
        %4752 = vmatprep.subr.bf16.mxu0 0
        %4753 = vmatpush1.bf16.xpose.msra.mxu0 0
        %4754 = vmatprep.subr.bf16.mxu0 0
        %4755 = vmatpush1.bf16.xpose.msra.mxu0 0
        %4756 = vmatprep.subr.bf16.mxu0 0
        %4757 = vmatpush1.bf16.xpose.msra.mxu0 0
        %4758 = vmatprep.subr.bf16.mxu0 0
        %4759 = vmatpush1.bf16.xpose.msra.mxu0 0
        %4760 = vmatprep.mubr.bf16.mxu0 0
        %4761 = vmatmul.mubr.bf16.gmra.mrb[0].mxu0 %v4723
        %v4762 = vpop.f32.mrb[0].mxu0
        %v4763 = vadd.f32 0.0, %v4762
        %v4764 = vpop.f32.mrb[0].mxu0
        %v4765 = vpop.f32.mrb[0].mxu0
        %v4766 = vadd.f32 0.0, %v4765
        %v4767 = vpop.f32.mrb[0].mxu0
        %4768 = vdwg.mxu0
        %v4771 = vunpack.c.l.b16 %v500
        %v4772 = vunpack.c.l.b16 %v501
        %v4773 = vpack.c.b16 %v4772, %v4771
        %v4775 = vsel %vm4721, %v4773, 0
        %v4778 = vsel %vm4721, %v4709, 0
        %4780 = vmatprep.subr.bf16.mxu0 0
        %4781 = vmatpush1.bf16.xpose.msra.mxu0 %v4778
        %4782 = vmatprep.subr.bf16.mxu0 0
        %4783 = vmatpush1.bf16.xpose.msra.mxu0 0
        %4784 = vmatprep.subr.bf16.mxu0 0
        %4785 = vmatpush1.bf16.xpose.msra.mxu0 0
        %4786 = vmatprep.subr.bf16.mxu0 0
        %4787 = vmatpush1.bf16.xpose.msra.mxu0 0
        %4788 = vmatprep.subr.bf16.mxu0 0
        %4789 = vmatpush1.bf16.xpose.msra.mxu0 0
        %4790 = vmatprep.subr.bf16.mxu0 0
        %4791 = vmatpush1.bf16.xpose.msra.mxu0 0
        %4792 = vmatprep.subr.bf16.mxu0 0
        %4793 = vmatpush1.bf16.xpose.msra.mxu0 0
        %4794 = vmatprep.subr.bf16.mxu0 0
        %4795 = vmatpush1.bf16.xpose.msra.mxu0 0
        %4796 = vmatprep.subr.bf16.mxu0 0
        %4797 = vmatpush1.bf16.xpose.msra.mxu0 0
        %4798 = vmatprep.subr.bf16.mxu0 0
        %4799 = vmatpush1.bf16.xpose.msra.mxu0 0
        %4800 = vmatprep.subr.bf16.mxu0 0
        %4801 = vmatpush1.bf16.xpose.msra.mxu0 0
        %4802 = vmatprep.subr.bf16.mxu0 0
        %4803 = vmatpush1.bf16.xpose.msra.mxu0 0
        %4804 = vmatprep.subr.bf16.mxu0 0
        %4805 = vmatpush1.bf16.xpose.msra.mxu0 0
        %4806 = vmatprep.subr.bf16.mxu0 0
        %4807 = vmatpush1.bf16.xpose.msra.mxu0 0
        %4808 = vmatprep.subr.bf16.mxu0 0
        %4809 = vmatpush1.bf16.xpose.msra.mxu0 0
        %4810 = vmatprep.subr.bf16.mxu0 0
        %4811 = vmatpush1.bf16.xpose.msra.mxu0 0
        %4812 = vmatprep.mubr.bf16.mxu0 0
        %4813 = vmatmul.mubr.bf16.gmra.mrb[0].mxu0 %v4775
        %v4814 = vpop.f32.mrb[0].mxu0
        %v4815 = vadd.f32 0.0, %v4814
        %v4816 = vpop.f32.mrb[0].mxu0
        %v4817 = vpop.f32.mrb[0].mxu0
        %v4818 = vadd.f32 0.0, %v4817
        %v4819 = vpop.f32.mrb[0].mxu0
        %4820 = vdwg.mxu0
        %v4823 = vunpack.c.l.b16 %v502
        %v4824 = vunpack.c.l.b16 %v503
        %v4825 = vpack.c.b16 %v4824, %v4823
        %v4827 = vsel %vm4721, %v4825, 0
        %v4830 = vsel %vm4721, %v4710, 0
        %4832 = vmatprep.subr.bf16.mxu0 0
        %4833 = vmatpush1.bf16.xpose.msra.mxu0 %v4830
        %4834 = vmatprep.subr.bf16.mxu0 0
        %4835 = vmatpush1.bf16.xpose.msra.mxu0 0
        %4836 = vmatprep.subr.bf16.mxu0 0
        %4837 = vmatpush1.bf16.xpose.msra.mxu0 0
        %4838 = vmatprep.subr.bf16.mxu0 0
        %4839 = vmatpush1.bf16.xpose.msra.mxu0 0
        %4840 = vmatprep.subr.bf16.mxu0 0
        %4841 = vmatpush1.bf16.xpose.msra.mxu0 0
        %4842 = vmatprep.subr.bf16.mxu0 0
        %4843 = vmatpush1.bf16.xpose.msra.mxu0 0
        %4844 = vmatprep.subr.bf16.mxu0 0
        %4845 = vmatpush1.bf16.xpose.msra.mxu0 0
        %4846 = vmatprep.subr.bf16.mxu0 0
        %4847 = vmatpush1.bf16.xpose.msra.mxu0 0
        %4848 = vmatprep.subr.bf16.mxu0 0
        %4849 = vmatpush1.bf16.xpose.msra.mxu0 0
        %4850 = vmatprep.subr.bf16.mxu0 0
        %4851 = vmatpush1.bf16.xpose.msra.mxu0 0
        %4852 = vmatprep.subr.bf16.mxu0 0
        %4853 = vmatpush1.bf16.xpose.msra.mxu0 0
        %4854 = vmatprep.subr.bf16.mxu0 0
        %4855 = vmatpush1.bf16.xpose.msra.mxu0 0
        %4856 = vmatprep.subr.bf16.mxu0 0
        %4857 = vmatpush1.bf16.xpose.msra.mxu0 0
        %4858 = vmatprep.subr.bf16.mxu0 0
        %4859 = vmatpush1.bf16.xpose.msra.mxu0 0
        %4860 = vmatprep.subr.bf16.mxu0 0
        %4861 = vmatpush1.bf16.xpose.msra.mxu0 0
        %4862 = vmatprep.subr.bf16.mxu0 0
        %4863 = vmatpush1.bf16.xpose.msra.mxu0 0
        %4864 = vmatprep.mubr.bf16.mxu0 0
        %4865 = vmatmul.mubr.bf16.gmra.mrb[0].mxu0 %v4827
        %v4866 = vpop.f32.mrb[0].mxu0
        %v4867 = vadd.f32 0.0, %v4866
        %v4868 = vpop.f32.mrb[0].mxu0
        %v4869 = vpop.f32.mrb[0].mxu0
        %v4870 = vadd.f32 0.0, %v4869
        %v4871 = vpop.f32.mrb[0].mxu0
        %4872 = vdwg.mxu0
        %v4875 = vunpack.c.l.b16 %v504
        %v4876 = vunpack.c.l.b16 %v505
        %v4877 = vpack.c.b16 %v4876, %v4875
        %v4879 = vsel %vm4721, %v4877, 0
        %v4882 = vsel %vm4721, %v4711, 0
        %4884 = vmatprep.subr.bf16.mxu0 0
        %4885 = vmatpush1.bf16.xpose.msra.mxu0 %v4882
        %4886 = vmatprep.subr.bf16.mxu0 0
        %4887 = vmatpush1.bf16.xpose.msra.mxu0 0
        %4888 = vmatprep.subr.bf16.mxu0 0
        %4889 = vmatpush1.bf16.xpose.msra.mxu0 0
        %4890 = vmatprep.subr.bf16.mxu0 0
        %4891 = vmatpush1.bf16.xpose.msra.mxu0 0
        %4892 = vmatprep.subr.bf16.mxu0 0
        %4893 = vmatpush1.bf16.xpose.msra.mxu0 0
        %4894 = vmatprep.subr.bf16.mxu0 0
        %4895 = vmatpush1.bf16.xpose.msra.mxu0 0
        %4896 = vmatprep.subr.bf16.mxu0 0
        %4897 = vmatpush1.bf16.xpose.msra.mxu0 0
        %4898 = vmatprep.subr.bf16.mxu0 0
        %4899 = vmatpush1.bf16.xpose.msra.mxu0 0
        %4900 = vmatprep.subr.bf16.mxu0 0
        %4901 = vmatpush1.bf16.xpose.msra.mxu0 0
        %4902 = vmatprep.subr.bf16.mxu0 0
        %4903 = vmatpush1.bf16.xpose.msra.mxu0 0
        %4904 = vmatprep.subr.bf16.mxu0 0
        %4905 = vmatpush1.bf16.xpose.msra.mxu0 0
        %4906 = vmatprep.subr.bf16.mxu0 0
        %4907 = vmatpush1.bf16.xpose.msra.mxu0 0
        %4908 = vmatprep.subr.bf16.mxu0 0
        %4909 = vmatpush1.bf16.xpose.msra.mxu0 0
        %4910 = vmatprep.subr.bf16.mxu0 0
        %4911 = vmatpush1.bf16.xpose.msra.mxu0 0
        %4912 = vmatprep.subr.bf16.mxu0 0
        %4913 = vmatpush1.bf16.xpose.msra.mxu0 0
        %4914 = vmatprep.subr.bf16.mxu0 0
        %4915 = vmatpush1.bf16.xpose.msra.mxu0 0
        %4916 = vmatprep.mubr.bf16.mxu0 0
        %4917 = vmatmul.mubr.bf16.gmra.mrb[0].mxu0 %v4879
        %v4918 = vpop.f32.mrb[0].mxu0
        %v4919 = vadd.f32 0.0, %v4918
        %v4920 = vpop.f32.mrb[0].mxu0
        %v4921 = vpop.f32.mrb[0].mxu0
        %v4922 = vadd.f32 0.0, %v4921
        %v4923 = vpop.f32.mrb[0].mxu0
        %4924 = vdwg.mxu0
        %v4927 = vunpack.c.l.b16 %v506
        %v4928 = vunpack.c.l.b16 %v507
        %v4929 = vpack.c.b16 %v4928, %v4927
        %v4931 = vsel %vm4721, %v4929, 0
        %v4934 = vsel %vm4721, %v4712, 0
        %4936 = vmatprep.subr.bf16.mxu0 0
        %4937 = vmatpush1.bf16.xpose.msra.mxu0 %v4934
        %4938 = vmatprep.subr.bf16.mxu0 0
        %4939 = vmatpush1.bf16.xpose.msra.mxu0 0
        %4940 = vmatprep.subr.bf16.mxu0 0
        %4941 = vmatpush1.bf16.xpose.msra.mxu0 0
        %4942 = vmatprep.subr.bf16.mxu0 0
        %4943 = vmatpush1.bf16.xpose.msra.mxu0 0
        %4944 = vmatprep.subr.bf16.mxu0 0
        %4945 = vmatpush1.bf16.xpose.msra.mxu0 0
        %4946 = vmatprep.subr.bf16.mxu0 0
        %4947 = vmatpush1.bf16.xpose.msra.mxu0 0
        %4948 = vmatprep.subr.bf16.mxu0 0
        %4949 = vmatpush1.bf16.xpose.msra.mxu0 0
        %4950 = vmatprep.subr.bf16.mxu0 0
        %4951 = vmatpush1.bf16.xpose.msra.mxu0 0
        %4952 = vmatprep.subr.bf16.mxu0 0
        %4953 = vmatpush1.bf16.xpose.msra.mxu0 0
        %4954 = vmatprep.subr.bf16.mxu0 0
        %4955 = vmatpush1.bf16.xpose.msra.mxu0 0
        %4956 = vmatprep.subr.bf16.mxu0 0
        %4957 = vmatpush1.bf16.xpose.msra.mxu0 0
        %4958 = vmatprep.subr.bf16.mxu0 0
        %4959 = vmatpush1.bf16.xpose.msra.mxu0 0
        %4960 = vmatprep.subr.bf16.mxu0 0
        %4961 = vmatpush1.bf16.xpose.msra.mxu0 0
        %4962 = vmatprep.subr.bf16.mxu0 0
        %4963 = vmatpush1.bf16.xpose.msra.mxu0 0
        %4964 = vmatprep.subr.bf16.mxu0 0
        %4965 = vmatpush1.bf16.xpose.msra.mxu0 0
        %4966 = vmatprep.subr.bf16.mxu0 0
        %4967 = vmatpush1.bf16.xpose.msra.mxu0 0
        %4968 = vmatprep.mubr.bf16.mxu0 0
        %4969 = vmatmul.mubr.bf16.gmra.mrb[0].mxu0 %v4931
        %v4970 = vpop.f32.mrb[0].mxu0
        %v4971 = vadd.f32 0.0, %v4970
        %v4972 = vpop.f32.mrb[0].mxu0
        %v4973 = vpop.f32.mrb[0].mxu0
        %v4974 = vadd.f32 0.0, %v4973
        %v4975 = vpop.f32.mrb[0].mxu0
        %4976 = vdwg.mxu0
        %v4979 = vunpack.c.l.b16 %v508
        %v4980 = vunpack.c.l.b16 %v509
        %v4981 = vpack.c.b16 %v4980, %v4979
        %v4983 = vsel %vm4721, %v4981, 0
        %v4986 = vsel %vm4721, %v4713, 0
        %4988 = vmatprep.subr.bf16.mxu0 0
        %4989 = vmatpush1.bf16.xpose.msra.mxu0 %v4986
        %4990 = vmatprep.subr.bf16.mxu0 0
        %4991 = vmatpush1.bf16.xpose.msra.mxu0 0
        %4992 = vmatprep.subr.bf16.mxu0 0
        %4993 = vmatpush1.bf16.xpose.msra.mxu0 0
        %4994 = vmatprep.subr.bf16.mxu0 0
        %4995 = vmatpush1.bf16.xpose.msra.mxu0 0
        %4996 = vmatprep.subr.bf16.mxu0 0
        %4997 = vmatpush1.bf16.xpose.msra.mxu0 0
        %4998 = vmatprep.subr.bf16.mxu0 0
        %4999 = vmatpush1.bf16.xpose.msra.mxu0 0
        %5000 = vmatprep.subr.bf16.mxu0 0
        %5001 = vmatpush1.bf16.xpose.msra.mxu0 0
        %5002 = vmatprep.subr.bf16.mxu0 0
        %5003 = vmatpush1.bf16.xpose.msra.mxu0 0
        %5004 = vmatprep.subr.bf16.mxu0 0
        %5005 = vmatpush1.bf16.xpose.msra.mxu0 0
        %5006 = vmatprep.subr.bf16.mxu0 0
        %5007 = vmatpush1.bf16.xpose.msra.mxu0 0
        %5008 = vmatprep.subr.bf16.mxu0 0
        %5009 = vmatpush1.bf16.xpose.msra.mxu0 0
        %5010 = vmatprep.subr.bf16.mxu0 0
        %5011 = vmatpush1.bf16.xpose.msra.mxu0 0
        %5012 = vmatprep.subr.bf16.mxu0 0
        %5013 = vmatpush1.bf16.xpose.msra.mxu0 0
        %5014 = vmatprep.subr.bf16.mxu0 0
        %5015 = vmatpush1.bf16.xpose.msra.mxu0 0
        %5016 = vmatprep.subr.bf16.mxu0 0
        %5017 = vmatpush1.bf16.xpose.msra.mxu0 0
        %5018 = vmatprep.subr.bf16.mxu0 0
        %5019 = vmatpush1.bf16.xpose.msra.mxu0 0
        %5020 = vmatprep.mubr.bf16.mxu0 0
        %5021 = vmatmul.mubr.bf16.gmra.mrb[0].mxu0 %v4983
        %v5022 = vpop.f32.mrb[0].mxu0
        %v5023 = vadd.f32 0.0, %v5022
        %v5024 = vpop.f32.mrb[0].mxu0
        %v5025 = vpop.f32.mrb[0].mxu0
        %v5026 = vadd.f32 0.0, %v5025
        %v5027 = vpop.f32.mrb[0].mxu0
        %5028 = vdwg.mxu0
        %v5031 = vunpack.c.l.b16 %v510
        %v5032 = vunpack.c.l.b16 %v511
        %v5033 = vpack.c.b16 %v5032, %v5031
        %v5035 = vsel %vm4721, %v5033, 0
        %v5038 = vsel %vm4721, %v4714, 0
        %5040 = vmatprep.subr.bf16.mxu0 0
        %5041 = vmatpush1.bf16.xpose.msra.mxu0 %v5038
        %5042 = vmatprep.subr.bf16.mxu0 0
        %5043 = vmatpush1.bf16.xpose.msra.mxu0 0
        %5044 = vmatprep.subr.bf16.mxu0 0
        %5045 = vmatpush1.bf16.xpose.msra.mxu0 0
        %5046 = vmatprep.subr.bf16.mxu0 0
        %5047 = vmatpush1.bf16.xpose.msra.mxu0 0
        %5048 = vmatprep.subr.bf16.mxu0 0
        %5049 = vmatpush1.bf16.xpose.msra.mxu0 0
        %5050 = vmatprep.subr.bf16.mxu0 0
        %5051 = vmatpush1.bf16.xpose.msra.mxu0 0
        %5052 = vmatprep.subr.bf16.mxu0 0
        %5053 = vmatpush1.bf16.xpose.msra.mxu0 0
        %5054 = vmatprep.subr.bf16.mxu0 0
        %5055 = vmatpush1.bf16.xpose.msra.mxu0 0
        %5056 = vmatprep.subr.bf16.mxu0 0
        %5057 = vmatpush1.bf16.xpose.msra.mxu0 0
        %5058 = vmatprep.subr.bf16.mxu0 0
        %5059 = vmatpush1.bf16.xpose.msra.mxu0 0
        %5060 = vmatprep.subr.bf16.mxu0 0
        %5061 = vmatpush1.bf16.xpose.msra.mxu0 0
        %5062 = vmatprep.subr.bf16.mxu0 0
        %5063 = vmatpush1.bf16.xpose.msra.mxu0 0
        %5064 = vmatprep.subr.bf16.mxu0 0
        %5065 = vmatpush1.bf16.xpose.msra.mxu0 0
        %5066 = vmatprep.subr.bf16.mxu0 0
        %5067 = vmatpush1.bf16.xpose.msra.mxu0 0
        %5068 = vmatprep.subr.bf16.mxu0 0
        %5069 = vmatpush1.bf16.xpose.msra.mxu0 0
        %5070 = vmatprep.subr.bf16.mxu0 0
        %5071 = vmatpush1.bf16.xpose.msra.mxu0 0
        %5072 = vmatprep.mubr.bf16.mxu0 0
        %5073 = vmatmul.mubr.bf16.gmra.mrb[0].mxu0 %v5035
        %v5074 = vpop.f32.mrb[0].mxu0
        %v5075 = vadd.f32 0.0, %v5074
        %v5076 = vpop.f32.mrb[0].mxu0
        %v5077 = vpop.f32.mrb[0].mxu0
        %v5078 = vadd.f32 0.0, %v5077
        %v5079 = vpop.f32.mrb[0].mxu0
        %5080 = vdwg.mxu0
        %v5083 = vunpack.c.l.b16 %v512
        %v5084 = vunpack.c.l.b16 %v513
        %v5085 = vpack.c.b16 %v5084, %v5083
        %v5087 = vsel %vm4721, %v5085, 0
        %v5090 = vsel %vm4721, %v4715, 0
        %5092 = vmatprep.subr.bf16.mxu0 0
        %5093 = vmatpush1.bf16.xpose.msra.mxu0 %v5090
        %5094 = vmatprep.subr.bf16.mxu0 0
        %5095 = vmatpush1.bf16.xpose.msra.mxu0 0
        %5096 = vmatprep.subr.bf16.mxu0 0
        %5097 = vmatpush1.bf16.xpose.msra.mxu0 0
        %5098 = vmatprep.subr.bf16.mxu0 0
        %5099 = vmatpush1.bf16.xpose.msra.mxu0 0
        %5100 = vmatprep.subr.bf16.mxu0 0
        %5101 = vmatpush1.bf16.xpose.msra.mxu0 0
        %5102 = vmatprep.subr.bf16.mxu0 0
        %5103 = vmatpush1.bf16.xpose.msra.mxu0 0
        %5104 = vmatprep.subr.bf16.mxu0 0
        %5105 = vmatpush1.bf16.xpose.msra.mxu0 0
        %5106 = vmatprep.subr.bf16.mxu0 0
        %5107 = vmatpush1.bf16.xpose.msra.mxu0 0
        %5108 = vmatprep.subr.bf16.mxu0 0
        %5109 = vmatpush1.bf16.xpose.msra.mxu0 0
        %5110 = vmatprep.subr.bf16.mxu0 0
        %5111 = vmatpush1.bf16.xpose.msra.mxu0 0
        %5112 = vmatprep.subr.bf16.mxu0 0
        %5113 = vmatpush1.bf16.xpose.msra.mxu0 0
        %5114 = vmatprep.subr.bf16.mxu0 0
        %5115 = vmatpush1.bf16.xpose.msra.mxu0 0
        %5116 = vmatprep.subr.bf16.mxu0 0
        %5117 = vmatpush1.bf16.xpose.msra.mxu0 0
        %5118 = vmatprep.subr.bf16.mxu0 0
        %5119 = vmatpush1.bf16.xpose.msra.mxu0 0
        %5120 = vmatprep.subr.bf16.mxu0 0
        %5121 = vmatpush1.bf16.xpose.msra.mxu0 0
        %5122 = vmatprep.subr.bf16.mxu0 0
        %5123 = vmatpush1.bf16.xpose.msra.mxu0 0
        %5124 = vmatprep.mubr.bf16.mxu0 0
        %5125 = vmatmul.mubr.bf16.gmra.mrb[0].mxu0 %v5087
        %v5126 = vpop.f32.mrb[0].mxu0
        %v5127 = vadd.f32 0.0, %v5126
        %v5128 = vpop.f32.mrb[0].mxu0
        %v5129 = vpop.f32.mrb[0].mxu0
        %v5130 = vadd.f32 0.0, %v5129
        %v5131 = vpop.f32.mrb[0].mxu0
        %5132 = vdwg.mxu0
        %v5133 = vunpack.c.l.bf16 %v498
        %v5134 = vunpack.c.l.bf16 %v499
        %v5135 = vunpack.c.l.bf16 %v500
        %v5136 = vunpack.c.l.bf16 %v501
        %v5137 = vunpack.c.l.bf16 %v502
        %v5138 = vunpack.c.l.bf16 %v503
        %v5139 = vunpack.c.l.bf16 %v504
        %v5140 = vunpack.c.l.bf16 %v505
        %v5141 = vunpack.c.l.bf16 %v506
        %v5142 = vunpack.c.l.bf16 %v507
        %v5143 = vunpack.c.l.bf16 %v508
        %v5144 = vunpack.c.l.bf16 %v509
        %v5145 = vunpack.c.l.bf16 %v510
        %v5146 = vunpack.c.l.bf16 %v511
        %v5147 = vunpack.c.l.bf16 %v512
        %v5148 = vunpack.c.l.bf16 %v513
        %v5149 = vmul.f32 %v5133, 0.35355338
        %v5150 = vmul.f32 %v5134, 0.35355338
        %v5151 = vmul.f32 %v5135, 0.35355338
        %v5152 = vmul.f32 %v5136, 0.35355338
        %v5153 = vmul.f32 %v5137, 0.35355338
        %v5154 = vmul.f32 %v5138, 0.35355338
        %v5155 = vmul.f32 %v5139, 0.35355338
        %v5156 = vmul.f32 %v5140, 0.35355338
        %v5157 = vmul.f32 %v5141, 0.35355338
        %v5158 = vmul.f32 %v5142, 0.35355338
        %v5159 = vmul.f32 %v5143, 0.35355338
        %v5160 = vmul.f32 %v5144, 0.35355338
        %v5161 = vmul.f32 %v5145, 0.35355338
        %v5162 = vmul.f32 %v5146, 0.35355338
        %v5163 = vmul.f32 %v5147, 0.35355338
        %v5164 = vmul.f32 %v5148, 0.35355338
        %v5165 = vpack.c.bf16 %v5150, %v5149
        %v5166 = vpack.c.bf16 %v5152, %v5151
        %v5167 = vpack.c.bf16 %v5154, %v5153
        %v5168 = vpack.c.bf16 %v5156, %v5155
        %v5169 = vpack.c.bf16 %v5158, %v5157
        %v5170 = vpack.c.bf16 %v5160, %v5159
        %v5171 = vpack.c.bf16 %v5162, %v5161
        %v5172 = vpack.c.bf16 %v5164, %v5163
        %v5173 = vld [vmem:[#allocation5] sm:$0xff]
        %v5174 = vld [vmem:[#allocation5 + $0x8] sm:$0xff]
        %v5175 = vld [vmem:[#allocation5 + $0x10] sm:$0xff]
        %v5176 = vld [vmem:[#allocation5 + $0x18] sm:$0xff]
        %v5177 = vld [vmem:[#allocation5 + $0x20] sm:$0xff]
        %v5178 = vld [vmem:[#allocation5 + $0x28] sm:$0xff]
        %v5179 = vld [vmem:[#allocation5 + $0x30] sm:$0xff]
        %v5180 = vld [vmem:[#allocation5 + $0x38] sm:$0xff]
        %v5181 = vld [vmem:[#allocation5 + $0x40] sm:$0xff]
        %v5182 = vld [vmem:[#allocation5 + $0x48] sm:$0xff]
        %v5183 = vld [vmem:[#allocation5 + $0x50] sm:$0xff]
        %v5184 = vld [vmem:[#allocation5 + $0x58] sm:$0xff]
        %v5185 = vld [vmem:[#allocation5 + $0x60] sm:$0xff]
        %v5186 = vld [vmem:[#allocation5 + $0x68] sm:$0xff]
        %v5187 = vld [vmem:[#allocation5 + $0x70] sm:$0xff]
        %v5188 = vld [vmem:[#allocation5 + $0x78] sm:$0xff]
        %5190 = vset.pattern.permute.xlu0 0
        %5191 = vperm.xlu0 %5190, %v4763
        %v5192 = vpop.permute.xlu0 %5191
        %5195 = vset.pattern.permute.xlu0 0
        %5196 = vperm.xlu0 %5195, %v4766
        %v5197 = vpop.permute.xlu0 %5196
        %5200 = vset.pattern.permute.xlu0 0
        %5201 = vperm.xlu0 %5200, %v4815
        %v5202 = vpop.permute.xlu0 %5201
        %5205 = vset.pattern.permute.xlu0 0
        %5206 = vperm.xlu0 %5205, %v4818
        %v5207 = vpop.permute.xlu0 %5206
        %5210 = vset.pattern.permute.xlu0 0
        %5211 = vperm.xlu0 %5210, %v4867
        %v5212 = vpop.permute.xlu0 %5211
        %5215 = vset.pattern.permute.xlu0 0
        %5216 = vperm.xlu0 %5215, %v4870
        %v5217 = vpop.permute.xlu0 %5216
        %5220 = vset.pattern.permute.xlu0 0
        %5221 = vperm.xlu0 %5220, %v4919
        %v5222 = vpop.permute.xlu0 %5221
        %5225 = vset.pattern.permute.xlu0 0
        %5226 = vperm.xlu0 %5225, %v4922
        %v5227 = vpop.permute.xlu0 %5226
        %5230 = vset.pattern.permute.xlu0 0
        %5231 = vperm.xlu0 %5230, %v4971
        %v5232 = vpop.permute.xlu0 %5231
        %5235 = vset.pattern.permute.xlu0 0
        %5236 = vperm.xlu0 %5235, %v4974
        %v5237 = vpop.permute.xlu0 %5236
        %5240 = vset.pattern.permute.xlu0 0
        %5241 = vperm.xlu0 %5240, %v5023
        %v5242 = vpop.permute.xlu0 %5241
        %5245 = vset.pattern.permute.xlu0 0
        %5246 = vperm.xlu0 %5245, %v5026
        %v5247 = vpop.permute.xlu0 %5246
        %5250 = vset.pattern.permute.xlu0 0
        %5251 = vperm.xlu0 %5250, %v5075
        %v5252 = vpop.permute.xlu0 %5251
        %5255 = vset.pattern.permute.xlu0 0
        %5256 = vperm.xlu0 %5255, %v5078
        %v5257 = vpop.permute.xlu0 %5256
        %5260 = vset.pattern.permute.xlu0 0
        %5261 = vperm.xlu0 %5260, %v5127
        %v5262 = vpop.permute.xlu0 %5261
        %5265 = vset.pattern.permute.xlu0 0
        %5266 = vperm.xlu0 %5265, %v5130
        %v5267 = vpop.permute.xlu0 %5266
        %v5269 = vadd.f32 %v5192, %v5173
        %v5270 = vadd.f32 %v5197, %v5174
        %v5271 = vadd.f32 %v5202, %v5175
        %v5272 = vadd.f32 %v5207, %v5176
        %v5273 = vadd.f32 %v5212, %v5177
        %v5274 = vadd.f32 %v5217, %v5178
        %v5275 = vadd.f32 %v5222, %v5179
        %v5276 = vadd.f32 %v5227, %v5180
        %v5277 = vadd.f32 %v5232, %v5181
        %v5278 = vadd.f32 %v5237, %v5182
        %v5279 = vadd.f32 %v5242, %v5183
        %v5280 = vadd.f32 %v5247, %v5184
        %v5281 = vadd.f32 %v5252, %v5185
        %v5282 = vadd.f32 %v5257, %v5186
        %v5283 = vadd.f32 %v5262, %v5187
        %v5284 = vadd.f32 %v5267, %v5188
        %5285 = vset.pattern.permute.xlu0 1
        %5286 = vperm.xlu0 %5285, %v4763
        %v5287 = vpop.permute.xlu0 %5286
        %5289 = vset.pattern.permute.xlu0 1
        %5290 = vperm.xlu0 %5289, %v4766
        %v5291 = vpop.permute.xlu0 %5290
        %5293 = vset.pattern.permute.xlu0 1
        %5294 = vperm.xlu0 %5293, %v4815
        %v5295 = vpop.permute.xlu0 %5294
        %5297 = vset.pattern.permute.xlu0 1
        %5298 = vperm.xlu0 %5297, %v4818
        %v5299 = vpop.permute.xlu0 %5298
        %5301 = vset.pattern.permute.xlu0 1
        %5302 = vperm.xlu0 %5301, %v4867
        %v5303 = vpop.permute.xlu0 %5302
        %5305 = vset.pattern.permute.xlu0 1
        %5306 = vperm.xlu0 %5305, %v4870
        %v5307 = vpop.permute.xlu0 %5306
        %5309 = vset.pattern.permute.xlu0 1
        %5310 = vperm.xlu0 %5309, %v4919
        %v5311 = vpop.permute.xlu0 %5310
        %5313 = vset.pattern.permute.xlu0 1
        %5314 = vperm.xlu0 %5313, %v4922
        %v5315 = vpop.permute.xlu0 %5314
        %5317 = vset.pattern.permute.xlu0 1
        %5318 = vperm.xlu0 %5317, %v4971
        %v5319 = vpop.permute.xlu0 %5318
        %5321 = vset.pattern.permute.xlu0 1
        %5322 = vperm.xlu0 %5321, %v4974
        %v5323 = vpop.permute.xlu0 %5322
        %5325 = vset.pattern.permute.xlu0 1
        %5326 = vperm.xlu0 %5325, %v5023
        %v5327 = vpop.permute.xlu0 %5326
        %5329 = vset.pattern.permute.xlu0 1
        %5330 = vperm.xlu0 %5329, %v5026
        %v5331 = vpop.permute.xlu0 %5330
        %5333 = vset.pattern.permute.xlu0 1
        %5334 = vperm.xlu0 %5333, %v5075
        %v5335 = vpop.permute.xlu0 %5334
        %5337 = vset.pattern.permute.xlu0 1
        %5338 = vperm.xlu0 %5337, %v5078
        %v5339 = vpop.permute.xlu0 %5338
        %5341 = vset.pattern.permute.xlu0 1
        %5342 = vperm.xlu0 %5341, %v5127
        %v5343 = vpop.permute.xlu0 %5342
        %5345 = vset.pattern.permute.xlu0 1
        %5346 = vperm.xlu0 %5345, %v5130
        %v5347 = vpop.permute.xlu0 %5346
        %v5349 = vadd.f32 %v5287, %v5173
        %v5350 = vadd.f32 %v5291, %v5174
        %v5351 = vadd.f32 %v5295, %v5175
        %v5352 = vadd.f32 %v5299, %v5176
        %v5353 = vadd.f32 %v5303, %v5177
        %v5354 = vadd.f32 %v5307, %v5178
        %v5355 = vadd.f32 %v5311, %v5179
        %v5356 = vadd.f32 %v5315, %v5180
        %v5357 = vadd.f32 %v5319, %v5181
        %v5358 = vadd.f32 %v5323, %v5182
        %v5359 = vadd.f32 %v5327, %v5183
        %v5360 = vadd.f32 %v5331, %v5184
        %v5361 = vadd.f32 %v5335, %v5185
        %v5362 = vadd.f32 %v5339, %v5186
        %v5363 = vadd.f32 %v5343, %v5187
        %v5364 = vadd.f32 %v5347, %v5188
        %5365 = vset.pattern.permute.xlu0 2
        %5366 = vperm.xlu0 %5365, %v4763
        %v5367 = vpop.permute.xlu0 %5366
        %5369 = vset.pattern.permute.xlu0 2
        %5370 = vperm.xlu0 %5369, %v4766
        %v5371 = vpop.permute.xlu0 %5370
        %5373 = vset.pattern.permute.xlu0 2
        %5374 = vperm.xlu0 %5373, %v4815
        %v5375 = vpop.permute.xlu0 %5374
        %5377 = vset.pattern.permute.xlu0 2
        %5378 = vperm.xlu0 %5377, %v4818
        %v5379 = vpop.permute.xlu0 %5378
        %5381 = vset.pattern.permute.xlu0 2
        %5382 = vperm.xlu0 %5381, %v4867
        %v5383 = vpop.permute.xlu0 %5382
        %5385 = vset.pattern.permute.xlu0 2
        %5386 = vperm.xlu0 %5385, %v4870
        %v5387 = vpop.permute.xlu0 %5386
        %5389 = vset.pattern.permute.xlu0 2
        %5390 = vperm.xlu0 %5389, %v4919
        %v5391 = vpop.permute.xlu0 %5390
        %5393 = vset.pattern.permute.xlu0 2
        %5394 = vperm.xlu0 %5393, %v4922
        %v5395 = vpop.permute.xlu0 %5394
        %5397 = vset.pattern.permute.xlu0 2
        %5398 = vperm.xlu0 %5397, %v4971
        %v5399 = vpop.permute.xlu0 %5398
        %5401 = vset.pattern.permute.xlu0 2
        %5402 = vperm.xlu0 %5401, %v4974
        %v5403 = vpop.permute.xlu0 %5402
        %5405 = vset.pattern.permute.xlu0 2
        %5406 = vperm.xlu0 %5405, %v5023
        %v5407 = vpop.permute.xlu0 %5406
        %5409 = vset.pattern.permute.xlu0 2
        %5410 = vperm.xlu0 %5409, %v5026
        %v5411 = vpop.permute.xlu0 %5410
        %5413 = vset.pattern.permute.xlu0 2
        %5414 = vperm.xlu0 %5413, %v5075
        %v5415 = vpop.permute.xlu0 %5414
        %5417 = vset.pattern.permute.xlu0 2
        %5418 = vperm.xlu0 %5417, %v5078
        %v5419 = vpop.permute.xlu0 %5418
        %5421 = vset.pattern.permute.xlu0 2
        %5422 = vperm.xlu0 %5421, %v5127
        %v5423 = vpop.permute.xlu0 %5422
        %5425 = vset.pattern.permute.xlu0 2
        %5426 = vperm.xlu0 %5425, %v5130
        %v5427 = vpop.permute.xlu0 %5426
        %v5429 = vadd.f32 %v5367, %v5173
        %v5430 = vadd.f32 %v5371, %v5174
        %v5431 = vadd.f32 %v5375, %v5175
        %v5432 = vadd.f32 %v5379, %v5176
        %v5433 = vadd.f32 %v5383, %v5177
        %v5434 = vadd.f32 %v5387, %v5178
        %v5435 = vadd.f32 %v5391, %v5179
        %v5436 = vadd.f32 %v5395, %v5180
        %v5437 = vadd.f32 %v5399, %v5181
        %v5438 = vadd.f32 %v5403, %v5182
        %v5439 = vadd.f32 %v5407, %v5183
        %v5440 = vadd.f32 %v5411, %v5184
        %v5441 = vadd.f32 %v5415, %v5185
        %v5442 = vadd.f32 %v5419, %v5186
        %v5443 = vadd.f32 %v5423, %v5187
        %v5444 = vadd.f32 %v5427, %v5188
        %5445 = vset.pattern.permute.xlu0 3
        %5446 = vperm.xlu0 %5445, %v4763
        %v5447 = vpop.permute.xlu0 %5446
        %5449 = vset.pattern.permute.xlu0 3
        %5450 = vperm.xlu0 %5449, %v4766
        %v5451 = vpop.permute.xlu0 %5450
        %5453 = vset.pattern.permute.xlu0 3
        %5454 = vperm.xlu0 %5453, %v4815
        %v5455 = vpop.permute.xlu0 %5454
        %5457 = vset.pattern.permute.xlu0 3
        %5458 = vperm.xlu0 %5457, %v4818
        %v5459 = vpop.permute.xlu0 %5458
        %5461 = vset.pattern.permute.xlu0 3
        %5462 = vperm.xlu0 %5461, %v4867
        %v5463 = vpop.permute.xlu0 %5462
        %5465 = vset.pattern.permute.xlu0 3
        %5466 = vperm.xlu0 %5465, %v4870
        %v5467 = vpop.permute.xlu0 %5466
        %5469 = vset.pattern.permute.xlu0 3
        %5470 = vperm.xlu0 %5469, %v4919
        %v5471 = vpop.permute.xlu0 %5470
        %5473 = vset.pattern.permute.xlu0 3
        %5474 = vperm.xlu0 %5473, %v4922
        %v5475 = vpop.permute.xlu0 %5474
        %5477 = vset.pattern.permute.xlu0 3
        %5478 = vperm.xlu0 %5477, %v4971
        %v5479 = vpop.permute.xlu0 %5478
        %5481 = vset.pattern.permute.xlu0 3
        %5482 = vperm.xlu0 %5481, %v4974
        %v5483 = vpop.permute.xlu0 %5482
        %5485 = vset.pattern.permute.xlu0 3
        %5486 = vperm.xlu0 %5485, %v5023
        %v5487 = vpop.permute.xlu0 %5486
        %5489 = vset.pattern.permute.xlu0 3
        %5490 = vperm.xlu0 %5489, %v5026
        %v5491 = vpop.permute.xlu0 %5490
        %5493 = vset.pattern.permute.xlu0 3
        %5494 = vperm.xlu0 %5493, %v5075
        %v5495 = vpop.permute.xlu0 %5494
        %5497 = vset.pattern.permute.xlu0 3
        %5498 = vperm.xlu0 %5497, %v5078
        %v5499 = vpop.permute.xlu0 %5498
        %5501 = vset.pattern.permute.xlu0 3
        %5502 = vperm.xlu0 %5501, %v5127
        %v5503 = vpop.permute.xlu0 %5502
        %5505 = vset.pattern.permute.xlu0 3
        %5506 = vperm.xlu0 %5505, %v5130
        %v5507 = vpop.permute.xlu0 %5506
        %v5509 = vadd.f32 %v5447, %v5173
        %v5510 = vadd.f32 %v5451, %v5174
        %v5511 = vadd.f32 %v5455, %v5175
        %v5512 = vadd.f32 %v5459, %v5176
        %v5513 = vadd.f32 %v5463, %v5177
        %v5514 = vadd.f32 %v5467, %v5178
        %v5515 = vadd.f32 %v5471, %v5179
        %v5516 = vadd.f32 %v5475, %v5180
        %v5517 = vadd.f32 %v5479, %v5181
        %v5518 = vadd.f32 %v5483, %v5182
        %v5519 = vadd.f32 %v5487, %v5183
        %v5520 = vadd.f32 %v5491, %v5184
        %v5521 = vadd.f32 %v5495, %v5185
        %v5522 = vadd.f32 %v5499, %v5186
        %v5523 = vadd.f32 %v5503, %v5187
        %v5524 = vadd.f32 %v5507, %v5188
        %5525 = vset.pattern.permute.xlu0 4
        %5526 = vperm.xlu0 %5525, %v4763
        %v5527 = vpop.permute.xlu0 %5526
        %5529 = vset.pattern.permute.xlu0 4
        %5530 = vperm.xlu0 %5529, %v4766
        %v5531 = vpop.permute.xlu0 %5530
        %5533 = vset.pattern.permute.xlu0 4
        %5534 = vperm.xlu0 %5533, %v4815
        %v5535 = vpop.permute.xlu0 %5534
        %5537 = vset.pattern.permute.xlu0 4
        %5538 = vperm.xlu0 %5537, %v4818
        %v5539 = vpop.permute.xlu0 %5538
        %5541 = vset.pattern.permute.xlu0 4
        %5542 = vperm.xlu0 %5541, %v4867
        %v5543 = vpop.permute.xlu0 %5542
        %5545 = vset.pattern.permute.xlu0 4
        %5546 = vperm.xlu0 %5545, %v4870
        %v5547 = vpop.permute.xlu0 %5546
        %5549 = vset.pattern.permute.xlu0 4
        %5550 = vperm.xlu0 %5549, %v4919
        %v5551 = vpop.permute.xlu0 %5550
        %5553 = vset.pattern.permute.xlu0 4
        %5554 = vperm.xlu0 %5553, %v4922
        %v5555 = vpop.permute.xlu0 %5554
        %5557 = vset.pattern.permute.xlu0 4
        %5558 = vperm.xlu0 %5557, %v4971
        %v5559 = vpop.permute.xlu0 %5558
        %5561 = vset.pattern.permute.xlu0 4
        %5562 = vperm.xlu0 %5561, %v4974
        %v5563 = vpop.permute.xlu0 %5562
        %5565 = vset.pattern.permute.xlu0 4
        %5566 = vperm.xlu0 %5565, %v5023
        %v5567 = vpop.permute.xlu0 %5566
        %5569 = vset.pattern.permute.xlu0 4
        %5570 = vperm.xlu0 %5569, %v5026
        %v5571 = vpop.permute.xlu0 %5570
        %5573 = vset.pattern.permute.xlu0 4
        %5574 = vperm.xlu0 %5573, %v5075
        %v5575 = vpop.permute.xlu0 %5574
        %5577 = vset.pattern.permute.xlu0 4
        %5578 = vperm.xlu0 %5577, %v5078
        %v5579 = vpop.permute.xlu0 %5578
        %5581 = vset.pattern.permute.xlu0 4
        %5582 = vperm.xlu0 %5581, %v5127
        %v5583 = vpop.permute.xlu0 %5582
        %5585 = vset.pattern.permute.xlu0 4
        %5586 = vperm.xlu0 %5585, %v5130
        %v5587 = vpop.permute.xlu0 %5586
        %v5589 = vadd.f32 %v5527, %v5173
        %v5590 = vadd.f32 %v5531, %v5174
        %v5591 = vadd.f32 %v5535, %v5175
        %v5592 = vadd.f32 %v5539, %v5176
        %v5593 = vadd.f32 %v5543, %v5177
        %v5594 = vadd.f32 %v5547, %v5178
        %v5595 = vadd.f32 %v5551, %v5179
        %v5596 = vadd.f32 %v5555, %v5180
        %v5597 = vadd.f32 %v5559, %v5181
        %v5598 = vadd.f32 %v5563, %v5182
        %v5599 = vadd.f32 %v5567, %v5183
        %v5600 = vadd.f32 %v5571, %v5184
        %v5601 = vadd.f32 %v5575, %v5185
        %v5602 = vadd.f32 %v5579, %v5186
        %v5603 = vadd.f32 %v5583, %v5187
        %v5604 = vadd.f32 %v5587, %v5188
        %5605 = vset.pattern.permute.xlu0 5
        %5606 = vperm.xlu0 %5605, %v4763
        %v5607 = vpop.permute.xlu0 %5606
        %5609 = vset.pattern.permute.xlu0 5
        %5610 = vperm.xlu0 %5609, %v4766
        %v5611 = vpop.permute.xlu0 %5610
        %5613 = vset.pattern.permute.xlu0 5
        %5614 = vperm.xlu0 %5613, %v4815
        %v5615 = vpop.permute.xlu0 %5614
        %5617 = vset.pattern.permute.xlu0 5
        %5618 = vperm.xlu0 %5617, %v4818
        %v5619 = vpop.permute.xlu0 %5618
        %5621 = vset.pattern.permute.xlu0 5
        %5622 = vperm.xlu0 %5621, %v4867
        %v5623 = vpop.permute.xlu0 %5622
        %5625 = vset.pattern.permute.xlu0 5
        %5626 = vperm.xlu0 %5625, %v4870
        %v5627 = vpop.permute.xlu0 %5626
        %5629 = vset.pattern.permute.xlu0 5
        %5630 = vperm.xlu0 %5629, %v4919
        %v5631 = vpop.permute.xlu0 %5630
        %5633 = vset.pattern.permute.xlu0 5
        %5634 = vperm.xlu0 %5633, %v4922
        %v5635 = vpop.permute.xlu0 %5634
        %5637 = vset.pattern.permute.xlu0 5
        %5638 = vperm.xlu0 %5637, %v4971
        %v5639 = vpop.permute.xlu0 %5638
        %5641 = vset.pattern.permute.xlu0 5
        %5642 = vperm.xlu0 %5641, %v4974
        %v5643 = vpop.permute.xlu0 %5642
        %5645 = vset.pattern.permute.xlu0 5
        %5646 = vperm.xlu0 %5645, %v5023
        %v5647 = vpop.permute.xlu0 %5646
        %5649 = vset.pattern.permute.xlu0 5
        %5650 = vperm.xlu0 %5649, %v5026
        %v5651 = vpop.permute.xlu0 %5650
        %5653 = vset.pattern.permute.xlu0 5
        %5654 = vperm.xlu0 %5653, %v5075
        %v5655 = vpop.permute.xlu0 %5654
        %5657 = vset.pattern.permute.xlu0 5
        %5658 = vperm.xlu0 %5657, %v5078
        %v5659 = vpop.permute.xlu0 %5658
        %5661 = vset.pattern.permute.xlu0 5
        %5662 = vperm.xlu0 %5661, %v5127
        %v5663 = vpop.permute.xlu0 %5662
        %5665 = vset.pattern.permute.xlu0 5
        %5666 = vperm.xlu0 %5665, %v5130
        %v5667 = vpop.permute.xlu0 %5666
        %v5669 = vadd.f32 %v5607, %v5173
        %v5670 = vadd.f32 %v5611, %v5174
        %v5671 = vadd.f32 %v5615, %v5175
        %v5672 = vadd.f32 %v5619, %v5176
        %v5673 = vadd.f32 %v5623, %v5177
        %v5674 = vadd.f32 %v5627, %v5178
        %v5675 = vadd.f32 %v5631, %v5179
        %v5676 = vadd.f32 %v5635, %v5180
        %v5677 = vadd.f32 %v5639, %v5181
        %v5678 = vadd.f32 %v5643, %v5182
        %v5679 = vadd.f32 %v5647, %v5183
        %v5680 = vadd.f32 %v5651, %v5184
        %v5681 = vadd.f32 %v5655, %v5185
        %v5682 = vadd.f32 %v5659, %v5186
        %v5683 = vadd.f32 %v5663, %v5187
        %v5684 = vadd.f32 %v5667, %v5188
        %5685 = vset.pattern.permute.xlu0 6
        %5686 = vperm.xlu0 %5685, %v4763
        %v5687 = vpop.permute.xlu0 %5686
        %5689 = vset.pattern.permute.xlu0 6
        %5690 = vperm.xlu0 %5689, %v4766
        %v5691 = vpop.permute.xlu0 %5690
        %5693 = vset.pattern.permute.xlu0 6
        %5694 = vperm.xlu0 %5693, %v4815
        %v5695 = vpop.permute.xlu0 %5694
        %5697 = vset.pattern.permute.xlu0 6
        %5698 = vperm.xlu0 %5697, %v4818
        %v5699 = vpop.permute.xlu0 %5698
        %5701 = vset.pattern.permute.xlu0 6
        %5702 = vperm.xlu0 %5701, %v4867
        %v5703 = vpop.permute.xlu0 %5702
        %5705 = vset.pattern.permute.xlu0 6
        %5706 = vperm.xlu0 %5705, %v4870
        %v5707 = vpop.permute.xlu0 %5706
        %5709 = vset.pattern.permute.xlu0 6
        %5710 = vperm.xlu0 %5709, %v4919
        %v5711 = vpop.permute.xlu0 %5710
        %5713 = vset.pattern.permute.xlu0 6
        %5714 = vperm.xlu0 %5713, %v4922
        %v5715 = vpop.permute.xlu0 %5714
        %5717 = vset.pattern.permute.xlu0 6
        %5718 = vperm.xlu0 %5717, %v4971
        %v5719 = vpop.permute.xlu0 %5718
        %5721 = vset.pattern.permute.xlu0 6
        %5722 = vperm.xlu0 %5721, %v4974
        %v5723 = vpop.permute.xlu0 %5722
        %5725 = vset.pattern.permute.xlu0 6
        %5726 = vperm.xlu0 %5725, %v5023
        %v5727 = vpop.permute.xlu0 %5726
        %5729 = vset.pattern.permute.xlu0 6
        %5730 = vperm.xlu0 %5729, %v5026
        %v5731 = vpop.permute.xlu0 %5730
        %5733 = vset.pattern.permute.xlu0 6
        %5734 = vperm.xlu0 %5733, %v5075
        %v5735 = vpop.permute.xlu0 %5734
        %5737 = vset.pattern.permute.xlu0 6
        %5738 = vperm.xlu0 %5737, %v5078
        %v5739 = vpop.permute.xlu0 %5738
        %5741 = vset.pattern.permute.xlu0 6
        %5742 = vperm.xlu0 %5741, %v5127
        %v5743 = vpop.permute.xlu0 %5742
        %5745 = vset.pattern.permute.xlu0 6
        %5746 = vperm.xlu0 %5745, %v5130
        %v5747 = vpop.permute.xlu0 %5746
        %v5749 = vadd.f32 %v5687, %v5173
        %v5750 = vadd.f32 %v5691, %v5174
        %v5751 = vadd.f32 %v5695, %v5175
        %v5752 = vadd.f32 %v5699, %v5176
        %v5753 = vadd.f32 %v5703, %v5177
        %v5754 = vadd.f32 %v5707, %v5178
        %v5755 = vadd.f32 %v5711, %v5179
        %v5756 = vadd.f32 %v5715, %v5180
        %v5757 = vadd.f32 %v5719, %v5181
        %v5758 = vadd.f32 %v5723, %v5182
        %v5759 = vadd.f32 %v5727, %v5183
        %v5760 = vadd.f32 %v5731, %v5184
        %v5761 = vadd.f32 %v5735, %v5185
        %v5762 = vadd.f32 %v5739, %v5186
        %v5763 = vadd.f32 %v5743, %v5187
        %v5764 = vadd.f32 %v5747, %v5188
        %5765 = vset.pattern.permute.xlu0 7
        %5766 = vperm.xlu0 %5765, %v4763
        %v5767 = vpop.permute.xlu0 %5766
        %5769 = vset.pattern.permute.xlu0 7
        %5770 = vperm.xlu0 %5769, %v4766
        %v5771 = vpop.permute.xlu0 %5770
        %5773 = vset.pattern.permute.xlu0 7
        %5774 = vperm.xlu0 %5773, %v4815
        %v5775 = vpop.permute.xlu0 %5774
        %5777 = vset.pattern.permute.xlu0 7
        %5778 = vperm.xlu0 %5777, %v4818
        %v5779 = vpop.permute.xlu0 %5778
        %5781 = vset.pattern.permute.xlu0 7
        %5782 = vperm.xlu0 %5781, %v4867
        %v5783 = vpop.permute.xlu0 %5782
        %5785 = vset.pattern.permute.xlu0 7
        %5786 = vperm.xlu0 %5785, %v4870
        %v5787 = vpop.permute.xlu0 %5786
        %5789 = vset.pattern.permute.xlu0 7
        %5790 = vperm.xlu0 %5789, %v4919
        %v5791 = vpop.permute.xlu0 %5790
        %5793 = vset.pattern.permute.xlu0 7
        %5794 = vperm.xlu0 %5793, %v4922
        %v5795 = vpop.permute.xlu0 %5794
        %5797 = vset.pattern.permute.xlu0 7
        %5798 = vperm.xlu0 %5797, %v4971
        %v5799 = vpop.permute.xlu0 %5798
        %5801 = vset.pattern.permute.xlu0 7
        %5802 = vperm.xlu0 %5801, %v4974
        %v5803 = vpop.permute.xlu0 %5802
        %5805 = vset.pattern.permute.xlu0 7
        %5806 = vperm.xlu0 %5805, %v5023
        %v5807 = vpop.permute.xlu0 %5806
        %5809 = vset.pattern.permute.xlu0 7
        %5810 = vperm.xlu0 %5809, %v5026
        %v5811 = vpop.permute.xlu0 %5810
        %5813 = vset.pattern.permute.xlu0 7
        %5814 = vperm.xlu0 %5813, %v5075
        %v5815 = vpop.permute.xlu0 %5814
        %5817 = vset.pattern.permute.xlu0 7
        %5818 = vperm.xlu0 %5817, %v5078
        %v5819 = vpop.permute.xlu0 %5818
        %5821 = vset.pattern.permute.xlu0 7
        %5822 = vperm.xlu0 %5821, %v5127
        %v5823 = vpop.permute.xlu0 %5822
        %5825 = vset.pattern.permute.xlu0 7
        %5826 = vperm.xlu0 %5825, %v5130
        %v5827 = vpop.permute.xlu0 %5826
        %v5829 = vadd.f32 %v5767, %v5173
        %v5830 = vadd.f32 %v5771, %v5174
        %v5831 = vadd.f32 %v5775, %v5175
        %v5832 = vadd.f32 %v5779, %v5176
        %v5833 = vadd.f32 %v5783, %v5177
        %v5834 = vadd.f32 %v5787, %v5178
        %v5835 = vadd.f32 %v5791, %v5179
        %v5836 = vadd.f32 %v5795, %v5180
        %v5837 = vadd.f32 %v5799, %v5181
        %v5838 = vadd.f32 %v5803, %v5182
        %v5839 = vadd.f32 %v5807, %v5183
        %v5840 = vadd.f32 %v5811, %v5184
        %v5841 = vadd.f32 %v5815, %v5185
        %v5842 = vadd.f32 %v5819, %v5186
        %v5843 = vadd.f32 %v5823, %v5187
        %v5844 = vadd.f32 %v5827, %v5188
        %5861 = vrot.lane.b32.xlu0 %v5349, 16
        %v5862 = vpop.permute.xlu0 %5861
        %5863 = vrot.lane.b32.xlu0 %v5350, 16
        %v5864 = vpop.permute.xlu0 %5863
        %5865 = vrot.lane.b32.xlu0 %v5351, 16
        %v5866 = vpop.permute.xlu0 %5865
        %5867 = vrot.lane.b32.xlu0 %v5352, 16
        %v5868 = vpop.permute.xlu0 %5867
        %5869 = vrot.lane.b32.xlu0 %v5353, 16
        %v5870 = vpop.permute.xlu0 %5869
        %5871 = vrot.lane.b32.xlu0 %v5354, 16
        %v5872 = vpop.permute.xlu0 %5871
        %5873 = vrot.lane.b32.xlu0 %v5355, 16
        %v5874 = vpop.permute.xlu0 %5873
        %5875 = vrot.lane.b32.xlu0 %v5356, 16
        %v5876 = vpop.permute.xlu0 %5875
        %5877 = vrot.lane.b32.xlu0 %v5357, 16
        %v5878 = vpop.permute.xlu0 %5877
        %5879 = vrot.lane.b32.xlu0 %v5358, 16
        %v5880 = vpop.permute.xlu0 %5879
        %5881 = vrot.lane.b32.xlu0 %v5359, 16
        %v5882 = vpop.permute.xlu0 %5881
        %5883 = vrot.lane.b32.xlu0 %v5360, 16
        %v5884 = vpop.permute.xlu0 %5883
        %5885 = vrot.lane.b32.xlu0 %v5361, 16
        %v5886 = vpop.permute.xlu0 %5885
        %5887 = vrot.lane.b32.xlu0 %v5362, 16
        %v5888 = vpop.permute.xlu0 %5887
        %5889 = vrot.lane.b32.xlu0 %v5363, 16
        %v5890 = vpop.permute.xlu0 %5889
        %5891 = vrot.lane.b32.xlu0 %v5364, 16
        %v5892 = vpop.permute.xlu0 %5891
        %5925 = vrot.lane.b32.xlu0 %v5429, 32
        %v5926 = vpop.permute.xlu0 %5925
        %5927 = vrot.lane.b32.xlu0 %v5430, 32
        %v5928 = vpop.permute.xlu0 %5927
        %5929 = vrot.lane.b32.xlu0 %v5431, 32
        %v5930 = vpop.permute.xlu0 %5929
        %5931 = vrot.lane.b32.xlu0 %v5432, 32
        %v5932 = vpop.permute.xlu0 %5931
        %5933 = vrot.lane.b32.xlu0 %v5433, 32
        %v5934 = vpop.permute.xlu0 %5933
        %5935 = vrot.lane.b32.xlu0 %v5434, 32
        %v5936 = vpop.permute.xlu0 %5935
        %5937 = vrot.lane.b32.xlu0 %v5435, 32
        %v5938 = vpop.permute.xlu0 %5937
        %5939 = vrot.lane.b32.xlu0 %v5436, 32
        %v5940 = vpop.permute.xlu0 %5939
        %5941 = vrot.lane.b32.xlu0 %v5437, 32
        %v5942 = vpop.permute.xlu0 %5941
        %5943 = vrot.lane.b32.xlu0 %v5438, 32
        %v5944 = vpop.permute.xlu0 %5943
        %5945 = vrot.lane.b32.xlu0 %v5439, 32
        %v5946 = vpop.permute.xlu0 %5945
        %5947 = vrot.lane.b32.xlu0 %v5440, 32
        %v5948 = vpop.permute.xlu0 %5947
        %5949 = vrot.lane.b32.xlu0 %v5441, 32
        %v5950 = vpop.permute.xlu0 %5949
        %5951 = vrot.lane.b32.xlu0 %v5442, 32
        %v5952 = vpop.permute.xlu0 %5951
        %5953 = vrot.lane.b32.xlu0 %v5443, 32
        %v5954 = vpop.permute.xlu0 %5953
        %5955 = vrot.lane.b32.xlu0 %v5444, 32
        %v5956 = vpop.permute.xlu0 %5955
        %5989 = vrot.lane.b32.xlu0 %v5509, 48
        %v5990 = vpop.permute.xlu0 %5989
        %5991 = vrot.lane.b32.xlu0 %v5510, 48
        %v5992 = vpop.permute.xlu0 %5991
        %5993 = vrot.lane.b32.xlu0 %v5511, 48
        %v5994 = vpop.permute.xlu0 %5993
        %5995 = vrot.lane.b32.xlu0 %v5512, 48
        %v5996 = vpop.permute.xlu0 %5995
        %5997 = vrot.lane.b32.xlu0 %v5513, 48
        %v5998 = vpop.permute.xlu0 %5997
        %5999 = vrot.lane.b32.xlu0 %v5514, 48
        %v6000 = vpop.permute.xlu0 %5999
        %6001 = vrot.lane.b32.xlu0 %v5515, 48
        %v6002 = vpop.permute.xlu0 %6001
        %6003 = vrot.lane.b32.xlu0 %v5516, 48
        %v6004 = vpop.permute.xlu0 %6003
        %6005 = vrot.lane.b32.xlu0 %v5517, 48
        %v6006 = vpop.permute.xlu0 %6005
        %6007 = vrot.lane.b32.xlu0 %v5518, 48
        %v6008 = vpop.permute.xlu0 %6007
        %6009 = vrot.lane.b32.xlu0 %v5519, 48
        %v6010 = vpop.permute.xlu0 %6009
        %6011 = vrot.lane.b32.xlu0 %v5520, 48
        %v6012 = vpop.permute.xlu0 %6011
        %6013 = vrot.lane.b32.xlu0 %v5521, 48
        %v6014 = vpop.permute.xlu0 %6013
        %6015 = vrot.lane.b32.xlu0 %v5522, 48
        %v6016 = vpop.permute.xlu0 %6015
        %6017 = vrot.lane.b32.xlu0 %v5523, 48
        %v6018 = vpop.permute.xlu0 %6017
        %6019 = vrot.lane.b32.xlu0 %v5524, 48
        %v6020 = vpop.permute.xlu0 %6019
        %6053 = vrot.lane.b32.xlu0 %v5589, 64
        %v6054 = vpop.permute.xlu0 %6053
        %6055 = vrot.lane.b32.xlu0 %v5590, 64
        %v6056 = vpop.permute.xlu0 %6055
        %6057 = vrot.lane.b32.xlu0 %v5591, 64
        %v6058 = vpop.permute.xlu0 %6057
        %6059 = vrot.lane.b32.xlu0 %v5592, 64
        %v6060 = vpop.permute.xlu0 %6059
        %6061 = vrot.lane.b32.xlu0 %v5593, 64
        %v6062 = vpop.permute.xlu0 %6061
        %6063 = vrot.lane.b32.xlu0 %v5594, 64
        %v6064 = vpop.permute.xlu0 %6063
        %6065 = vrot.lane.b32.xlu0 %v5595, 64
        %v6066 = vpop.permute.xlu0 %6065
        %6067 = vrot.lane.b32.xlu0 %v5596, 64
        %v6068 = vpop.permute.xlu0 %6067
        %6069 = vrot.lane.b32.xlu0 %v5597, 64
        %v6070 = vpop.permute.xlu0 %6069
        %6071 = vrot.lane.b32.xlu0 %v5598, 64
        %v6072 = vpop.permute.xlu0 %6071
        %6073 = vrot.lane.b32.xlu0 %v5599, 64
        %v6074 = vpop.permute.xlu0 %6073
        %6075 = vrot.lane.b32.xlu0 %v5600, 64
        %v6076 = vpop.permute.xlu0 %6075
        %6077 = vrot.lane.b32.xlu0 %v5601, 64
        %v6078 = vpop.permute.xlu0 %6077
        %6079 = vrot.lane.b32.xlu0 %v5602, 64
        %v6080 = vpop.permute.xlu0 %6079
        %6081 = vrot.lane.b32.xlu0 %v5603, 64
        %v6082 = vpop.permute.xlu0 %6081
        %6083 = vrot.lane.b32.xlu0 %v5604, 64
        %v6084 = vpop.permute.xlu0 %6083
        %6117 = vrot.lane.b32.xlu0 %v5669, 80
        %v6118 = vpop.permute.xlu0 %6117
        %6119 = vrot.lane.b32.xlu0 %v5670, 80
        %v6120 = vpop.permute.xlu0 %6119
        %6121 = vrot.lane.b32.xlu0 %v5671, 80
        %v6122 = vpop.permute.xlu0 %6121
        %6123 = vrot.lane.b32.xlu0 %v5672, 80
        %v6124 = vpop.permute.xlu0 %6123
        %6125 = vrot.lane.b32.xlu0 %v5673, 80
        %v6126 = vpop.permute.xlu0 %6125
        %6127 = vrot.lane.b32.xlu0 %v5674, 80
        %v6128 = vpop.permute.xlu0 %6127
        %6129 = vrot.lane.b32.xlu0 %v5675, 80
        %v6130 = vpop.permute.xlu0 %6129
        %6131 = vrot.lane.b32.xlu0 %v5676, 80
        %v6132 = vpop.permute.xlu0 %6131
        %6133 = vrot.lane.b32.xlu0 %v5677, 80
        %v6134 = vpop.permute.xlu0 %6133
        %6135 = vrot.lane.b32.xlu0 %v5678, 80
        %v6136 = vpop.permute.xlu0 %6135
        %6137 = vrot.lane.b32.xlu0 %v5679, 80
        %v6138 = vpop.permute.xlu0 %6137
        %6139 = vrot.lane.b32.xlu0 %v5680, 80
        %v6140 = vpop.permute.xlu0 %6139
        %6141 = vrot.lane.b32.xlu0 %v5681, 80
        %v6142 = vpop.permute.xlu0 %6141
        %6143 = vrot.lane.b32.xlu0 %v5682, 80
        %v6144 = vpop.permute.xlu0 %6143
        %6145 = vrot.lane.b32.xlu0 %v5683, 80
        %v6146 = vpop.permute.xlu0 %6145
        %6147 = vrot.lane.b32.xlu0 %v5684, 80
        %v6148 = vpop.permute.xlu0 %6147
        %6181 = vrot.lane.b32.xlu0 %v5749, 96
        %v6182 = vpop.permute.xlu0 %6181
        %6183 = vrot.lane.b32.xlu0 %v5750, 96
        %v6184 = vpop.permute.xlu0 %6183
        %6185 = vrot.lane.b32.xlu0 %v5751, 96
        %v6186 = vpop.permute.xlu0 %6185
        %6187 = vrot.lane.b32.xlu0 %v5752, 96
        %v6188 = vpop.permute.xlu0 %6187
        %6189 = vrot.lane.b32.xlu0 %v5753, 96
        %v6190 = vpop.permute.xlu0 %6189
        %6191 = vrot.lane.b32.xlu0 %v5754, 96
        %v6192 = vpop.permute.xlu0 %6191
        %6193 = vrot.lane.b32.xlu0 %v5755, 96
        %v6194 = vpop.permute.xlu0 %6193
        %6195 = vrot.lane.b32.xlu0 %v5756, 96
        %v6196 = vpop.permute.xlu0 %6195
        %6197 = vrot.lane.b32.xlu0 %v5757, 96
        %v6198 = vpop.permute.xlu0 %6197
        %6199 = vrot.lane.b32.xlu0 %v5758, 96
        %v6200 = vpop.permute.xlu0 %6199
        %6201 = vrot.lane.b32.xlu0 %v5759, 96
        %v6202 = vpop.permute.xlu0 %6201
        %6203 = vrot.lane.b32.xlu0 %v5760, 96
        %v6204 = vpop.permute.xlu0 %6203
        %6205 = vrot.lane.b32.xlu0 %v5761, 96
        %v6206 = vpop.permute.xlu0 %6205
        %6207 = vrot.lane.b32.xlu0 %v5762, 96
        %v6208 = vpop.permute.xlu0 %6207
        %6209 = vrot.lane.b32.xlu0 %v5763, 96
        %v6210 = vpop.permute.xlu0 %6209
        %6211 = vrot.lane.b32.xlu0 %v5764, 96
        %v6212 = vpop.permute.xlu0 %6211
        %6245 = vrot.lane.b32.xlu0 %v5829, 112
        %v6246 = vpop.permute.xlu0 %6245
        %6247 = vrot.lane.b32.xlu0 %v5830, 112
        %v6248 = vpop.permute.xlu0 %6247
        %6249 = vrot.lane.b32.xlu0 %v5831, 112
        %v6250 = vpop.permute.xlu0 %6249
        %6251 = vrot.lane.b32.xlu0 %v5832, 112
        %v6252 = vpop.permute.xlu0 %6251
        %6253 = vrot.lane.b32.xlu0 %v5833, 112
        %v6254 = vpop.permute.xlu0 %6253
        %6255 = vrot.lane.b32.xlu0 %v5834, 112
        %v6256 = vpop.permute.xlu0 %6255
        %6257 = vrot.lane.b32.xlu0 %v5835, 112
        %v6258 = vpop.permute.xlu0 %6257
        %6259 = vrot.lane.b32.xlu0 %v5836, 112
        %v6260 = vpop.permute.xlu0 %6259
        %6261 = vrot.lane.b32.xlu0 %v5837, 112
        %v6262 = vpop.permute.xlu0 %6261
        %6263 = vrot.lane.b32.xlu0 %v5838, 112
        %v6264 = vpop.permute.xlu0 %6263
        %6265 = vrot.lane.b32.xlu0 %v5839, 112
        %v6266 = vpop.permute.xlu0 %6265
        %6267 = vrot.lane.b32.xlu0 %v5840, 112
        %v6268 = vpop.permute.xlu0 %6267
        %6269 = vrot.lane.b32.xlu0 %v5841, 112
        %v6270 = vpop.permute.xlu0 %6269
        %6271 = vrot.lane.b32.xlu0 %v5842, 112
        %v6272 = vpop.permute.xlu0 %6271
        %6273 = vrot.lane.b32.xlu0 %v5843, 112
        %v6274 = vpop.permute.xlu0 %6273
        %6275 = vrot.lane.b32.xlu0 %v5844, 112
        %v6276 = vpop.permute.xlu0 %6275
        %vm6293 = vcmask 130048
        %v6294 = vsel %vm6293, %v5269, %v5862
        %v6295 = vsel %vm6293, %v5270, %v5864
        %v6296 = vsel %vm6293, %v5271, %v5866
        %v6297 = vsel %vm6293, %v5272, %v5868
        %v6298 = vsel %vm6293, %v5273, %v5870
        %v6299 = vsel %vm6293, %v5274, %v5872
        %v6300 = vsel %vm6293, %v5275, %v5874
        %v6301 = vsel %vm6293, %v5276, %v5876
        %v6302 = vsel %vm6293, %v5277, %v5878
        %v6303 = vsel %vm6293, %v5278, %v5880
        %v6304 = vsel %vm6293, %v5279, %v5882
        %v6305 = vsel %vm6293, %v5280, %v5884
        %v6306 = vsel %vm6293, %v5281, %v5886
        %v6307 = vsel %vm6293, %v5282, %v5888
        %v6308 = vsel %vm6293, %v5283, %v5890
        %v6309 = vsel %vm6293, %v5284, %v5892
        %vm6310 = vcmask 261120
        %v6311 = vsel %vm6310, %v6294, %v5926
        %v6312 = vsel %vm6310, %v6295, %v5928
        %v6313 = vsel %vm6310, %v6296, %v5930
        %v6314 = vsel %vm6310, %v6297, %v5932
        %v6315 = vsel %vm6310, %v6298, %v5934
        %v6316 = vsel %vm6310, %v6299, %v5936
        %v6317 = vsel %vm6310, %v6300, %v5938
        %v6318 = vsel %vm6310, %v6301, %v5940
        %v6319 = vsel %vm6310, %v6302, %v5942
        %v6320 = vsel %vm6310, %v6303, %v5944
        %v6321 = vsel %vm6310, %v6304, %v5946
        %v6322 = vsel %vm6310, %v6305, %v5948
        %v6323 = vsel %vm6310, %v6306, %v5950
        %v6324 = vsel %vm6310, %v6307, %v5952
        %v6325 = vsel %vm6310, %v6308, %v5954
        %v6326 = vsel %vm6310, %v6309, %v5956
        %vm6327 = vcmask 392192
        %v6328 = vsel %vm6327, %v6311, %v5990
        %v6329 = vsel %vm6327, %v6312, %v5992
        %v6330 = vsel %vm6327, %v6313, %v5994
        %v6331 = vsel %vm6327, %v6314, %v5996
        %v6332 = vsel %vm6327, %v6315, %v5998
        %v6333 = vsel %vm6327, %v6316, %v6000
        %v6334 = vsel %vm6327, %v6317, %v6002
        %v6335 = vsel %vm6327, %v6318, %v6004
        %v6336 = vsel %vm6327, %v6319, %v6006
        %v6337 = vsel %vm6327, %v6320, %v6008
        %v6338 = vsel %vm6327, %v6321, %v6010
        %v6339 = vsel %vm6327, %v6322, %v6012
        %v6340 = vsel %vm6327, %v6323, %v6014
        %v6341 = vsel %vm6327, %v6324, %v6016
        %v6342 = vsel %vm6327, %v6325, %v6018
        %v6343 = vsel %vm6327, %v6326, %v6020
        %vm6344 = vcmask 523264
        %v6345 = vsel %vm6344, %v6328, %v6054
        %v6346 = vsel %vm6344, %v6329, %v6056
        %v6347 = vsel %vm6344, %v6330, %v6058
        %v6348 = vsel %vm6344, %v6331, %v6060
        %v6349 = vsel %vm6344, %v6332, %v6062
        %v6350 = vsel %vm6344, %v6333, %v6064
        %v6351 = vsel %vm6344, %v6334, %v6066
        %v6352 = vsel %vm6344, %v6335, %v6068
        %v6353 = vsel %vm6344, %v6336, %v6070
        %v6354 = vsel %vm6344, %v6337, %v6072
        %v6355 = vsel %vm6344, %v6338, %v6074
        %v6356 = vsel %vm6344, %v6339, %v6076
        %v6357 = vsel %vm6344, %v6340, %v6078
        %v6358 = vsel %vm6344, %v6341, %v6080
        %v6359 = vsel %vm6344, %v6342, %v6082
        %v6360 = vsel %vm6344, %v6343, %v6084
        %vm6361 = vcmask 654336
        %v6362 = vsel %vm6361, %v6345, %v6118
        %v6363 = vsel %vm6361, %v6346, %v6120
        %v6364 = vsel %vm6361, %v6347, %v6122
        %v6365 = vsel %vm6361, %v6348, %v6124
        %v6366 = vsel %vm6361, %v6349, %v6126
        %v6367 = vsel %vm6361, %v6350, %v6128
        %v6368 = vsel %vm6361, %v6351, %v6130
        %v6369 = vsel %vm6361, %v6352, %v6132
        %v6370 = vsel %vm6361, %v6353, %v6134
        %v6371 = vsel %vm6361, %v6354, %v6136
        %v6372 = vsel %vm6361, %v6355, %v6138
        %v6373 = vsel %vm6361, %v6356, %v6140
        %v6374 = vsel %vm6361, %v6357, %v6142
        %v6375 = vsel %vm6361, %v6358, %v6144
        %v6376 = vsel %vm6361, %v6359, %v6146
        %v6377 = vsel %vm6361, %v6360, %v6148
        %vm6378 = vcmask 785408
        %v6379 = vsel %vm6378, %v6362, %v6182
        %v6380 = vsel %vm6378, %v6363, %v6184
        %v6381 = vsel %vm6378, %v6364, %v6186
        %v6382 = vsel %vm6378, %v6365, %v6188
        %v6383 = vsel %vm6378, %v6366, %v6190
        %v6384 = vsel %vm6378, %v6367, %v6192
        %v6385 = vsel %vm6378, %v6368, %v6194
        %v6386 = vsel %vm6378, %v6369, %v6196
        %v6387 = vsel %vm6378, %v6370, %v6198
        %v6388 = vsel %vm6378, %v6371, %v6200
        %v6389 = vsel %vm6378, %v6372, %v6202
        %v6390 = vsel %vm6378, %v6373, %v6204
        %v6391 = vsel %vm6378, %v6374, %v6206
        %v6392 = vsel %vm6378, %v6375, %v6208
        %v6393 = vsel %vm6378, %v6376, %v6210
        %v6394 = vsel %vm6378, %v6377, %v6212
        %vm6395 = vcmask 916480
        %v6396 = vsel %vm6395, %v6379, %v6246
        %v6397 = vsel %vm6395, %v6380, %v6248
        %v6398 = vsel %vm6395, %v6381, %v6250
        %v6399 = vsel %vm6395, %v6382, %v6252
        %v6400 = vsel %vm6395, %v6383, %v6254
        %v6401 = vsel %vm6395, %v6384, %v6256
        %v6402 = vsel %vm6395, %v6385, %v6258
        %v6403 = vsel %vm6395, %v6386, %v6260
        %v6404 = vsel %vm6395, %v6387, %v6262
        %v6405 = vsel %vm6395, %v6388, %v6264
        %v6406 = vsel %vm6395, %v6389, %v6266
        %v6407 = vsel %vm6395, %v6390, %v6268
        %v6408 = vsel %vm6395, %v6391, %v6270
        %v6409 = vsel %vm6395, %v6392, %v6272
        %v6410 = vsel %vm6395, %v6393, %v6274
        %v6411 = vsel %vm6395, %v6394, %v6276
        %v6428 = vunpack.c.l.b16 %v514
        %v6429 = vunpack.c.l.b16 %v515
        %v6430 = vunpack.c.l.b16 %v516
        %v6431 = vunpack.c.l.b16 %v517
        %v6432 = vunpack.c.l.b16 %v518
        %v6433 = vunpack.c.l.b16 %v519
        %v6434 = vunpack.c.l.b16 %v520
        %v6435 = vunpack.c.l.b16 %v521
        %v6436 = vunpack.c.l.b16 %v522
        %v6437 = vunpack.c.l.b16 %v523
        %v6438 = vunpack.c.l.b16 %v524
        %v6439 = vunpack.c.l.b16 %v525
        %v6440 = vunpack.c.l.b16 %v526
        %v6441 = vunpack.c.l.b16 %v527
        %v6442 = vunpack.c.l.b16 %v528
        %v6443 = vunpack.c.l.b16 %v529
        %v6444 = vpack.c.b16 %v6429, %v6428
        %v6445 = vpack.c.b16 %v6431, %v6430
        %v6446 = vpack.c.b16 %v6433, %v6432
        %v6447 = vpack.c.b16 %v6435, %v6434
        %v6448 = vpack.c.b16 %v6437, %v6436
        %v6449 = vpack.c.b16 %v6439, %v6438
        %v6450 = vpack.c.b16 %v6441, %v6440
        %v6451 = vpack.c.b16 %v6443, %v6442
        %v6453 = vsel %vm4721, %v5165, 0
        %v6456 = vsel %vm4721, %v5166, 0
        %v6459 = vsel %vm4721, %v5167, 0
        %v6462 = vsel %vm4721, %v5168, 0
        %v6465 = vsel %vm4721, %v5169, 0
        %v6468 = vsel %vm4721, %v5170, 0
        %v6471 = vsel %vm4721, %v5171, 0
        %v6474 = vsel %vm4721, %v5172, 0
        %v6477 = vsel %vm4721, %v6444, 0
        %v6480 = vsel %vm4721, %v6445, 0
        %v6483 = vsel %vm4721, %v6446, 0
        %v6486 = vsel %vm4721, %v6447, 0
        %v6489 = vsel %vm4721, %v6448, 0
        %v6492 = vsel %vm4721, %v6449, 0
        %v6495 = vsel %vm4721, %v6450, 0
        %v6498 = vsel %vm4721, %v6451, 0
        %6500 = vmatprep.subr.bf16.mxu0 0
        %6501 = vmatpush1.bf16.xpose.msra.mxu0 %v6477
        %6502 = vmatprep.subr.bf16.mxu0 0
        %6503 = vmatpush1.bf16.xpose.msra.mxu0 %v6480
        %6504 = vmatprep.subr.bf16.mxu0 0
        %6505 = vmatpush1.bf16.xpose.msra.mxu0 %v6483
        %6506 = vmatprep.subr.bf16.mxu0 0
        %6507 = vmatpush1.bf16.xpose.msra.mxu0 %v6486
        %6508 = vmatprep.subr.bf16.mxu0 0
        %6509 = vmatpush1.bf16.xpose.msra.mxu0 %v6489
        %6510 = vmatprep.subr.bf16.mxu0 0
        %6511 = vmatpush1.bf16.xpose.msra.mxu0 %v6492
        %6512 = vmatprep.subr.bf16.mxu0 0
        %6513 = vmatpush1.bf16.xpose.msra.mxu0 %v6495
        %6514 = vmatprep.subr.bf16.mxu0 0
        %6515 = vmatpush1.bf16.xpose.msra.mxu0 %v6498
        %6516 = vmatprep.subr.bf16.mxu0 0
        %6517 = vmatpush1.bf16.xpose.msra.mxu0 0
        %6518 = vmatprep.subr.bf16.mxu0 0
        %6519 = vmatpush1.bf16.xpose.msra.mxu0 0
        %6520 = vmatprep.subr.bf16.mxu0 0
        %6521 = vmatpush1.bf16.xpose.msra.mxu0 0
        %6522 = vmatprep.subr.bf16.mxu0 0
        %6523 = vmatpush1.bf16.xpose.msra.mxu0 0
        %6524 = vmatprep.subr.bf16.mxu0 0
        %6525 = vmatpush1.bf16.xpose.msra.mxu0 0
        %6526 = vmatprep.subr.bf16.mxu0 0
        %6527 = vmatpush1.bf16.xpose.msra.mxu0 0
        %6528 = vmatprep.subr.bf16.mxu0 0
        %6529 = vmatpush1.bf16.xpose.msra.mxu0 0
        %6530 = vmatprep.subr.bf16.mxu0 0
        %6531 = vmatpush1.bf16.xpose.msra.mxu0 0
        %6532 = vmatprep.mubr.bf16.mxu0 0
        %6533 = vmatmul.mubr.bf16.gmra.mrb[0].mxu0 %v6453
        %v6534 = vpop.f32.mrb[0].mxu0
        %v6535 = vadd.f32 %v6396, %v6534
        %v6536 = vpop.f32.mrb[0].mxu0
        %v6537 = vpop.f32.mrb[0].mxu0
        %v6538 = vadd.f32 %v6397, %v6537
        %v6539 = vpop.f32.mrb[0].mxu0
        %6540 = vmatprep.mubr.bf16.mxu0 0
        %6541 = vmatmul.mubr.bf16.gmra.mrb[0].mxu0 %v6456
        %v6542 = vpop.f32.mrb[0].mxu0
        %v6543 = vadd.f32 %v6398, %v6542
        %v6544 = vpop.f32.mrb[0].mxu0
        %v6545 = vpop.f32.mrb[0].mxu0
        %v6546 = vadd.f32 %v6399, %v6545
        %v6547 = vpop.f32.mrb[0].mxu0
        %6548 = vmatprep.mubr.bf16.mxu0 0
        %6549 = vmatmul.mubr.bf16.gmra.mrb[0].mxu0 %v6459
        %v6550 = vpop.f32.mrb[0].mxu0
        %v6551 = vadd.f32 %v6400, %v6550
        %v6552 = vpop.f32.mrb[0].mxu0
        %v6553 = vpop.f32.mrb[0].mxu0
        %v6554 = vadd.f32 %v6401, %v6553
        %v6555 = vpop.f32.mrb[0].mxu0
        %6556 = vmatprep.mubr.bf16.mxu0 0
        %6557 = vmatmul.mubr.bf16.gmra.mrb[0].mxu0 %v6462
        %v6558 = vpop.f32.mrb[0].mxu0
        %v6559 = vadd.f32 %v6402, %v6558
        %v6560 = vpop.f32.mrb[0].mxu0
        %v6561 = vpop.f32.mrb[0].mxu0
        %v6562 = vadd.f32 %v6403, %v6561
        %v6563 = vpop.f32.mrb[0].mxu0
        %6564 = vmatprep.mubr.bf16.mxu0 0
        %6565 = vmatmul.mubr.bf16.gmra.mrb[0].mxu0 %v6465
        %v6566 = vpop.f32.mrb[0].mxu0
        %v6567 = vadd.f32 %v6404, %v6566
        %v6568 = vpop.f32.mrb[0].mxu0
        %v6569 = vpop.f32.mrb[0].mxu0
        %v6570 = vadd.f32 %v6405, %v6569
        %v6571 = vpop.f32.mrb[0].mxu0
        %6572 = vmatprep.mubr.bf16.mxu0 0
        %6573 = vmatmul.mubr.bf16.gmra.mrb[0].mxu0 %v6468
        %v6574 = vpop.f32.mrb[0].mxu0
        %v6575 = vadd.f32 %v6406, %v6574
        %v6576 = vpop.f32.mrb[0].mxu0
        %v6577 = vpop.f32.mrb[0].mxu0
        %v6578 = vadd.f32 %v6407, %v6577
        %v6579 = vpop.f32.mrb[0].mxu0
        %6580 = vmatprep.mubr.bf16.mxu0 0
        %6581 = vmatmul.mubr.bf16.gmra.mrb[0].mxu0 %v6471
        %v6582 = vpop.f32.mrb[0].mxu0
        %v6583 = vadd.f32 %v6408, %v6582
        %v6584 = vpop.f32.mrb[0].mxu0
        %v6585 = vpop.f32.mrb[0].mxu0
        %v6586 = vadd.f32 %v6409, %v6585
        %v6587 = vpop.f32.mrb[0].mxu0
        %6588 = vmatprep.mubr.bf16.mxu0 0
        %6589 = vmatmul.mubr.bf16.gmra.mrb[0].mxu0 %v6474
        %v6590 = vpop.f32.mrb[0].mxu0
        %v6591 = vadd.f32 %v6410, %v6590
        %v6592 = vpop.f32.mrb[0].mxu0
        %v6593 = vpop.f32.mrb[0].mxu0
        %v6594 = vadd.f32 %v6411, %v6593
        %v6595 = vpop.f32.mrb[0].mxu0
        %6596 = vdwg.mxu0
        %v6597 = vld [vmem:[#allocation2] sm:$0xff]
        %v6598 = vld [vmem:[#allocation2 + $0x8] sm:$0xff]
        %v6599 = vld [vmem:[#allocation2 + $0x10] sm:$0xff]
        %v6600 = vld [vmem:[#allocation2 + $0x18] sm:$0xff]
        %v6601 = vld [vmem:[#allocation2 + $0x20] sm:$0xff]
        %v6602 = vld [vmem:[#allocation2 + $0x28] sm:$0xff]
        %v6603 = vld [vmem:[#allocation2 + $0x30] sm:$0xff]
        %v6604 = vld [vmem:[#allocation2 + $0x38] sm:$0xff]
        %v6605 = vld [vmem:[#allocation2 + $0x40] sm:$0xff]
        %v6606 = vld [vmem:[#allocation2 + $0x48] sm:$0xff]
        %v6607 = vld [vmem:[#allocation2 + $0x50] sm:$0xff]
        %v6608 = vld [vmem:[#allocation2 + $0x58] sm:$0xff]
        %v6609 = vld [vmem:[#allocation2 + $0x60] sm:$0xff]
        %v6610 = vld [vmem:[#allocation2 + $0x68] sm:$0xff]
        %v6611 = vld [vmem:[#allocation2 + $0x70] sm:$0xff]
        %v6612 = vld [vmem:[#allocation2 + $0x78] sm:$0xff]
        %6613 = vmax.xlane.f32.xlu0 %v6535
        %v6614 = vpop.xlane.xlu0 %6613
        %6615 = vmax.xlane.f32.xlu0 %v6538
        %v6616 = vpop.xlane.xlu0 %6615
        %6617 = vmax.xlane.f32.xlu0 %v6543
        %v6618 = vpop.xlane.xlu0 %6617
        %6619 = vmax.xlane.f32.xlu0 %v6546
        %v6620 = vpop.xlane.xlu0 %6619
        %6621 = vmax.xlane.f32.xlu0 %v6551
        %v6622 = vpop.xlane.xlu0 %6621
        %6623 = vmax.xlane.f32.xlu0 %v6554
        %v6624 = vpop.xlane.xlu0 %6623
        %6625 = vmax.xlane.f32.xlu0 %v6559
        %v6626 = vpop.xlane.xlu0 %6625
        %6627 = vmax.xlane.f32.xlu0 %v6562
        %v6628 = vpop.xlane.xlu0 %6627
        %6629 = vmax.xlane.f32.xlu0 %v6567
        %v6630 = vpop.xlane.xlu0 %6629
        %6631 = vmax.xlane.f32.xlu0 %v6570
        %v6632 = vpop.xlane.xlu0 %6631
        %6633 = vmax.xlane.f32.xlu0 %v6575
        %v6634 = vpop.xlane.xlu0 %6633
        %6635 = vmax.xlane.f32.xlu0 %v6578
        %v6636 = vpop.xlane.xlu0 %6635
        %6637 = vmax.xlane.f32.xlu0 %v6583
        %v6638 = vpop.xlane.xlu0 %6637
        %6639 = vmax.xlane.f32.xlu0 %v6586
        %v6640 = vpop.xlane.xlu0 %6639
        %6641 = vmax.xlane.f32.xlu0 %v6591
        %v6642 = vpop.xlane.xlu0 %6641
        %6643 = vmax.xlane.f32.xlu0 %v6594
        %v6644 = vpop.xlane.xlu0 %6643
        %v6645 = vmax.f32 %v6597, %v6614
        %v6646 = vmax.f32 %v6598, %v6616
        %v6647 = vmax.f32 %v6599, %v6618
        %v6648 = vmax.f32 %v6600, %v6620
        %v6649 = vmax.f32 %v6601, %v6622
        %v6650 = vmax.f32 %v6602, %v6624
        %v6651 = vmax.f32 %v6603, %v6626
        %v6652 = vmax.f32 %v6604, %v6628
        %v6653 = vmax.f32 %v6605, %v6630
        %v6654 = vmax.f32 %v6606, %v6632
        %v6655 = vmax.f32 %v6607, %v6634
        %v6656 = vmax.f32 %v6608, %v6636
        %v6657 = vmax.f32 %v6609, %v6638
        %v6658 = vmax.f32 %v6610, %v6640
        %v6659 = vmax.f32 %v6611, %v6642
        %v6660 = vmax.f32 %v6612, %v6644
        %v6661 = vsub.f32 %v6597, %v6645
        %v6662 = vsub.f32 %v6598, %v6646
        %v6663 = vsub.f32 %v6599, %v6647
        %v6664 = vsub.f32 %v6600, %v6648
        %v6665 = vsub.f32 %v6601, %v6649
        %v6666 = vsub.f32 %v6602, %v6650
        %v6667 = vsub.f32 %v6603, %v6651
        %v6668 = vsub.f32 %v6604, %v6652
        %v6669 = vsub.f32 %v6605, %v6653
        %v6670 = vsub.f32 %v6606, %v6654
        %v6671 = vsub.f32 %v6607, %v6655
        %v6672 = vsub.f32 %v6608, %v6656
        %v6673 = vsub.f32 %v6609, %v6657
        %v6674 = vsub.f32 %v6610, %v6658
        %v6675 = vsub.f32 %v6611, %v6659
        %v6676 = vsub.f32 %v6612, %v6660
        %v6677 = vmul.f32 %v6661, 1.442695
        %v6678 = vpow.pop %v6677
        %v6679 = vmul.f32 %v6662, 1.442695
        %v6680 = vpow.pop %v6679
        %v6681 = vmul.f32 %v6663, 1.442695
        %v6682 = vpow.pop %v6681
        %v6683 = vmul.f32 %v6664, 1.442695
        %v6684 = vpow.pop %v6683
        %v6685 = vmul.f32 %v6665, 1.442695
        %v6686 = vpow.pop %v6685
        %v6687 = vmul.f32 %v6666, 1.442695
        %v6688 = vpow.pop %v6687
        %v6689 = vmul.f32 %v6667, 1.442695
        %v6690 = vpow.pop %v6689
        %v6691 = vmul.f32 %v6668, 1.442695
        %v6692 = vpow.pop %v6691
        %v6693 = vmul.f32 %v6669, 1.442695
        %v6694 = vpow.pop %v6693
        %v6695 = vmul.f32 %v6670, 1.442695
        %v6696 = vpow.pop %v6695
        %v6697 = vmul.f32 %v6671, 1.442695
        %v6698 = vpow.pop %v6697
        %v6699 = vmul.f32 %v6672, 1.442695
        %v6700 = vpow.pop %v6699
        %v6701 = vmul.f32 %v6673, 1.442695
        %v6702 = vpow.pop %v6701
        %v6703 = vmul.f32 %v6674, 1.442695
        %v6704 = vpow.pop %v6703
        %v6705 = vmul.f32 %v6675, 1.442695
        %v6706 = vpow.pop %v6705
        %v6707 = vmul.f32 %v6676, 1.442695
        %v6708 = vpow.pop %v6707
        %6710 = vset.pattern.permute.xlu0 0
        %6711 = vperm.xlu0 %6710, %v6645
        %v6712 = vpop.permute.xlu0 %6711
        %6715 = vset.pattern.permute.xlu0 0
        %6716 = vperm.xlu0 %6715, %v6646
        %v6717 = vpop.permute.xlu0 %6716
        %6720 = vset.pattern.permute.xlu0 0
        %6721 = vperm.xlu0 %6720, %v6647
        %v6722 = vpop.permute.xlu0 %6721
        %6725 = vset.pattern.permute.xlu0 0
        %6726 = vperm.xlu0 %6725, %v6648
        %v6727 = vpop.permute.xlu0 %6726
        %6730 = vset.pattern.permute.xlu0 0
        %6731 = vperm.xlu0 %6730, %v6649
        %v6732 = vpop.permute.xlu0 %6731
        %6735 = vset.pattern.permute.xlu0 0
        %6736 = vperm.xlu0 %6735, %v6650
        %v6737 = vpop.permute.xlu0 %6736
        %6740 = vset.pattern.permute.xlu0 0
        %6741 = vperm.xlu0 %6740, %v6651
        %v6742 = vpop.permute.xlu0 %6741
        %6745 = vset.pattern.permute.xlu0 0
        %6746 = vperm.xlu0 %6745, %v6652
        %v6747 = vpop.permute.xlu0 %6746
        %6750 = vset.pattern.permute.xlu0 0
        %6751 = vperm.xlu0 %6750, %v6653
        %v6752 = vpop.permute.xlu0 %6751
        %6755 = vset.pattern.permute.xlu0 0
        %6756 = vperm.xlu0 %6755, %v6654
        %v6757 = vpop.permute.xlu0 %6756
        %6760 = vset.pattern.permute.xlu0 0
        %6761 = vperm.xlu0 %6760, %v6655
        %v6762 = vpop.permute.xlu0 %6761
        %6765 = vset.pattern.permute.xlu0 0
        %6766 = vperm.xlu0 %6765, %v6656
        %v6767 = vpop.permute.xlu0 %6766
        %6770 = vset.pattern.permute.xlu0 0
        %6771 = vperm.xlu0 %6770, %v6657
        %v6772 = vpop.permute.xlu0 %6771
        %6775 = vset.pattern.permute.xlu0 0
        %6776 = vperm.xlu0 %6775, %v6658
        %v6777 = vpop.permute.xlu0 %6776
        %6780 = vset.pattern.permute.xlu0 0
        %6781 = vperm.xlu0 %6780, %v6659
        %v6782 = vpop.permute.xlu0 %6781
        %6785 = vset.pattern.permute.xlu0 0
        %6786 = vperm.xlu0 %6785, %v6660
        %v6787 = vpop.permute.xlu0 %6786
        %v6789 = vsub.f32 %v6535, %v6712
        %v6790 = vsub.f32 %v6538, %v6717
        %v6791 = vsub.f32 %v6543, %v6722
        %v6792 = vsub.f32 %v6546, %v6727
        %v6793 = vsub.f32 %v6551, %v6732
        %v6794 = vsub.f32 %v6554, %v6737
        %v6795 = vsub.f32 %v6559, %v6742
        %v6796 = vsub.f32 %v6562, %v6747
        %v6797 = vsub.f32 %v6567, %v6752
        %v6798 = vsub.f32 %v6570, %v6757
        %v6799 = vsub.f32 %v6575, %v6762
        %v6800 = vsub.f32 %v6578, %v6767
        %v6801 = vsub.f32 %v6583, %v6772
        %v6802 = vsub.f32 %v6586, %v6777
        %v6803 = vsub.f32 %v6591, %v6782
        %v6804 = vsub.f32 %v6594, %v6787
        %v6805 = vmul.f32 %v6789, 1.442695
        %v6806 = vpow.pop %v6805
        %v6807 = vmul.f32 %v6790, 1.442695
        %v6808 = vpow.pop %v6807
        %v6809 = vmul.f32 %v6791, 1.442695
        %v6810 = vpow.pop %v6809
        %v6811 = vmul.f32 %v6792, 1.442695
        %v6812 = vpow.pop %v6811
        %v6813 = vmul.f32 %v6793, 1.442695
        %v6814 = vpow.pop %v6813
        %v6815 = vmul.f32 %v6794, 1.442695
        %v6816 = vpow.pop %v6815
        %v6817 = vmul.f32 %v6795, 1.442695
        %v6818 = vpow.pop %v6817
        %v6819 = vmul.f32 %v6796, 1.442695
        %v6820 = vpow.pop %v6819
        %v6821 = vmul.f32 %v6797, 1.442695
        %v6822 = vpow.pop %v6821
        %v6823 = vmul.f32 %v6798, 1.442695
        %v6824 = vpow.pop %v6823
        %v6825 = vmul.f32 %v6799, 1.442695
        %v6826 = vpow.pop %v6825
        %v6827 = vmul.f32 %v6800, 1.442695
        %v6828 = vpow.pop %v6827
        %v6829 = vmul.f32 %v6801, 1.442695
        %v6830 = vpow.pop %v6829
        %v6831 = vmul.f32 %v6802, 1.442695
        %v6832 = vpow.pop %v6831
        %v6833 = vmul.f32 %v6803, 1.442695
        %v6834 = vpow.pop %v6833
        %v6835 = vmul.f32 %v6804, 1.442695
        %v6836 = vpow.pop %v6835
        %v6837 = vld [vmem:[#allocation3] sm:$0xff]
        %v6838 = vld [vmem:[#allocation3 + $0x8] sm:$0xff]
        %v6839 = vld [vmem:[#allocation3 + $0x10] sm:$0xff]
        %v6840 = vld [vmem:[#allocation3 + $0x18] sm:$0xff]
        %v6841 = vld [vmem:[#allocation3 + $0x20] sm:$0xff]
        %v6842 = vld [vmem:[#allocation3 + $0x28] sm:$0xff]
        %v6843 = vld [vmem:[#allocation3 + $0x30] sm:$0xff]
        %v6844 = vld [vmem:[#allocation3 + $0x38] sm:$0xff]
        %v6845 = vld [vmem:[#allocation3 + $0x40] sm:$0xff]
        %v6846 = vld [vmem:[#allocation3 + $0x48] sm:$0xff]
        %v6847 = vld [vmem:[#allocation3 + $0x50] sm:$0xff]
        %v6848 = vld [vmem:[#allocation3 + $0x58] sm:$0xff]
        %v6849 = vld [vmem:[#allocation3 + $0x60] sm:$0xff]
        %v6850 = vld [vmem:[#allocation3 + $0x68] sm:$0xff]
        %v6851 = vld [vmem:[#allocation3 + $0x70] sm:$0xff]
        %v6852 = vld [vmem:[#allocation3 + $0x78] sm:$0xff]
        %v6853 = vmul.f32 %v6678, %v6837
        %v6854 = vmul.f32 %v6680, %v6838
        %v6855 = vmul.f32 %v6682, %v6839
        %v6856 = vmul.f32 %v6684, %v6840
        %v6857 = vmul.f32 %v6686, %v6841
        %v6858 = vmul.f32 %v6688, %v6842
        %v6859 = vmul.f32 %v6690, %v6843
        %v6860 = vmul.f32 %v6692, %v6844
        %v6861 = vmul.f32 %v6694, %v6845
        %v6862 = vmul.f32 %v6696, %v6846
        %v6863 = vmul.f32 %v6698, %v6847
        %v6864 = vmul.f32 %v6700, %v6848
        %v6865 = vmul.f32 %v6702, %v6849
        %v6866 = vmul.f32 %v6704, %v6850
        %v6867 = vmul.f32 %v6706, %v6851
        %v6868 = vmul.f32 %v6708, %v6852
        %6869 = vadd.xlane.f32.xlu0 %v6806
        %v6870 = vpop.xlane.xlu0 %6869
        %6871 = vadd.xlane.f32.xlu0 %v6808
        %v6872 = vpop.xlane.xlu0 %6871
        %6873 = vadd.xlane.f32.xlu0 %v6810
        %v6874 = vpop.xlane.xlu0 %6873
        %6875 = vadd.xlane.f32.xlu0 %v6812
        %v6876 = vpop.xlane.xlu0 %6875
        %6877 = vadd.xlane.f32.xlu0 %v6814
        %v6878 = vpop.xlane.xlu0 %6877
        %6879 = vadd.xlane.f32.xlu0 %v6816
        %v6880 = vpop.xlane.xlu0 %6879
        %6881 = vadd.xlane.f32.xlu0 %v6818
        %v6882 = vpop.xlane.xlu0 %6881
        %6883 = vadd.xlane.f32.xlu0 %v6820
        %v6884 = vpop.xlane.xlu0 %6883
        %6885 = vadd.xlane.f32.xlu0 %v6822
        %v6886 = vpop.xlane.xlu0 %6885
        %6887 = vadd.xlane.f32.xlu0 %v6824
        %v6888 = vpop.xlane.xlu0 %6887
        %6889 = vadd.xlane.f32.xlu0 %v6826
        %v6890 = vpop.xlane.xlu0 %6889
        %6891 = vadd.xlane.f32.xlu0 %v6828
        %v6892 = vpop.xlane.xlu0 %6891
        %6893 = vadd.xlane.f32.xlu0 %v6830
        %v6894 = vpop.xlane.xlu0 %6893
        %6895 = vadd.xlane.f32.xlu0 %v6832
        %v6896 = vpop.xlane.xlu0 %6895
        %6897 = vadd.xlane.f32.xlu0 %v6834
        %v6898 = vpop.xlane.xlu0 %6897
        %6899 = vadd.xlane.f32.xlu0 %v6836
        %v6900 = vpop.xlane.xlu0 %6899
        %v6901 = vadd.f32 %v6853, %v6870
        %v6902 = vadd.f32 %v6854, %v6872
        %v6903 = vadd.f32 %v6855, %v6874
        %v6904 = vadd.f32 %v6856, %v6876
        %v6905 = vadd.f32 %v6857, %v6878
        %v6906 = vadd.f32 %v6858, %v6880
        %v6907 = vadd.f32 %v6859, %v6882
        %v6908 = vadd.f32 %v6860, %v6884
        %v6909 = vadd.f32 %v6861, %v6886
        %v6910 = vadd.f32 %v6862, %v6888
        %v6911 = vadd.f32 %v6863, %v6890
        %v6912 = vadd.f32 %v6864, %v6892
        %v6913 = vadd.f32 %v6865, %v6894
        %v6914 = vadd.f32 %v6866, %v6896
        %v6915 = vadd.f32 %v6867, %v6898
        %v6916 = vadd.f32 %v6868, %v6900
        %vm6917 = vcmask 7168
        %6918 = vst.msk [vmem:[#allocation3] sm:$0xff] %vm6917, %v6901
        %6919 = vst.msk [vmem:[#allocation3 + $0x8] sm:$0xff] %vm6917, %v6902
        %6920 = vst.msk [vmem:[#allocation3 + $0x10] sm:$0xff] %vm6917, %v6903
        %6921 = vst.msk [vmem:[#allocation3 + $0x18] sm:$0xff] %vm6917, %v6904
        %6922 = vst.msk [vmem:[#allocation3 + $0x20] sm:$0xff] %vm6917, %v6905
        %6923 = vst.msk [vmem:[#allocation3 + $0x28] sm:$0xff] %vm6917, %v6906
        %6924 = vst.msk [vmem:[#allocation3 + $0x30] sm:$0xff] %vm6917, %v6907
        %6925 = vst.msk [vmem:[#allocation3 + $0x38] sm:$0xff] %vm6917, %v6908
        %6926 = vst.msk [vmem:[#allocation3 + $0x40] sm:$0xff] %vm6917, %v6909
        %6927 = vst.msk [vmem:[#allocation3 + $0x48] sm:$0xff] %vm6917, %v6910
        %6928 = vst.msk [vmem:[#allocation3 + $0x50] sm:$0xff] %vm6917, %v6911
        %6929 = vst.msk [vmem:[#allocation3 + $0x58] sm:$0xff] %vm6917, %v6912
        %6930 = vst.msk [vmem:[#allocation3 + $0x60] sm:$0xff] %vm6917, %v6913
        %6931 = vst.msk [vmem:[#allocation3 + $0x68] sm:$0xff] %vm6917, %v6914
        %6932 = vst.msk [vmem:[#allocation3 + $0x70] sm:$0xff] %vm6917, %v6915
        %6933 = vst.msk [vmem:[#allocation3 + $0x78] sm:$0xff] %vm6917, %v6916
        %v6934 = vld [vmem:[#allocation4] sm:$0xff]
        %v6935 = vld [vmem:[#allocation4 + $0x8] sm:$0xff]
        %v6936 = vld [vmem:[#allocation4 + $0x10] sm:$0xff]
        %v6937 = vld [vmem:[#allocation4 + $0x18] sm:$0xff]
        %v6938 = vld [vmem:[#allocation4 + $0x20] sm:$0xff]
        %v6939 = vld [vmem:[#allocation4 + $0x28] sm:$0xff]
        %v6940 = vld [vmem:[#allocation4 + $0x30] sm:$0xff]
        %v6941 = vld [vmem:[#allocation4 + $0x38] sm:$0xff]
        %v6942 = vld [vmem:[#allocation4 + $0x40] sm:$0xff]
        %v6943 = vld [vmem:[#allocation4 + $0x48] sm:$0xff]
        %v6944 = vld [vmem:[#allocation4 + $0x50] sm:$0xff]
        %v6945 = vld [vmem:[#allocation4 + $0x58] sm:$0xff]
        %v6946 = vld [vmem:[#allocation4 + $0x60] sm:$0xff]
        %v6947 = vld [vmem:[#allocation4 + $0x68] sm:$0xff]
        %v6948 = vld [vmem:[#allocation4 + $0x70] sm:$0xff]
        %v6949 = vld [vmem:[#allocation4 + $0x78] sm:$0xff]
        %6951 = vset.pattern.permute.xlu0 0
        %6952 = vperm.xlu0 %6951, %v6678
        %v6953 = vpop.permute.xlu0 %6952
        %6956 = vset.pattern.permute.xlu0 0
        %6957 = vperm.xlu0 %6956, %v6680
        %v6958 = vpop.permute.xlu0 %6957
        %6961 = vset.pattern.permute.xlu0 0
        %6962 = vperm.xlu0 %6961, %v6682
        %v6963 = vpop.permute.xlu0 %6962
        %6966 = vset.pattern.permute.xlu0 0
        %6967 = vperm.xlu0 %6966, %v6684
        %v6968 = vpop.permute.xlu0 %6967
        %6971 = vset.pattern.permute.xlu0 0
        %6972 = vperm.xlu0 %6971, %v6686
        %v6973 = vpop.permute.xlu0 %6972
        %6976 = vset.pattern.permute.xlu0 0
        %6977 = vperm.xlu0 %6976, %v6688
        %v6978 = vpop.permute.xlu0 %6977
        %6981 = vset.pattern.permute.xlu0 0
        %6982 = vperm.xlu0 %6981, %v6690
        %v6983 = vpop.permute.xlu0 %6982
        %6986 = vset.pattern.permute.xlu0 0
        %6987 = vperm.xlu0 %6986, %v6692
        %v6988 = vpop.permute.xlu0 %6987
        %6991 = vset.pattern.permute.xlu0 0
        %6992 = vperm.xlu0 %6991, %v6694
        %v6993 = vpop.permute.xlu0 %6992
        %6996 = vset.pattern.permute.xlu0 0
        %6997 = vperm.xlu0 %6996, %v6696
        %v6998 = vpop.permute.xlu0 %6997
        %7001 = vset.pattern.permute.xlu0 0
        %7002 = vperm.xlu0 %7001, %v6698
        %v7003 = vpop.permute.xlu0 %7002
        %7006 = vset.pattern.permute.xlu0 0
        %7007 = vperm.xlu0 %7006, %v6700
        %v7008 = vpop.permute.xlu0 %7007
        %7011 = vset.pattern.permute.xlu0 0
        %7012 = vperm.xlu0 %7011, %v6702
        %v7013 = vpop.permute.xlu0 %7012
        %7016 = vset.pattern.permute.xlu0 0
        %7017 = vperm.xlu0 %7016, %v6704
        %v7018 = vpop.permute.xlu0 %7017
        %7021 = vset.pattern.permute.xlu0 0
        %7022 = vperm.xlu0 %7021, %v6706
        %v7023 = vpop.permute.xlu0 %7022
        %7026 = vset.pattern.permute.xlu0 0
        %7027 = vperm.xlu0 %7026, %v6708
        %v7028 = vpop.permute.xlu0 %7027
        %v7030 = vmul.f32 %v6953, %v6934
        %v7031 = vmul.f32 %v6958, %v6935
        %v7032 = vmul.f32 %v6963, %v6936
        %v7033 = vmul.f32 %v6968, %v6937
        %v7034 = vmul.f32 %v6973, %v6938
        %v7035 = vmul.f32 %v6978, %v6939
        %v7036 = vmul.f32 %v6983, %v6940
        %v7037 = vmul.f32 %v6988, %v6941
        %v7038 = vmul.f32 %v6993, %v6942
        %v7039 = vmul.f32 %v6998, %v6943
        %v7040 = vmul.f32 %v7003, %v6944
        %v7041 = vmul.f32 %v7008, %v6945
        %v7042 = vmul.f32 %v7013, %v6946
        %v7043 = vmul.f32 %v7018, %v6947
        %v7044 = vmul.f32 %v7023, %v6948
        %v7045 = vmul.f32 %v7028, %v6949
        %v7046 = vpack.c.bf16 %v6808, %v6806
        %v7047 = vpack.c.bf16 %v6812, %v6810
        %v7048 = vpack.c.bf16 %v6816, %v6814
        %v7049 = vpack.c.bf16 %v6820, %v6818
        %v7050 = vpack.c.bf16 %v6824, %v6822
        %v7051 = vpack.c.bf16 %v6828, %v6826
        %v7052 = vpack.c.bf16 %v6832, %v6830
        %v7053 = vpack.c.bf16 %v6836, %v6834
        %v7070 = vunpack.c.l.b16 %v530
        %v7071 = vunpack.c.l.b16 %v531
        %v7072 = vunpack.c.l.b16 %v532
        %v7073 = vunpack.c.l.b16 %v533
        %v7074 = vunpack.c.l.b16 %v534
        %v7075 = vunpack.c.l.b16 %v535
        %v7076 = vunpack.c.l.b16 %v536
        %v7077 = vunpack.c.l.b16 %v537
        %v7078 = vunpack.c.l.b16 %v538
        %v7079 = vunpack.c.l.b16 %v539
        %v7080 = vunpack.c.l.b16 %v540
        %v7081 = vunpack.c.l.b16 %v541
        %v7082 = vunpack.c.l.b16 %v542
        %v7083 = vunpack.c.l.b16 %v543
        %v7084 = vunpack.c.l.b16 %v544
        %v7085 = vunpack.c.l.b16 %v545
        %v7086 = vpack.c.b16 %v7071, %v7070
        %v7087 = vpack.c.b16 %v7073, %v7072
        %v7088 = vpack.c.b16 %v7075, %v7074
        %v7089 = vpack.c.b16 %v7077, %v7076
        %v7090 = vpack.c.b16 %v7079, %v7078
        %v7091 = vpack.c.b16 %v7081, %v7080
        %v7092 = vpack.c.b16 %v7083, %v7082
        %v7093 = vpack.c.b16 %v7085, %v7084
        %7102 = vmatprep.subr.bf16.mxu0 0
        %7103 = vmatpush1.bf16.msra.mxu0 %v7086
        %7104 = vmatprep.subr.bf16.mxu0 0
        %7105 = vmatpush1.bf16.msra.mxu0 %v7087
        %7106 = vmatprep.subr.bf16.mxu0 0
        %7107 = vmatpush1.bf16.msra.mxu0 %v7088
        %7108 = vmatprep.subr.bf16.mxu0 0
        %7109 = vmatpush1.bf16.msra.mxu0 %v7089
        %7110 = vmatprep.subr.bf16.mxu0 0
        %7111 = vmatpush1.bf16.msra.mxu0 %v7090
        %7112 = vmatprep.subr.bf16.mxu0 0
        %7113 = vmatpush1.bf16.msra.mxu0 %v7091
        %7114 = vmatprep.subr.bf16.mxu0 0
        %7115 = vmatpush1.bf16.msra.mxu0 %v7092
        %7116 = vmatprep.subr.bf16.mxu0 0
        %7117 = vmatpush1.bf16.msra.mxu0 %v7093
        %7118 = vmatprep.subr.bf16.mxu0 0
        %7119 = vmatpush1.bf16.msra.mxu0 0
        %7120 = vmatprep.subr.bf16.mxu0 0
        %7121 = vmatpush1.bf16.msra.mxu0 0
        %7122 = vmatprep.subr.bf16.mxu0 0
        %7123 = vmatpush1.bf16.msra.mxu0 0
        %7124 = vmatprep.subr.bf16.mxu0 0
        %7125 = vmatpush1.bf16.msra.mxu0 0
        %7126 = vmatprep.subr.bf16.mxu0 0
        %7127 = vmatpush1.bf16.msra.mxu0 0
        %7128 = vmatprep.subr.bf16.mxu0 0
        %7129 = vmatpush1.bf16.msra.mxu0 0
        %7130 = vmatprep.subr.bf16.mxu0 0
        %7131 = vmatpush1.bf16.msra.mxu0 0
        %7132 = vmatprep.subr.bf16.mxu0 0
        %7133 = vmatpush1.bf16.msra.mxu0 0
        %7134 = vmatprep.mubr.bf16.mxu0 0
        %7135 = vmatmul.mubr.bf16.gmra.mrb[0].mxu0 %v7046
        %v7136 = vpop.f32.mrb[0].mxu0
        %v7137 = vadd.f32 0.0, %v7136
        %v7138 = vpop.f32.mrb[0].mxu0
        %v7139 = vpop.f32.mrb[0].mxu0
        %v7140 = vadd.f32 0.0, %v7139
        %v7141 = vpop.f32.mrb[0].mxu0
        %7142 = vmatprep.mubr.bf16.mxu0 0
        %7143 = vmatmul.mubr.bf16.gmra.mrb[0].mxu0 %v7047
        %v7144 = vpop.f32.mrb[0].mxu0
        %v7145 = vadd.f32 0.0, %v7144
        %v7146 = vpop.f32.mrb[0].mxu0
        %v7147 = vpop.f32.mrb[0].mxu0
        %v7148 = vadd.f32 0.0, %v7147
        %v7149 = vpop.f32.mrb[0].mxu0
        %7150 = vmatprep.mubr.bf16.mxu0 0
        %7151 = vmatmul.mubr.bf16.gmra.mrb[0].mxu0 %v7048
        %v7152 = vpop.f32.mrb[0].mxu0
        %v7153 = vadd.f32 0.0, %v7152
        %v7154 = vpop.f32.mrb[0].mxu0
        %v7155 = vpop.f32.mrb[0].mxu0
        %v7156 = vadd.f32 0.0, %v7155
        %v7157 = vpop.f32.mrb[0].mxu0
        %7158 = vmatprep.mubr.bf16.mxu0 0
        %7159 = vmatmul.mubr.bf16.gmra.mrb[0].mxu0 %v7049
        %v7160 = vpop.f32.mrb[0].mxu0
        %v7161 = vadd.f32 0.0, %v7160
        %v7162 = vpop.f32.mrb[0].mxu0
        %v7163 = vpop.f32.mrb[0].mxu0
        %v7164 = vadd.f32 0.0, %v7163
        %v7165 = vpop.f32.mrb[0].mxu0
        %7166 = vmatprep.mubr.bf16.mxu0 0
        %7167 = vmatmul.mubr.bf16.gmra.mrb[0].mxu0 %v7050
        %v7168 = vpop.f32.mrb[0].mxu0
        %v7169 = vadd.f32 0.0, %v7168
        %v7170 = vpop.f32.mrb[0].mxu0
        %v7171 = vpop.f32.mrb[0].mxu0
        %v7172 = vadd.f32 0.0, %v7171
        %v7173 = vpop.f32.mrb[0].mxu0
        %7174 = vmatprep.mubr.bf16.mxu0 0
        %7175 = vmatmul.mubr.bf16.gmra.mrb[0].mxu0 %v7051
        %v7176 = vpop.f32.mrb[0].mxu0
        %v7177 = vadd.f32 0.0, %v7176
        %v7178 = vpop.f32.mrb[0].mxu0
        %v7179 = vpop.f32.mrb[0].mxu0
        %v7180 = vadd.f32 0.0, %v7179
        %v7181 = vpop.f32.mrb[0].mxu0
        %7182 = vmatprep.mubr.bf16.mxu0 0
        %7183 = vmatmul.mubr.bf16.gmra.mrb[0].mxu0 %v7052
        %v7184 = vpop.f32.mrb[0].mxu0
        %v7185 = vadd.f32 0.0, %v7184
        %v7186 = vpop.f32.mrb[0].mxu0
        %v7187 = vpop.f32.mrb[0].mxu0
        %v7188 = vadd.f32 0.0, %v7187
        %v7189 = vpop.f32.mrb[0].mxu0
        %7190 = vmatprep.mubr.bf16.mxu0 0
        %7191 = vmatmul.mubr.bf16.gmra.mrb[0].mxu0 %v7053
        %v7192 = vpop.f32.mrb[0].mxu0
        %v7193 = vadd.f32 0.0, %v7192
        %v7194 = vpop.f32.mrb[0].mxu0
        %v7195 = vpop.f32.mrb[0].mxu0
        %v7196 = vadd.f32 0.0, %v7195
        %v7197 = vpop.f32.mrb[0].mxu0
        %7198 = vdwg.mxu0
        %v7199 = vadd.f32 %v7030, %v7137
        %v7200 = vadd.f32 %v7031, %v7140
        %v7201 = vadd.f32 %v7032, %v7145
        %v7202 = vadd.f32 %v7033, %v7148
        %v7203 = vadd.f32 %v7034, %v7153
        %v7204 = vadd.f32 %v7035, %v7156
        %v7205 = vadd.f32 %v7036, %v7161
        %v7206 = vadd.f32 %v7037, %v7164
        %v7207 = vadd.f32 %v7038, %v7169
        %v7208 = vadd.f32 %v7039, %v7172
        %v7209 = vadd.f32 %v7040, %v7177
        %v7210 = vadd.f32 %v7041, %v7180
        %v7211 = vadd.f32 %v7042, %v7185
        %v7212 = vadd.f32 %v7043, %v7188
        %v7213 = vadd.f32 %v7044, %v7193
        %v7214 = vadd.f32 %v7045, %v7196
        %7215 = vst.msk [vmem:[#allocation4] sm:$0xff] %vm4721, %v7199
        %7216 = vst.msk [vmem:[#allocation4 + $0x8] sm:$0xff] %vm4721, %v7200
        %7217 = vst.msk [vmem:[#allocation4 + $0x10] sm:$0xff] %vm4721, %v7201
        %7218 = vst.msk [vmem:[#allocation4 + $0x18] sm:$0xff] %vm4721, %v7202
        %7219 = vst.msk [vmem:[#allocation4 + $0x20] sm:$0xff] %vm4721, %v7203
        %7220 = vst.msk [vmem:[#allocation4 + $0x28] sm:$0xff] %vm4721, %v7204
        %7221 = vst.msk [vmem:[#allocation4 + $0x30] sm:$0xff] %vm4721, %v7205
        %7222 = vst.msk [vmem:[#allocation4 + $0x38] sm:$0xff] %vm4721, %v7206
        %7223 = vst.msk [vmem:[#allocation4 + $0x40] sm:$0xff] %vm4721, %v7207
        %7224 = vst.msk [vmem:[#allocation4 + $0x48] sm:$0xff] %vm4721, %v7208
        %7225 = vst.msk [vmem:[#allocation4 + $0x50] sm:$0xff] %vm4721, %v7209
        %7226 = vst.msk [vmem:[#allocation4 + $0x58] sm:$0xff] %vm4721, %v7210
        %7227 = vst.msk [vmem:[#allocation4 + $0x60] sm:$0xff] %vm4721, %v7211
        %7228 = vst.msk [vmem:[#allocation4 + $0x68] sm:$0xff] %vm4721, %v7212
        %7229 = vst.msk [vmem:[#allocation4 + $0x70] sm:$0xff] %vm4721, %v7213
        %7230 = vst.msk [vmem:[#allocation4 + $0x78] sm:$0xff] %vm4721, %v7214
        %7231 = vst.msk [vmem:[#allocation2] sm:$0xff] %vm6917, %v6645
        %7232 = vst.msk [vmem:[#allocation2 + $0x8] sm:$0xff] %vm6917, %v6646
        %7233 = vst.msk [vmem:[#allocation2 + $0x10] sm:$0xff] %vm6917, %v6647
        %7234 = vst.msk [vmem:[#allocation2 + $0x18] sm:$0xff] %vm6917, %v6648
        %7235 = vst.msk [vmem:[#allocation2 + $0x20] sm:$0xff] %vm6917, %v6649
        %7236 = vst.msk [vmem:[#allocation2 + $0x28] sm:$0xff] %vm6917, %v6650
        %7237 = vst.msk [vmem:[#allocation2 + $0x30] sm:$0xff] %vm6917, %v6651
        %7238 = vst.msk [vmem:[#allocation2 + $0x38] sm:$0xff] %vm6917, %v6652
        %7239 = vst.msk [vmem:[#allocation2 + $0x40] sm:$0xff] %vm6917, %v6653
        %7240 = vst.msk [vmem:[#allocation2 + $0x48] sm:$0xff] %vm6917, %v6654
        %7241 = vst.msk [vmem:[#allocation2 + $0x50] sm:$0xff] %vm6917, %v6655
        %7242 = vst.msk [vmem:[#allocation2 + $0x58] sm:$0xff] %vm6917, %v6656
        %7243 = vst.msk [vmem:[#allocation2 + $0x60] sm:$0xff] %vm6917, %v6657
        %7244 = vst.msk [vmem:[#allocation2 + $0x68] sm:$0xff] %vm6917, %v6658
        %7245 = vst.msk [vmem:[#allocation2 + $0x70] sm:$0xff] %vm6917, %v6659
        %7246 = vst.msk [vmem:[#allocation2 + $0x78] sm:$0xff] %vm6917, %v6660
        %p7247 = scmp.eq.s32.totalorder %s25, 1
        // Predicated region
        $region86: #{attention_forward.4} parent=76 // pred_check
          %p7248 = pneg %p7247
        $region87: #{attention_forward.4} parent=76 // pred_check_branch
          %7250 = sbr.rel (%p7248) target = $region89
        $region88: #{attention_forward.4} parent=76 // pred_region
          %v7251 = vld [vmem:[#allocation4] sm:$0xff]
          %v7252 = vld [vmem:[#allocation4 + $0x8] sm:$0xff]
          %v7253 = vld [vmem:[#allocation4 + $0x10] sm:$0xff]
          %v7254 = vld [vmem:[#allocation4 + $0x18] sm:$0xff]
          %v7255 = vld [vmem:[#allocation4 + $0x20] sm:$0xff]
          %v7256 = vld [vmem:[#allocation4 + $0x28] sm:$0xff]
          %v7257 = vld [vmem:[#allocation4 + $0x30] sm:$0xff]
          %v7258 = vld [vmem:[#allocation4 + $0x38] sm:$0xff]
          %v7259 = vld [vmem:[#allocation4 + $0x40] sm:$0xff]
          %v7260 = vld [vmem:[#allocation4 + $0x48] sm:$0xff]
          %v7261 = vld [vmem:[#allocation4 + $0x50] sm:$0xff]
          %v7262 = vld [vmem:[#allocation4 + $0x58] sm:$0xff]
          %v7263 = vld [vmem:[#allocation4 + $0x60] sm:$0xff]
          %v7264 = vld [vmem:[#allocation4 + $0x68] sm:$0xff]
          %v7265 = vld [vmem:[#allocation4 + $0x70] sm:$0xff]
          %v7266 = vld [vmem:[#allocation4 + $0x78] sm:$0xff]
          %v7267 = vld [vmem:[#allocation3] sm:$0xff]
          %v7268 = vld [vmem:[#allocation3 + $0x8] sm:$0xff]
          %v7269 = vld [vmem:[#allocation3 + $0x10] sm:$0xff]
          %v7270 = vld [vmem:[#allocation3 + $0x18] sm:$0xff]
          %v7271 = vld [vmem:[#allocation3 + $0x20] sm:$0xff]
          %v7272 = vld [vmem:[#allocation3 + $0x28] sm:$0xff]
          %v7273 = vld [vmem:[#allocation3 + $0x30] sm:$0xff]
          %v7274 = vld [vmem:[#allocation3 + $0x38] sm:$0xff]
          %v7275 = vld [vmem:[#allocation3 + $0x40] sm:$0xff]
          %v7276 = vld [vmem:[#allocation3 + $0x48] sm:$0xff]
          %v7277 = vld [vmem:[#allocation3 + $0x50] sm:$0xff]
          %v7278 = vld [vmem:[#allocation3 + $0x58] sm:$0xff]
          %v7279 = vld [vmem:[#allocation3 + $0x60] sm:$0xff]
          %v7280 = vld [vmem:[#allocation3 + $0x68] sm:$0xff]
          %v7281 = vld [vmem:[#allocation3 + $0x70] sm:$0xff]
          %v7282 = vld [vmem:[#allocation3 + $0x78] sm:$0xff]
          %v7283 = vrcp.pop %v7267
          %v7284 = vrcp.pop %v7268
          %v7285 = vrcp.pop %v7269
          %v7286 = vrcp.pop %v7270
          %v7287 = vrcp.pop %v7271
          %v7288 = vrcp.pop %v7272
          %v7289 = vrcp.pop %v7273
          %v7290 = vrcp.pop %v7274
          %v7291 = vrcp.pop %v7275
          %v7292 = vrcp.pop %v7276
          %v7293 = vrcp.pop %v7277
          %v7294 = vrcp.pop %v7278
          %v7295 = vrcp.pop %v7279
          %v7296 = vrcp.pop %v7280
          %v7297 = vrcp.pop %v7281
          %v7298 = vrcp.pop %v7282
          %7300 = vset.pattern.permute.xlu0 0
          %7301 = vperm.xlu0 %7300, %v7283
          %v7302 = vpop.permute.xlu0 %7301
          %7305 = vset.pattern.permute.xlu0 0
          %7306 = vperm.xlu0 %7305, %v7284
          %v7307 = vpop.permute.xlu0 %7306
          %7310 = vset.pattern.permute.xlu0 0
          %7311 = vperm.xlu0 %7310, %v7285
          %v7312 = vpop.permute.xlu0 %7311
          %7315 = vset.pattern.permute.xlu0 0
          %7316 = vperm.xlu0 %7315, %v7286
          %v7317 = vpop.permute.xlu0 %7316
          %7320 = vset.pattern.permute.xlu0 0
          %7321 = vperm.xlu0 %7320, %v7287
          %v7322 = vpop.permute.xlu0 %7321
          %7325 = vset.pattern.permute.xlu0 0
          %7326 = vperm.xlu0 %7325, %v7288
          %v7327 = vpop.permute.xlu0 %7326
          %7330 = vset.pattern.permute.xlu0 0
          %7331 = vperm.xlu0 %7330, %v7289
          %v7332 = vpop.permute.xlu0 %7331
          %7335 = vset.pattern.permute.xlu0 0
          %7336 = vperm.xlu0 %7335, %v7290
          %v7337 = vpop.permute.xlu0 %7336
          %7340 = vset.pattern.permute.xlu0 0
          %7341 = vperm.xlu0 %7340, %v7291
          %v7342 = vpop.permute.xlu0 %7341
          %7345 = vset.pattern.permute.xlu0 0
          %7346 = vperm.xlu0 %7345, %v7292
          %v7347 = vpop.permute.xlu0 %7346
          %7350 = vset.pattern.permute.xlu0 0
          %7351 = vperm.xlu0 %7350, %v7293
          %v7352 = vpop.permute.xlu0 %7351
          %7355 = vset.pattern.permute.xlu0 0
          %7356 = vperm.xlu0 %7355, %v7294
          %v7357 = vpop.permute.xlu0 %7356
          %7360 = vset.pattern.permute.xlu0 0
          %7361 = vperm.xlu0 %7360, %v7295
          %v7362 = vpop.permute.xlu0 %7361
          %7365 = vset.pattern.permute.xlu0 0
          %7366 = vperm.xlu0 %7365, %v7296
          %v7367 = vpop.permute.xlu0 %7366
          %7370 = vset.pattern.permute.xlu0 0
          %7371 = vperm.xlu0 %7370, %v7297
          %v7372 = vpop.permute.xlu0 %7371
          %7375 = vset.pattern.permute.xlu0 0
          %7376 = vperm.xlu0 %7375, %v7298
          %v7377 = vpop.permute.xlu0 %7376
          %v7379 = vmul.f32 %v7251, %v7302
          %v7380 = vmul.f32 %v7252, %v7307
          %v7381 = vmul.f32 %v7253, %v7312
          %v7382 = vmul.f32 %v7254, %v7317
          %v7383 = vmul.f32 %v7255, %v7322
          %v7384 = vmul.f32 %v7256, %v7327
          %v7385 = vmul.f32 %v7257, %v7332
          %v7386 = vmul.f32 %v7258, %v7337
          %v7387 = vmul.f32 %v7259, %v7342
          %v7388 = vmul.f32 %v7260, %v7347
          %v7389 = vmul.f32 %v7261, %v7352
          %v7390 = vmul.f32 %v7262, %v7357
          %v7391 = vmul.f32 %v7263, %v7362
          %v7392 = vmul.f32 %v7264, %v7367
          %v7393 = vmul.f32 %v7265, %v7372
          %v7394 = vmul.f32 %v7266, %v7377
          %v7395 = vpack.c.bf16 %v7380, %v7379
          %v7396 = vpack.c.bf16 %v7382, %v7381
          %v7397 = vpack.c.bf16 %v7384, %v7383
          %v7398 = vpack.c.bf16 %v7386, %v7385
          %v7399 = vpack.c.bf16 %v7388, %v7387
          %v7400 = vpack.c.bf16 %v7390, %v7389
          %v7401 = vpack.c.bf16 %v7392, %v7391
          %v7402 = vpack.c.bf16 %v7394, %v7393
          %v7411 = vunpack.c.l.b16 %v7395
          %v7412 = vunpack.c.h.b16 %v7395
          %v7413 = vunpack.c.l.b16 %v7396
          %v7414 = vunpack.c.h.b16 %v7396
          %v7415 = vunpack.c.l.b16 %v7397
          %v7416 = vunpack.c.h.b16 %v7397
          %v7417 = vunpack.c.l.b16 %v7398
          %v7418 = vunpack.c.h.b16 %v7398
          %v7419 = vunpack.c.l.b16 %v7399
          %v7420 = vunpack.c.h.b16 %v7399
          %v7421 = vunpack.c.l.b16 %v7400
          %v7422 = vunpack.c.h.b16 %v7400
          %v7423 = vunpack.c.l.b16 %v7401
          %v7424 = vunpack.c.h.b16 %v7401
          %v7425 = vunpack.c.l.b16 %v7402
          %v7426 = vunpack.c.h.b16 %v7402
          %v7427 = vpack.c.b16 %v7411, %v7411
          %v7428 = vpack.c.b16 %v7412, %v7412
          %v7429 = vpack.c.b16 %v7413, %v7413
          %v7430 = vpack.c.b16 %v7414, %v7414
          %v7431 = vpack.c.b16 %v7415, %v7415
          %v7432 = vpack.c.b16 %v7416, %v7416
          %v7433 = vpack.c.b16 %v7417, %v7417
          %v7434 = vpack.c.b16 %v7418, %v7418
          %v7435 = vpack.c.b16 %v7419, %v7419
          %v7436 = vpack.c.b16 %v7420, %v7420
          %v7437 = vpack.c.b16 %v7421, %v7421
          %v7438 = vpack.c.b16 %v7422, %v7422
          %v7439 = vpack.c.b16 %v7423, %v7423
          %v7440 = vpack.c.b16 %v7424, %v7424
          %v7441 = vpack.c.b16 %v7425, %v7425
          %v7442 = vpack.c.b16 %v7426, %v7426
          %vm7459 = vcmask 60416
          %7460 = vst.msk [vmem:[%s495] sm:$0xf] %vm7459, %v7427
          %7461 = vst.msk [vmem:[%s495 + $0x4] sm:$0xf] %vm7459, %v7428
          %7462 = vst.msk [vmem:[%s495 + $0x8] sm:$0xf] %vm7459, %v7429
          %7463 = vst.msk [vmem:[%s495 + $0xc] sm:$0xf] %vm7459, %v7430
          %7464 = vst.msk [vmem:[%s495 + $0x10] sm:$0xf] %vm7459, %v7431
          %7465 = vst.msk [vmem:[%s495 + $0x14] sm:$0xf] %vm7459, %v7432
          %7466 = vst.msk [vmem:[%s495 + $0x18] sm:$0xf] %vm7459, %v7433
          %7467 = vst.msk [vmem:[%s495 + $0x1c] sm:$0xf] %vm7459, %v7434
          %7468 = vst.msk [vmem:[%s495 + $0x20] sm:$0xf] %vm7459, %v7435
          %7469 = vst.msk [vmem:[%s495 + $0x24] sm:$0xf] %vm7459, %v7436
          %7470 = vst.msk [vmem:[%s495 + $0x28] sm:$0xf] %vm7459, %v7437
          %7471 = vst.msk [vmem:[%s495 + $0x2c] sm:$0xf] %vm7459, %v7438
          %7472 = vst.msk [vmem:[%s495 + $0x30] sm:$0xf] %vm7459, %v7439
          %7473 = vst.msk [vmem:[%s495 + $0x34] sm:$0xf] %vm7459, %v7440
          %7474 = vst.msk [vmem:[%s495 + $0x38] sm:$0xf] %vm7459, %v7441
          %7475 = vst.msk [vmem:[%s495 + $0x3c] sm:$0xf] %vm7459, %v7442
        $region89: #{attention_forward.4} parent=76 // pred_fallthru
          _
        %s7476 = smul.u32 16, %s24
        %p7477 = scmp.lt.s32.totalorder %s22, 1
        %s7478 = scalar_select %p7477, %s22, 1
        %p7479 = scmp.lt.s32.totalorder %s23, 3
        %s7480 = scalar_select %p7479, %s23, 3
        %p7481 = scmp.lt.s32.totalorder %s7476, 31
        %s7482 = scalar_select %p7481, %s7476, 31
        %s7483 = smul.addr %s7480, 32
        %s7484 = sadd.s32 %s7482, %s7483
        %s7485 = smul.addr %s7478, 128
        %s7486 = sadd.s32 %s7484, %s7485
        %s7487 = smul.addr %s7486, 4
        %s7488 = scalar_lea.vmem %s5, %s7487
        // Predicated region
        $region90: #{attention_forward.4} parent=76 // pred_check
          %p7489 = pneg %p203
        $region91: #{attention_forward.4} parent=76 // pred_check_branch
          %7491 = sbr.rel (%p7489) target = $region93
        $region92: #{attention_forward.4} parent=76 // pred_region
          %s7492 = smul.u32 16, %s24
        $region93: #{attention_forward.4} parent=76 // pred_fallthru
          _
      $region77: #{attention_forward.4} parent=5 // pred_fallthru
        _
      %p7493 = scmp.le.s32.totalorder 2, %s11
      // Predicated region
      $region94: #{attention_forward.4} parent=5 // pred_check
        %p7494 = pneg %p7493
      $region95: #{attention_forward.4} parent=5 // pred_check_branch
        %7496 = sbr.rel (%p7494) target = $region97
      $region96: #{attention_forward.4} parent=5 // pred_region
        %s7497 = ssub.s32 %s11, 2
        // Predicated region
        $region98: #{attention_forward.4} parent=96 // pred_check
          %p7498 = pneg %p209
        $region99: #{attention_forward.4} parent=96 // pred_check_branch
          %7500 = sbr.rel (%p7498) target = $region101
        $region100: #{attention_forward.4} parent=96 // pred_region
          %s7501 = smul.u32 16, %s28
          %p7502 = scmp.lt.s32.totalorder %s26, 1
          %s7503 = scalar_select %p7502, %s26, 1
          %p7504 = scmp.lt.s32.totalorder %s27, 3
          %s7505 = scalar_select %p7504, %s27, 3
          %p7506 = scmp.lt.s32.totalorder %s7501, 31
          %s7507 = scalar_select %p7506, %s7501, 31
          %s7508 = smul.addr %s7505, 32
          %s7509 = sadd.s32 %s7507, %s7508
          %s7510 = smul.addr %s7503, 128
          %s7511 = sadd.s32 %s7509, %s7510
          %s7512 = smul.addr %s7511, 4
          %s7513 = scalar_lea.vmem %s5, %s7512
        $region101: #{attention_forward.4} parent=96 // pred_fallthru
          _
      $region97: #{attention_forward.4} parent=5 // pred_fallthru
        _
    $region6: #{attention_forward.4} parent=1 // loop_footer
      %s15 = sadd.s32 1, %s11
    $region7: #{attention_forward.4} parent=1 // loop_footer_branch
      %10 = sbr.rel target = $region3
    $region8: #{attention_forward.4} parent=1 // loop_exit
      _

</llo_original>
